<compile_context>
chip_gen: v7x
topology: tpu7x:2x2x1
jax: 0.10.0
libtpu: 0.0.40
codegen_flags: <defaults>
</compile_context>

<pallas_src>
import functools

import jax
import jax.numpy as jnp
from jax import lax
from jax.experimental import pallas as pl
from jax.experimental.pallas import tpu as pltpu

# ----------------------- small, module-consistent config -----------------------
IN_CHANNELS = 3
IMAGE_SIZE = 16
PATCH = 4
DIM = 32
FF_DIM = 64
NUM_HEADS = 4
NUM_LAYERS = 2
BATCH = 2

GH = IMAGE_SIZE // PATCH          # patches per side
SEQ_PATCH = GH * GH               # number of patches
SEQ = SEQ_PATCH + 1               # + class token
PATCH_DIM = IN_CHANNELS * PATCH * PATCH
D_HEAD = DIM // NUM_HEADS
LN_EPS = 1e-6

NBLK = 2 * NUM_LAYERS             # interleaved [origin_0, cloned_0, origin_1, cloned_1]
NTOK = BATCH * SEQ                # all tokens of the whole batch (34)
NCOL = NUM_HEADS * NTOK           # packed (head, key-token) score columns (136)


# ----------------------------- in-kernel helpers -----------------------------
def _layernorm(h, g, b):
    mu = jnp.mean(h, axis=-1, keepdims=True)
    var = jnp.mean((h - mu) ** 2, axis=-1, keepdims=True)
    return (h - mu) * lax.rsqrt(var + LN_EPS) * g + b


def _gelu_exact(x):
    # matches pytorch_pretrained_vit gelu: x * 0.5 * (1 + erf(x / sqrt(2)))
    return x * 0.5 * (1.0 + lax.erf(x / jnp.sqrt(jnp.float32(2.0))))


# ------------------------------ fused kernel ------------------------------
def fused_vit_kernel(
        patches_ref, pw_ref, pb_ref, scatter_ref, tok_bias_ref,
        rep_ref, head_mask_ref, attn_bias_ref, denom_fix_ref, gsum_ref,
        ln1g_ref, ln1b_ref, wqkv_ref, bqkv_ref, wo_ref, bo_ref,
        ln2g_ref, ln2b_ref, w1_ref, b1_ref, w2_ref, b2_ref,
        origin_ref, cloned_ref):
    f32 = jnp.float32

    # --- patch embedding + cls token + positional embedding (all in VMEM) ---
    emb = jnp.dot(patches_ref[...], pw_ref[...], preferred_element_type=f32) + pb_ref[...]
    # scatter patch rows into token rows (cls rows stay 0), then add cls+pos bias
    x = jnp.dot(scatter_ref[...], emb, preferred_element_type=f32) + tok_bias_ref[...]

    rep = rep_ref[...]               # (NCOL, NTOK)  replicate K/V rows once per head
    head_mask = head_mask_ref[...]   # (NCOL, DIM)   keep only that head's feature slice
    attn_bias = attn_bias_ref[...]   # (NTOK, NCOL)  0 same-batch / -1e9 cross-batch
    denom_fix = denom_fix_ref[...]   # (NTOK, NCOL)  0 same-batch / 1 cross-batch
    gsum = gsum_ref[...]             # (NCOL, NCOL)  per-(head,batch) group-sum matrix
    scale = 1.0 / float(D_HEAD) ** 0.5

    def run_block(xin, bi):
        # --- multi-head self-attention (pre-LN), all heads & batches packed ---
        h = _layernorm(xin, ln1g_ref[bi], ln1b_ref[bi])
        qkv = jnp.dot(h, wqkv_ref[bi], preferred_element_type=f32) + bqkv_ref[bi]
        q = qkv[:, 0:DIM] * scale
        k = qkv[:, DIM:2 * DIM]
        v = qkv[:, 2 * DIM:3 * DIM]
        kp = jnp.dot(rep, k, preferred_element_type=f32) * head_mask   # (NCOL, DIM)
        vp = jnp.dot(rep, v, preferred_element_type=f32) * head_mask   # (NCOL, DIM)
        # scores for every (head, key) column in one NT matmul
        s = lax.dot_general(q, kp, (((1,), (1,)), ((), ())),
                            preferred_element_type=f32) + attn_bias    # (NTOK, NCOL)
        m = jnp.max(s, axis=-1, keepdims=True)          # per-row shift (exact softmax)
        p = jnp.exp(s - m)                              # cross-batch columns underflow to 0
        denom = jnp.dot(p, gsum, preferred_element_type=f32) + denom_fix
        p = p * pl.reciprocal(denom, approx=True)
        ctx = jnp.dot(p, vp, preferred_element_type=f32)               # (NTOK, DIM), heads in place
        attn = jnp.dot(ctx, wo_ref[bi], preferred_element_type=f32) + bo_ref[bi]
        x1 = xin + attn                                  # residual

        # --- position-wise feed forward (pre-LN) ---
        h2 = _layernorm(x1, ln2g_ref[bi], ln2b_ref[bi])
        h2 = jnp.dot(h2, w1_ref[bi], preferred_element_type=f32) + b1_ref[bi]
        h2 = _gelu_exact(h2)
        h2 = jnp.dot(h2, w2_ref[bi], preferred_element_type=f32) + b2_ref[bi]
        return x1 + h2                                   # residual

    for li in range(NUM_LAYERS):
        cloned = run_block(x, 2 * li + 1)   # cloned block sees the same per-layer input
        x = run_block(x, 2 * li)            # origin chain
        origin_ref[li] = x
        cloned_ref[li] = cloned


# ----------------------------- wrapper -----------------------------
def _structural_constants():
    tok = jnp.arange(NTOK)
    patch = jnp.arange(BATCH * SEQ_PATCH)
    col = jnp.arange(NCOL)
    d = jnp.arange(DIM)

    # token <- patch scatter (cls rows all-zero)
    scatter = ((tok[:, None] // SEQ == patch[None, :] // SEQ_PATCH)
               & (tok[:, None] % SEQ == patch[None, :] % SEQ_PATCH + 1)).astype(jnp.float32)
    # replicate the NTOK key/value rows once per head
    rep = (col[:, None] % NTOK == tok[None, :]).astype(jnp.float32)
    # keep only head h's feature slice in replica h
    head_mask = (col[:, None] // NTOK == d[None, :] // D_HEAD).astype(jnp.float32)
    # a query token may only attend to key tokens of the same batch element
    same_batch = (tok[:, None] // SEQ) == ((col[None, :] % NTOK) // SEQ)
    attn_bias = jnp.where(same_batch, 0.0, -1e9).astype(jnp.float32)
    denom_fix = jnp.where(same_batch, 0.0, 1.0).astype(jnp.float32)
    # softmax groups: columns share a group iff same (head, batch) -> same col//SEQ
    gsum = (col[:, None] // SEQ == col[None, :] // SEQ).astype(jnp.float32)
    return scatter, rep, head_mask, attn_bias, denom_fix, gsum


def _full_spec(arr):
    zeros = (0,) * arr.ndim
    return pl.BlockSpec(arr.shape, lambda i, _z=zeros: _z)


def anomaly_vit_forward(x_nchw, params):
    """x_nchw: (B, C, H, W) float32, PyTorch NCHW layout."""
    b = x_nchw.shape[0]
    assert b == BATCH, "static config expects BATCH images"

    # conv(kernel=stride=patch) == per-patch flatten + matmul, flatten order (c, fh, fw)
    patches = x_nchw.reshape(b, IN_CHANNELS, GH, PATCH, GH, PATCH)
    patches = patches.transpose(0, 2, 4, 1, 3, 5).reshape(b * SEQ_PATCH, PATCH_DIM)

    scatter, rep, head_mask, attn_bias, denom_fix, gsum = _structural_constants()
    # class token + positional embedding folded into one additive per-token bias
    cls_row = params["class_token"] + params["pos_embedding"][0:1]
    tok_bias = jnp.concatenate(
        [jnp.concatenate([cls_row, params["pos_embedding"][1:]], axis=0)] * b, axis=0)

    args = (patches, params["patch_w"], params["patch_b"], scatter, tok_bias,
            rep, head_mask, attn_bias, denom_fix, gsum,
            params["ln1_g"], params["ln1_b"], params["w_qkv"], params["b_qkv"],
            params["w_o"], params["b_o"], params["ln2_g"], params["ln2_b"],
            params["w_1"], params["b_1"], params["w_2"], params["b_2"])

    out_sds = jax.ShapeDtypeStruct((NUM_LAYERS, NTOK, DIM), jnp.float32)
    origin, cloned = pl.pallas_call(
        fused_vit_kernel,
        out_shape=(out_sds, out_sds),
        grid=(1,),
        in_specs=[_full_spec(a) for a in args],
        out_specs=(pl.BlockSpec((NUM_LAYERS, NTOK, DIM), lambda i: (0, 0, 0)),
                   pl.BlockSpec((NUM_LAYERS, NTOK, DIM), lambda i: (0, 0, 0))),
        compiler_params=pltpu.CompilerParams(dimension_semantics=("arbitrary",)),
    )(*args)
    return (origin.reshape(NUM_LAYERS, b, SEQ, DIM),
            cloned.reshape(NUM_LAYERS, b, SEQ, DIM))


# ----------------------------- deterministic init -----------------------------
def _xavier_uniform(key, fan_in, fan_out):
    bound = (6.0 / (fan_in + fan_out)) ** 0.5
    return jax.random.uniform(key, (fan_in, fan_out), jnp.float32, -bound, bound)


def _bias(key, n):
    return 1e-6 * jax.random.normal(key, (1, n), jnp.float32)


def _init_block(key):
    ks = jax.random.split(key, 12)
    wq, wk, wv = (_xavier_uniform(ks[i], DIM, DIM) for i in (0, 2, 4))
    bq, bk, bv = (_bias(ks[i], DIM) for i in (1, 3, 5))
    return {
        "ln1_g": jnp.ones((1, DIM), jnp.float32),
        "ln1_b": jnp.zeros((1, DIM), jnp.float32),
        "w_qkv": jnp.concatenate([wq, wk, wv], axis=1),
        "b_qkv": jnp.concatenate([bq, bk, bv], axis=1),
        "w_o": _xavier_uniform(ks[6], DIM, DIM),
        "b_o": _bias(ks[7], DIM),
        "ln2_g": jnp.ones((1, DIM), jnp.float32),
        "ln2_b": jnp.zeros((1, DIM), jnp.float32),
        "w_1": _xavier_uniform(ks[8], DIM, FF_DIM),
        "b_1": _bias(ks[9], FF_DIM),
        "w_2": _xavier_uniform(ks[10], FF_DIM, DIM),
        "b_2": _bias(ks[11], DIM),
    }


def init_params(key):
    kconv, kcb, kpos, kblocks, kcloned = jax.random.split(key, 5)
    conv_bound = 1.0 / (PATCH_DIM ** 0.5)
    origin = [_init_block(k) for k in jax.random.split(kblocks, NUM_LAYERS)]
    cloned = [_init_block(k) for k in jax.random.split(kcloned, NUM_LAYERS)]
    interleaved = []
    for l in range(NUM_LAYERS):
        interleaved += [origin[l], cloned[l]]
    stacked = {name: jnp.stack([blk[name] for blk in interleaved], axis=0)
               for name in interleaved[0]}
    return {
        # conv weight stored pre-flattened as (PATCH_DIM, DIM), (c, fh, fw) order
        "patch_w": jax.random.uniform(kconv, (PATCH_DIM, DIM), jnp.float32,
                                      -conv_bound, conv_bound),
        "patch_b": jax.random.uniform(kcb, (1, DIM), jnp.float32,
                                      -conv_bound, conv_bound),
        "class_token": jnp.zeros((1, DIM), jnp.float32),
        "pos_embedding": 0.02 * jax.random.normal(kpos, (SEQ, DIM), jnp.float32),
        **stacked,
    }


# ----------------------------- main -----------------------------
if __name__ == "__main__":
    key = jax.random.PRNGKey(0)
    pkey, xkey = jax.random.split(key)
    params = init_params(pkey)
    x = jax.random.normal(
        xkey, (BATCH, IN_CHANNELS, IMAGE_SIZE, IMAGE_SIZE), jnp.float32)

    fwd = jax.jit(functools.partial(anomaly_vit_forward, params=params))
    origin_block_outputs, cloned_block_outputs = fwd(x)
    jax.block_until_ready((origin_block_outputs, cloned_block_outputs))

    assert origin_block_outputs.shape == (NUM_LAYERS, BATCH, SEQ, DIM)
    assert cloned_block_outputs.shape == (NUM_LAYERS, BATCH, SEQ, DIM)
    assert origin_block_outputs.dtype == jnp.float32
    assert bool(jnp.all(jnp.isfinite(origin_block_outputs)))
    assert bool(jnp.all(jnp.isfinite(cloned_block_outputs)))

    print("KERNEL_OK")
</pallas_src>

<mosaic_0001>
module attributes {stable_mosaic.version = 11 : i64} {
  func.func @fused_vit_kernel(%arg0: i32, %arg1: memref<32x48xf32, #tpu.memory_space<vmem>>, %arg2: memref<48x32xf32, #tpu.memory_space<vmem>>, %arg3: memref<1x32xf32, #tpu.memory_space<vmem>>, %arg4: memref<34x32xf32, #tpu.memory_space<vmem>>, %arg5: memref<34x32xf32, #tpu.memory_space<vmem>>, %arg6: memref<136x34xf32, #tpu.memory_space<vmem>>, %arg7: memref<136x32xf32, #tpu.memory_space<vmem>>, %arg8: memref<34x136xf32, #tpu.memory_space<vmem>>, %arg9: memref<34x136xf32, #tpu.memory_space<vmem>>, %arg10: memref<136x136xf32, #tpu.memory_space<vmem>>, %arg11: memref<4x1x32xf32, #tpu.memory_space<vmem>>, %arg12: memref<4x1x32xf32, #tpu.memory_space<vmem>>, %arg13: memref<4x32x96xf32, #tpu.memory_space<vmem>>, %arg14: memref<4x1x96xf32, #tpu.memory_space<vmem>>, %arg15: memref<4x32x32xf32, #tpu.memory_space<vmem>>, %arg16: memref<4x1x32xf32, #tpu.memory_space<vmem>>, %arg17: memref<4x1x32xf32, #tpu.memory_space<vmem>>, %arg18: memref<4x1x32xf32, #tpu.memory_space<vmem>>, %arg19: memref<4x32x64xf32, #tpu.memory_space<vmem>>, %arg20: memref<4x1x64xf32, #tpu.memory_space<vmem>>, %arg21: memref<4x64x32xf32, #tpu.memory_space<vmem>>, %arg22: memref<4x1x32xf32, #tpu.memory_space<vmem>>, %arg23: memref<2x34x32xf32, #tpu.memory_space<vmem>>, %arg24: memref<2x34x32xf32, #tpu.memory_space<vmem>>) attributes {dimension_semantics = [#tpu.dimension_semantics<arbitrary>], iteration_bounds = array<i64: 1>, scalar_prefetch = 0 : i64, scratch_operands = 0 : i64, tpu.core_type = #tpu.core_type<tc>, window_params = [{pipeline_mode = #tpu.pipeline_mode<synchronous>, transform_indices = @transform_0, window_bounds = array<i64: 32, 48>}, {pipeline_mode = #tpu.pipeline_mode<synchronous>, transform_indices = @transform_1, window_bounds = array<i64: 48, 32>}, {pipeline_mode = #tpu.pipeline_mode<synchronous>, transform_indices = @transform_2, window_bounds = array<i64: 1, 32>}, {pipeline_mode = #tpu.pipeline_mode<synchronous>, transform_indices = @transform_3, window_bounds = array<i64: 34, 32>}, {pipeline_mode = #tpu.pipeline_mode<synchronous>, transform_indices = @transform_4, window_bounds = array<i64: 34, 32>}, {pipeline_mode = #tpu.pipeline_mode<synchronous>, transform_indices = @transform_5, window_bounds = array<i64: 136, 34>}, {pipeline_mode = #tpu.pipeline_mode<synchronous>, transform_indices = @transform_6, window_bounds = array<i64: 136, 32>}, {pipeline_mode = #tpu.pipeline_mode<synchronous>, transform_indices = @transform_7, window_bounds = array<i64: 34, 136>}, {pipeline_mode = #tpu.pipeline_mode<synchronous>, transform_indices = @transform_8, window_bounds = array<i64: 34, 136>}, {pipeline_mode = #tpu.pipeline_mode<synchronous>, transform_indices = @transform_9, window_bounds = array<i64: 136, 136>}, {pipeline_mode = #tpu.pipeline_mode<synchronous>, transform_indices = @transform_10, window_bounds = array<i64: 4, 1, 32>}, {pipeline_mode = #tpu.pipeline_mode<synchronous>, transform_indices = @transform_11, window_bounds = array<i64: 4, 1, 32>}, {pipeline_mode = #tpu.pipeline_mode<synchronous>, transform_indices = @transform_12, window_bounds = array<i64: 4, 32, 96>}, {pipeline_mode = #tpu.pipeline_mode<synchronous>, transform_indices = @transform_13, window_bounds = array<i64: 4, 1, 96>}, {pipeline_mode = #tpu.pipeline_mode<synchronous>, transform_indices = @transform_14, window_bounds = array<i64: 4, 32, 32>}, {pipeline_mode = #tpu.pipeline_mode<synchronous>, transform_indices = @transform_15, window_bounds = array<i64: 4, 1, 32>}, {pipeline_mode = #tpu.pipeline_mode<synchronous>, transform_indices = @transform_16, window_bounds = array<i64: 4, 1, 32>}, {pipeline_mode = #tpu.pipeline_mode<synchronous>, transform_indices = @transform_17, window_bounds = array<i64: 4, 1, 32>}, {pipeline_mode = #tpu.pipeline_mode<synchronous>, transform_indices = @transform_18, window_bounds = array<i64: 4, 32, 64>}, {pipeline_mode = #tpu.pipeline_mode<synchronous>, transform_indices = @transform_19, window_bounds = array<i64: 4, 1, 64>}, {pipeline_mode = #tpu.pipeline_mode<synchronous>, transform_indices = @transform_20, window_bounds = array<i64: 4, 64, 32>}, {pipeline_mode = #tpu.pipeline_mode<synchronous>, transform_indices = @transform_21, window_bounds = array<i64: 4, 1, 32>}, {pipeline_mode = #tpu.pipeline_mode<synchronous>, transform_indices = @transform_22, window_bounds = array<i64: 2, 34, 32>}, {pipeline_mode = #tpu.pipeline_mode<synchronous>, transform_indices = @transform_23, window_bounds = array<i64: 2, 34, 32>}]} {
    %c0 = arith.constant 0 : index
    %c0_0 = arith.constant 0 : index
    %0 = vector.load %arg1[%c0, %c0_0] : memref<32x48xf32, #tpu.memory_space<vmem>>, vector<32x48xf32>
    %c0_1 = arith.constant 0 : index
    %c0_2 = arith.constant 0 : index
    %1 = vector.load %arg2[%c0_1, %c0_2] : memref<48x32xf32, #tpu.memory_space<vmem>>, vector<48x32xf32>
    %cst = arith.constant dense<0.000000e+00> : vector<32x32xf32>
    %2 = tpu.matmul %0, %1, %cst {dimension_numbers = #tpu.dot_dimension_numbers<[1], [0], [0], [1], [0, 0, 1, 1], [], []>} : vector<32x48xf32>, vector<48x32xf32>, vector<32x32xf32> -> vector<32x32xf32>
    %c0_3 = arith.constant 0 : index
    %c0_4 = arith.constant 0 : index
    %3 = vector.load %arg3[%c0_3, %c0_4] : memref<1x32xf32, #tpu.memory_space<vmem>>, vector<1x32xf32>
    %4 = vector.broadcast %3 : vector<1x32xf32> to vector<32x32xf32>
    %5 = arith.addf %2, %4 : vector<32x32xf32>
    %c0_5 = arith.constant 0 : index
    %c0_6 = arith.constant 0 : index
    %6 = vector.load %arg4[%c0_5, %c0_6] : memref<34x32xf32, #tpu.memory_space<vmem>>, vector<34x32xf32>
    %cst_7 = arith.constant dense<0.000000e+00> : vector<34x32xf32>
    %7 = tpu.matmul %6, %5, %cst_7 {dimension_numbers = #tpu.dot_dimension_numbers<[1], [0], [0], [1], [0, 0, 1, 1], [], []>} : vector<34x32xf32>, vector<32x32xf32>, vector<34x32xf32> -> vector<34x32xf32>
    %c0_8 = arith.constant 0 : index
    %c0_9 = arith.constant 0 : index
    %8 = vector.load %arg5[%c0_8, %c0_9] : memref<34x32xf32, #tpu.memory_space<vmem>>, vector<34x32xf32>
    %9 = arith.addf %7, %8 : vector<34x32xf32>
    %c0_10 = arith.constant 0 : index
    %c0_11 = arith.constant 0 : index
    %10 = vector.load %arg6[%c0_10, %c0_11] : memref<136x34xf32, #tpu.memory_space<vmem>>, vector<136x34xf32>
    %c0_12 = arith.constant 0 : index
    %c0_13 = arith.constant 0 : index
    %11 = vector.load %arg7[%c0_12, %c0_13] : memref<136x32xf32, #tpu.memory_space<vmem>>, vector<136x32xf32>
    %c0_14 = arith.constant 0 : index
    %c0_15 = arith.constant 0 : index
    %12 = vector.load %arg8[%c0_14, %c0_15] : memref<34x136xf32, #tpu.memory_space<vmem>>, vector<34x136xf32>
    %c0_16 = arith.constant 0 : index
    %c0_17 = arith.constant 0 : index
    %13 = vector.load %arg9[%c0_16, %c0_17] : memref<34x136xf32, #tpu.memory_space<vmem>>, vector<34x136xf32>
    %c0_18 = arith.constant 0 : index
    %c0_19 = arith.constant 0 : index
    %14 = vector.load %arg10[%c0_18, %c0_19] : memref<136x136xf32, #tpu.memory_space<vmem>>, vector<136x136xf32>
    %c1 = arith.constant 1 : index
    %c0_20 = arith.constant 0 : index
    %c0_21 = arith.constant 0 : index
    %15 = vector.load %arg11[%c1, %c0_20, %c0_21] : memref<4x1x32xf32, #tpu.memory_space<vmem>>, vector<1x1x32xf32>
    %16 = vector.shape_cast %15 : vector<1x1x32xf32> to vector<1x32xf32>
    %c1_22 = arith.constant 1 : index
    %c0_23 = arith.constant 0 : index
    %c0_24 = arith.constant 0 : index
    %17 = vector.load %arg12[%c1_22, %c0_23, %c0_24] : memref<4x1x32xf32, #tpu.memory_space<vmem>>, vector<1x1x32xf32>
    %18 = vector.shape_cast %17 : vector<1x1x32xf32> to vector<1x32xf32>
    %cst_25 = arith.constant dense<0.000000e+00> : vector<34xf32>
    %19 = vector.multi_reduction <add>, %9, %cst_25 [1] : vector<34x32xf32> to vector<34xf32>
    %20 = vector.shape_cast %19 : vector<34xf32> to vector<34x1xf32>
    %cst_26 = arith.constant 3.200000e+01 : f32
    %21 = vector.broadcast %cst_26 : f32 to vector<34x1xf32>
    %22 = arith.divf %20, %21 : vector<34x1xf32>
    %23 = vector.broadcast %22 : vector<34x1xf32> to vector<34x32xf32>
    %24 = arith.subf %9, %23 : vector<34x32xf32>
    %25 = arith.mulf %24, %24 : vector<34x32xf32>
    %cst_27 = arith.constant dense<0.000000e+00> : vector<34xf32>
    %26 = vector.multi_reduction <add>, %25, %cst_27 [1] : vector<34x32xf32> to vector<34xf32>
    %27 = vector.shape_cast %26 : vector<34xf32> to vector<34x1xf32>
    %cst_28 = arith.constant 3.200000e+01 : f32
    %28 = vector.broadcast %cst_28 : f32 to vector<34x1xf32>
    %29 = arith.divf %27, %28 : vector<34x1xf32>
    %30 = vector.broadcast %22 : vector<34x1xf32> to vector<34x32xf32>
    %31 = arith.subf %9, %30 : vector<34x32xf32>
    %cst_29 = arith.constant 9.99999997E-7 : f32
    %32 = vector.broadcast %cst_29 : f32 to vector<34x1xf32>
    %33 = arith.addf %29, %32 : vector<34x1xf32>
    %34 = math.rsqrt %33 : vector<34x1xf32>
    %35 = vector.broadcast %34 : vector<34x1xf32> to vector<34x32xf32>
    %36 = arith.mulf %31, %35 : vector<34x32xf32>
    %37 = vector.broadcast %16 : vector<1x32xf32> to vector<34x32xf32>
    %38 = arith.mulf %36, %37 : vector<34x32xf32>
    %39 = vector.broadcast %18 : vector<1x32xf32> to vector<34x32xf32>
    %40 = arith.addf %38, %39 : vector<34x32xf32>
    %c1_30 = arith.constant 1 : index
    %c0_31 = arith.constant 0 : index
    %c0_32 = arith.constant 0 : index
    %41 = vector.load %arg13[%c1_30, %c0_31, %c0_32] : memref<4x32x96xf32, #tpu.memory_space<vmem>>, vector<1x32x96xf32>
    %42 = vector.shape_cast %41 : vector<1x32x96xf32> to vector<32x96xf32>
    %cst_33 = arith.constant dense<0.000000e+00> : vector<34x96xf32>
    %43 = tpu.matmul %40, %42, %cst_33 {dimension_numbers = #tpu.dot_dimension_numbers<[1], [0], [0], [1], [0, 0, 1, 1], [], []>} : vector<34x32xf32>, vector<32x96xf32>, vector<34x96xf32> -> vector<34x96xf32>
    %c1_34 = arith.constant 1 : index
    %c0_35 = arith.constant 0 : index
    %c0_36 = arith.constant 0 : index
    %44 = vector.load %arg14[%c1_34, %c0_35, %c0_36] : memref<4x1x96xf32, #tpu.memory_space<vmem>>, vector<1x1x96xf32>
    %45 = vector.shape_cast %44 : vector<1x1x96xf32> to vector<1x96xf32>
    %46 = vector.broadcast %45 : vector<1x96xf32> to vector<34x96xf32>
    %47 = arith.addf %43, %46 : vector<34x96xf32>
    %48 = vector.extract_strided_slice %47 {offsets = [0, 0], sizes = [34, 32], strides = [1, 1]} : vector<34x96xf32> to vector<34x32xf32>
    %cst_37 = arith.constant 0.353553385 : f32
    %49 = vector.broadcast %cst_37 : f32 to vector<34x32xf32>
    %50 = arith.mulf %48, %49 : vector<34x32xf32>
    %51 = vector.extract_strided_slice %47 {offsets = [0, 32], sizes = [34, 32], strides = [1, 1]} : vector<34x96xf32> to vector<34x32xf32>
    %52 = vector.extract_strided_slice %47 {offsets = [0, 64], sizes = [34, 32], strides = [1, 1]} : vector<34x96xf32> to vector<34x32xf32>
    %cst_38 = arith.constant dense<0.000000e+00> : vector<136x32xf32>
    %53 = tpu.matmul %10, %51, %cst_38 {dimension_numbers = #tpu.dot_dimension_numbers<[1], [0], [0], [1], [0, 0, 1, 1], [], []>} : vector<136x34xf32>, vector<34x32xf32>, vector<136x32xf32> -> vector<136x32xf32>
    %54 = arith.mulf %53, %11 : vector<136x32xf32>
    %cst_39 = arith.constant dense<0.000000e+00> : vector<136x32xf32>
    %55 = tpu.matmul %10, %52, %cst_39 {dimension_numbers = #tpu.dot_dimension_numbers<[1], [0], [0], [1], [0, 0, 1, 1], [], []>} : vector<136x34xf32>, vector<34x32xf32>, vector<136x32xf32> -> vector<136x32xf32>
    %56 = arith.mulf %55, %11 : vector<136x32xf32>
    %cst_40 = arith.constant dense<0.000000e+00> : vector<34x136xf32>
    %57 = tpu.matmul %50, %54, %cst_40 {dimension_numbers = #tpu.dot_dimension_numbers<[1], [1], [0], [0], [0, 0, 1, 0], [], []>} : vector<34x32xf32>, vector<136x32xf32>, vector<34x136xf32> -> vector<34x136xf32>
    %58 = arith.addf %57, %12 : vector<34x136xf32>
    %cst_41 = arith.constant dense<0xFF800000> : vector<34xf32>
    %59 = vector.multi_reduction <maximumf>, %58, %cst_41 [1] : vector<34x136xf32> to vector<34xf32>
    %60 = vector.shape_cast %59 : vector<34xf32> to vector<34x1xf32>
    %61 = vector.broadcast %60 : vector<34x1xf32> to vector<34x136xf32>
    %62 = arith.subf %58, %61 : vector<34x136xf32>
    %63 = math.exp %62 : vector<34x136xf32>
    %cst_42 = arith.constant dense<0.000000e+00> : vector<34x136xf32>
    %64 = tpu.matmul %63, %14, %cst_42 {dimension_numbers = #tpu.dot_dimension_numbers<[1], [0], [0], [1], [0, 0, 1, 1], [], []>} : vector<34x136xf32>, vector<136x136xf32>, vector<34x136xf32> -> vector<34x136xf32>
    %65 = arith.addf %64, %13 : vector<34x136xf32>
    %66 = tpu.reciprocal %65 {approx = true} : vector<34x136xf32> -> vector<34x136xf32>
    %67 = arith.mulf %63, %66 : vector<34x136xf32>
    %cst_43 = arith.constant dense<0.000000e+00> : vector<34x32xf32>
    %68 = tpu.matmul %67, %56, %cst_43 {dimension_numbers = #tpu.dot_dimension_numbers<[1], [0], [0], [1], [0, 0, 1, 1], [], []>} : vector<34x136xf32>, vector<136x32xf32>, vector<34x32xf32> -> vector<34x32xf32>
    %c1_44 = arith.constant 1 : index
    %c0_45 = arith.constant 0 : index
    %c0_46 = arith.constant 0 : index
    %69 = vector.load %arg15[%c1_44, %c0_45, %c0_46] : memref<4x32x32xf32, #tpu.memory_space<vmem>>, vector<1x32x32xf32>
    %70 = vector.shape_cast %69 : vector<1x32x32xf32> to vector<32x32xf32>
    %cst_47 = arith.constant dense<0.000000e+00> : vector<34x32xf32>
    %71 = tpu.matmul %68, %70, %cst_47 {dimension_numbers = #tpu.dot_dimension_numbers<[1], [0], [0], [1], [0, 0, 1, 1], [], []>} : vector<34x32xf32>, vector<32x32xf32>, vector<34x32xf32> -> vector<34x32xf32>
    %c1_48 = arith.constant 1 : index
    %c0_49 = arith.constant 0 : index
    %c0_50 = arith.constant 0 : index
    %72 = vector.load %arg16[%c1_48, %c0_49, %c0_50] : memref<4x1x32xf32, #tpu.memory_space<vmem>>, vector<1x1x32xf32>
    %73 = vector.shape_cast %72 : vector<1x1x32xf32> to vector<1x32xf32>
    %74 = vector.broadcast %73 : vector<1x32xf32> to vector<34x32xf32>
    %75 = arith.addf %71, %74 : vector<34x32xf32>
    %76 = arith.addf %9, %75 : vector<34x32xf32>
    %c1_51 = arith.constant 1 : index
    %c0_52 = arith.constant 0 : index
    %c0_53 = arith.constant 0 : index
    %77 = vector.load %arg17[%c1_51, %c0_52, %c0_53] : memref<4x1x32xf32, #tpu.memory_space<vmem>>, vector<1x1x32xf32>
    %78 = vector.shape_cast %77 : vector<1x1x32xf32> to vector<1x32xf32>
    %c1_54 = arith.constant 1 : index
    %c0_55 = arith.constant 0 : index
    %c0_56 = arith.constant 0 : index
    %79 = vector.load %arg18[%c1_54, %c0_55, %c0_56] : memref<4x1x32xf32, #tpu.memory_space<vmem>>, vector<1x1x32xf32>
    %80 = vector.shape_cast %79 : vector<1x1x32xf32> to vector<1x32xf32>
    %cst_57 = arith.constant dense<0.000000e+00> : vector<34xf32>
    %81 = vector.multi_reduction <add>, %76, %cst_57 [1] : vector<34x32xf32> to vector<34xf32>
    %82 = vector.shape_cast %81 : vector<34xf32> to vector<34x1xf32>
    %cst_58 = arith.constant 3.200000e+01 : f32
    %83 = vector.broadcast %cst_58 : f32 to vector<34x1xf32>
    %84 = arith.divf %82, %83 : vector<34x1xf32>
    %85 = vector.broadcast %84 : vector<34x1xf32> to vector<34x32xf32>
    %86 = arith.subf %76, %85 : vector<34x32xf32>
    %87 = arith.mulf %86, %86 : vector<34x32xf32>
    %cst_59 = arith.constant dense<0.000000e+00> : vector<34xf32>
    %88 = vector.multi_reduction <add>, %87, %cst_59 [1] : vector<34x32xf32> to vector<34xf32>
    %89 = vector.shape_cast %88 : vector<34xf32> to vector<34x1xf32>
    %cst_60 = arith.constant 3.200000e+01 : f32
    %90 = vector.broadcast %cst_60 : f32 to vector<34x1xf32>
    %91 = arith.divf %89, %90 : vector<34x1xf32>
    %92 = vector.broadcast %84 : vector<34x1xf32> to vector<34x32xf32>
    %93 = arith.subf %76, %92 : vector<34x32xf32>
    %cst_61 = arith.constant 9.99999997E-7 : f32
    %94 = vector.broadcast %cst_61 : f32 to vector<34x1xf32>
    %95 = arith.addf %91, %94 : vector<34x1xf32>
    %96 = math.rsqrt %95 : vector<34x1xf32>
    %97 = vector.broadcast %96 : vector<34x1xf32> to vector<34x32xf32>
    %98 = arith.mulf %93, %97 : vector<34x32xf32>
    %99 = vector.broadcast %78 : vector<1x32xf32> to vector<34x32xf32>
    %100 = arith.mulf %98, %99 : vector<34x32xf32>
    %101 = vector.broadcast %80 : vector<1x32xf32> to vector<34x32xf32>
    %102 = arith.addf %100, %101 : vector<34x32xf32>
    %c1_62 = arith.constant 1 : index
    %c0_63 = arith.constant 0 : index
    %c0_64 = arith.constant 0 : index
    %103 = vector.load %arg19[%c1_62, %c0_63, %c0_64] : memref<4x32x64xf32, #tpu.memory_space<vmem>>, vector<1x32x64xf32>
    %104 = vector.shape_cast %103 : vector<1x32x64xf32> to vector<32x64xf32>
    %cst_65 = arith.constant dense<0.000000e+00> : vector<34x64xf32>
    %105 = tpu.matmul %102, %104, %cst_65 {dimension_numbers = #tpu.dot_dimension_numbers<[1], [0], [0], [1], [0, 0, 1, 1], [], []>} : vector<34x32xf32>, vector<32x64xf32>, vector<34x64xf32> -> vector<34x64xf32>
    %c1_66 = arith.constant 1 : index
    %c0_67 = arith.constant 0 : index
    %c0_68 = arith.constant 0 : index
    %106 = vector.load %arg20[%c1_66, %c0_67, %c0_68] : memref<4x1x64xf32, #tpu.memory_space<vmem>>, vector<1x1x64xf32>
    %107 = vector.shape_cast %106 : vector<1x1x64xf32> to vector<1x64xf32>
    %108 = vector.broadcast %107 : vector<1x64xf32> to vector<34x64xf32>
    %109 = arith.addf %105, %108 : vector<34x64xf32>
    %cst_69 = arith.constant 5.000000e-01 : f32
    %110 = vector.broadcast %cst_69 : f32 to vector<34x64xf32>
    %111 = arith.mulf %109, %110 : vector<34x64xf32>
    %cst_70 = arith.constant 2.000000e+00 : f32
    %112 = math.sqrt %cst_70 : f32
    %113 = vector.broadcast %112 : f32 to vector<34x64xf32>
    %114 = arith.divf %109, %113 : vector<34x64xf32>
    %115 = math.erf %114 : vector<34x64xf32>
    %cst_71 = arith.constant 1.000000e+00 : f32
    %116 = vector.broadcast %cst_71 : f32 to vector<34x64xf32>
    %117 = arith.addf %116, %115 : vector<34x64xf32>
    %118 = arith.mulf %111, %117 : vector<34x64xf32>
    %c1_72 = arith.constant 1 : index
    %c0_73 = arith.constant 0 : index
    %c0_74 = arith.constant 0 : index
    %119 = vector.load %arg21[%c1_72, %c0_73, %c0_74] : memref<4x64x32xf32, #tpu.memory_space<vmem>>, vector<1x64x32xf32>
    %120 = vector.shape_cast %119 : vector<1x64x32xf32> to vector<64x32xf32>
    %cst_75 = arith.constant dense<0.000000e+00> : vector<34x32xf32>
    %121 = tpu.matmul %118, %120, %cst_75 {dimension_numbers = #tpu.dot_dimension_numbers<[1], [0], [0], [1], [0, 0, 1, 1], [], []>} : vector<34x64xf32>, vector<64x32xf32>, vector<34x32xf32> -> vector<34x32xf32>
    %c1_76 = arith.constant 1 : index
    %c0_77 = arith.constant 0 : index
    %c0_78 = arith.constant 0 : index
    %122 = vector.load %arg22[%c1_76, %c0_77, %c0_78] : memref<4x1x32xf32, #tpu.memory_space<vmem>>, vector<1x1x32xf32>
    %123 = vector.shape_cast %122 : vector<1x1x32xf32> to vector<1x32xf32>
    %124 = vector.broadcast %123 : vector<1x32xf32> to vector<34x32xf32>
    %125 = arith.addf %121, %124 : vector<34x32xf32>
    %126 = arith.addf %76, %125 : vector<34x32xf32>
    %c0_79 = arith.constant 0 : index
    %c0_80 = arith.constant 0 : index
    %c0_81 = arith.constant 0 : index
    %127 = vector.load %arg11[%c0_79, %c0_80, %c0_81] : memref<4x1x32xf32, #tpu.memory_space<vmem>>, vector<1x1x32xf32>
    %128 = vector.shape_cast %127 : vector<1x1x32xf32> to vector<1x32xf32>
    %c0_82 = arith.constant 0 : index
    %c0_83 = arith.constant 0 : index
    %c0_84 = arith.constant 0 : index
    %129 = vector.load %arg12[%c0_82, %c0_83, %c0_84] : memref<4x1x32xf32, #tpu.memory_space<vmem>>, vector<1x1x32xf32>
    %130 = vector.shape_cast %129 : vector<1x1x32xf32> to vector<1x32xf32>
    %cst_85 = arith.constant dense<0.000000e+00> : vector<34xf32>
    %131 = vector.multi_reduction <add>, %9, %cst_85 [1] : vector<34x32xf32> to vector<34xf32>
    %132 = vector.shape_cast %131 : vector<34xf32> to vector<34x1xf32>
    %cst_86 = arith.constant 3.200000e+01 : f32
    %133 = vector.broadcast %cst_86 : f32 to vector<34x1xf32>
    %134 = arith.divf %132, %133 : vector<34x1xf32>
    %135 = vector.broadcast %134 : vector<34x1xf32> to vector<34x32xf32>
    %136 = arith.subf %9, %135 : vector<34x32xf32>
    %137 = arith.mulf %136, %136 : vector<34x32xf32>
    %cst_87 = arith.constant dense<0.000000e+00> : vector<34xf32>
    %138 = vector.multi_reduction <add>, %137, %cst_87 [1] : vector<34x32xf32> to vector<34xf32>
    %139 = vector.shape_cast %138 : vector<34xf32> to vector<34x1xf32>
    %cst_88 = arith.constant 3.200000e+01 : f32
    %140 = vector.broadcast %cst_88 : f32 to vector<34x1xf32>
    %141 = arith.divf %139, %140 : vector<34x1xf32>
    %142 = vector.broadcast %134 : vector<34x1xf32> to vector<34x32xf32>
    %143 = arith.subf %9, %142 : vector<34x32xf32>
    %cst_89 = arith.constant 9.99999997E-7 : f32
    %144 = vector.broadcast %cst_89 : f32 to vector<34x1xf32>
    %145 = arith.addf %141, %144 : vector<34x1xf32>
    %146 = math.rsqrt %145 : vector<34x1xf32>
    %147 = vector.broadcast %146 : vector<34x1xf32> to vector<34x32xf32>
    %148 = arith.mulf %143, %147 : vector<34x32xf32>
    %149 = vector.broadcast %128 : vector<1x32xf32> to vector<34x32xf32>
    %150 = arith.mulf %148, %149 : vector<34x32xf32>
    %151 = vector.broadcast %130 : vector<1x32xf32> to vector<34x32xf32>
    %152 = arith.addf %150, %151 : vector<34x32xf32>
    %c0_90 = arith.constant 0 : index
    %c0_91 = arith.constant 0 : index
    %c0_92 = arith.constant 0 : index
    %153 = vector.load %arg13[%c0_90, %c0_91, %c0_92] : memref<4x32x96xf32, #tpu.memory_space<vmem>>, vector<1x32x96xf32>
    %154 = vector.shape_cast %153 : vector<1x32x96xf32> to vector<32x96xf32>
    %cst_93 = arith.constant dense<0.000000e+00> : vector<34x96xf32>
    %155 = tpu.matmul %152, %154, %cst_93 {dimension_numbers = #tpu.dot_dimension_numbers<[1], [0], [0], [1], [0, 0, 1, 1], [], []>} : vector<34x32xf32>, vector<32x96xf32>, vector<34x96xf32> -> vector<34x96xf32>
    %c0_94 = arith.constant 0 : index
    %c0_95 = arith.constant 0 : index
    %c0_96 = arith.constant 0 : index
    %156 = vector.load %arg14[%c0_94, %c0_95, %c0_96] : memref<4x1x96xf32, #tpu.memory_space<vmem>>, vector<1x1x96xf32>
    %157 = vector.shape_cast %156 : vector<1x1x96xf32> to vector<1x96xf32>
    %158 = vector.broadcast %157 : vector<1x96xf32> to vector<34x96xf32>
    %159 = arith.addf %155, %158 : vector<34x96xf32>
    %160 = vector.extract_strided_slice %159 {offsets = [0, 0], sizes = [34, 32], strides = [1, 1]} : vector<34x96xf32> to vector<34x32xf32>
    %cst_97 = arith.constant 0.353553385 : f32
    %161 = vector.broadcast %cst_97 : f32 to vector<34x32xf32>
    %162 = arith.mulf %160, %161 : vector<34x32xf32>
    %163 = vector.extract_strided_slice %159 {offsets = [0, 32], sizes = [34, 32], strides = [1, 1]} : vector<34x96xf32> to vector<34x32xf32>
    %164 = vector.extract_strided_slice %159 {offsets = [0, 64], sizes = [34, 32], strides = [1, 1]} : vector<34x96xf32> to vector<34x32xf32>
    %cst_98 = arith.constant dense<0.000000e+00> : vector<136x32xf32>
    %165 = tpu.matmul %10, %163, %cst_98 {dimension_numbers = #tpu.dot_dimension_numbers<[1], [0], [0], [1], [0, 0, 1, 1], [], []>} : vector<136x34xf32>, vector<34x32xf32>, vector<136x32xf32> -> vector<136x32xf32>
    %166 = arith.mulf %165, %11 : vector<136x32xf32>
    %cst_99 = arith.constant dense<0.000000e+00> : vector<136x32xf32>
    %167 = tpu.matmul %10, %164, %cst_99 {dimension_numbers = #tpu.dot_dimension_numbers<[1], [0], [0], [1], [0, 0, 1, 1], [], []>} : vector<136x34xf32>, vector<34x32xf32>, vector<136x32xf32> -> vector<136x32xf32>
    %168 = arith.mulf %167, %11 : vector<136x32xf32>
    %cst_100 = arith.constant dense<0.000000e+00> : vector<34x136xf32>
    %169 = tpu.matmul %162, %166, %cst_100 {dimension_numbers = #tpu.dot_dimension_numbers<[1], [1], [0], [0], [0, 0, 1, 0], [], []>} : vector<34x32xf32>, vector<136x32xf32>, vector<34x136xf32> -> vector<34x136xf32>
    %170 = arith.addf %169, %12 : vector<34x136xf32>
    %cst_101 = arith.constant dense<0xFF800000> : vector<34xf32>
    %171 = vector.multi_reduction <maximumf>, %170, %cst_101 [1] : vector<34x136xf32> to vector<34xf32>
    %172 = vector.shape_cast %171 : vector<34xf32> to vector<34x1xf32>
    %173 = vector.broadcast %172 : vector<34x1xf32> to vector<34x136xf32>
    %174 = arith.subf %170, %173 : vector<34x136xf32>
    %175 = math.exp %174 : vector<34x136xf32>
    %cst_102 = arith.constant dense<0.000000e+00> : vector<34x136xf32>
    %176 = tpu.matmul %175, %14, %cst_102 {dimension_numbers = #tpu.dot_dimension_numbers<[1], [0], [0], [1], [0, 0, 1, 1], [], []>} : vector<34x136xf32>, vector<136x136xf32>, vector<34x136xf32> -> vector<34x136xf32>
    %177 = arith.addf %176, %13 : vector<34x136xf32>
    %178 = tpu.reciprocal %177 {approx = true} : vector<34x136xf32> -> vector<34x136xf32>
    %179 = arith.mulf %175, %178 : vector<34x136xf32>
    %cst_103 = arith.constant dense<0.000000e+00> : vector<34x32xf32>
    %180 = tpu.matmul %179, %168, %cst_103 {dimension_numbers = #tpu.dot_dimension_numbers<[1], [0], [0], [1], [0, 0, 1, 1], [], []>} : vector<34x136xf32>, vector<136x32xf32>, vector<34x32xf32> -> vector<34x32xf32>
    %c0_104 = arith.constant 0 : index
    %c0_105 = arith.constant 0 : index
    %c0_106 = arith.constant 0 : index
    %181 = vector.load %arg15[%c0_104, %c0_105, %c0_106] : memref<4x32x32xf32, #tpu.memory_space<vmem>>, vector<1x32x32xf32>
    %182 = vector.shape_cast %181 : vector<1x32x32xf32> to vector<32x32xf32>
    %cst_107 = arith.constant dense<0.000000e+00> : vector<34x32xf32>
    %183 = tpu.matmul %180, %182, %cst_107 {dimension_numbers = #tpu.dot_dimension_numbers<[1], [0], [0], [1], [0, 0, 1, 1], [], []>} : vector<34x32xf32>, vector<32x32xf32>, vector<34x32xf32> -> vector<34x32xf32>
    %c0_108 = arith.constant 0 : index
    %c0_109 = arith.constant 0 : index
    %c0_110 = arith.constant 0 : index
    %184 = vector.load %arg16[%c0_108, %c0_109, %c0_110] : memref<4x1x32xf32, #tpu.memory_space<vmem>>, vector<1x1x32xf32>
    %185 = vector.shape_cast %184 : vector<1x1x32xf32> to vector<1x32xf32>
    %186 = vector.broadcast %185 : vector<1x32xf32> to vector<34x32xf32>
    %187 = arith.addf %183, %186 : vector<34x32xf32>
    %188 = arith.addf %9, %187 : vector<34x32xf32>
    %c0_111 = arith.constant 0 : index
    %c0_112 = arith.constant 0 : index
    %c0_113 = arith.constant 0 : index
    %189 = vector.load %arg17[%c0_111, %c0_112, %c0_113] : memref<4x1x32xf32, #tpu.memory_space<vmem>>, vector<1x1x32xf32>
    %190 = vector.shape_cast %189 : vector<1x1x32xf32> to vector<1x32xf32>
    %c0_114 = arith.constant 0 : index
    %c0_115 = arith.constant 0 : index
    %c0_116 = arith.constant 0 : index
    %191 = vector.load %arg18[%c0_114, %c0_115, %c0_116] : memref<4x1x32xf32, #tpu.memory_space<vmem>>, vector<1x1x32xf32>
    %192 = vector.shape_cast %191 : vector<1x1x32xf32> to vector<1x32xf32>
    %cst_117 = arith.constant dense<0.000000e+00> : vector<34xf32>
    %193 = vector.multi_reduction <add>, %188, %cst_117 [1] : vector<34x32xf32> to vector<34xf32>
    %194 = vector.shape_cast %193 : vector<34xf32> to vector<34x1xf32>
    %cst_118 = arith.constant 3.200000e+01 : f32
    %195 = vector.broadcast %cst_118 : f32 to vector<34x1xf32>
    %196 = arith.divf %194, %195 : vector<34x1xf32>
    %197 = vector.broadcast %196 : vector<34x1xf32> to vector<34x32xf32>
    %198 = arith.subf %188, %197 : vector<34x32xf32>
    %199 = arith.mulf %198, %198 : vector<34x32xf32>
    %cst_119 = arith.constant dense<0.000000e+00> : vector<34xf32>
    %200 = vector.multi_reduction <add>, %199, %cst_119 [1] : vector<34x32xf32> to vector<34xf32>
    %201 = vector.shape_cast %200 : vector<34xf32> to vector<34x1xf32>
    %cst_120 = arith.constant 3.200000e+01 : f32
    %202 = vector.broadcast %cst_120 : f32 to vector<34x1xf32>
    %203 = arith.divf %201, %202 : vector<34x1xf32>
    %204 = vector.broadcast %196 : vector<34x1xf32> to vector<34x32xf32>
    %205 = arith.subf %188, %204 : vector<34x32xf32>
    %cst_121 = arith.constant 9.99999997E-7 : f32
    %206 = vector.broadcast %cst_121 : f32 to vector<34x1xf32>
    %207 = arith.addf %203, %206 : vector<34x1xf32>
    %208 = math.rsqrt %207 : vector<34x1xf32>
    %209 = vector.broadcast %208 : vector<34x1xf32> to vector<34x32xf32>
    %210 = arith.mulf %205, %209 : vector<34x32xf32>
    %211 = vector.broadcast %190 : vector<1x32xf32> to vector<34x32xf32>
    %212 = arith.mulf %210, %211 : vector<34x32xf32>
    %213 = vector.broadcast %192 : vector<1x32xf32> to vector<34x32xf32>
    %214 = arith.addf %212, %213 : vector<34x32xf32>
    %c0_122 = arith.constant 0 : index
    %c0_123 = arith.constant 0 : index
    %c0_124 = arith.constant 0 : index
    %215 = vector.load %arg19[%c0_122, %c0_123, %c0_124] : memref<4x32x64xf32, #tpu.memory_space<vmem>>, vector<1x32x64xf32>
    %216 = vector.shape_cast %215 : vector<1x32x64xf32> to vector<32x64xf32>
    %cst_125 = arith.constant dense<0.000000e+00> : vector<34x64xf32>
    %217 = tpu.matmul %214, %216, %cst_125 {dimension_numbers = #tpu.dot_dimension_numbers<[1], [0], [0], [1], [0, 0, 1, 1], [], []>} : vector<34x32xf32>, vector<32x64xf32>, vector<34x64xf32> -> vector<34x64xf32>
    %c0_126 = arith.constant 0 : index
    %c0_127 = arith.constant 0 : index
    %c0_128 = arith.constant 0 : index
    %218 = vector.load %arg20[%c0_126, %c0_127, %c0_128] : memref<4x1x64xf32, #tpu.memory_space<vmem>>, vector<1x1x64xf32>
    %219 = vector.shape_cast %218 : vector<1x1x64xf32> to vector<1x64xf32>
    %220 = vector.broadcast %219 : vector<1x64xf32> to vector<34x64xf32>
    %221 = arith.addf %217, %220 : vector<34x64xf32>
    %cst_129 = arith.constant 5.000000e-01 : f32
    %222 = vector.broadcast %cst_129 : f32 to vector<34x64xf32>
    %223 = arith.mulf %221, %222 : vector<34x64xf32>
    %cst_130 = arith.constant 2.000000e+00 : f32
    %224 = math.sqrt %cst_130 : f32
    %225 = vector.broadcast %224 : f32 to vector<34x64xf32>
    %226 = arith.divf %221, %225 : vector<34x64xf32>
    %227 = math.erf %226 : vector<34x64xf32>
    %cst_131 = arith.constant 1.000000e+00 : f32
    %228 = vector.broadcast %cst_131 : f32 to vector<34x64xf32>
    %229 = arith.addf %228, %227 : vector<34x64xf32>
    %230 = arith.mulf %223, %229 : vector<34x64xf32>
    %c0_132 = arith.constant 0 : index
    %c0_133 = arith.constant 0 : index
    %c0_134 = arith.constant 0 : index
    %231 = vector.load %arg21[%c0_132, %c0_133, %c0_134] : memref<4x64x32xf32, #tpu.memory_space<vmem>>, vector<1x64x32xf32>
    %232 = vector.shape_cast %231 : vector<1x64x32xf32> to vector<64x32xf32>
    %cst_135 = arith.constant dense<0.000000e+00> : vector<34x32xf32>
    %233 = tpu.matmul %230, %232, %cst_135 {dimension_numbers = #tpu.dot_dimension_numbers<[1], [0], [0], [1], [0, 0, 1, 1], [], []>} : vector<34x64xf32>, vector<64x32xf32>, vector<34x32xf32> -> vector<34x32xf32>
    %c0_136 = arith.constant 0 : index
    %c0_137 = arith.constant 0 : index
    %c0_138 = arith.constant 0 : index
    %234 = vector.load %arg22[%c0_136, %c0_137, %c0_138] : memref<4x1x32xf32, #tpu.memory_space<vmem>>, vector<1x1x32xf32>
    %235 = vector.shape_cast %234 : vector<1x1x32xf32> to vector<1x32xf32>
    %236 = vector.broadcast %235 : vector<1x32xf32> to vector<34x32xf32>
    %237 = arith.addf %233, %236 : vector<34x32xf32>
    %238 = arith.addf %188, %237 : vector<34x32xf32>
    %c0_139 = arith.constant 0 : index
    %c0_140 = arith.constant 0 : index
    %c0_141 = arith.constant 0 : index
    %239 = vector.load %arg23[%c0_139, %c0_140, %c0_141] : memref<2x34x32xf32, #tpu.memory_space<vmem>>, vector<1x34x32xf32>
    %240 = vector.shape_cast %239 : vector<1x34x32xf32> to vector<34x32xf32>
    %241 = vector.shape_cast %238 : vector<34x32xf32> to vector<1x34x32xf32>
    tpu.vector_store %arg23[%c0_139, %c0_140, %c0_141], %241 {strides = array<i32>} : memref<2x34x32xf32, #tpu.memory_space<vmem>>, vector<1x34x32xf32>,
    %c0_142 = arith.constant 0 : index
    %c0_143 = arith.constant 0 : index
    %c0_144 = arith.constant 0 : index
    %242 = vector.load %arg24[%c0_142, %c0_143, %c0_144] : memref<2x34x32xf32, #tpu.memory_space<vmem>>, vector<1x34x32xf32>
    %243 = vector.shape_cast %242 : vector<1x34x32xf32> to vector<34x32xf32>
    %244 = vector.shape_cast %126 : vector<34x32xf32> to vector<1x34x32xf32>
    tpu.vector_store %arg24[%c0_142, %c0_143, %c0_144], %244 {strides = array<i32>} : memref<2x34x32xf32, #tpu.memory_space<vmem>>, vector<1x34x32xf32>,
    %c3 = arith.constant 3 : index
    %c0_145 = arith.constant 0 : index
    %c0_146 = arith.constant 0 : index
    %245 = vector.load %arg11[%c3, %c0_145, %c0_146] : memref<4x1x32xf32, #tpu.memory_space<vmem>>, vector<1x1x32xf32>
    %246 = vector.shape_cast %245 : vector<1x1x32xf32> to vector<1x32xf32>
    %c3_147 = arith.constant 3 : index
    %c0_148 = arith.constant 0 : index
    %c0_149 = arith.constant 0 : index
    %247 = vector.load %arg12[%c3_147, %c0_148, %c0_149] : memref<4x1x32xf32, #tpu.memory_space<vmem>>, vector<1x1x32xf32>
    %248 = vector.shape_cast %247 : vector<1x1x32xf32> to vector<1x32xf32>
    %cst_150 = arith.constant dense<0.000000e+00> : vector<34xf32>
    %249 = vector.multi_reduction <add>, %238, %cst_150 [1] : vector<34x32xf32> to vector<34xf32>
    %250 = vector.shape_cast %249 : vector<34xf32> to vector<34x1xf32>
    %cst_151 = arith.constant 3.200000e+01 : f32
    %251 = vector.broadcast %cst_151 : f32 to vector<34x1xf32>
    %252 = arith.divf %250, %251 : vector<34x1xf32>
    %253 = vector.broadcast %252 : vector<34x1xf32> to vector<34x32xf32>
    %254 = arith.subf %238, %253 : vector<34x32xf32>
    %255 = arith.mulf %254, %254 : vector<34x32xf32>
    %cst_152 = arith.constant dense<0.000000e+00> : vector<34xf32>
    %256 = vector.multi_reduction <add>, %255, %cst_152 [1] : vector<34x32xf32> to vector<34xf32>
    %257 = vector.shape_cast %256 : vector<34xf32> to vector<34x1xf32>
    %cst_153 = arith.constant 3.200000e+01 : f32
    %258 = vector.broadcast %cst_153 : f32 to vector<34x1xf32>
    %259 = arith.divf %257, %258 : vector<34x1xf32>
    %260 = vector.broadcast %252 : vector<34x1xf32> to vector<34x32xf32>
    %261 = arith.subf %238, %260 : vector<34x32xf32>
    %cst_154 = arith.constant 9.99999997E-7 : f32
    %262 = vector.broadcast %cst_154 : f32 to vector<34x1xf32>
    %263 = arith.addf %259, %262 : vector<34x1xf32>
    %264 = math.rsqrt %263 : vector<34x1xf32>
    %265 = vector.broadcast %264 : vector<34x1xf32> to vector<34x32xf32>
    %266 = arith.mulf %261, %265 : vector<34x32xf32>
    %267 = vector.broadcast %246 : vector<1x32xf32> to vector<34x32xf32>
    %268 = arith.mulf %266, %267 : vector<34x32xf32>
    %269 = vector.broadcast %248 : vector<1x32xf32> to vector<34x32xf32>
    %270 = arith.addf %268, %269 : vector<34x32xf32>
    %c3_155 = arith.constant 3 : index
    %c0_156 = arith.constant 0 : index
    %c0_157 = arith.constant 0 : index
    %271 = vector.load %arg13[%c3_155, %c0_156, %c0_157] : memref<4x32x96xf32, #tpu.memory_space<vmem>>, vector<1x32x96xf32>
    %272 = vector.shape_cast %271 : vector<1x32x96xf32> to vector<32x96xf32>
    %cst_158 = arith.constant dense<0.000000e+00> : vector<34x96xf32>
    %273 = tpu.matmul %270, %272, %cst_158 {dimension_numbers = #tpu.dot_dimension_numbers<[1], [0], [0], [1], [0, 0, 1, 1], [], []>} : vector<34x32xf32>, vector<32x96xf32>, vector<34x96xf32> -> vector<34x96xf32>
    %c3_159 = arith.constant 3 : index
    %c0_160 = arith.constant 0 : index
    %c0_161 = arith.constant 0 : index
    %274 = vector.load %arg14[%c3_159, %c0_160, %c0_161] : memref<4x1x96xf32, #tpu.memory_space<vmem>>, vector<1x1x96xf32>
    %275 = vector.shape_cast %274 : vector<1x1x96xf32> to vector<1x96xf32>
    %276 = vector.broadcast %275 : vector<1x96xf32> to vector<34x96xf32>
    %277 = arith.addf %273, %276 : vector<34x96xf32>
    %278 = vector.extract_strided_slice %277 {offsets = [0, 0], sizes = [34, 32], strides = [1, 1]} : vector<34x96xf32> to vector<34x32xf32>
    %cst_162 = arith.constant 0.353553385 : f32
    %279 = vector.broadcast %cst_162 : f32 to vector<34x32xf32>
    %280 = arith.mulf %278, %279 : vector<34x32xf32>
    %281 = vector.extract_strided_slice %277 {offsets = [0, 32], sizes = [34, 32], strides = [1, 1]} : vector<34x96xf32> to vector<34x32xf32>
    %282 = vector.extract_strided_slice %277 {offsets = [0, 64], sizes = [34, 32], strides = [1, 1]} : vector<34x96xf32> to vector<34x32xf32>
    %cst_163 = arith.constant dense<0.000000e+00> : vector<136x32xf32>
    %283 = tpu.matmul %10, %281, %cst_163 {dimension_numbers = #tpu.dot_dimension_numbers<[1], [0], [0], [1], [0, 0, 1, 1], [], []>} : vector<136x34xf32>, vector<34x32xf32>, vector<136x32xf32> -> vector<136x32xf32>
    %284 = arith.mulf %283, %11 : vector<136x32xf32>
    %cst_164 = arith.constant dense<0.000000e+00> : vector<136x32xf32>
    %285 = tpu.matmul %10, %282, %cst_164 {dimension_numbers = #tpu.dot_dimension_numbers<[1], [0], [0], [1], [0, 0, 1, 1], [], []>} : vector<136x34xf32>, vector<34x32xf32>, vector<136x32xf32> -> vector<136x32xf32>
    %286 = arith.mulf %285, %11 : vector<136x32xf32>
    %cst_165 = arith.constant dense<0.000000e+00> : vector<34x136xf32>
    %287 = tpu.matmul %280, %284, %cst_165 {dimension_numbers = #tpu.dot_dimension_numbers<[1], [1], [0], [0], [0, 0, 1, 0], [], []>} : vector<34x32xf32>, vector<136x32xf32>, vector<34x136xf32> -> vector<34x136xf32>
    %288 = arith.addf %287, %12 : vector<34x136xf32>
    %cst_166 = arith.constant dense<0xFF800000> : vector<34xf32>
    %289 = vector.multi_reduction <maximumf>, %288, %cst_166 [1] : vector<34x136xf32> to vector<34xf32>
    %290 = vector.shape_cast %289 : vector<34xf32> to vector<34x1xf32>
    %291 = vector.broadcast %290 : vector<34x1xf32> to vector<34x136xf32>
    %292 = arith.subf %288, %291 : vector<34x136xf32>
    %293 = math.exp %292 : vector<34x136xf32>
    %cst_167 = arith.constant dense<0.000000e+00> : vector<34x136xf32>
    %294 = tpu.matmul %293, %14, %cst_167 {dimension_numbers = #tpu.dot_dimension_numbers<[1], [0], [0], [1], [0, 0, 1, 1], [], []>} : vector<34x136xf32>, vector<136x136xf32>, vector<34x136xf32> -> vector<34x136xf32>
    %295 = arith.addf %294, %13 : vector<34x136xf32>
    %296 = tpu.reciprocal %295 {approx = true} : vector<34x136xf32> -> vector<34x136xf32>
    %297 = arith.mulf %293, %296 : vector<34x136xf32>
    %cst_168 = arith.constant dense<0.000000e+00> : vector<34x32xf32>
    %298 = tpu.matmul %297, %286, %cst_168 {dimension_numbers = #tpu.dot_dimension_numbers<[1], [0], [0], [1], [0, 0, 1, 1], [], []>} : vector<34x136xf32>, vector<136x32xf32>, vector<34x32xf32> -> vector<34x32xf32>
    %c3_169 = arith.constant 3 : index
    %c0_170 = arith.constant 0 : index
    %c0_171 = arith.constant 0 : index
    %299 = vector.load %arg15[%c3_169, %c0_170, %c0_171] : memref<4x32x32xf32, #tpu.memory_space<vmem>>, vector<1x32x32xf32>
    %300 = vector.shape_cast %299 : vector<1x32x32xf32> to vector<32x32xf32>
    %cst_172 = arith.constant dense<0.000000e+00> : vector<34x32xf32>
    %301 = tpu.matmul %298, %300, %cst_172 {dimension_numbers = #tpu.dot_dimension_numbers<[1], [0], [0], [1], [0, 0, 1, 1], [], []>} : vector<34x32xf32>, vector<32x32xf32>, vector<34x32xf32> -> vector<34x32xf32>
    %c3_173 = arith.constant 3 : index
    %c0_174 = arith.constant 0 : index
    %c0_175 = arith.constant 0 : index
    %302 = vector.load %arg16[%c3_173, %c0_174, %c0_175] : memref<4x1x32xf32, #tpu.memory_space<vmem>>, vector<1x1x32xf32>
    %303 = vector.shape_cast %302 : vector<1x1x32xf32> to vector<1x32xf32>
    %304 = vector.broadcast %303 : vector<1x32xf32> to vector<34x32xf32>
    %305 = arith.addf %301, %304 : vector<34x32xf32>
    %306 = arith.addf %238, %305 : vector<34x32xf32>
    %c3_176 = arith.constant 3 : index
    %c0_177 = arith.constant 0 : index
    %c0_178 = arith.constant 0 : index
    %307 = vector.load %arg17[%c3_176, %c0_177, %c0_178] : memref<4x1x32xf32, #tpu.memory_space<vmem>>, vector<1x1x32xf32>
    %308 = vector.shape_cast %307 : vector<1x1x32xf32> to vector<1x32xf32>
    %c3_179 = arith.constant 3 : index
    %c0_180 = arith.constant 0 : index
    %c0_181 = arith.constant 0 : index
    %309 = vector.load %arg18[%c3_179, %c0_180, %c0_181] : memref<4x1x32xf32, #tpu.memory_space<vmem>>, vector<1x1x32xf32>
    %310 = vector.shape_cast %309 : vector<1x1x32xf32> to vector<1x32xf32>
    %cst_182 = arith.constant dense<0.000000e+00> : vector<34xf32>
    %311 = vector.multi_reduction <add>, %306, %cst_182 [1] : vector<34x32xf32> to vector<34xf32>
    %312 = vector.shape_cast %311 : vector<34xf32> to vector<34x1xf32>
    %cst_183 = arith.constant 3.200000e+01 : f32
    %313 = vector.broadcast %cst_183 : f32 to vector<34x1xf32>
    %314 = arith.divf %312, %313 : vector<34x1xf32>
    %315 = vector.broadcast %314 : vector<34x1xf32> to vector<34x32xf32>
    %316 = arith.subf %306, %315 : vector<34x32xf32>
    %317 = arith.mulf %316, %316 : vector<34x32xf32>
    %cst_184 = arith.constant dense<0.000000e+00> : vector<34xf32>
    %318 = vector.multi_reduction <add>, %317, %cst_184 [1] : vector<34x32xf32> to vector<34xf32>
    %319 = vector.shape_cast %318 : vector<34xf32> to vector<34x1xf32>
    %cst_185 = arith.constant 3.200000e+01 : f32
    %320 = vector.broadcast %cst_185 : f32 to vector<34x1xf32>
    %321 = arith.divf %319, %320 : vector<34x1xf32>
    %322 = vector.broadcast %314 : vector<34x1xf32> to vector<34x32xf32>
    %323 = arith.subf %306, %322 : vector<34x32xf32>
    %cst_186 = arith.constant 9.99999997E-7 : f32
    %324 = vector.broadcast %cst_186 : f32 to vector<34x1xf32>
    %325 = arith.addf %321, %324 : vector<34x1xf32>
    %326 = math.rsqrt %325 : vector<34x1xf32>
    %327 = vector.broadcast %326 : vector<34x1xf32> to vector<34x32xf32>
    %328 = arith.mulf %323, %327 : vector<34x32xf32>
    %329 = vector.broadcast %308 : vector<1x32xf32> to vector<34x32xf32>
    %330 = arith.mulf %328, %329 : vector<34x32xf32>
    %331 = vector.broadcast %310 : vector<1x32xf32> to vector<34x32xf32>
    %332 = arith.addf %330, %331 : vector<34x32xf32>
    %c3_187 = arith.constant 3 : index
    %c0_188 = arith.constant 0 : index
    %c0_189 = arith.constant 0 : index
    %333 = vector.load %arg19[%c3_187, %c0_188, %c0_189] : memref<4x32x64xf32, #tpu.memory_space<vmem>>, vector<1x32x64xf32>
    %334 = vector.shape_cast %333 : vector<1x32x64xf32> to vector<32x64xf32>
    %cst_190 = arith.constant dense<0.000000e+00> : vector<34x64xf32>
    %335 = tpu.matmul %332, %334, %cst_190 {dimension_numbers = #tpu.dot_dimension_numbers<[1], [0], [0], [1], [0, 0, 1, 1], [], []>} : vector<34x32xf32>, vector<32x64xf32>, vector<34x64xf32> -> vector<34x64xf32>
    %c3_191 = arith.constant 3 : index
    %c0_192 = arith.constant 0 : index
    %c0_193 = arith.constant 0 : index
    %336 = vector.load %arg20[%c3_191, %c0_192, %c0_193] : memref<4x1x64xf32, #tpu.memory_space<vmem>>, vector<1x1x64xf32>
    %337 = vector.shape_cast %336 : vector<1x1x64xf32> to vector<1x64xf32>
    %338 = vector.broadcast %337 : vector<1x64xf32> to vector<34x64xf32>
    %339 = arith.addf %335, %338 : vector<34x64xf32>
    %cst_194 = arith.constant 5.000000e-01 : f32
    %340 = vector.broadcast %cst_194 : f32 to vector<34x64xf32>
    %341 = arith.mulf %339, %340 : vector<34x64xf32>
    %cst_195 = arith.constant 2.000000e+00 : f32
    %342 = math.sqrt %cst_195 : f32
    %343 = vector.broadcast %342 : f32 to vector<34x64xf32>
    %344 = arith.divf %339, %343 : vector<34x64xf32>
    %345 = math.erf %344 : vector<34x64xf32>
    %cst_196 = arith.constant 1.000000e+00 : f32
    %346 = vector.broadcast %cst_196 : f32 to vector<34x64xf32>
    %347 = arith.addf %346, %345 : vector<34x64xf32>
    %348 = arith.mulf %341, %347 : vector<34x64xf32>
    %c3_197 = arith.constant 3 : index
    %c0_198 = arith.constant 0 : index
    %c0_199 = arith.constant 0 : index
    %349 = vector.load %arg21[%c3_197, %c0_198, %c0_199] : memref<4x64x32xf32, #tpu.memory_space<vmem>>, vector<1x64x32xf32>
    %350 = vector.shape_cast %349 : vector<1x64x32xf32> to vector<64x32xf32>
    %cst_200 = arith.constant dense<0.000000e+00> : vector<34x32xf32>
    %351 = tpu.matmul %348, %350, %cst_200 {dimension_numbers = #tpu.dot_dimension_numbers<[1], [0], [0], [1], [0, 0, 1, 1], [], []>} : vector<34x64xf32>, vector<64x32xf32>, vector<34x32xf32> -> vector<34x32xf32>
    %c3_201 = arith.constant 3 : index
    %c0_202 = arith.constant 0 : index
    %c0_203 = arith.constant 0 : index
    %352 = vector.load %arg22[%c3_201, %c0_202, %c0_203] : memref<4x1x32xf32, #tpu.memory_space<vmem>>, vector<1x1x32xf32>
    %353 = vector.shape_cast %352 : vector<1x1x32xf32> to vector<1x32xf32>
    %354 = vector.broadcast %353 : vector<1x32xf32> to vector<34x32xf32>
    %355 = arith.addf %351, %354 : vector<34x32xf32>
    %356 = arith.addf %306, %355 : vector<34x32xf32>
    %c2 = arith.constant 2 : index
    %c0_204 = arith.constant 0 : index
    %c0_205 = arith.constant 0 : index
    %357 = vector.load %arg11[%c2, %c0_204, %c0_205] : memref<4x1x32xf32, #tpu.memory_space<vmem>>, vector<1x1x32xf32>
    %358 = vector.shape_cast %357 : vector<1x1x32xf32> to vector<1x32xf32>
    %c2_206 = arith.constant 2 : index
    %c0_207 = arith.constant 0 : index
    %c0_208 = arith.constant 0 : index
    %359 = vector.load %arg12[%c2_206, %c0_207, %c0_208] : memref<4x1x32xf32, #tpu.memory_space<vmem>>, vector<1x1x32xf32>
    %360 = vector.shape_cast %359 : vector<1x1x32xf32> to vector<1x32xf32>
    %cst_209 = arith.constant dense<0.000000e+00> : vector<34xf32>
    %361 = vector.multi_reduction <add>, %238, %cst_209 [1] : vector<34x32xf32> to vector<34xf32>
    %362 = vector.shape_cast %361 : vector<34xf32> to vector<34x1xf32>
    %cst_210 = arith.constant 3.200000e+01 : f32
    %363 = vector.broadcast %cst_210 : f32 to vector<34x1xf32>
    %364 = arith.divf %362, %363 : vector<34x1xf32>
    %365 = vector.broadcast %364 : vector<34x1xf32> to vector<34x32xf32>
    %366 = arith.subf %238, %365 : vector<34x32xf32>
    %367 = arith.mulf %366, %366 : vector<34x32xf32>
    %cst_211 = arith.constant dense<0.000000e+00> : vector<34xf32>
    %368 = vector.multi_reduction <add>, %367, %cst_211 [1] : vector<34x32xf32> to vector<34xf32>
    %369 = vector.shape_cast %368 : vector<34xf32> to vector<34x1xf32>
    %cst_212 = arith.constant 3.200000e+01 : f32
    %370 = vector.broadcast %cst_212 : f32 to vector<34x1xf32>
    %371 = arith.divf %369, %370 : vector<34x1xf32>
    %372 = vector.broadcast %364 : vector<34x1xf32> to vector<34x32xf32>
    %373 = arith.subf %238, %372 : vector<34x32xf32>
    %cst_213 = arith.constant 9.99999997E-7 : f32
    %374 = vector.broadcast %cst_213 : f32 to vector<34x1xf32>
    %375 = arith.addf %371, %374 : vector<34x1xf32>
    %376 = math.rsqrt %375 : vector<34x1xf32>
    %377 = vector.broadcast %376 : vector<34x1xf32> to vector<34x32xf32>
    %378 = arith.mulf %373, %377 : vector<34x32xf32>
    %379 = vector.broadcast %358 : vector<1x32xf32> to vector<34x32xf32>
    %380 = arith.mulf %378, %379 : vector<34x32xf32>
    %381 = vector.broadcast %360 : vector<1x32xf32> to vector<34x32xf32>
    %382 = arith.addf %380, %381 : vector<34x32xf32>
    %c2_214 = arith.constant 2 : index
    %c0_215 = arith.constant 0 : index
    %c0_216 = arith.constant 0 : index
    %383 = vector.load %arg13[%c2_214, %c0_215, %c0_216] : memref<4x32x96xf32, #tpu.memory_space<vmem>>, vector<1x32x96xf32>
    %384 = vector.shape_cast %383 : vector<1x32x96xf32> to vector<32x96xf32>
    %cst_217 = arith.constant dense<0.000000e+00> : vector<34x96xf32>
    %385 = tpu.matmul %382, %384, %cst_217 {dimension_numbers = #tpu.dot_dimension_numbers<[1], [0], [0], [1], [0, 0, 1, 1], [], []>} : vector<34x32xf32>, vector<32x96xf32>, vector<34x96xf32> -> vector<34x96xf32>
    %c2_218 = arith.constant 2 : index
    %c0_219 = arith.constant 0 : index
    %c0_220 = arith.constant 0 : index
    %386 = vector.load %arg14[%c2_218, %c0_219, %c0_220] : memref<4x1x96xf32, #tpu.memory_space<vmem>>, vector<1x1x96xf32>
    %387 = vector.shape_cast %386 : vector<1x1x96xf32> to vector<1x96xf32>
    %388 = vector.broadcast %387 : vector<1x96xf32> to vector<34x96xf32>
    %389 = arith.addf %385, %388 : vector<34x96xf32>
    %390 = vector.extract_strided_slice %389 {offsets = [0, 0], sizes = [34, 32], strides = [1, 1]} : vector<34x96xf32> to vector<34x32xf32>
    %cst_221 = arith.constant 0.353553385 : f32
    %391 = vector.broadcast %cst_221 : f32 to vector<34x32xf32>
    %392 = arith.mulf %390, %391 : vector<34x32xf32>
    %393 = vector.extract_strided_slice %389 {offsets = [0, 32], sizes = [34, 32], strides = [1, 1]} : vector<34x96xf32> to vector<34x32xf32>
    %394 = vector.extract_strided_slice %389 {offsets = [0, 64], sizes = [34, 32], strides = [1, 1]} : vector<34x96xf32> to vector<34x32xf32>
    %cst_222 = arith.constant dense<0.000000e+00> : vector<136x32xf32>
    %395 = tpu.matmul %10, %393, %cst_222 {dimension_numbers = #tpu.dot_dimension_numbers<[1], [0], [0], [1], [0, 0, 1, 1], [], []>} : vector<136x34xf32>, vector<34x32xf32>, vector<136x32xf32> -> vector<136x32xf32>
    %396 = arith.mulf %395, %11 : vector<136x32xf32>
    %cst_223 = arith.constant dense<0.000000e+00> : vector<136x32xf32>
    %397 = tpu.matmul %10, %394, %cst_223 {dimension_numbers = #tpu.dot_dimension_numbers<[1], [0], [0], [1], [0, 0, 1, 1], [], []>} : vector<136x34xf32>, vector<34x32xf32>, vector<136x32xf32> -> vector<136x32xf32>
    %398 = arith.mulf %397, %11 : vector<136x32xf32>
    %cst_224 = arith.constant dense<0.000000e+00> : vector<34x136xf32>
    %399 = tpu.matmul %392, %396, %cst_224 {dimension_numbers = #tpu.dot_dimension_numbers<[1], [1], [0], [0], [0, 0, 1, 0], [], []>} : vector<34x32xf32>, vector<136x32xf32>, vector<34x136xf32> -> vector<34x136xf32>
    %400 = arith.addf %399, %12 : vector<34x136xf32>
    %cst_225 = arith.constant dense<0xFF800000> : vector<34xf32>
    %401 = vector.multi_reduction <maximumf>, %400, %cst_225 [1] : vector<34x136xf32> to vector<34xf32>
    %402 = vector.shape_cast %401 : vector<34xf32> to vector<34x1xf32>
    %403 = vector.broadcast %402 : vector<34x1xf32> to vector<34x136xf32>
    %404 = arith.subf %400, %403 : vector<34x136xf32>
    %405 = math.exp %404 : vector<34x136xf32>
    %cst_226 = arith.constant dense<0.000000e+00> : vector<34x136xf32>
    %406 = tpu.matmul %405, %14, %cst_226 {dimension_numbers = #tpu.dot_dimension_numbers<[1], [0], [0], [1], [0, 0, 1, 1], [], []>} : vector<34x136xf32>, vector<136x136xf32>, vector<34x136xf32> -> vector<34x136xf32>
    %407 = arith.addf %406, %13 : vector<34x136xf32>
    %408 = tpu.reciprocal %407 {approx = true} : vector<34x136xf32> -> vector<34x136xf32>
    %409 = arith.mulf %405, %408 : vector<34x136xf32>
    %cst_227 = arith.constant dense<0.000000e+00> : vector<34x32xf32>
    %410 = tpu.matmul %409, %398, %cst_227 {dimension_numbers = #tpu.dot_dimension_numbers<[1], [0], [0], [1], [0, 0, 1, 1], [], []>} : vector<34x136xf32>, vector<136x32xf32>, vector<34x32xf32> -> vector<34x32xf32>
    %c2_228 = arith.constant 2 : index
    %c0_229 = arith.constant 0 : index
    %c0_230 = arith.constant 0 : index
    %411 = vector.load %arg15[%c2_228, %c0_229, %c0_230] : memref<4x32x32xf32, #tpu.memory_space<vmem>>, vector<1x32x32xf32>
    %412 = vector.shape_cast %411 : vector<1x32x32xf32> to vector<32x32xf32>
    %cst_231 = arith.constant dense<0.000000e+00> : vector<34x32xf32>
    %413 = tpu.matmul %410, %412, %cst_231 {dimension_numbers = #tpu.dot_dimension_numbers<[1], [0], [0], [1], [0, 0, 1, 1], [], []>} : vector<34x32xf32>, vector<32x32xf32>, vector<34x32xf32> -> vector<34x32xf32>
    %c2_232 = arith.constant 2 : index
    %c0_233 = arith.constant 0 : index
    %c0_234 = arith.constant 0 : index
    %414 = vector.load %arg16[%c2_232, %c0_233, %c0_234] : memref<4x1x32xf32, #tpu.memory_space<vmem>>, vector<1x1x32xf32>
    %415 = vector.shape_cast %414 : vector<1x1x32xf32> to vector<1x32xf32>
    %416 = vector.broadcast %415 : vector<1x32xf32> to vector<34x32xf32>
    %417 = arith.addf %413, %416 : vector<34x32xf32>
    %418 = arith.addf %238, %417 : vector<34x32xf32>
    %c2_235 = arith.constant 2 : index
    %c0_236 = arith.constant 0 : index
    %c0_237 = arith.constant 0 : index
    %419 = vector.load %arg17[%c2_235, %c0_236, %c0_237] : memref<4x1x32xf32, #tpu.memory_space<vmem>>, vector<1x1x32xf32>
    %420 = vector.shape_cast %419 : vector<1x1x32xf32> to vector<1x32xf32>
    %c2_238 = arith.constant 2 : index
    %c0_239 = arith.constant 0 : index
    %c0_240 = arith.constant 0 : index
    %421 = vector.load %arg18[%c2_238, %c0_239, %c0_240] : memref<4x1x32xf32, #tpu.memory_space<vmem>>, vector<1x1x32xf32>
    %422 = vector.shape_cast %421 : vector<1x1x32xf32> to vector<1x32xf32>
    %cst_241 = arith.constant dense<0.000000e+00> : vector<34xf32>
    %423 = vector.multi_reduction <add>, %418, %cst_241 [1] : vector<34x32xf32> to vector<34xf32>
    %424 = vector.shape_cast %423 : vector<34xf32> to vector<34x1xf32>
    %cst_242 = arith.constant 3.200000e+01 : f32
    %425 = vector.broadcast %cst_242 : f32 to vector<34x1xf32>
    %426 = arith.divf %424, %425 : vector<34x1xf32>
    %427 = vector.broadcast %426 : vector<34x1xf32> to vector<34x32xf32>
    %428 = arith.subf %418, %427 : vector<34x32xf32>
    %429 = arith.mulf %428, %428 : vector<34x32xf32>
    %cst_243 = arith.constant dense<0.000000e+00> : vector<34xf32>
    %430 = vector.multi_reduction <add>, %429, %cst_243 [1] : vector<34x32xf32> to vector<34xf32>
    %431 = vector.shape_cast %430 : vector<34xf32> to vector<34x1xf32>
    %cst_244 = arith.constant 3.200000e+01 : f32
    %432 = vector.broadcast %cst_244 : f32 to vector<34x1xf32>
    %433 = arith.divf %431, %432 : vector<34x1xf32>
    %434 = vector.broadcast %426 : vector<34x1xf32> to vector<34x32xf32>
    %435 = arith.subf %418, %434 : vector<34x32xf32>
    %cst_245 = arith.constant 9.99999997E-7 : f32
    %436 = vector.broadcast %cst_245 : f32 to vector<34x1xf32>
    %437 = arith.addf %433, %436 : vector<34x1xf32>
    %438 = math.rsqrt %437 : vector<34x1xf32>
    %439 = vector.broadcast %438 : vector<34x1xf32> to vector<34x32xf32>
    %440 = arith.mulf %435, %439 : vector<34x32xf32>
    %441 = vector.broadcast %420 : vector<1x32xf32> to vector<34x32xf32>
    %442 = arith.mulf %440, %441 : vector<34x32xf32>
    %443 = vector.broadcast %422 : vector<1x32xf32> to vector<34x32xf32>
    %444 = arith.addf %442, %443 : vector<34x32xf32>
    %c2_246 = arith.constant 2 : index
    %c0_247 = arith.constant 0 : index
    %c0_248 = arith.constant 0 : index
    %445 = vector.load %arg19[%c2_246, %c0_247, %c0_248] : memref<4x32x64xf32, #tpu.memory_space<vmem>>, vector<1x32x64xf32>
    %446 = vector.shape_cast %445 : vector<1x32x64xf32> to vector<32x64xf32>
    %cst_249 = arith.constant dense<0.000000e+00> : vector<34x64xf32>
    %447 = tpu.matmul %444, %446, %cst_249 {dimension_numbers = #tpu.dot_dimension_numbers<[1], [0], [0], [1], [0, 0, 1, 1], [], []>} : vector<34x32xf32>, vector<32x64xf32>, vector<34x64xf32> -> vector<34x64xf32>
    %c2_250 = arith.constant 2 : index
    %c0_251 = arith.constant 0 : index
    %c0_252 = arith.constant 0 : index
    %448 = vector.load %arg20[%c2_250, %c0_251, %c0_252] : memref<4x1x64xf32, #tpu.memory_space<vmem>>, vector<1x1x64xf32>
    %449 = vector.shape_cast %448 : vector<1x1x64xf32> to vector<1x64xf32>
    %450 = vector.broadcast %449 : vector<1x64xf32> to vector<34x64xf32>
    %451 = arith.addf %447, %450 : vector<34x64xf32>
    %cst_253 = arith.constant 5.000000e-01 : f32
    %452 = vector.broadcast %cst_253 : f32 to vector<34x64xf32>
    %453 = arith.mulf %451, %452 : vector<34x64xf32>
    %cst_254 = arith.constant 2.000000e+00 : f32
    %454 = math.sqrt %cst_254 : f32
    %455 = vector.broadcast %454 : f32 to vector<34x64xf32>
    %456 = arith.divf %451, %455 : vector<34x64xf32>
    %457 = math.erf %456 : vector<34x64xf32>
    %cst_255 = arith.constant 1.000000e+00 : f32
    %458 = vector.broadcast %cst_255 : f32 to vector<34x64xf32>
    %459 = arith.addf %458, %457 : vector<34x64xf32>
    %460 = arith.mulf %453, %459 : vector<34x64xf32>
    %c2_256 = arith.constant 2 : index
    %c0_257 = arith.constant 0 : index
    %c0_258 = arith.constant 0 : index
    %461 = vector.load %arg21[%c2_256, %c0_257, %c0_258] : memref<4x64x32xf32, #tpu.memory_space<vmem>>, vector<1x64x32xf32>
    %462 = vector.shape_cast %461 : vector<1x64x32xf32> to vector<64x32xf32>
    %cst_259 = arith.constant dense<0.000000e+00> : vector<34x32xf32>
    %463 = tpu.matmul %460, %462, %cst_259 {dimension_numbers = #tpu.dot_dimension_numbers<[1], [0], [0], [1], [0, 0, 1, 1], [], []>} : vector<34x64xf32>, vector<64x32xf32>, vector<34x32xf32> -> vector<34x32xf32>
    %c2_260 = arith.constant 2 : index
    %c0_261 = arith.constant 0 : index
    %c0_262 = arith.constant 0 : index
    %464 = vector.load %arg22[%c2_260, %c0_261, %c0_262] : memref<4x1x32xf32, #tpu.memory_space<vmem>>, vector<1x1x32xf32>
    %465 = vector.shape_cast %464 : vector<1x1x32xf32> to vector<1x32xf32>
    %466 = vector.broadcast %465 : vector<1x32xf32> to vector<34x32xf32>
    %467 = arith.addf %463, %466 : vector<34x32xf32>
    %468 = arith.addf %418, %467 : vector<34x32xf32>
    %c1_263 = arith.constant 1 : index
    %c0_264 = arith.constant 0 : index
    %c0_265 = arith.constant 0 : index
    %469 = vector.load %arg23[%c1_263, %c0_264, %c0_265] : memref<2x34x32xf32, #tpu.memory_space<vmem>>, vector<1x34x32xf32>
    %470 = vector.shape_cast %469 : vector<1x34x32xf32> to vector<34x32xf32>
    %471 = vector.shape_cast %468 : vector<34x32xf32> to vector<1x34x32xf32>
    tpu.vector_store %arg23[%c1_263, %c0_264, %c0_265], %471 {strides = array<i32>} : memref<2x34x32xf32, #tpu.memory_space<vmem>>, vector<1x34x32xf32>,
    %c1_266 = arith.constant 1 : index
    %c0_267 = arith.constant 0 : index
    %c0_268 = arith.constant 0 : index
    %472 = vector.load %arg24[%c1_266, %c0_267, %c0_268] : memref<2x34x32xf32, #tpu.memory_space<vmem>>, vector<1x34x32xf32>
    %473 = vector.shape_cast %472 : vector<1x34x32xf32> to vector<34x32xf32>
    %474 = vector.shape_cast %356 : vector<34x32xf32> to vector<1x34x32xf32>
    tpu.vector_store %arg24[%c1_266, %c0_267, %c0_268], %474 {strides = array<i32>} : memref<2x34x32xf32, #tpu.memory_space<vmem>>, vector<1x34x32xf32>,
    return
  }
  func.func @transform_0(%arg0: i32) -> (i32, i32) {
    %c0_i32 = arith.constant 0 : i32
    %c0_i32_0 = arith.constant 0 : i32
    %c0_i32_1 = arith.constant 0 : i32
    return %c0_i32, %c0_i32_0 : i32, i32
  }
  func.func @transform_1(%arg0: i32) -> (i32, i32) {
    %c0_i32 = arith.constant 0 : i32
    %c0_i32_0 = arith.constant 0 : i32
    %c0_i32_1 = arith.constant 0 : i32
    return %c0_i32, %c0_i32_0 : i32, i32
  }
  func.func @transform_2(%arg0: i32) -> (i32, i32) {
    %c0_i32 = arith.constant 0 : i32
    %c0_i32_0 = arith.constant 0 : i32
    %c0_i32_1 = arith.constant 0 : i32
    return %c0_i32, %c0_i32_0 : i32, i32
  }
  func.func @transform_3(%arg0: i32) -> (i32, i32) {
    %c0_i32 = arith.constant 0 : i32
    %c0_i32_0 = arith.constant 0 : i32
    %c0_i32_1 = arith.constant 0 : i32
    return %c0_i32, %c0_i32_0 : i32, i32
  }
  func.func @transform_4(%arg0: i32) -> (i32, i32) {
    %c0_i32 = arith.constant 0 : i32
    %c0_i32_0 = arith.constant 0 : i32
    %c0_i32_1 = arith.constant 0 : i32
    return %c0_i32, %c0_i32_0 : i32, i32
  }
  func.func @transform_5(%arg0: i32) -> (i32, i32) {
    %c0_i32 = arith.constant 0 : i32
    %c0_i32_0 = arith.constant 0 : i32
    %c0_i32_1 = arith.constant 0 : i32
    return %c0_i32, %c0_i32_0 : i32, i32
  }
  func.func @transform_6(%arg0: i32) -> (i32, i32) {
    %c0_i32 = arith.constant 0 : i32
    %c0_i32_0 = arith.constant 0 : i32
    %c0_i32_1 = arith.constant 0 : i32
    return %c0_i32, %c0_i32_0 : i32, i32
  }
  func.func @transform_7(%arg0: i32) -> (i32, i32) {
    %c0_i32 = arith.constant 0 : i32
    %c0_i32_0 = arith.constant 0 : i32
    %c0_i32_1 = arith.constant 0 : i32
    return %c0_i32, %c0_i32_0 : i32, i32
  }
  func.func @transform_8(%arg0: i32) -> (i32, i32) {
    %c0_i32 = arith.constant 0 : i32
    %c0_i32_0 = arith.constant 0 : i32
    %c0_i32_1 = arith.constant 0 : i32
    return %c0_i32, %c0_i32_0 : i32, i32
  }
  func.func @transform_9(%arg0: i32) -> (i32, i32) {
    %c0_i32 = arith.constant 0 : i32
    %c0_i32_0 = arith.constant 0 : i32
    %c0_i32_1 = arith.constant 0 : i32
    return %c0_i32, %c0_i32_0 : i32, i32
  }
  func.func @transform_10(%arg0: i32) -> (i32, i32, i32) {
    %c0_i32 = arith.constant 0 : i32
    %c0_i32_0 = arith.constant 0 : i32
    %c0_i32_1 = arith.constant 0 : i32
    %c0_i32_2 = arith.constant 0 : i32
    return %c0_i32, %c0_i32_0, %c0_i32_1 : i32, i32, i32
  }
  func.func @transform_11(%arg0: i32) -> (i32, i32, i32) {
    %c0_i32 = arith.constant 0 : i32
    %c0_i32_0 = arith.constant 0 : i32
    %c0_i32_1 = arith.constant 0 : i32
    %c0_i32_2 = arith.constant 0 : i32
    return %c0_i32, %c0_i32_0, %c0_i32_1 : i32, i32, i32
  }
  func.func @transform_12(%arg0: i32) -> (i32, i32, i32) {
    %c0_i32 = arith.constant 0 : i32
    %c0_i32_0 = arith.constant 0 : i32
    %c0_i32_1 = arith.constant 0 : i32
    %c0_i32_2 = arith.constant 0 : i32
    return %c0_i32, %c0_i32_0, %c0_i32_1 : i32, i32, i32
  }
  func.func @transform_13(%arg0: i32) -> (i32, i32, i32) {
    %c0_i32 = arith.constant 0 : i32
    %c0_i32_0 = arith.constant 0 : i32
    %c0_i32_1 = arith.constant 0 : i32
    %c0_i32_2 = arith.constant 0 : i32
    return %c0_i32, %c0_i32_0, %c0_i32_1 : i32, i32, i32
  }
  func.func @transform_14(%arg0: i32) -> (i32, i32, i32) {
    %c0_i32 = arith.constant 0 : i32
    %c0_i32_0 = arith.constant 0 : i32
    %c0_i32_1 = arith.constant 0 : i32
    %c0_i32_2 = arith.constant 0 : i32
    return %c0_i32, %c0_i32_0, %c0_i32_1 : i32, i32, i32
  }
  func.func @transform_15(%arg0: i32) -> (i32, i32, i32) {
    %c0_i32 = arith.constant 0 : i32
    %c0_i32_0 = arith.constant 0 : i32
    %c0_i32_1 = arith.constant 0 : i32
    %c0_i32_2 = arith.constant 0 : i32
    return %c0_i32, %c0_i32_0, %c0_i32_1 : i32, i32, i32
  }
  func.func @transform_16(%arg0: i32) -> (i32, i32, i32) {
    %c0_i32 = arith.constant 0 : i32
    %c0_i32_0 = arith.constant 0 : i32
    %c0_i32_1 = arith.constant 0 : i32
    %c0_i32_2 = arith.constant 0 : i32
    return %c0_i32, %c0_i32_0, %c0_i32_1 : i32, i32, i32
  }
  func.func @transform_17(%arg0: i32) -> (i32, i32, i32) {
    %c0_i32 = arith.constant 0 : i32
    %c0_i32_0 = arith.constant 0 : i32
    %c0_i32_1 = arith.constant 0 : i32
    %c0_i32_2 = arith.constant 0 : i32
    return %c0_i32, %c0_i32_0, %c0_i32_1 : i32, i32, i32
  }
  func.func @transform_18(%arg0: i32) -> (i32, i32, i32) {
    %c0_i32 = arith.constant 0 : i32
    %c0_i32_0 = arith.constant 0 : i32
    %c0_i32_1 = arith.constant 0 : i32
    %c0_i32_2 = arith.constant 0 : i32
    return %c0_i32, %c0_i32_0, %c0_i32_1 : i32, i32, i32
  }
  func.func @transform_19(%arg0: i32) -> (i32, i32, i32) {
    %c0_i32 = arith.constant 0 : i32
    %c0_i32_0 = arith.constant 0 : i32
    %c0_i32_1 = arith.constant 0 : i32
    %c0_i32_2 = arith.constant 0 : i32
    return %c0_i32, %c0_i32_0, %c0_i32_1 : i32, i32, i32
  }
  func.func @transform_20(%arg0: i32) -> (i32, i32, i32) {
    %c0_i32 = arith.constant 0 : i32
    %c0_i32_0 = arith.constant 0 : i32
    %c0_i32_1 = arith.constant 0 : i32
    %c0_i32_2 = arith.constant 0 : i32
    return %c0_i32, %c0_i32_0, %c0_i32_1 : i32, i32, i32
  }
  func.func @transform_21(%arg0: i32) -> (i32, i32, i32) {
    %c0_i32 = arith.constant 0 : i32
    %c0_i32_0 = arith.constant 0 : i32
    %c0_i32_1 = arith.constant 0 : i32
    %c0_i32_2 = arith.constant 0 : i32
    return %c0_i32, %c0_i32_0, %c0_i32_1 : i32, i32, i32
  }
  func.func @transform_22(%arg0: i32) -> (i32, i32, i32) {
    %c0_i32 = arith.constant 0 : i32
    %c0_i32_0 = arith.constant 0 : i32
    %c0_i32_1 = arith.constant 0 : i32
    %c0_i32_2 = arith.constant 0 : i32
    return %c0_i32, %c0_i32_0, %c0_i32_1 : i32, i32, i32
  }
  func.func @transform_23(%arg0: i32) -> (i32, i32, i32) {
    %c0_i32 = arith.constant 0 : i32
    %c0_i32_0 = arith.constant 0 : i32
    %c0_i32_1 = arith.constant 0 : i32
    %c0_i32_2 = arith.constant 0 : i32
    return %c0_i32, %c0_i32_0, %c0_i32_1 : i32, i32, i32
  }
}

</mosaic_0001>

<llo_original>
// kernel: anomaly_vit_forward.1
$region0: #{anomaly_vit_forward.1}
  #allocation0 [shape = 'u32[]', space=smem, size = 0x4, offset = 0x4, fixed_abs, tag = 'smem constant byte address 0x4 - core index']
  #allocation1 [shape = 'u32[144,128]{1,0:T(1,128)}', space=vmem, size = 0x12000, scoped, tag = 'internal scratch']
  %s0 = inlined_call_operand.vmem [shape: f32[32,48], index: 0, kind: input, shape index: {}]
  %s1 = inlined_call_operand.vmem [shape: f32[48,32], index: 1, kind: input, shape index: {}]
  %s2 = inlined_call_operand.vmem [shape: f32[1,32], index: 2, kind: input, shape index: {}]
  %s3 = inlined_call_operand.vmem [shape: f32[34,32], index: 3, kind: input, shape index: {}]
  %s4 = inlined_call_operand.vmem [shape: f32[34,32], index: 4, kind: input, shape index: {}]
  %s5 = inlined_call_operand.vmem [shape: f32[136,34], index: 5, kind: input, shape index: {}]
  %s6 = inlined_call_operand.vmem [shape: f32[136,32], index: 6, kind: input, shape index: {}]
  %s7 = inlined_call_operand.vmem [shape: f32[34,136], index: 7, kind: input, shape index: {}]
  %s8 = inlined_call_operand.vmem [shape: f32[34,136], index: 8, kind: input, shape index: {}]
  %s9 = inlined_call_operand.vmem [shape: f32[136,136], index: 9, kind: input, shape index: {}]
  %s10 = inlined_call_operand.vmem [shape: f32[4,1,32], index: 10, kind: input, shape index: {}, may-alias: {10,16}]
  %s11 = inlined_call_operand.vmem [shape: f32[4,1,32], index: 11, kind: input, shape index: {}, may-alias: {11,17}]
  %s12 = inlined_call_operand.vmem [shape: f32[4,32,96], index: 12, kind: input, shape index: {}]
  %s13 = inlined_call_operand.vmem [shape: f32[4,1,96], index: 13, kind: input, shape index: {}]
  %s14 = inlined_call_operand.vmem [shape: f32[4,32,32], index: 14, kind: input, shape index: {}]
  %s15 = inlined_call_operand.vmem [shape: f32[4,1,32], index: 15, kind: input, shape index: {}]
  %s16 = inlined_call_operand.vmem [shape: f32[4,1,32], index: 16, kind: input, shape index: {}, may-alias: {10,16}]
  %s17 = inlined_call_operand.vmem [shape: f32[4,1,32], index: 17, kind: input, shape index: {}, may-alias: {11,17}]
  %s18 = inlined_call_operand.vmem [shape: f32[4,32,64], index: 18, kind: input, shape index: {}]
  %s19 = inlined_call_operand.vmem [shape: f32[4,1,64], index: 19, kind: input, shape index: {}]
  %s20 = inlined_call_operand.vmem [shape: f32[4,64,32], index: 20, kind: input, shape index: {}]
  %s21 = inlined_call_operand.vmem [shape: f32[4,1,32], index: 21, kind: input, shape index: {}]
  %s22 = inlined_call_operand.vmem [shape: f32[2,34,32], index: 22, kind: output, shape index: {0}]
  %s23 = inlined_call_operand.vmem [shape: f32[2,34,32], index: 23, kind: output, shape index: {1}]
  %24 = xla_tuple %s22, %s23
  %s25 = sld [smem:[#allocation0]]
  $region106: #{anomaly_vit_forward.1} parent=0
    _
  %s27 = ssub.s32 1, %s25
  %s28 = scalar_select 0, %s27, %s25
  // Predicated region
  $region2: #{anomaly_vit_forward.1} parent=0 // pred_check
    _
  $region3: #{anomaly_vit_forward.1} parent=0 // pred_check_branch
    %30 = sbr.rel (0) target = $region5
  $region4: #{anomaly_vit_forward.1} parent=0 // pred_region
    _
  $region5: #{anomaly_vit_forward.1} parent=0 // pred_fallthru
    _
  // Predicated region
  $region6: #{anomaly_vit_forward.1} parent=0 // pred_check
    _
  $region7: #{anomaly_vit_forward.1} parent=0 // pred_check_branch
    %32 = sbr.rel (0) target = $region9
  $region8: #{anomaly_vit_forward.1} parent=0 // pred_region
    _
  $region9: #{anomaly_vit_forward.1} parent=0 // pred_fallthru
    _
  // Predicated region
  $region10: #{anomaly_vit_forward.1} parent=0 // pred_check
    _
  $region11: #{anomaly_vit_forward.1} parent=0 // pred_check_branch
    %34 = sbr.rel (0) target = $region13
  $region12: #{anomaly_vit_forward.1} parent=0 // pred_region
    _
  $region13: #{anomaly_vit_forward.1} parent=0 // pred_fallthru
    _
  // Predicated region
  $region14: #{anomaly_vit_forward.1} parent=0 // pred_check
    _
  $region15: #{anomaly_vit_forward.1} parent=0 // pred_check_branch
    %36 = sbr.rel (0) target = $region17
  $region16: #{anomaly_vit_forward.1} parent=0 // pred_region
    _
  $region17: #{anomaly_vit_forward.1} parent=0 // pred_fallthru
    _
  // Predicated region
  $region18: #{anomaly_vit_forward.1} parent=0 // pred_check
    _
  $region19: #{anomaly_vit_forward.1} parent=0 // pred_check_branch
    %38 = sbr.rel (0) target = $region21
  $region20: #{anomaly_vit_forward.1} parent=0 // pred_region
    _
  $region21: #{anomaly_vit_forward.1} parent=0 // pred_fallthru
    _
  // Predicated region
  $region22: #{anomaly_vit_forward.1} parent=0 // pred_check
    _
  $region23: #{anomaly_vit_forward.1} parent=0 // pred_check_branch
    %40 = sbr.rel (0) target = $region25
  $region24: #{anomaly_vit_forward.1} parent=0 // pred_region
    _
  $region25: #{anomaly_vit_forward.1} parent=0 // pred_fallthru
    _
  // Predicated region
  $region26: #{anomaly_vit_forward.1} parent=0 // pred_check
    _
  $region27: #{anomaly_vit_forward.1} parent=0 // pred_check_branch
    %42 = sbr.rel (0) target = $region29
  $region28: #{anomaly_vit_forward.1} parent=0 // pred_region
    _
  $region29: #{anomaly_vit_forward.1} parent=0 // pred_fallthru
    _
  // Predicated region
  $region30: #{anomaly_vit_forward.1} parent=0 // pred_check
    _
  $region31: #{anomaly_vit_forward.1} parent=0 // pred_check_branch
    %44 = sbr.rel (0) target = $region33
  $region32: #{anomaly_vit_forward.1} parent=0 // pred_region
    _
  $region33: #{anomaly_vit_forward.1} parent=0 // pred_fallthru
    _
  // Predicated region
  $region34: #{anomaly_vit_forward.1} parent=0 // pred_check
    _
  $region35: #{anomaly_vit_forward.1} parent=0 // pred_check_branch
    %46 = sbr.rel (0) target = $region37
  $region36: #{anomaly_vit_forward.1} parent=0 // pred_region
    _
  $region37: #{anomaly_vit_forward.1} parent=0 // pred_fallthru
    _
  // Predicated region
  $region38: #{anomaly_vit_forward.1} parent=0 // pred_check
    _
  $region39: #{anomaly_vit_forward.1} parent=0 // pred_check_branch
    %48 = sbr.rel (0) target = $region41
  $region40: #{anomaly_vit_forward.1} parent=0 // pred_region
    _
  $region41: #{anomaly_vit_forward.1} parent=0 // pred_fallthru
    _
  // Predicated region
  $region42: #{anomaly_vit_forward.1} parent=0 // pred_check
    _
  $region43: #{anomaly_vit_forward.1} parent=0 // pred_check_branch
    %50 = sbr.rel (0) target = $region45
  $region44: #{anomaly_vit_forward.1} parent=0 // pred_region
    _
  $region45: #{anomaly_vit_forward.1} parent=0 // pred_fallthru
    _
  // Predicated region
  $region46: #{anomaly_vit_forward.1} parent=0 // pred_check
    _
  $region47: #{anomaly_vit_forward.1} parent=0 // pred_check_branch
    %52 = sbr.rel (0) target = $region49
  $region48: #{anomaly_vit_forward.1} parent=0 // pred_region
    _
  $region49: #{anomaly_vit_forward.1} parent=0 // pred_fallthru
    _
  // Predicated region
  $region50: #{anomaly_vit_forward.1} parent=0 // pred_check
    _
  $region51: #{anomaly_vit_forward.1} parent=0 // pred_check_branch
    %54 = sbr.rel (0) target = $region53
  $region52: #{anomaly_vit_forward.1} parent=0 // pred_region
    _
  $region53: #{anomaly_vit_forward.1} parent=0 // pred_fallthru
    _
  // Predicated region
  $region54: #{anomaly_vit_forward.1} parent=0 // pred_check
    _
  $region55: #{anomaly_vit_forward.1} parent=0 // pred_check_branch
    %56 = sbr.rel (0) target = $region57
  $region56: #{anomaly_vit_forward.1} parent=0 // pred_region
    _
  $region57: #{anomaly_vit_forward.1} parent=0 // pred_fallthru
    _
  // Predicated region
  $region58: #{anomaly_vit_forward.1} parent=0 // pred_check
    _
  $region59: #{anomaly_vit_forward.1} parent=0 // pred_check_branch
    %58 = sbr.rel (0) target = $region61
  $region60: #{anomaly_vit_forward.1} parent=0 // pred_region
    _
  $region61: #{anomaly_vit_forward.1} parent=0 // pred_fallthru
    _
  // Predicated region
  $region62: #{anomaly_vit_forward.1} parent=0 // pred_check
    _
  $region63: #{anomaly_vit_forward.1} parent=0 // pred_check_branch
    %60 = sbr.rel (0) target = $region65
  $region64: #{anomaly_vit_forward.1} parent=0 // pred_region
    _
  $region65: #{anomaly_vit_forward.1} parent=0 // pred_fallthru
    _
  // Predicated region
  $region66: #{anomaly_vit_forward.1} parent=0 // pred_check
    _
  $region67: #{anomaly_vit_forward.1} parent=0 // pred_check_branch
    %62 = sbr.rel (0) target = $region69
  $region68: #{anomaly_vit_forward.1} parent=0 // pred_region
    _
  $region69: #{anomaly_vit_forward.1} parent=0 // pred_fallthru
    _
  // Predicated region
  $region70: #{anomaly_vit_forward.1} parent=0 // pred_check
    _
  $region71: #{anomaly_vit_forward.1} parent=0 // pred_check_branch
    %64 = sbr.rel (0) target = $region73
  $region72: #{anomaly_vit_forward.1} parent=0 // pred_region
    _
  $region73: #{anomaly_vit_forward.1} parent=0 // pred_fallthru
    _
  // Predicated region
  $region74: #{anomaly_vit_forward.1} parent=0 // pred_check
    _
  $region75: #{anomaly_vit_forward.1} parent=0 // pred_check_branch
    %66 = sbr.rel (0) target = $region77
  $region76: #{anomaly_vit_forward.1} parent=0 // pred_region
    _
  $region77: #{anomaly_vit_forward.1} parent=0 // pred_fallthru
    _
  // Predicated region
  $region78: #{anomaly_vit_forward.1} parent=0 // pred_check
    _
  $region79: #{anomaly_vit_forward.1} parent=0 // pred_check_branch
    %68 = sbr.rel (0) target = $region81
  $region80: #{anomaly_vit_forward.1} parent=0 // pred_region
    _
  $region81: #{anomaly_vit_forward.1} parent=0 // pred_fallthru
    _
  // Predicated region
  $region82: #{anomaly_vit_forward.1} parent=0 // pred_check
    _
  $region83: #{anomaly_vit_forward.1} parent=0 // pred_check_branch
    %70 = sbr.rel (0) target = $region85
  $region84: #{anomaly_vit_forward.1} parent=0 // pred_region
    _
  $region85: #{anomaly_vit_forward.1} parent=0 // pred_fallthru
    _
  // Predicated region
  $region86: #{anomaly_vit_forward.1} parent=0 // pred_check
    _
  $region87: #{anomaly_vit_forward.1} parent=0 // pred_check_branch
    %72 = sbr.rel (0) target = $region89
  $region88: #{anomaly_vit_forward.1} parent=0 // pred_region
    _
  $region89: #{anomaly_vit_forward.1} parent=0 // pred_fallthru
    _
  %v73 = vld [vmem:[%s0] sm:$0xff]
  %v74 = vld [vmem:[%s0 + $0x8] sm:$0xff]
  %v75 = vld [vmem:[%s0 + $0x10] sm:$0xff]
  %v76 = vld [vmem:[%s0 + $0x18] sm:$0xff]
  %v77 = vld [vmem:[%s1] sm:$0xff]
  %v78 = vld [vmem:[%s1 + $0x8] sm:$0xff]
  %v79 = vld [vmem:[%s1 + $0x10] sm:$0xff]
  %v80 = vld [vmem:[%s1 + $0x18] sm:$0xff]
  %v81 = vld [vmem:[%s1 + $0x20] sm:$0xff]
  %v82 = vld [vmem:[%s1 + $0x28] sm:$0xff]
  %v83 = vld [vmem:[%s2] sm:$0x1]
  %v85 = vlaneseq
  %v86 = vshrl.u32 %v85, 7
  %v87 = vsub.s32 0, %v86
  %v88 = vrot.slane %v83, %v87
  %vm90 = vcmask 392192
  %v92 = vsel %vm90, %v73, 0
  %v95 = vsel %vm90, %v74, 0
  %v98 = vsel %vm90, %v75, 0
  %v101 = vsel %vm90, %v76, 0
  %103 = vmatprep.subr.mxu0 0.0
  %104 = vmatpush1.msra.mxu0 %v77
  %105 = vmatprep.subr.mxu0 0.0
  %106 = vmatpush1.msra.mxu0 %v78
  %107 = vmatprep.subr.mxu0 0.0
  %108 = vmatpush1.msra.mxu0 %v79
  %109 = vmatprep.subr.mxu0 0.0
  %110 = vmatpush1.msra.mxu0 %v80
  %111 = vmatprep.subr.mxu0 0.0
  %112 = vmatpush1.msra.mxu0 %v81
  %113 = vmatprep.subr.mxu0 0.0
  %114 = vmatpush1.msra.mxu0 %v82
  %115 = vmatprep.subr.mxu0 0.0
  %116 = vmatpush1.msra.mxu0 0.0
  %117 = vmatprep.subr.mxu0 0.0
  %118 = vmatpush1.msra.mxu0 0.0
  %119 = vmatprep.subr.mxu0 0.0
  %120 = vmatpush1.msra.mxu0 0.0
  %121 = vmatprep.subr.mxu0 0.0
  %122 = vmatpush1.msra.mxu0 0.0
  %123 = vmatprep.subr.mxu0 0.0
  %124 = vmatpush1.msra.mxu0 0.0
  %125 = vmatprep.subr.mxu0 0.0
  %126 = vmatpush1.msra.mxu0 0.0
  %127 = vmatprep.subr.mxu0 0.0
  %128 = vmatpush1.msra.mxu0 0.0
  %129 = vmatprep.subr.mxu0 0.0
  %130 = vmatpush1.msra.mxu0 0.0
  %131 = vmatprep.subr.mxu0 0.0
  %132 = vmatpush1.msra.mxu0 0.0
  %133 = vmatprep.subr.mxu0 0.0
  %134 = vmatpush1.msra.mxu0 0.0
  %135 = vmatprep.subr.mxu0 0.0
  %136 = vmatpush1.msra.mxu0 0.0
  %137 = vmatprep.subr.mxu0 0.0
  %138 = vmatpush1.msra.mxu0 0.0
  %139 = vmatprep.subr.mxu0 0.0
  %140 = vmatpush1.msra.mxu0 0.0
  %141 = vmatprep.subr.mxu0 0.0
  %142 = vmatpush1.msra.mxu0 0.0
  %143 = vmatprep.subr.mxu0 0.0
  %144 = vmatpush1.msra.mxu0 0.0
  %145 = vmatprep.subr.mxu0 0.0
  %146 = vmatpush1.msra.mxu0 0.0
  %147 = vmatprep.subr.mxu0 0.0
  %148 = vmatpush1.msra.mxu0 0.0
  %149 = vmatprep.subr.mxu0 0.0
  %150 = vmatpush1.msra.mxu0 0.0
  %151 = vmatprep.subr.mxu0 0.0
  %152 = vmatpush1.msra.mxu0 0.0
  %153 = vmatprep.subr.mxu0 0.0
  %154 = vmatpush1.msra.mxu0 0.0
  %155 = vmatprep.subr.mxu0 0.0
  %156 = vmatpush1.msra.mxu0 0.0
  %157 = vmatprep.subr.mxu0 0.0
  %158 = vmatpush1.msra.mxu0 0.0
  %159 = vmatprep.subr.mxu0 0.0
  %160 = vmatpush1.msra.mxu0 0.0
  %161 = vmatprep.subr.mxu0 0.0
  %162 = vmatpush1.msra.mxu0 0.0
  %163 = vmatprep.subr.mxu0 0.0
  %164 = vmatpush1.msra.mxu0 0.0
  %165 = vmatprep.subr.mxu0 0.0
  %166 = vmatpush1.msra.mxu0 0.0
  %167 = vmatprep.mubr.f32.mxu0 0.0
  %168 = vmatmul.mubr.f32.gmra.mrb[0].mxu0 %v92
  %v169 = vpop.f32.mrb[0].mxu0
  %v170 = vadd.f32 %v88, %v169
  %v171 = vpop.f32.mrb[0].mxu0
  %172 = vmatprep.mubr.f32.mxu0 0.0
  %173 = vmatmul.mubr.f32.gmra.mrb[0].mxu0 %v95
  %v174 = vpop.f32.mrb[0].mxu0
  %v175 = vadd.f32 %v88, %v174
  %v176 = vpop.f32.mrb[0].mxu0
  %177 = vmatprep.mubr.f32.mxu0 0.0
  %178 = vmatmul.mubr.f32.gmra.mrb[0].mxu0 %v98
  %v179 = vpop.f32.mrb[0].mxu0
  %v180 = vadd.f32 %v88, %v179
  %v181 = vpop.f32.mrb[0].mxu0
  %182 = vmatprep.mubr.f32.mxu0 0.0
  %183 = vmatmul.mubr.f32.gmra.mrb[0].mxu0 %v101
  %v184 = vpop.f32.mrb[0].mxu0
  %v185 = vadd.f32 %v88, %v184
  %v186 = vpop.f32.mrb[0].mxu0
  %187 = vdwg.mxu0
  %v188 = vld [vmem:[%s3] sm:$0xff]
  %v189 = vld [vmem:[%s3 + $0x8] sm:$0xff]
  %v190 = vld [vmem:[%s3 + $0x10] sm:$0xff]
  %v191 = vld [vmem:[%s3 + $0x18] sm:$0xff]
  %v192 = vld [vmem:[%s3 + $0x20] sm:$0x3]
  %v193 = vld [vmem:[%s4] sm:$0xff]
  %v194 = vld [vmem:[%s4 + $0x8] sm:$0xff]
  %v195 = vld [vmem:[%s4 + $0x10] sm:$0xff]
  %v196 = vld [vmem:[%s4 + $0x18] sm:$0xff]
  %v197 = vld [vmem:[%s4 + $0x20] sm:$0x3]
  %vm198 = vcmask 261120
  %v200 = vsel %vm198, %v188, 0
  %v203 = vsel %vm198, %v189, 0
  %v206 = vsel %vm198, %v190, 0
  %v209 = vsel %vm198, %v191, 0
  %v212 = vsel %vm198, %v192, 0
  %214 = vmatprep.subr.mxu0 0.0
  %215 = vmatpush1.msra.mxu0 %v170
  %216 = vmatprep.subr.mxu0 0.0
  %217 = vmatpush1.msra.mxu0 %v175
  %218 = vmatprep.subr.mxu0 0.0
  %219 = vmatpush1.msra.mxu0 %v180
  %220 = vmatprep.subr.mxu0 0.0
  %221 = vmatpush1.msra.mxu0 %v185
  %222 = vmatprep.subr.mxu0 0.0
  %223 = vmatpush1.msra.mxu0 0.0
  %224 = vmatprep.subr.mxu0 0.0
  %225 = vmatpush1.msra.mxu0 0.0
  %226 = vmatprep.subr.mxu0 0.0
  %227 = vmatpush1.msra.mxu0 0.0
  %228 = vmatprep.subr.mxu0 0.0
  %229 = vmatpush1.msra.mxu0 0.0
  %230 = vmatprep.subr.mxu0 0.0
  %231 = vmatpush1.msra.mxu0 0.0
  %232 = vmatprep.subr.mxu0 0.0
  %233 = vmatpush1.msra.mxu0 0.0
  %234 = vmatprep.subr.mxu0 0.0
  %235 = vmatpush1.msra.mxu0 0.0
  %236 = vmatprep.subr.mxu0 0.0
  %237 = vmatpush1.msra.mxu0 0.0
  %238 = vmatprep.subr.mxu0 0.0
  %239 = vmatpush1.msra.mxu0 0.0
  %240 = vmatprep.subr.mxu0 0.0
  %241 = vmatpush1.msra.mxu0 0.0
  %242 = vmatprep.subr.mxu0 0.0
  %243 = vmatpush1.msra.mxu0 0.0
  %244 = vmatprep.subr.mxu0 0.0
  %245 = vmatpush1.msra.mxu0 0.0
  %246 = vmatprep.subr.mxu0 0.0
  %247 = vmatpush1.msra.mxu0 0.0
  %248 = vmatprep.subr.mxu0 0.0
  %249 = vmatpush1.msra.mxu0 0.0
  %250 = vmatprep.subr.mxu0 0.0
  %251 = vmatpush1.msra.mxu0 0.0
  %252 = vmatprep.subr.mxu0 0.0
  %253 = vmatpush1.msra.mxu0 0.0
  %254 = vmatprep.subr.mxu0 0.0
  %255 = vmatpush1.msra.mxu0 0.0
  %256 = vmatprep.subr.mxu0 0.0
  %257 = vmatpush1.msra.mxu0 0.0
  %258 = vmatprep.subr.mxu0 0.0
  %259 = vmatpush1.msra.mxu0 0.0
  %260 = vmatprep.subr.mxu0 0.0
  %261 = vmatpush1.msra.mxu0 0.0
  %262 = vmatprep.subr.mxu0 0.0
  %263 = vmatpush1.msra.mxu0 0.0
  %264 = vmatprep.subr.mxu0 0.0
  %265 = vmatpush1.msra.mxu0 0.0
  %266 = vmatprep.subr.mxu0 0.0
  %267 = vmatpush1.msra.mxu0 0.0
  %268 = vmatprep.subr.mxu0 0.0
  %269 = vmatpush1.msra.mxu0 0.0
  %270 = vmatprep.subr.mxu0 0.0
  %271 = vmatpush1.msra.mxu0 0.0
  %272 = vmatprep.subr.mxu0 0.0
  %273 = vmatpush1.msra.mxu0 0.0
  %274 = vmatprep.subr.mxu0 0.0
  %275 = vmatpush1.msra.mxu0 0.0
  %276 = vmatprep.subr.mxu0 0.0
  %277 = vmatpush1.msra.mxu0 0.0
  %278 = vmatprep.mubr.f32.mxu0 0.0
  %279 = vmatmul.mubr.f32.gmra.mrb[0].mxu0 %v200
  %v280 = vpop.f32.mrb[0].mxu0
  %v281 = vadd.f32 %v193, %v280
  %v282 = vpop.f32.mrb[0].mxu0
  %283 = vmatprep.mubr.f32.mxu0 0.0
  %284 = vmatmul.mubr.f32.gmra.mrb[0].mxu0 %v203
  %v285 = vpop.f32.mrb[0].mxu0
  %v286 = vadd.f32 %v194, %v285
  %v287 = vpop.f32.mrb[0].mxu0
  %288 = vmatprep.mubr.f32.mxu0 0.0
  %289 = vmatmul.mubr.f32.gmra.mrb[0].mxu0 %v206
  %v290 = vpop.f32.mrb[0].mxu0
  %v291 = vadd.f32 %v195, %v290
  %v292 = vpop.f32.mrb[0].mxu0
  %293 = vmatprep.mubr.f32.mxu0 0.0
  %294 = vmatmul.mubr.f32.gmra.mrb[0].mxu0 %v209
  %v295 = vpop.f32.mrb[0].mxu0
  %v296 = vadd.f32 %v196, %v295
  %v297 = vpop.f32.mrb[0].mxu0
  %298 = vmatprep.mubr.f32.mxu0 0.0
  %299 = vmatmul.mubr.f32.gmra.mrb[0].mxu0 %v212
  %v300 = vpop.f32.mrb[0].mxu0
  %v301 = vadd.f32 %v197, %v300
  %v302 = vpop.f32.mrb[0].mxu0
  %303 = vdwg.mxu0
  %v304 = vld [vmem:[%s5] sm:$0xff]
  %v305 = vld [vmem:[%s5 + $0x8] sm:$0xff]
  %v306 = vld [vmem:[%s5 + $0x10] sm:$0xff]
  %v307 = vld [vmem:[%s5 + $0x18] sm:$0xff]
  %v308 = vld [vmem:[%s5 + $0x20] sm:$0xff]
  %v309 = vld [vmem:[%s5 + $0x28] sm:$0xff]
  %v310 = vld [vmem:[%s5 + $0x30] sm:$0xff]
  %v311 = vld [vmem:[%s5 + $0x38] sm:$0xff]
  %v312 = vld [vmem:[%s5 + $0x40] sm:$0xff]
  %v313 = vld [vmem:[%s5 + $0x48] sm:$0xff]
  %v314 = vld [vmem:[%s5 + $0x50] sm:$0xff]
  %v315 = vld [vmem:[%s5 + $0x58] sm:$0xff]
  %v316 = vld [vmem:[%s5 + $0x60] sm:$0xff]
  %v317 = vld [vmem:[%s5 + $0x68] sm:$0xff]
  %v318 = vld [vmem:[%s5 + $0x70] sm:$0xff]
  %v319 = vld [vmem:[%s5 + $0x78] sm:$0xff]
  %v320 = vld [vmem:[%s5 + $0x80] sm:$0xff]
  %v321 = vld [vmem:[%s6] sm:$0xff]
  %v322 = vld [vmem:[%s6 + $0x8] sm:$0xff]
  %v323 = vld [vmem:[%s6 + $0x10] sm:$0xff]
  %v324 = vld [vmem:[%s6 + $0x18] sm:$0xff]
  %v325 = vld [vmem:[%s6 + $0x20] sm:$0xff]
  %v326 = vld [vmem:[%s6 + $0x28] sm:$0xff]
  %v327 = vld [vmem:[%s6 + $0x30] sm:$0xff]
  %v328 = vld [vmem:[%s6 + $0x38] sm:$0xff]
  %v329 = vld [vmem:[%s6 + $0x40] sm:$0xff]
  %v330 = vld [vmem:[%s6 + $0x48] sm:$0xff]
  %v331 = vld [vmem:[%s6 + $0x50] sm:$0xff]
  %v332 = vld [vmem:[%s6 + $0x58] sm:$0xff]
  %v333 = vld [vmem:[%s6 + $0x60] sm:$0xff]
  %v334 = vld [vmem:[%s6 + $0x68] sm:$0xff]
  %v335 = vld [vmem:[%s6 + $0x70] sm:$0xff]
  %v336 = vld [vmem:[%s6 + $0x78] sm:$0xff]
  %v337 = vld [vmem:[%s6 + $0x80] sm:$0xff]
  %v338 = vld [vmem:[%s7] sm:$0xff]
  %v339 = vld [vmem:[%s7 + $0x8] sm:$0xff]
  %v340 = vld [vmem:[%s7 + $0x10] sm:$0xff]
  %v341 = vld [vmem:[%s7 + $0x18] sm:$0xff]
  %v342 = vld [vmem:[%s7 + $0x20] sm:$0xff]
  %v343 = vld [vmem:[%s7 + $0x28] sm:$0xff]
  %v344 = vld [vmem:[%s7 + $0x30] sm:$0xff]
  %v345 = vld [vmem:[%s7 + $0x38] sm:$0xff]
  %v346 = vld [vmem:[%s7 + $0x40] sm:$0x3]
  %v347 = vld [vmem:[%s7 + $0x48] sm:$0x3]
  %v348 = vld [vmem:[%s8] sm:$0xff]
  %v349 = vld [vmem:[%s8 + $0x8] sm:$0xff]
  %v350 = vld [vmem:[%s8 + $0x10] sm:$0xff]
  %v351 = vld [vmem:[%s8 + $0x18] sm:$0xff]
  %v352 = vld [vmem:[%s8 + $0x20] sm:$0xff]
  %v353 = vld [vmem:[%s8 + $0x28] sm:$0xff]
  %v354 = vld [vmem:[%s8 + $0x30] sm:$0xff]
  %v355 = vld [vmem:[%s8 + $0x38] sm:$0xff]
  %v356 = vld [vmem:[%s8 + $0x40] sm:$0x3]
  %v357 = vld [vmem:[%s8 + $0x48] sm:$0x3]
  %v358 = vld [vmem:[%s9] sm:$0xff]
  %v359 = vld [vmem:[%s9 + $0x8] sm:$0xff]
  %v360 = vld [vmem:[%s9 + $0x10] sm:$0xff]
  %v361 = vld [vmem:[%s9 + $0x18] sm:$0xff]
  %v362 = vld [vmem:[%s9 + $0x20] sm:$0xff]
  %v363 = vld [vmem:[%s9 + $0x28] sm:$0xff]
  %v364 = vld [vmem:[%s9 + $0x30] sm:$0xff]
  %v365 = vld [vmem:[%s9 + $0x38] sm:$0xff]
  %v366 = vld [vmem:[%s9 + $0x40] sm:$0xff]
  %v367 = vld [vmem:[%s9 + $0x48] sm:$0xff]
  %v368 = vld [vmem:[%s9 + $0x50] sm:$0xff]
  %v369 = vld [vmem:[%s9 + $0x58] sm:$0xff]
  %v370 = vld [vmem:[%s9 + $0x60] sm:$0xff]
  %v371 = vld [vmem:[%s9 + $0x68] sm:$0xff]
  %v372 = vld [vmem:[%s9 + $0x70] sm:$0xff]
  %v373 = vld [vmem:[%s9 + $0x78] sm:$0xff]
  %v374 = vld [vmem:[%s9 + $0x80] sm:$0xff]
  %v375 = vld [vmem:[%s9 + $0x88] sm:$0xff]
  %v376 = vld [vmem:[%s9 + $0x90] sm:$0xff]
  %v377 = vld [vmem:[%s9 + $0x98] sm:$0xff]
  %v378 = vld [vmem:[%s9 + $0xa0] sm:$0xff]
  %v379 = vld [vmem:[%s9 + $0xa8] sm:$0xff]
  %v380 = vld [vmem:[%s9 + $0xb0] sm:$0xff]
  %v381 = vld [vmem:[%s9 + $0xb8] sm:$0xff]
  %v382 = vld [vmem:[%s9 + $0xc0] sm:$0xff]
  %v383 = vld [vmem:[%s9 + $0xc8] sm:$0xff]
  %v384 = vld [vmem:[%s9 + $0xd0] sm:$0xff]
  %v385 = vld [vmem:[%s9 + $0xd8] sm:$0xff]
  %v386 = vld [vmem:[%s9 + $0xe0] sm:$0xff]
  %v387 = vld [vmem:[%s9 + $0xe8] sm:$0xff]
  %v388 = vld [vmem:[%s9 + $0xf0] sm:$0xff]
  %v389 = vld [vmem:[%s9 + $0xf8] sm:$0xff]
  %v390 = vld [vmem:[%s9 + $0x100] sm:$0xff]
  %v391 = vld [vmem:[%s9 + $0x108] sm:$0xff]
  %s392 = scalar_lea.vmem %s10, 1
  %v393 = vld [vmem:[%s392] sm:$0x1]
  %s394 = scalar_lea.vmem %s11, 1
  %v395 = vld [vmem:[%s394] sm:$0x1]
  %v396 = vsel %vm198, %v281, 0.0
  %397 = vadd.xlane.f32.xlu0 %v396
  %v398 = vpop.xlane.xlu0 %397
  %v399 = vsel %vm198, %v286, 0.0
  %400 = vadd.xlane.f32.xlu0 %v399
  %v401 = vpop.xlane.xlu0 %400
  %v402 = vsel %vm198, %v291, 0.0
  %403 = vadd.xlane.f32.xlu0 %v402
  %v404 = vpop.xlane.xlu0 %403
  %v405 = vsel %vm198, %v296, 0.0
  %406 = vadd.xlane.f32.xlu0 %v405
  %v407 = vpop.xlane.xlu0 %406
  %vm408 = vcmask 254976
  %v409 = vsel %vm408, %v301, 0.0
  %410 = vadd.xlane.f32.xlu0 %v409
  %v411 = vpop.xlane.xlu0 %410
  %v412 = vrcp.pop 32.0
  %v413 = vmul.f32 %v398, %v412
  %v414 = vmul.f32 %v401, %v412
  %v415 = vmul.f32 %v404, %v412
  %v416 = vmul.f32 %v407, %v412
  %v417 = vmul.f32 %v411, %v412
  %v418 = vsub.f32 %v281, %v413
  %v419 = vsub.f32 %v286, %v414
  %v420 = vsub.f32 %v291, %v415
  %v421 = vsub.f32 %v296, %v416
  %v422 = vsub.f32 %v301, %v417
  %v423 = vmul.f32 %v418, %v418
  %v424 = vmul.f32 %v419, %v419
  %v425 = vmul.f32 %v420, %v420
  %v426 = vmul.f32 %v421, %v421
  %v427 = vmul.f32 %v422, %v422
  %v428 = vsel %vm198, %v423, 0.0
  %429 = vadd.xlane.f32.xlu0 %v428
  %v430 = vpop.xlane.xlu0 %429
  %v431 = vsel %vm198, %v424, 0.0
  %432 = vadd.xlane.f32.xlu0 %v431
  %v433 = vpop.xlane.xlu0 %432
  %v434 = vsel %vm198, %v425, 0.0
  %435 = vadd.xlane.f32.xlu0 %v434
  %v436 = vpop.xlane.xlu0 %435
  %v437 = vsel %vm198, %v426, 0.0
  %438 = vadd.xlane.f32.xlu0 %v437
  %v439 = vpop.xlane.xlu0 %438
  %v440 = vsel %vm408, %v427, 0.0
  %441 = vadd.xlane.f32.xlu0 %v440
  %v442 = vpop.xlane.xlu0 %441
  %v443 = vmul.f32 %v430, %v412
  %v444 = vmul.f32 %v433, %v412
  %v445 = vmul.f32 %v436, %v412
  %v446 = vmul.f32 %v439, %v412
  %v447 = vmul.f32 %v442, %v412
  %v448 = vadd.f32 %v443, 1e-06
  %v449 = vadd.f32 %v444, 1e-06
  %v450 = vadd.f32 %v445, 1e-06
  %v451 = vadd.f32 %v446, 1e-06
  %v452 = vadd.f32 %v447, 1e-06
  %v453 = vrsqrt.pop %v448
  %v454 = vrsqrt.pop %v449
  %v455 = vrsqrt.pop %v450
  %v456 = vrsqrt.pop %v451
  %v457 = vrsqrt.pop %v452
  %v458 = vmul.f32 %v418, %v453
  %v459 = vmul.f32 %v419, %v454
  %v460 = vmul.f32 %v420, %v455
  %v461 = vmul.f32 %v421, %v456
  %v462 = vmul.f32 %v422, %v457
  %v464 = vlaneseq
  %v465 = vshrl.u32 %v464, 7
  %v466 = vsub.s32 0, %v465
  %v467 = vrot.slane %v393, %v466
  %v469 = vmul.f32 %v458, %v467
  %v470 = vmul.f32 %v459, %v467
  %v471 = vmul.f32 %v460, %v467
  %v472 = vmul.f32 %v461, %v467
  %v473 = vmul.f32 %v462, %v467
  %v475 = vlaneseq
  %v476 = vshrl.u32 %v475, 7
  %v477 = vsub.s32 0, %v476
  %v478 = vrot.slane %v395, %v477
  %v480 = vadd.f32 %v469, %v478
  %v481 = vadd.f32 %v470, %v478
  %v482 = vadd.f32 %v471, %v478
  %v483 = vadd.f32 %v472, %v478
  %v484 = vadd.f32 %v473, %v478
  %s485 = scalar_lea.vmem %s12, 32
  %v486 = vld [vmem:[%s485] sm:$0xff]
  %v487 = vld [vmem:[%s485 + $0x8] sm:$0xff]
  %v488 = vld [vmem:[%s485 + $0x10] sm:$0xff]
  %v489 = vld [vmem:[%s485 + $0x18] sm:$0xff]
  %s490 = scalar_lea.vmem %s13, 1
  %v491 = vld [vmem:[%s490] sm:$0x1]
  %v493 = vlaneseq
  %v494 = vshrl.u32 %v493, 7
  %v495 = vsub.s32 0, %v494
  %v496 = vrot.slane %v491, %v495
  %v499 = vsel %vm198, %v480, 0
  %v502 = vsel %vm198, %v481, 0
  %v505 = vsel %vm198, %v482, 0
  %v508 = vsel %vm198, %v483, 0
  %v511 = vsel %vm198, %v484, 0
  %513 = vmatprep.subr.mxu0 0.0
  %514 = vmatpush1.msra.mxu0 %v486
  %515 = vmatprep.subr.mxu0 0.0
  %516 = vmatpush1.msra.mxu0 %v487
  %517 = vmatprep.subr.mxu0 0.0
  %518 = vmatpush1.msra.mxu0 %v488
  %519 = vmatprep.subr.mxu0 0.0
  %520 = vmatpush1.msra.mxu0 %v489
  %521 = vmatprep.subr.mxu0 0.0
  %522 = vmatpush1.msra.mxu0 0.0
  %523 = vmatprep.subr.mxu0 0.0
  %524 = vmatpush1.msra.mxu0 0.0
  %525 = vmatprep.subr.mxu0 0.0
  %526 = vmatpush1.msra.mxu0 0.0
  %527 = vmatprep.subr.mxu0 0.0
  %528 = vmatpush1.msra.mxu0 0.0
  %529 = vmatprep.subr.mxu0 0.0
  %530 = vmatpush1.msra.mxu0 0.0
  %531 = vmatprep.subr.mxu0 0.0
  %532 = vmatpush1.msra.mxu0 0.0
  %533 = vmatprep.subr.mxu0 0.0
  %534 = vmatpush1.msra.mxu0 0.0
  %535 = vmatprep.subr.mxu0 0.0
  %536 = vmatpush1.msra.mxu0 0.0
  %537 = vmatprep.subr.mxu0 0.0
  %538 = vmatpush1.msra.mxu0 0.0
  %539 = vmatprep.subr.mxu0 0.0
  %540 = vmatpush1.msra.mxu0 0.0
  %541 = vmatprep.subr.mxu0 0.0
  %542 = vmatpush1.msra.mxu0 0.0
  %543 = vmatprep.subr.mxu0 0.0
  %544 = vmatpush1.msra.mxu0 0.0
  %545 = vmatprep.subr.mxu0 0.0
  %546 = vmatpush1.msra.mxu0 0.0
  %547 = vmatprep.subr.mxu0 0.0
  %548 = vmatpush1.msra.mxu0 0.0
  %549 = vmatprep.subr.mxu0 0.0
  %550 = vmatpush1.msra.mxu0 0.0
  %551 = vmatprep.subr.mxu0 0.0
  %552 = vmatpush1.msra.mxu0 0.0
  %553 = vmatprep.subr.mxu0 0.0
  %554 = vmatpush1.msra.mxu0 0.0
  %555 = vmatprep.subr.mxu0 0.0
  %556 = vmatpush1.msra.mxu0 0.0
  %557 = vmatprep.subr.mxu0 0.0
  %558 = vmatpush1.msra.mxu0 0.0
  %559 = vmatprep.subr.mxu0 0.0
  %560 = vmatpush1.msra.mxu0 0.0
  %561 = vmatprep.subr.mxu0 0.0
  %562 = vmatpush1.msra.mxu0 0.0
  %563 = vmatprep.subr.mxu0 0.0
  %564 = vmatpush1.msra.mxu0 0.0
  %565 = vmatprep.subr.mxu0 0.0
  %566 = vmatpush1.msra.mxu0 0.0
  %567 = vmatprep.subr.mxu0 0.0
  %568 = vmatpush1.msra.mxu0 0.0
  %569 = vmatprep.subr.mxu0 0.0
  %570 = vmatpush1.msra.mxu0 0.0
  %571 = vmatprep.subr.mxu0 0.0
  %572 = vmatpush1.msra.mxu0 0.0
  %573 = vmatprep.subr.mxu0 0.0
  %574 = vmatpush1.msra.mxu0 0.0
  %575 = vmatprep.subr.mxu0 0.0
  %576 = vmatpush1.msra.mxu0 0.0
  %577 = vmatprep.mubr.f32.mxu0 0.0
  %578 = vmatmul.mubr.f32.gmra.mrb[0].mxu0 %v499
  %v579 = vpop.f32.mrb[0].mxu0
  %v580 = vadd.f32 %v496, %v579
  %v581 = vpop.f32.mrb[0].mxu0
  %582 = vmatprep.mubr.f32.mxu0 0.0
  %583 = vmatmul.mubr.f32.gmra.mrb[0].mxu0 %v502
  %v584 = vpop.f32.mrb[0].mxu0
  %v585 = vadd.f32 %v496, %v584
  %v586 = vpop.f32.mrb[0].mxu0
  %587 = vmatprep.mubr.f32.mxu0 0.0
  %588 = vmatmul.mubr.f32.gmra.mrb[0].mxu0 %v505
  %v589 = vpop.f32.mrb[0].mxu0
  %v590 = vadd.f32 %v496, %v589
  %v591 = vpop.f32.mrb[0].mxu0
  %592 = vmatprep.mubr.f32.mxu0 0.0
  %593 = vmatmul.mubr.f32.gmra.mrb[0].mxu0 %v508
  %v594 = vpop.f32.mrb[0].mxu0
  %v595 = vadd.f32 %v496, %v594
  %v596 = vpop.f32.mrb[0].mxu0
  %597 = vmatprep.mubr.f32.mxu0 0.0
  %598 = vmatmul.mubr.f32.gmra.mrb[0].mxu0 %v511
  %v599 = vpop.f32.mrb[0].mxu0
  %v600 = vadd.f32 %v496, %v599
  %v601 = vpop.f32.mrb[0].mxu0
  %602 = vdwg.mxu0
  %v603 = vmul.f32 %v580, 0.35355338
  %v604 = vmul.f32 %v585, 0.35355338
  %v605 = vmul.f32 %v590, 0.35355338
  %v606 = vmul.f32 %v595, 0.35355338
  %v607 = vmul.f32 %v600, 0.35355338
  %613 = vrot.lane.b32.xlu0 %v580, 96
  %v614 = vpop.permute.xlu0 %613
  %615 = vrot.lane.b32.xlu0 %v585, 96
  %v616 = vpop.permute.xlu0 %615
  %617 = vrot.lane.b32.xlu0 %v590, 96
  %v618 = vpop.permute.xlu0 %617
  %619 = vrot.lane.b32.xlu0 %v595, 96
  %v620 = vpop.permute.xlu0 %619
  %621 = vrot.lane.b32.xlu0 %v600, 96
  %v622 = vpop.permute.xlu0 %621
  %vm627 = vcmask 277504
  %v629 = vsel %vm627, %v304, 0
  %v632 = vsel %vm627, %v305, 0
  %v635 = vsel %vm627, %v306, 0
  %v638 = vsel %vm627, %v307, 0
  %v641 = vsel %vm627, %v308, 0
  %v644 = vsel %vm627, %v309, 0
  %v647 = vsel %vm627, %v310, 0
  %v650 = vsel %vm627, %v311, 0
  %v653 = vsel %vm627, %v312, 0
  %v656 = vsel %vm627, %v313, 0
  %v659 = vsel %vm627, %v314, 0
  %v662 = vsel %vm627, %v315, 0
  %v665 = vsel %vm627, %v316, 0
  %v668 = vsel %vm627, %v317, 0
  %v671 = vsel %vm627, %v318, 0
  %v674 = vsel %vm627, %v319, 0
  %v677 = vsel %vm627, %v320, 0
  %vm679 = vcmask 1041408
  %v680 = vsel %vm679, %v622, 0
  %682 = vmatprep.subr.mxu0 0.0
  %683 = vmatpush1.msra.mxu0 %v614
  %684 = vmatprep.subr.mxu0 0.0
  %685 = vmatpush1.msra.mxu0 %v616
  %686 = vmatprep.subr.mxu0 0.0
  %687 = vmatpush1.msra.mxu0 %v618
  %688 = vmatprep.subr.mxu0 0.0
  %689 = vmatpush1.msra.mxu0 %v620
  %690 = vmatprep.subr.mxu0 0.0
  %691 = vmatpush1.msra.mxu0 %v680
  %692 = vmatprep.subr.mxu0 0.0
  %693 = vmatpush1.msra.mxu0 0.0
  %694 = vmatprep.subr.mxu0 0.0
  %695 = vmatpush1.msra.mxu0 0.0
  %696 = vmatprep.subr.mxu0 0.0
  %697 = vmatpush1.msra.mxu0 0.0
  %698 = vmatprep.subr.mxu0 0.0
  %699 = vmatpush1.msra.mxu0 0.0
  %700 = vmatprep.subr.mxu0 0.0
  %701 = vmatpush1.msra.mxu0 0.0
  %702 = vmatprep.subr.mxu0 0.0
  %703 = vmatpush1.msra.mxu0 0.0
  %704 = vmatprep.subr.mxu0 0.0
  %705 = vmatpush1.msra.mxu0 0.0
  %706 = vmatprep.subr.mxu0 0.0
  %707 = vmatpush1.msra.mxu0 0.0
  %708 = vmatprep.subr.mxu0 0.0
  %709 = vmatpush1.msra.mxu0 0.0
  %710 = vmatprep.subr.mxu0 0.0
  %711 = vmatpush1.msra.mxu0 0.0
  %712 = vmatprep.subr.mxu0 0.0
  %713 = vmatpush1.msra.mxu0 0.0
  %714 = vmatprep.subr.mxu0 0.0
  %715 = vmatpush1.msra.mxu0 0.0
  %716 = vmatprep.subr.mxu0 0.0
  %717 = vmatpush1.msra.mxu0 0.0
  %718 = vmatprep.subr.mxu0 0.0
  %719 = vmatpush1.msra.mxu0 0.0
  %720 = vmatprep.subr.mxu0 0.0
  %721 = vmatpush1.msra.mxu0 0.0
  %722 = vmatprep.subr.mxu0 0.0
  %723 = vmatpush1.msra.mxu0 0.0
  %724 = vmatprep.subr.mxu0 0.0
  %725 = vmatpush1.msra.mxu0 0.0
  %726 = vmatprep.subr.mxu0 0.0
  %727 = vmatpush1.msra.mxu0 0.0
  %728 = vmatprep.subr.mxu0 0.0
  %729 = vmatpush1.msra.mxu0 0.0
  %730 = vmatprep.subr.mxu0 0.0
  %731 = vmatpush1.msra.mxu0 0.0
  %732 = vmatprep.subr.mxu0 0.0
  %733 = vmatpush1.msra.mxu0 0.0
  %734 = vmatprep.subr.mxu0 0.0
  %735 = vmatpush1.msra.mxu0 0.0
  %736 = vmatprep.subr.mxu0 0.0
  %737 = vmatpush1.msra.mxu0 0.0
  %738 = vmatprep.subr.mxu0 0.0
  %739 = vmatpush1.msra.mxu0 0.0
  %740 = vmatprep.subr.mxu0 0.0
  %741 = vmatpush1.msra.mxu0 0.0
  %742 = vmatprep.subr.mxu0 0.0
  %743 = vmatpush1.msra.mxu0 0.0
  %744 = vmatprep.subr.mxu0 0.0
  %745 = vmatpush1.msra.mxu0 0.0
  %746 = vmatprep.mubr.f32.mxu0 0.0
  %747 = vmatmul.mubr.f32.gmra.mrb[0].mxu0 %v629
  %v748 = vpop.f32.mrb[0].mxu0
  %v749 = vadd.f32 0.0, %v748
  %v750 = vpop.f32.mrb[0].mxu0
  %751 = vmatprep.mubr.f32.mxu0 0.0
  %752 = vmatmul.mubr.f32.gmra.mrb[0].mxu0 %v632
  %v753 = vpop.f32.mrb[0].mxu0
  %v754 = vadd.f32 0.0, %v753
  %v755 = vpop.f32.mrb[0].mxu0
  %756 = vmatprep.mubr.f32.mxu0 0.0
  %757 = vmatmul.mubr.f32.gmra.mrb[0].mxu0 %v635
  %v758 = vpop.f32.mrb[0].mxu0
  %v759 = vadd.f32 0.0, %v758
  %v760 = vpop.f32.mrb[0].mxu0
  %761 = vmatprep.mubr.f32.mxu0 0.0
  %762 = vmatmul.mubr.f32.gmra.mrb[0].mxu0 %v638
  %v763 = vpop.f32.mrb[0].mxu0
  %v764 = vadd.f32 0.0, %v763
  %v765 = vpop.f32.mrb[0].mxu0
  %766 = vmatprep.mubr.f32.mxu0 0.0
  %767 = vmatmul.mubr.f32.gmra.mrb[0].mxu0 %v641
  %v768 = vpop.f32.mrb[0].mxu0
  %v769 = vadd.f32 0.0, %v768
  %v770 = vpop.f32.mrb[0].mxu0
  %771 = vmatprep.mubr.f32.mxu0 0.0
  %772 = vmatmul.mubr.f32.gmra.mrb[0].mxu0 %v644
  %v773 = vpop.f32.mrb[0].mxu0
  %v774 = vadd.f32 0.0, %v773
  %v775 = vpop.f32.mrb[0].mxu0
  %776 = vmatprep.mubr.f32.mxu0 0.0
  %777 = vmatmul.mubr.f32.gmra.mrb[0].mxu0 %v647
  %v778 = vpop.f32.mrb[0].mxu0
  %v779 = vadd.f32 0.0, %v778
  %v780 = vpop.f32.mrb[0].mxu0
  %781 = vmatprep.mubr.f32.mxu0 0.0
  %782 = vmatmul.mubr.f32.gmra.mrb[0].mxu0 %v650
  %v783 = vpop.f32.mrb[0].mxu0
  %v784 = vadd.f32 0.0, %v783
  %v785 = vpop.f32.mrb[0].mxu0
  %786 = vmatprep.mubr.f32.mxu0 0.0
  %787 = vmatmul.mubr.f32.gmra.mrb[0].mxu0 %v653
  %v788 = vpop.f32.mrb[0].mxu0
  %v789 = vadd.f32 0.0, %v788
  %v790 = vpop.f32.mrb[0].mxu0
  %791 = vmatprep.mubr.f32.mxu0 0.0
  %792 = vmatmul.mubr.f32.gmra.mrb[0].mxu0 %v656
  %v793 = vpop.f32.mrb[0].mxu0
  %v794 = vadd.f32 0.0, %v793
  %v795 = vpop.f32.mrb[0].mxu0
  %796 = vmatprep.mubr.f32.mxu0 0.0
  %797 = vmatmul.mubr.f32.gmra.mrb[0].mxu0 %v659
  %v798 = vpop.f32.mrb[0].mxu0
  %v799 = vadd.f32 0.0, %v798
  %v800 = vpop.f32.mrb[0].mxu0
  %801 = vmatprep.mubr.f32.mxu0 0.0
  %802 = vmatmul.mubr.f32.gmra.mrb[0].mxu0 %v662
  %v803 = vpop.f32.mrb[0].mxu0
  %v804 = vadd.f32 0.0, %v803
  %v805 = vpop.f32.mrb[0].mxu0
  %806 = vmatprep.mubr.f32.mxu0 0.0
  %807 = vmatmul.mubr.f32.gmra.mrb[0].mxu0 %v665
  %v808 = vpop.f32.mrb[0].mxu0
  %v809 = vadd.f32 0.0, %v808
  %v810 = vpop.f32.mrb[0].mxu0
  %811 = vmatprep.mubr.f32.mxu0 0.0
  %812 = vmatmul.mubr.f32.gmra.mrb[0].mxu0 %v668
  %v813 = vpop.f32.mrb[0].mxu0
  %v814 = vadd.f32 0.0, %v813
  %v815 = vpop.f32.mrb[0].mxu0
  %816 = vmatprep.mubr.f32.mxu0 0.0
  %817 = vmatmul.mubr.f32.gmra.mrb[0].mxu0 %v671
  %v818 = vpop.f32.mrb[0].mxu0
  %v819 = vadd.f32 0.0, %v818
  %v820 = vpop.f32.mrb[0].mxu0
  %821 = vmatprep.mubr.f32.mxu0 0.0
  %822 = vmatmul.mubr.f32.gmra.mrb[0].mxu0 %v674
  %v823 = vpop.f32.mrb[0].mxu0
  %v824 = vadd.f32 0.0, %v823
  %v825 = vpop.f32.mrb[0].mxu0
  %826 = vmatprep.mubr.f32.mxu0 0.0
  %827 = vmatmul.mubr.f32.gmra.mrb[0].mxu0 %v677
  %v828 = vpop.f32.mrb[0].mxu0
  %v829 = vadd.f32 0.0, %v828
  %v830 = vpop.f32.mrb[0].mxu0
  %831 = vdwg.mxu0
  %v832 = vmul.f32 %v749, %v321
  %v833 = vmul.f32 %v754, %v322
  %v834 = vmul.f32 %v759, %v323
  %v835 = vmul.f32 %v764, %v324
  %v836 = vmul.f32 %v769, %v325
  %v837 = vmul.f32 %v774, %v326
  %v838 = vmul.f32 %v779, %v327
  %v839 = vmul.f32 %v784, %v328
  %v840 = vmul.f32 %v789, %v329
  %v841 = vmul.f32 %v794, %v330
  %v842 = vmul.f32 %v799, %v331
  %v843 = vmul.f32 %v804, %v332
  %v844 = vmul.f32 %v809, %v333
  %v845 = vmul.f32 %v814, %v334
  %v846 = vmul.f32 %v819, %v335
  %v847 = vmul.f32 %v824, %v336
  %v848 = vmul.f32 %v829, %v337
  %849 = vrot.lane.b32.xlu0 %v580, 64
  %v850 = vpop.permute.xlu0 %849
  %851 = vrot.lane.b32.xlu0 %v585, 64
  %v852 = vpop.permute.xlu0 %851
  %853 = vrot.lane.b32.xlu0 %v590, 64
  %v854 = vpop.permute.xlu0 %853
  %855 = vrot.lane.b32.xlu0 %v595, 64
  %v856 = vpop.permute.xlu0 %855
  %857 = vrot.lane.b32.xlu0 %v600, 64
  %v858 = vpop.permute.xlu0 %857
  %v863 = vsel %vm679, %v858, 0
  %865 = vmatprep.subr.mxu0 0.0
  %866 = vmatpush1.msra.mxu0 %v850
  %867 = vmatprep.subr.mxu0 0.0
  %868 = vmatpush1.msra.mxu0 %v852
  %869 = vmatprep.subr.mxu0 0.0
  %870 = vmatpush1.msra.mxu0 %v854
  %871 = vmatprep.subr.mxu0 0.0
  %872 = vmatpush1.msra.mxu0 %v856
  %873 = vmatprep.subr.mxu0 0.0
  %874 = vmatpush1.msra.mxu0 %v863
  %875 = vmatprep.subr.mxu0 0.0
  %876 = vmatpush1.msra.mxu0 0.0
  %877 = vmatprep.subr.mxu0 0.0
  %878 = vmatpush1.msra.mxu0 0.0
  %879 = vmatprep.subr.mxu0 0.0
  %880 = vmatpush1.msra.mxu0 0.0
  %881 = vmatprep.subr.mxu0 0.0
  %882 = vmatpush1.msra.mxu0 0.0
  %883 = vmatprep.subr.mxu0 0.0
  %884 = vmatpush1.msra.mxu0 0.0
  %885 = vmatprep.subr.mxu0 0.0
  %886 = vmatpush1.msra.mxu0 0.0
  %887 = vmatprep.subr.mxu0 0.0
  %888 = vmatpush1.msra.mxu0 0.0
  %889 = vmatprep.subr.mxu0 0.0
  %890 = vmatpush1.msra.mxu0 0.0
  %891 = vmatprep.subr.mxu0 0.0
  %892 = vmatpush1.msra.mxu0 0.0
  %893 = vmatprep.subr.mxu0 0.0
  %894 = vmatpush1.msra.mxu0 0.0
  %895 = vmatprep.subr.mxu0 0.0
  %896 = vmatpush1.msra.mxu0 0.0
  %897 = vmatprep.subr.mxu0 0.0
  %898 = vmatpush1.msra.mxu0 0.0
  %899 = vmatprep.subr.mxu0 0.0
  %900 = vmatpush1.msra.mxu0 0.0
  %901 = vmatprep.subr.mxu0 0.0
  %902 = vmatpush1.msra.mxu0 0.0
  %903 = vmatprep.subr.mxu0 0.0
  %904 = vmatpush1.msra.mxu0 0.0
  %905 = vmatprep.subr.mxu0 0.0
  %906 = vmatpush1.msra.mxu0 0.0
  %907 = vmatprep.subr.mxu0 0.0
  %908 = vmatpush1.msra.mxu0 0.0
  %909 = vmatprep.subr.mxu0 0.0
  %910 = vmatpush1.msra.mxu0 0.0
  %911 = vmatprep.subr.mxu0 0.0
  %912 = vmatpush1.msra.mxu0 0.0
  %913 = vmatprep.subr.mxu0 0.0
  %914 = vmatpush1.msra.mxu0 0.0
  %915 = vmatprep.subr.mxu0 0.0
  %916 = vmatpush1.msra.mxu0 0.0
  %917 = vmatprep.subr.mxu0 0.0
  %918 = vmatpush1.msra.mxu0 0.0
  %919 = vmatprep.subr.mxu0 0.0
  %920 = vmatpush1.msra.mxu0 0.0
  %921 = vmatprep.subr.mxu0 0.0
  %922 = vmatpush1.msra.mxu0 0.0
  %923 = vmatprep.subr.mxu0 0.0
  %924 = vmatpush1.msra.mxu0 0.0
  %925 = vmatprep.subr.mxu0 0.0
  %926 = vmatpush1.msra.mxu0 0.0
  %927 = vmatprep.subr.mxu0 0.0
  %928 = vmatpush1.msra.mxu0 0.0
  %929 = vmatprep.mubr.f32.mxu0 0.0
  %930 = vmatmul.mubr.f32.gmra.mrb[0].mxu0 %v629
  %v931 = vpop.f32.mrb[0].mxu0
  %v932 = vadd.f32 0.0, %v931
  %v933 = vpop.f32.mrb[0].mxu0
  %934 = vmatprep.mubr.f32.mxu0 0.0
  %935 = vmatmul.mubr.f32.gmra.mrb[0].mxu0 %v632
  %v936 = vpop.f32.mrb[0].mxu0
  %v937 = vadd.f32 0.0, %v936
  %v938 = vpop.f32.mrb[0].mxu0
  %939 = vmatprep.mubr.f32.mxu0 0.0
  %940 = vmatmul.mubr.f32.gmra.mrb[0].mxu0 %v635
  %v941 = vpop.f32.mrb[0].mxu0
  %v942 = vadd.f32 0.0, %v941
  %v943 = vpop.f32.mrb[0].mxu0
  %944 = vmatprep.mubr.f32.mxu0 0.0
  %945 = vmatmul.mubr.f32.gmra.mrb[0].mxu0 %v638
  %v946 = vpop.f32.mrb[0].mxu0
  %v947 = vadd.f32 0.0, %v946
  %v948 = vpop.f32.mrb[0].mxu0
  %949 = vmatprep.mubr.f32.mxu0 0.0
  %950 = vmatmul.mubr.f32.gmra.mrb[0].mxu0 %v641
  %v951 = vpop.f32.mrb[0].mxu0
  %v952 = vadd.f32 0.0, %v951
  %v953 = vpop.f32.mrb[0].mxu0
  %954 = vmatprep.mubr.f32.mxu0 0.0
  %955 = vmatmul.mubr.f32.gmra.mrb[0].mxu0 %v644
  %v956 = vpop.f32.mrb[0].mxu0
  %v957 = vadd.f32 0.0, %v956
  %v958 = vpop.f32.mrb[0].mxu0
  %959 = vmatprep.mubr.f32.mxu0 0.0
  %960 = vmatmul.mubr.f32.gmra.mrb[0].mxu0 %v647
  %v961 = vpop.f32.mrb[0].mxu0
  %v962 = vadd.f32 0.0, %v961
  %v963 = vpop.f32.mrb[0].mxu0
  %964 = vmatprep.mubr.f32.mxu0 0.0
  %965 = vmatmul.mubr.f32.gmra.mrb[0].mxu0 %v650
  %v966 = vpop.f32.mrb[0].mxu0
  %v967 = vadd.f32 0.0, %v966
  %v968 = vpop.f32.mrb[0].mxu0
  %969 = vmatprep.mubr.f32.mxu0 0.0
  %970 = vmatmul.mubr.f32.gmra.mrb[0].mxu0 %v653
  %v971 = vpop.f32.mrb[0].mxu0
  %v972 = vadd.f32 0.0, %v971
  %v973 = vpop.f32.mrb[0].mxu0
  %974 = vmatprep.mubr.f32.mxu0 0.0
  %975 = vmatmul.mubr.f32.gmra.mrb[0].mxu0 %v656
  %v976 = vpop.f32.mrb[0].mxu0
  %v977 = vadd.f32 0.0, %v976
  %v978 = vpop.f32.mrb[0].mxu0
  %979 = vmatprep.mubr.f32.mxu0 0.0
  %980 = vmatmul.mubr.f32.gmra.mrb[0].mxu0 %v659
  %v981 = vpop.f32.mrb[0].mxu0
  %v982 = vadd.f32 0.0, %v981
  %v983 = vpop.f32.mrb[0].mxu0
  %984 = vmatprep.mubr.f32.mxu0 0.0
  %985 = vmatmul.mubr.f32.gmra.mrb[0].mxu0 %v662
  %v986 = vpop.f32.mrb[0].mxu0
  %v987 = vadd.f32 0.0, %v986
  %v988 = vpop.f32.mrb[0].mxu0
  %989 = vmatprep.mubr.f32.mxu0 0.0
  %990 = vmatmul.mubr.f32.gmra.mrb[0].mxu0 %v665
  %v991 = vpop.f32.mrb[0].mxu0
  %v992 = vadd.f32 0.0, %v991
  %v993 = vpop.f32.mrb[0].mxu0
  %994 = vmatprep.mubr.f32.mxu0 0.0
  %995 = vmatmul.mubr.f32.gmra.mrb[0].mxu0 %v668
  %v996 = vpop.f32.mrb[0].mxu0
  %v997 = vadd.f32 0.0, %v996
  %v998 = vpop.f32.mrb[0].mxu0
  %999 = vmatprep.mubr.f32.mxu0 0.0
  %1000 = vmatmul.mubr.f32.gmra.mrb[0].mxu0 %v671
  %v1001 = vpop.f32.mrb[0].mxu0
  %v1002 = vadd.f32 0.0, %v1001
  %v1003 = vpop.f32.mrb[0].mxu0
  %1004 = vmatprep.mubr.f32.mxu0 0.0
  %1005 = vmatmul.mubr.f32.gmra.mrb[0].mxu0 %v674
  %v1006 = vpop.f32.mrb[0].mxu0
  %v1007 = vadd.f32 0.0, %v1006
  %v1008 = vpop.f32.mrb[0].mxu0
  %1009 = vmatprep.mubr.f32.mxu0 0.0
  %1010 = vmatmul.mubr.f32.gmra.mrb[0].mxu0 %v677
  %v1011 = vpop.f32.mrb[0].mxu0
  %v1012 = vadd.f32 0.0, %v1011
  %v1013 = vpop.f32.mrb[0].mxu0
  %1014 = vdwg.mxu0
  %v1015 = vmul.f32 %v932, %v321
  %v1016 = vmul.f32 %v937, %v322
  %v1017 = vmul.f32 %v942, %v323
  %v1018 = vmul.f32 %v947, %v324
  %v1019 = vmul.f32 %v952, %v325
  %v1020 = vmul.f32 %v957, %v326
  %v1021 = vmul.f32 %v962, %v327
  %v1022 = vmul.f32 %v967, %v328
  %v1023 = vmul.f32 %v972, %v329
  %v1024 = vmul.f32 %v977, %v330
  %v1025 = vmul.f32 %v982, %v331
  %v1026 = vmul.f32 %v987, %v332
  %v1027 = vmul.f32 %v992, %v333
  %v1028 = vmul.f32 %v997, %v334
  %v1029 = vmul.f32 %v1002, %v335
  %v1030 = vmul.f32 %v1007, %v336
  %v1031 = vmul.f32 %v1012, %v337
  %v1033 = vsel %vm198, %v603, 0
  %v1036 = vsel %vm198, %v604, 0
  %v1039 = vsel %vm198, %v605, 0
  %v1042 = vsel %vm198, %v606, 0
  %v1045 = vsel %vm198, %v607, 0
  %v1048 = vsel %vm198, %v832, 0
  %v1051 = vsel %vm198, %v833, 0
  %v1054 = vsel %vm198, %v834, 0
  %v1057 = vsel %vm198, %v835, 0
  %v1060 = vsel %vm198, %v836, 0
  %v1063 = vsel %vm198, %v837, 0
  %v1066 = vsel %vm198, %v838, 0
  %v1069 = vsel %vm198, %v839, 0
  %v1072 = vsel %vm198, %v840, 0
  %v1075 = vsel %vm198, %v841, 0
  %v1078 = vsel %vm198, %v842, 0
  %v1081 = vsel %vm198, %v843, 0
  %v1084 = vsel %vm198, %v844, 0
  %v1087 = vsel %vm198, %v845, 0
  %v1090 = vsel %vm198, %v846, 0
  %v1093 = vsel %vm198, %v847, 0
  %v1096 = vsel %vm198, %v848, 0
  %1098 = vmatprep.subr.mxu0 0.0
  %1099 = vmatpush1.xpose.msra.mxu0 %v1048
  %1100 = vmatprep.subr.mxu0 0.0
  %1101 = vmatpush1.xpose.msra.mxu0 %v1051
  %1102 = vmatprep.subr.mxu0 0.0
  %1103 = vmatpush1.xpose.msra.mxu0 %v1054
  %1104 = vmatprep.subr.mxu0 0.0
  %1105 = vmatpush1.xpose.msra.mxu0 %v1057
  %1106 = vmatprep.subr.mxu0 0.0
  %1107 = vmatpush1.xpose.msra.mxu0 %v1060
  %1108 = vmatprep.subr.mxu0 0.0
  %1109 = vmatpush1.xpose.msra.mxu0 %v1063
  %1110 = vmatprep.subr.mxu0 0.0
  %1111 = vmatpush1.xpose.msra.mxu0 %v1066
  %1112 = vmatprep.subr.mxu0 0.0
  %1113 = vmatpush1.xpose.msra.mxu0 %v1069
  %1114 = vmatprep.subr.mxu0 0.0
  %1115 = vmatpush1.xpose.msra.mxu0 %v1072
  %1116 = vmatprep.subr.mxu0 0.0
  %1117 = vmatpush1.xpose.msra.mxu0 %v1075
  %1118 = vmatprep.subr.mxu0 0.0
  %1119 = vmatpush1.xpose.msra.mxu0 %v1078
  %1120 = vmatprep.subr.mxu0 0.0
  %1121 = vmatpush1.xpose.msra.mxu0 %v1081
  %1122 = vmatprep.subr.mxu0 0.0
  %1123 = vmatpush1.xpose.msra.mxu0 %v1084
  %1124 = vmatprep.subr.mxu0 0.0
  %1125 = vmatpush1.xpose.msra.mxu0 %v1087
  %1126 = vmatprep.subr.mxu0 0.0
  %1127 = vmatpush1.xpose.msra.mxu0 %v1090
  %1128 = vmatprep.subr.mxu0 0.0
  %1129 = vmatpush1.xpose.msra.mxu0 %v1093
  %1130 = vmatprep.subr.mxu0 0.0
  %1131 = vmatpush1.xpose.msra.mxu0 %v1096
  %1132 = vmatprep.subr.mxu0 0.0
  %1133 = vmatpush1.xpose.msra.mxu0 0.0
  %1134 = vmatprep.subr.mxu0 0.0
  %1135 = vmatpush1.xpose.msra.mxu0 0.0
  %1136 = vmatprep.subr.mxu0 0.0
  %1137 = vmatpush1.xpose.msra.mxu0 0.0
  %1138 = vmatprep.subr.mxu0 0.0
  %1139 = vmatpush1.xpose.msra.mxu0 0.0
  %1140 = vmatprep.subr.mxu0 0.0
  %1141 = vmatpush1.xpose.msra.mxu0 0.0
  %1142 = vmatprep.subr.mxu0 0.0
  %1143 = vmatpush1.xpose.msra.mxu0 0.0
  %1144 = vmatprep.subr.mxu0 0.0
  %1145 = vmatpush1.xpose.msra.mxu0 0.0
  %1146 = vmatprep.subr.mxu0 0.0
  %1147 = vmatpush1.xpose.msra.mxu0 0.0
  %1148 = vmatprep.subr.mxu0 0.0
  %1149 = vmatpush1.xpose.msra.mxu0 0.0
  %1150 = vmatprep.subr.mxu0 0.0
  %1151 = vmatpush1.xpose.msra.mxu0 0.0
  %1152 = vmatprep.subr.mxu0 0.0
  %1153 = vmatpush1.xpose.msra.mxu0 0.0
  %1154 = vmatprep.subr.mxu0 0.0
  %1155 = vmatpush1.xpose.msra.mxu0 0.0
  %1156 = vmatprep.subr.mxu0 0.0
  %1157 = vmatpush1.xpose.msra.mxu0 0.0
  %1158 = vmatprep.subr.mxu0 0.0
  %1159 = vmatpush1.xpose.msra.mxu0 0.0
  %1160 = vmatprep.subr.mxu0 0.0
  %1161 = vmatpush1.xpose.msra.mxu0 0.0
  %1162 = vmatprep.mubr.f32.mxu0 0.0
  %1163 = vmatmul.mubr.f32.gmra.mrb[0].mxu0 %v1033
  %v1164 = vpop.f32.mrb[0].mxu0
  %v1165 = vadd.f32 %v338, %v1164
  %v1166 = vpop.f32.mrb[0].mxu0
  %v1167 = vadd.f32 %v339, %v1166
  %1168 = vmatprep.mubr.f32.mxu0 0.0
  %1169 = vmatmul.mubr.f32.gmra.mrb[0].mxu0 %v1036
  %v1170 = vpop.f32.mrb[0].mxu0
  %v1171 = vadd.f32 %v340, %v1170
  %v1172 = vpop.f32.mrb[0].mxu0
  %v1173 = vadd.f32 %v341, %v1172
  %1174 = vmatprep.mubr.f32.mxu0 0.0
  %1175 = vmatmul.mubr.f32.gmra.mrb[0].mxu0 %v1039
  %v1176 = vpop.f32.mrb[0].mxu0
  %v1177 = vadd.f32 %v342, %v1176
  %v1178 = vpop.f32.mrb[0].mxu0
  %v1179 = vadd.f32 %v343, %v1178
  %1180 = vmatprep.mubr.f32.mxu0 0.0
  %1181 = vmatmul.mubr.f32.gmra.mrb[0].mxu0 %v1042
  %v1182 = vpop.f32.mrb[0].mxu0
  %v1183 = vadd.f32 %v344, %v1182
  %v1184 = vpop.f32.mrb[0].mxu0
  %v1185 = vadd.f32 %v345, %v1184
  %1186 = vmatprep.mubr.f32.mxu0 0.0
  %1187 = vmatmul.mubr.f32.gmra.mrb[0].mxu0 %v1045
  %v1188 = vpop.f32.mrb[0].mxu0
  %v1189 = vadd.f32 %v346, %v1188
  %v1190 = vpop.f32.mrb[0].mxu0
  %v1191 = vadd.f32 %v347, %v1190
  %1192 = vdwg.mxu0
  %vm1193 = vcmask 64512
  %v1194 = vsel %vm1193, %v1167, -inf
  %v1195 = vmax.f32 %v1165, %v1194
  %1196 = vmax.xlane.f32.xlu0 %v1195
  %v1197 = vpop.xlane.xlu0 %1196
  %v1198 = vsel %vm1193, %v1173, -inf
  %v1199 = vmax.f32 %v1171, %v1198
  %1200 = vmax.xlane.f32.xlu0 %v1199
  %v1201 = vpop.xlane.xlu0 %1200
  %v1202 = vsel %vm1193, %v1179, -inf
  %v1203 = vmax.f32 %v1177, %v1202
  %1204 = vmax.xlane.f32.xlu0 %v1203
  %v1205 = vpop.xlane.xlu0 %1204
  %v1206 = vsel %vm1193, %v1185, -inf
  %v1207 = vmax.f32 %v1183, %v1206
  %1208 = vmax.xlane.f32.xlu0 %v1207
  %v1209 = vpop.xlane.xlu0 %1208
  %v1210 = vsel %vm679, %v1189, -inf
  %vm1211 = vcmask 58368
  %v1212 = vsel %vm1211, %v1191, -inf
  %v1213 = vmax.f32 %v1210, %v1212
  %1214 = vmax.xlane.f32.xlu0 %v1213
  %v1215 = vpop.xlane.xlu0 %1214
  %v1216 = vsub.f32 %v1165, %v1197
  %v1217 = vsub.f32 %v1167, %v1197
  %v1218 = vsub.f32 %v1171, %v1201
  %v1219 = vsub.f32 %v1173, %v1201
  %v1220 = vsub.f32 %v1177, %v1205
  %v1221 = vsub.f32 %v1179, %v1205
  %v1222 = vsub.f32 %v1183, %v1209
  %v1223 = vsub.f32 %v1185, %v1209
  %v1224 = vsub.f32 %v1189, %v1215
  %v1225 = vsub.f32 %v1191, %v1215
  %v1226 = vmul.f32 %v1216, 1.442695
  %v1227 = vpow.pop %v1226
  %v1228 = vmul.f32 %v1217, 1.442695
  %v1229 = vpow.pop %v1228
  %v1230 = vmul.f32 %v1218, 1.442695
  %v1231 = vpow.pop %v1230
  %v1232 = vmul.f32 %v1219, 1.442695
  %v1233 = vpow.pop %v1232
  %v1234 = vmul.f32 %v1220, 1.442695
  %v1235 = vpow.pop %v1234
  %v1236 = vmul.f32 %v1221, 1.442695
  %v1237 = vpow.pop %v1236
  %v1238 = vmul.f32 %v1222, 1.442695
  %v1239 = vpow.pop %v1238
  %v1240 = vmul.f32 %v1223, 1.442695
  %v1241 = vpow.pop %v1240
  %v1242 = vmul.f32 %v1224, 1.442695
  %v1243 = vpow.pop %v1242
  %v1244 = vmul.f32 %v1225, 1.442695
  %v1245 = vpow.pop %v1244
  %v1247 = vsel %vm1193, %v1229, 0
  %v1250 = vsel %vm1193, %v1233, 0
  %v1253 = vsel %vm1193, %v1237, 0
  %v1256 = vsel %vm1193, %v1241, 0
  %v1259 = vsel %vm1193, %v1245, 0
  %1261 = vmatprep.subr.mxu0 %v359
  %1262 = vmatpush1.msra.mxu0 %v358
  %1263 = vmatprep.subr.mxu0 %v361
  %1264 = vmatpush1.msra.mxu0 %v360
  %1265 = vmatprep.subr.mxu0 %v363
  %1266 = vmatpush1.msra.mxu0 %v362
  %1267 = vmatprep.subr.mxu0 %v365
  %1268 = vmatpush1.msra.mxu0 %v364
  %1269 = vmatprep.subr.mxu0 %v367
  %1270 = vmatpush1.msra.mxu0 %v366
  %1271 = vmatprep.subr.mxu0 %v369
  %1272 = vmatpush1.msra.mxu0 %v368
  %1273 = vmatprep.subr.mxu0 %v371
  %1274 = vmatpush1.msra.mxu0 %v370
  %1275 = vmatprep.subr.mxu0 %v373
  %1276 = vmatpush1.msra.mxu0 %v372
  %1277 = vmatprep.subr.mxu0 %v375
  %1278 = vmatpush1.msra.mxu0 %v374
  %1279 = vmatprep.subr.mxu0 %v377
  %1280 = vmatpush1.msra.mxu0 %v376
  %1281 = vmatprep.subr.mxu0 %v379
  %1282 = vmatpush1.msra.mxu0 %v378
  %1283 = vmatprep.subr.mxu0 %v381
  %1284 = vmatpush1.msra.mxu0 %v380
  %1285 = vmatprep.subr.mxu0 %v383
  %1286 = vmatpush1.msra.mxu0 %v382
  %1287 = vmatprep.subr.mxu0 %v385
  %1288 = vmatpush1.msra.mxu0 %v384
  %1289 = vmatprep.subr.mxu0 %v387
  %1290 = vmatpush1.msra.mxu0 %v386
  %1291 = vmatprep.subr.mxu0 %v389
  %1292 = vmatpush1.msra.mxu0 %v388
  %1293 = vmatprep.subr.mxu0 %v391
  %1294 = vmatpush1.msra.mxu0 %v390
  %1295 = vmatprep.subr.mxu0 0.0
  %1296 = vmatpush1.msra.mxu0 0.0
  %1297 = vmatprep.subr.mxu0 0.0
  %1298 = vmatpush1.msra.mxu0 0.0
  %1299 = vmatprep.subr.mxu0 0.0
  %1300 = vmatpush1.msra.mxu0 0.0
  %1301 = vmatprep.subr.mxu0 0.0
  %1302 = vmatpush1.msra.mxu0 0.0
  %1303 = vmatprep.subr.mxu0 0.0
  %1304 = vmatpush1.msra.mxu0 0.0
  %1305 = vmatprep.subr.mxu0 0.0
  %1306 = vmatpush1.msra.mxu0 0.0
  %1307 = vmatprep.subr.mxu0 0.0
  %1308 = vmatpush1.msra.mxu0 0.0
  %1309 = vmatprep.subr.mxu0 0.0
  %1310 = vmatpush1.msra.mxu0 0.0
  %1311 = vmatprep.subr.mxu0 0.0
  %1312 = vmatpush1.msra.mxu0 0.0
  %1313 = vmatprep.subr.mxu0 0.0
  %1314 = vmatpush1.msra.mxu0 0.0
  %1315 = vmatprep.subr.mxu0 0.0
  %1316 = vmatpush1.msra.mxu0 0.0
  %1317 = vmatprep.subr.mxu0 0.0
  %1318 = vmatpush1.msra.mxu0 0.0
  %1319 = vmatprep.subr.mxu0 0.0
  %1320 = vmatpush1.msra.mxu0 0.0
  %1321 = vmatprep.subr.mxu0 0.0
  %1322 = vmatpush1.msra.mxu0 0.0
  %1323 = vmatprep.subr.mxu0 0.0
  %1324 = vmatpush1.msra.mxu0 0.0
  %1325 = vmatprep.mubr.f32.mxu0 %v1247
  %1326 = vmatmul.mubr.f32.gmra.mrb[0].mxu0 %v1227
  %v1327 = vpop.f32.mrb[0].mxu0
  %v1328 = vadd.f32 %v348, %v1327
  %v1329 = vpop.f32.mrb[0].mxu0
  %v1330 = vadd.f32 %v349, %v1329
  %1331 = vmatprep.mubr.f32.mxu0 %v1250
  %1332 = vmatmul.mubr.f32.gmra.mrb[0].mxu0 %v1231
  %v1333 = vpop.f32.mrb[0].mxu0
  %v1334 = vadd.f32 %v350, %v1333
  %v1335 = vpop.f32.mrb[0].mxu0
  %v1336 = vadd.f32 %v351, %v1335
  %1337 = vmatprep.mubr.f32.mxu0 %v1253
  %1338 = vmatmul.mubr.f32.gmra.mrb[0].mxu0 %v1235
  %v1339 = vpop.f32.mrb[0].mxu0
  %v1340 = vadd.f32 %v352, %v1339
  %v1341 = vpop.f32.mrb[0].mxu0
  %v1342 = vadd.f32 %v353, %v1341
  %1343 = vmatprep.mubr.f32.mxu0 %v1256
  %1344 = vmatmul.mubr.f32.gmra.mrb[0].mxu0 %v1239
  %v1345 = vpop.f32.mrb[0].mxu0
  %v1346 = vadd.f32 %v354, %v1345
  %v1347 = vpop.f32.mrb[0].mxu0
  %v1348 = vadd.f32 %v355, %v1347
  %1349 = vmatprep.mubr.f32.mxu0 %v1259
  %1350 = vmatmul.mubr.f32.gmra.mrb[0].mxu0 %v1243
  %v1351 = vpop.f32.mrb[0].mxu0
  %v1352 = vadd.f32 %v356, %v1351
  %v1353 = vpop.f32.mrb[0].mxu0
  %v1354 = vadd.f32 %v357, %v1353
  %1355 = vdwg.mxu0
  %v1356 = vrcp.pop %v1328
  %v1357 = vrcp.pop %v1330
  %v1358 = vrcp.pop %v1334
  %v1359 = vrcp.pop %v1336
  %v1360 = vrcp.pop %v1340
  %v1361 = vrcp.pop %v1342
  %v1362 = vrcp.pop %v1346
  %v1363 = vrcp.pop %v1348
  %v1364 = vrcp.pop %v1352
  %v1365 = vrcp.pop %v1354
  %v1366 = vmul.f32 %v1227, %v1356
  %v1367 = vmul.f32 %v1229, %v1357
  %v1368 = vmul.f32 %v1231, %v1358
  %v1369 = vmul.f32 %v1233, %v1359
  %v1370 = vmul.f32 %v1235, %v1360
  %v1371 = vmul.f32 %v1237, %v1361
  %v1372 = vmul.f32 %v1239, %v1362
  %v1373 = vmul.f32 %v1241, %v1363
  %v1374 = vmul.f32 %v1243, %v1364
  %v1375 = vmul.f32 %v1245, %v1365
  %v1377 = vsel %vm1193, %v1367, 0
  %v1380 = vsel %vm1193, %v1369, 0
  %v1383 = vsel %vm1193, %v1371, 0
  %v1386 = vsel %vm1193, %v1373, 0
  %v1389 = vsel %vm1193, %v1375, 0
  %1391 = vmatprep.subr.mxu0 0.0
  %1392 = vmatpush1.msra.mxu0 %v1015
  %1393 = vmatprep.subr.mxu0 0.0
  %1394 = vmatpush1.msra.mxu0 %v1016
  %1395 = vmatprep.subr.mxu0 0.0
  %1396 = vmatpush1.msra.mxu0 %v1017
  %1397 = vmatprep.subr.mxu0 0.0
  %1398 = vmatpush1.msra.mxu0 %v1018
  %1399 = vmatprep.subr.mxu0 0.0
  %1400 = vmatpush1.msra.mxu0 %v1019
  %1401 = vmatprep.subr.mxu0 0.0
  %1402 = vmatpush1.msra.mxu0 %v1020
  %1403 = vmatprep.subr.mxu0 0.0
  %1404 = vmatpush1.msra.mxu0 %v1021
  %1405 = vmatprep.subr.mxu0 0.0
  %1406 = vmatpush1.msra.mxu0 %v1022
  %1407 = vmatprep.subr.mxu0 0.0
  %1408 = vmatpush1.msra.mxu0 %v1023
  %1409 = vmatprep.subr.mxu0 0.0
  %1410 = vmatpush1.msra.mxu0 %v1024
  %1411 = vmatprep.subr.mxu0 0.0
  %1412 = vmatpush1.msra.mxu0 %v1025
  %1413 = vmatprep.subr.mxu0 0.0
  %1414 = vmatpush1.msra.mxu0 %v1026
  %1415 = vmatprep.subr.mxu0 0.0
  %1416 = vmatpush1.msra.mxu0 %v1027
  %1417 = vmatprep.subr.mxu0 0.0
  %1418 = vmatpush1.msra.mxu0 %v1028
  %1419 = vmatprep.subr.mxu0 0.0
  %1420 = vmatpush1.msra.mxu0 %v1029
  %1421 = vmatprep.subr.mxu0 0.0
  %1422 = vmatpush1.msra.mxu0 %v1030
  %1423 = vmatprep.subr.mxu0 0.0
  %1424 = vmatpush1.msra.mxu0 %v1031
  %1425 = vmatprep.subr.mxu0 0.0
  %1426 = vmatpush1.msra.mxu0 0.0
  %1427 = vmatprep.subr.mxu0 0.0
  %1428 = vmatpush1.msra.mxu0 0.0
  %1429 = vmatprep.subr.mxu0 0.0
  %1430 = vmatpush1.msra.mxu0 0.0
  %1431 = vmatprep.subr.mxu0 0.0
  %1432 = vmatpush1.msra.mxu0 0.0
  %1433 = vmatprep.subr.mxu0 0.0
  %1434 = vmatpush1.msra.mxu0 0.0
  %1435 = vmatprep.subr.mxu0 0.0
  %1436 = vmatpush1.msra.mxu0 0.0
  %1437 = vmatprep.subr.mxu0 0.0
  %1438 = vmatpush1.msra.mxu0 0.0
  %1439 = vmatprep.subr.mxu0 0.0
  %1440 = vmatpush1.msra.mxu0 0.0
  %1441 = vmatprep.subr.mxu0 0.0
  %1442 = vmatpush1.msra.mxu0 0.0
  %1443 = vmatprep.subr.mxu0 0.0
  %1444 = vmatpush1.msra.mxu0 0.0
  %1445 = vmatprep.subr.mxu0 0.0
  %1446 = vmatpush1.msra.mxu0 0.0
  %1447 = vmatprep.subr.mxu0 0.0
  %1448 = vmatpush1.msra.mxu0 0.0
  %1449 = vmatprep.subr.mxu0 0.0
  %1450 = vmatpush1.msra.mxu0 0.0
  %1451 = vmatprep.subr.mxu0 0.0
  %1452 = vmatpush1.msra.mxu0 0.0
  %1453 = vmatprep.subr.mxu0 0.0
  %1454 = vmatpush1.msra.mxu0 0.0
  %1455 = vmatprep.mubr.f32.mxu0 %v1377
  %1456 = vmatmul.mubr.f32.gmra.mrb[0].mxu0 %v1366
  %v1457 = vpop.f32.mrb[0].mxu0
  %v1458 = vadd.f32 0.0, %v1457
  %v1459 = vpop.f32.mrb[0].mxu0
  %1460 = vmatprep.mubr.f32.mxu0 %v1380
  %1461 = vmatmul.mubr.f32.gmra.mrb[0].mxu0 %v1368
  %v1462 = vpop.f32.mrb[0].mxu0
  %v1463 = vadd.f32 0.0, %v1462
  %v1464 = vpop.f32.mrb[0].mxu0
  %1465 = vmatprep.mubr.f32.mxu0 %v1383
  %1466 = vmatmul.mubr.f32.gmra.mrb[0].mxu0 %v1370
  %v1467 = vpop.f32.mrb[0].mxu0
  %v1468 = vadd.f32 0.0, %v1467
  %v1469 = vpop.f32.mrb[0].mxu0
  %1470 = vmatprep.mubr.f32.mxu0 %v1386
  %1471 = vmatmul.mubr.f32.gmra.mrb[0].mxu0 %v1372
  %v1472 = vpop.f32.mrb[0].mxu0
  %v1473 = vadd.f32 0.0, %v1472
  %v1474 = vpop.f32.mrb[0].mxu0
  %1475 = vmatprep.mubr.f32.mxu0 %v1389
  %1476 = vmatmul.mubr.f32.gmra.mrb[0].mxu0 %v1374
  %v1477 = vpop.f32.mrb[0].mxu0
  %v1478 = vadd.f32 0.0, %v1477
  %v1479 = vpop.f32.mrb[0].mxu0
  %1480 = vdwg.mxu0
  %s1481 = scalar_lea.vmem %s14, 32
  %v1482 = vld [vmem:[%s1481] sm:$0xff]
  %v1483 = vld [vmem:[%s1481 + $0x8] sm:$0xff]
  %v1484 = vld [vmem:[%s1481 + $0x10] sm:$0xff]
  %v1485 = vld [vmem:[%s1481 + $0x18] sm:$0xff]
  %s1486 = scalar_lea.vmem %s15, 1
  %v1487 = vld [vmem:[%s1486] sm:$0x1]
  %v1489 = vlaneseq
  %v1490 = vshrl.u32 %v1489, 7
  %v1491 = vsub.s32 0, %v1490
  %v1492 = vrot.slane %v1487, %v1491
  %v1495 = vsel %vm198, %v1458, 0
  %v1498 = vsel %vm198, %v1463, 0
  %v1501 = vsel %vm198, %v1468, 0
  %v1504 = vsel %vm198, %v1473, 0
  %v1507 = vsel %vm198, %v1478, 0
  %1509 = vmatprep.subr.mxu0 0.0
  %1510 = vmatpush1.msra.mxu0 %v1482
  %1511 = vmatprep.subr.mxu0 0.0
  %1512 = vmatpush1.msra.mxu0 %v1483
  %1513 = vmatprep.subr.mxu0 0.0
  %1514 = vmatpush1.msra.mxu0 %v1484
  %1515 = vmatprep.subr.mxu0 0.0
  %1516 = vmatpush1.msra.mxu0 %v1485
  %1517 = vmatprep.subr.mxu0 0.0
  %1518 = vmatpush1.msra.mxu0 0.0
  %1519 = vmatprep.subr.mxu0 0.0
  %1520 = vmatpush1.msra.mxu0 0.0
  %1521 = vmatprep.subr.mxu0 0.0
  %1522 = vmatpush1.msra.mxu0 0.0
  %1523 = vmatprep.subr.mxu0 0.0
  %1524 = vmatpush1.msra.mxu0 0.0
  %1525 = vmatprep.subr.mxu0 0.0
  %1526 = vmatpush1.msra.mxu0 0.0
  %1527 = vmatprep.subr.mxu0 0.0
  %1528 = vmatpush1.msra.mxu0 0.0
  %1529 = vmatprep.subr.mxu0 0.0
  %1530 = vmatpush1.msra.mxu0 0.0
  %1531 = vmatprep.subr.mxu0 0.0
  %1532 = vmatpush1.msra.mxu0 0.0
  %1533 = vmatprep.subr.mxu0 0.0
  %1534 = vmatpush1.msra.mxu0 0.0
  %1535 = vmatprep.subr.mxu0 0.0
  %1536 = vmatpush1.msra.mxu0 0.0
  %1537 = vmatprep.subr.mxu0 0.0
  %1538 = vmatpush1.msra.mxu0 0.0
  %1539 = vmatprep.subr.mxu0 0.0
  %1540 = vmatpush1.msra.mxu0 0.0
  %1541 = vmatprep.subr.mxu0 0.0
  %1542 = vmatpush1.msra.mxu0 0.0
  %1543 = vmatprep.subr.mxu0 0.0
  %1544 = vmatpush1.msra.mxu0 0.0
  %1545 = vmatprep.subr.mxu0 0.0
  %1546 = vmatpush1.msra.mxu0 0.0
  %1547 = vmatprep.subr.mxu0 0.0
  %1548 = vmatpush1.msra.mxu0 0.0
  %1549 = vmatprep.subr.mxu0 0.0
  %1550 = vmatpush1.msra.mxu0 0.0
  %1551 = vmatprep.subr.mxu0 0.0
  %1552 = vmatpush1.msra.mxu0 0.0
  %1553 = vmatprep.subr.mxu0 0.0
  %1554 = vmatpush1.msra.mxu0 0.0
  %1555 = vmatprep.subr.mxu0 0.0
  %1556 = vmatpush1.msra.mxu0 0.0
  %1557 = vmatprep.subr.mxu0 0.0
  %1558 = vmatpush1.msra.mxu0 0.0
  %1559 = vmatprep.subr.mxu0 0.0
  %1560 = vmatpush1.msra.mxu0 0.0
  %1561 = vmatprep.subr.mxu0 0.0
  %1562 = vmatpush1.msra.mxu0 0.0
  %1563 = vmatprep.subr.mxu0 0.0
  %1564 = vmatpush1.msra.mxu0 0.0
  %1565 = vmatprep.subr.mxu0 0.0
  %1566 = vmatpush1.msra.mxu0 0.0
  %1567 = vmatprep.subr.mxu0 0.0
  %1568 = vmatpush1.msra.mxu0 0.0
  %1569 = vmatprep.subr.mxu0 0.0
  %1570 = vmatpush1.msra.mxu0 0.0
  %1571 = vmatprep.subr.mxu0 0.0
  %1572 = vmatpush1.msra.mxu0 0.0
  %1573 = vmatprep.mubr.f32.mxu0 0.0
  %1574 = vmatmul.mubr.f32.gmra.mrb[0].mxu0 %v1495
  %v1575 = vpop.f32.mrb[0].mxu0
  %v1576 = vadd.f32 %v1492, %v1575
  %v1577 = vpop.f32.mrb[0].mxu0
  %1578 = vmatprep.mubr.f32.mxu0 0.0
  %1579 = vmatmul.mubr.f32.gmra.mrb[0].mxu0 %v1498
  %v1580 = vpop.f32.mrb[0].mxu0
  %v1581 = vadd.f32 %v1492, %v1580
  %v1582 = vpop.f32.mrb[0].mxu0
  %1583 = vmatprep.mubr.f32.mxu0 0.0
  %1584 = vmatmul.mubr.f32.gmra.mrb[0].mxu0 %v1501
  %v1585 = vpop.f32.mrb[0].mxu0
  %v1586 = vadd.f32 %v1492, %v1585
  %v1587 = vpop.f32.mrb[0].mxu0
  %1588 = vmatprep.mubr.f32.mxu0 0.0
  %1589 = vmatmul.mubr.f32.gmra.mrb[0].mxu0 %v1504
  %v1590 = vpop.f32.mrb[0].mxu0
  %v1591 = vadd.f32 %v1492, %v1590
  %v1592 = vpop.f32.mrb[0].mxu0
  %1593 = vmatprep.mubr.f32.mxu0 0.0
  %1594 = vmatmul.mubr.f32.gmra.mrb[0].mxu0 %v1507
  %v1595 = vpop.f32.mrb[0].mxu0
  %v1596 = vadd.f32 %v1492, %v1595
  %v1597 = vpop.f32.mrb[0].mxu0
  %1598 = vdwg.mxu0
  %v1599 = vadd.f32 %v281, %v1576
  %v1600 = vadd.f32 %v286, %v1581
  %v1601 = vadd.f32 %v291, %v1586
  %v1602 = vadd.f32 %v296, %v1591
  %v1603 = vadd.f32 %v301, %v1596
  %s1604 = scalar_lea.vmem %s16, 1
  %v1605 = vld [vmem:[%s1604] sm:$0x1]
  %s1606 = scalar_lea.vmem %s17, 1
  %v1607 = vld [vmem:[%s1606] sm:$0x1]
  %v1608 = vsel %vm198, %v1599, 0.0
  %1609 = vadd.xlane.f32.xlu0 %v1608
  %v1610 = vpop.xlane.xlu0 %1609
  %v1611 = vsel %vm198, %v1600, 0.0
  %1612 = vadd.xlane.f32.xlu0 %v1611
  %v1613 = vpop.xlane.xlu0 %1612
  %v1614 = vsel %vm198, %v1601, 0.0
  %1615 = vadd.xlane.f32.xlu0 %v1614
  %v1616 = vpop.xlane.xlu0 %1615
  %v1617 = vsel %vm198, %v1602, 0.0
  %1618 = vadd.xlane.f32.xlu0 %v1617
  %v1619 = vpop.xlane.xlu0 %1618
  %v1620 = vsel %vm408, %v1603, 0.0
  %1621 = vadd.xlane.f32.xlu0 %v1620
  %v1622 = vpop.xlane.xlu0 %1621
  %v1623 = vmul.f32 %v1610, %v412
  %v1624 = vmul.f32 %v1613, %v412
  %v1625 = vmul.f32 %v1616, %v412
  %v1626 = vmul.f32 %v1619, %v412
  %v1627 = vmul.f32 %v1622, %v412
  %v1628 = vsub.f32 %v1599, %v1623
  %v1629 = vsub.f32 %v1600, %v1624
  %v1630 = vsub.f32 %v1601, %v1625
  %v1631 = vsub.f32 %v1602, %v1626
  %v1632 = vsub.f32 %v1603, %v1627
  %v1633 = vmul.f32 %v1628, %v1628
  %v1634 = vmul.f32 %v1629, %v1629
  %v1635 = vmul.f32 %v1630, %v1630
  %v1636 = vmul.f32 %v1631, %v1631
  %v1637 = vmul.f32 %v1632, %v1632
  %v1638 = vsel %vm198, %v1633, 0.0
  %1639 = vadd.xlane.f32.xlu0 %v1638
  %v1640 = vpop.xlane.xlu0 %1639
  %v1641 = vsel %vm198, %v1634, 0.0
  %1642 = vadd.xlane.f32.xlu0 %v1641
  %v1643 = vpop.xlane.xlu0 %1642
  %v1644 = vsel %vm198, %v1635, 0.0
  %1645 = vadd.xlane.f32.xlu0 %v1644
  %v1646 = vpop.xlane.xlu0 %1645
  %v1647 = vsel %vm198, %v1636, 0.0
  %1648 = vadd.xlane.f32.xlu0 %v1647
  %v1649 = vpop.xlane.xlu0 %1648
  %v1650 = vsel %vm408, %v1637, 0.0
  %1651 = vadd.xlane.f32.xlu0 %v1650
  %v1652 = vpop.xlane.xlu0 %1651
  %v1653 = vmul.f32 %v1640, %v412
  %v1654 = vmul.f32 %v1643, %v412
  %v1655 = vmul.f32 %v1646, %v412
  %v1656 = vmul.f32 %v1649, %v412
  %v1657 = vmul.f32 %v1652, %v412
  %v1658 = vadd.f32 %v1653, 1e-06
  %v1659 = vadd.f32 %v1654, 1e-06
  %v1660 = vadd.f32 %v1655, 1e-06
  %v1661 = vadd.f32 %v1656, 1e-06
  %v1662 = vadd.f32 %v1657, 1e-06
  %v1663 = vrsqrt.pop %v1658
  %v1664 = vrsqrt.pop %v1659
  %v1665 = vrsqrt.pop %v1660
  %v1666 = vrsqrt.pop %v1661
  %v1667 = vrsqrt.pop %v1662
  %v1668 = vmul.f32 %v1628, %v1663
  %v1669 = vmul.f32 %v1629, %v1664
  %v1670 = vmul.f32 %v1630, %v1665
  %v1671 = vmul.f32 %v1631, %v1666
  %v1672 = vmul.f32 %v1632, %v1667
  %v1674 = vlaneseq
  %v1675 = vshrl.u32 %v1674, 7
  %v1676 = vsub.s32 0, %v1675
  %v1677 = vrot.slane %v1605, %v1676
  %v1679 = vmul.f32 %v1668, %v1677
  %v1680 = vmul.f32 %v1669, %v1677
  %v1681 = vmul.f32 %v1670, %v1677
  %v1682 = vmul.f32 %v1671, %v1677
  %v1683 = vmul.f32 %v1672, %v1677
  %v1685 = vlaneseq
  %v1686 = vshrl.u32 %v1685, 7
  %v1687 = vsub.s32 0, %v1686
  %v1688 = vrot.slane %v1607, %v1687
  %v1690 = vadd.f32 %v1679, %v1688
  %v1691 = vadd.f32 %v1680, %v1688
  %v1692 = vadd.f32 %v1681, %v1688
  %v1693 = vadd.f32 %v1682, %v1688
  %v1694 = vadd.f32 %v1683, %v1688
  %s1695 = scalar_lea.vmem %s18, 32
  %v1696 = vld [vmem:[%s1695] sm:$0xff]
  %v1697 = vld [vmem:[%s1695 + $0x8] sm:$0xff]
  %v1698 = vld [vmem:[%s1695 + $0x10] sm:$0xff]
  %v1699 = vld [vmem:[%s1695 + $0x18] sm:$0xff]
  %s1700 = scalar_lea.vmem %s19, 1
  %v1701 = vld [vmem:[%s1700] sm:$0x1]
  %v1703 = vlaneseq
  %v1704 = vshrl.u32 %v1703, 7
  %v1705 = vsub.s32 0, %v1704
  %v1706 = vrot.slane %v1701, %v1705
  %v1709 = vsel %vm198, %v1690, 0
  %v1712 = vsel %vm198, %v1691, 0
  %v1715 = vsel %vm198, %v1692, 0
  %v1718 = vsel %vm198, %v1693, 0
  %v1721 = vsel %vm198, %v1694, 0
  %1723 = vmatprep.subr.mxu0 0.0
  %1724 = vmatpush1.msra.mxu0 %v1696
  %1725 = vmatprep.subr.mxu0 0.0
  %1726 = vmatpush1.msra.mxu0 %v1697
  %1727 = vmatprep.subr.mxu0 0.0
  %1728 = vmatpush1.msra.mxu0 %v1698
  %1729 = vmatprep.subr.mxu0 0.0
  %1730 = vmatpush1.msra.mxu0 %v1699
  %1731 = vmatprep.subr.mxu0 0.0
  %1732 = vmatpush1.msra.mxu0 0.0
  %1733 = vmatprep.subr.mxu0 0.0
  %1734 = vmatpush1.msra.mxu0 0.0
  %1735 = vmatprep.subr.mxu0 0.0
  %1736 = vmatpush1.msra.mxu0 0.0
  %1737 = vmatprep.subr.mxu0 0.0
  %1738 = vmatpush1.msra.mxu0 0.0
  %1739 = vmatprep.subr.mxu0 0.0
  %1740 = vmatpush1.msra.mxu0 0.0
  %1741 = vmatprep.subr.mxu0 0.0
  %1742 = vmatpush1.msra.mxu0 0.0
  %1743 = vmatprep.subr.mxu0 0.0
  %1744 = vmatpush1.msra.mxu0 0.0
  %1745 = vmatprep.subr.mxu0 0.0
  %1746 = vmatpush1.msra.mxu0 0.0
  %1747 = vmatprep.subr.mxu0 0.0
  %1748 = vmatpush1.msra.mxu0 0.0
  %1749 = vmatprep.subr.mxu0 0.0
  %1750 = vmatpush1.msra.mxu0 0.0
  %1751 = vmatprep.subr.mxu0 0.0
  %1752 = vmatpush1.msra.mxu0 0.0
  %1753 = vmatprep.subr.mxu0 0.0
  %1754 = vmatpush1.msra.mxu0 0.0
  %1755 = vmatprep.subr.mxu0 0.0
  %1756 = vmatpush1.msra.mxu0 0.0
  %1757 = vmatprep.subr.mxu0 0.0
  %1758 = vmatpush1.msra.mxu0 0.0
  %1759 = vmatprep.subr.mxu0 0.0
  %1760 = vmatpush1.msra.mxu0 0.0
  %1761 = vmatprep.subr.mxu0 0.0
  %1762 = vmatpush1.msra.mxu0 0.0
  %1763 = vmatprep.subr.mxu0 0.0
  %1764 = vmatpush1.msra.mxu0 0.0
  %1765 = vmatprep.subr.mxu0 0.0
  %1766 = vmatpush1.msra.mxu0 0.0
  %1767 = vmatprep.subr.mxu0 0.0
  %1768 = vmatpush1.msra.mxu0 0.0
  %1769 = vmatprep.subr.mxu0 0.0
  %1770 = vmatpush1.msra.mxu0 0.0
  %1771 = vmatprep.subr.mxu0 0.0
  %1772 = vmatpush1.msra.mxu0 0.0
  %1773 = vmatprep.subr.mxu0 0.0
  %1774 = vmatpush1.msra.mxu0 0.0
  %1775 = vmatprep.subr.mxu0 0.0
  %1776 = vmatpush1.msra.mxu0 0.0
  %1777 = vmatprep.subr.mxu0 0.0
  %1778 = vmatpush1.msra.mxu0 0.0
  %1779 = vmatprep.subr.mxu0 0.0
  %1780 = vmatpush1.msra.mxu0 0.0
  %1781 = vmatprep.subr.mxu0 0.0
  %1782 = vmatpush1.msra.mxu0 0.0
  %1783 = vmatprep.subr.mxu0 0.0
  %1784 = vmatpush1.msra.mxu0 0.0
  %1785 = vmatprep.subr.mxu0 0.0
  %1786 = vmatpush1.msra.mxu0 0.0
  %1787 = vmatprep.mubr.f32.mxu0 0.0
  %1788 = vmatmul.mubr.f32.gmra.mrb[0].mxu0 %v1709
  %v1789 = vpop.f32.mrb[0].mxu0
  %v1790 = vadd.f32 %v1706, %v1789
  %v1791 = vpop.f32.mrb[0].mxu0
  %1792 = vmatprep.mubr.f32.mxu0 0.0
  %1793 = vmatmul.mubr.f32.gmra.mrb[0].mxu0 %v1712
  %v1794 = vpop.f32.mrb[0].mxu0
  %v1795 = vadd.f32 %v1706, %v1794
  %v1796 = vpop.f32.mrb[0].mxu0
  %1797 = vmatprep.mubr.f32.mxu0 0.0
  %1798 = vmatmul.mubr.f32.gmra.mrb[0].mxu0 %v1715
  %v1799 = vpop.f32.mrb[0].mxu0
  %v1800 = vadd.f32 %v1706, %v1799
  %v1801 = vpop.f32.mrb[0].mxu0
  %1802 = vmatprep.mubr.f32.mxu0 0.0
  %1803 = vmatmul.mubr.f32.gmra.mrb[0].mxu0 %v1718
  %v1804 = vpop.f32.mrb[0].mxu0
  %v1805 = vadd.f32 %v1706, %v1804
  %v1806 = vpop.f32.mrb[0].mxu0
  %1807 = vmatprep.mubr.f32.mxu0 0.0
  %1808 = vmatmul.mubr.f32.gmra.mrb[0].mxu0 %v1721
  %v1809 = vpop.f32.mrb[0].mxu0
  %v1810 = vadd.f32 %v1706, %v1809
  %v1811 = vpop.f32.mrb[0].mxu0
  %1812 = vdwg.mxu0
  %v1813 = vmul.f32 %v1790, 0.5
  %v1814 = vmul.f32 %v1795, 0.5
  %v1815 = vmul.f32 %v1800, 0.5
  %v1816 = vmul.f32 %v1805, 0.5
  %v1817 = vmul.f32 %v1810, 0.5
  %v1818 = vrcp.pop 1.4142135
  %v1819 = vmul.f32 %v1790, %v1818
  %v1820 = vmul.f32 %v1795, %v1818
  %v1821 = vmul.f32 %v1800, %v1818
  %v1822 = vmul.f32 %v1805, %v1818
  %v1823 = vmul.f32 %v1810, %v1818
  %v1824 = verf.f32.pop %v1819
  %v1825 = verf.f32.pop %v1820
  %v1826 = verf.f32.pop %v1821
  %v1827 = verf.f32.pop %v1822
  %v1828 = verf.f32.pop %v1823
  %v1829 = vadd.f32 %v1824, 1.0
  %v1830 = vadd.f32 %v1825, 1.0
  %v1831 = vadd.f32 %v1826, 1.0
  %v1832 = vadd.f32 %v1827, 1.0
  %v1833 = vadd.f32 %v1828, 1.0
  %v1834 = vmul.f32 %v1813, %v1829
  %v1835 = vmul.f32 %v1814, %v1830
  %v1836 = vmul.f32 %v1815, %v1831
  %v1837 = vmul.f32 %v1816, %v1832
  %v1838 = vmul.f32 %v1817, %v1833
  %s1839 = scalar_lea.vmem %s20, 64
  %v1840 = vld [vmem:[%s1839] sm:$0xff]
  %v1841 = vld [vmem:[%s1839 + $0x8] sm:$0xff]
  %v1842 = vld [vmem:[%s1839 + $0x10] sm:$0xff]
  %v1843 = vld [vmem:[%s1839 + $0x18] sm:$0xff]
  %v1844 = vld [vmem:[%s1839 + $0x20] sm:$0xff]
  %v1845 = vld [vmem:[%s1839 + $0x28] sm:$0xff]
  %v1846 = vld [vmem:[%s1839 + $0x30] sm:$0xff]
  %v1847 = vld [vmem:[%s1839 + $0x38] sm:$0xff]
  %s1848 = scalar_lea.vmem %s21, 1
  %v1849 = vld [vmem:[%s1848] sm:$0x1]
  %v1851 = vlaneseq
  %v1852 = vshrl.u32 %v1851, 7
  %v1853 = vsub.s32 0, %v1852
  %v1854 = vrot.slane %v1849, %v1853
  %vm1856 = vcmask 523264
  %v1858 = vsel %vm1856, %v1834, 0
  %v1861 = vsel %vm1856, %v1835, 0
  %v1864 = vsel %vm1856, %v1836, 0
  %v1867 = vsel %vm1856, %v1837, 0
  %v1870 = vsel %vm1856, %v1838, 0
  %1872 = vmatprep.subr.mxu0 0.0
  %1873 = vmatpush1.msra.mxu0 %v1840
  %1874 = vmatprep.subr.mxu0 0.0
  %1875 = vmatpush1.msra.mxu0 %v1841
  %1876 = vmatprep.subr.mxu0 0.0
  %1877 = vmatpush1.msra.mxu0 %v1842
  %1878 = vmatprep.subr.mxu0 0.0
  %1879 = vmatpush1.msra.mxu0 %v1843
  %1880 = vmatprep.subr.mxu0 0.0
  %1881 = vmatpush1.msra.mxu0 %v1844
  %1882 = vmatprep.subr.mxu0 0.0
  %1883 = vmatpush1.msra.mxu0 %v1845
  %1884 = vmatprep.subr.mxu0 0.0
  %1885 = vmatpush1.msra.mxu0 %v1846
  %1886 = vmatprep.subr.mxu0 0.0
  %1887 = vmatpush1.msra.mxu0 %v1847
  %1888 = vmatprep.subr.mxu0 0.0
  %1889 = vmatpush1.msra.mxu0 0.0
  %1890 = vmatprep.subr.mxu0 0.0
  %1891 = vmatpush1.msra.mxu0 0.0
  %1892 = vmatprep.subr.mxu0 0.0
  %1893 = vmatpush1.msra.mxu0 0.0
  %1894 = vmatprep.subr.mxu0 0.0
  %1895 = vmatpush1.msra.mxu0 0.0
  %1896 = vmatprep.subr.mxu0 0.0
  %1897 = vmatpush1.msra.mxu0 0.0
  %1898 = vmatprep.subr.mxu0 0.0
  %1899 = vmatpush1.msra.mxu0 0.0
  %1900 = vmatprep.subr.mxu0 0.0
  %1901 = vmatpush1.msra.mxu0 0.0
  %1902 = vmatprep.subr.mxu0 0.0
  %1903 = vmatpush1.msra.mxu0 0.0
  %1904 = vmatprep.subr.mxu0 0.0
  %1905 = vmatpush1.msra.mxu0 0.0
  %1906 = vmatprep.subr.mxu0 0.0
  %1907 = vmatpush1.msra.mxu0 0.0
  %1908 = vmatprep.subr.mxu0 0.0
  %1909 = vmatpush1.msra.mxu0 0.0
  %1910 = vmatprep.subr.mxu0 0.0
  %1911 = vmatpush1.msra.mxu0 0.0
  %1912 = vmatprep.subr.mxu0 0.0
  %1913 = vmatpush1.msra.mxu0 0.0
  %1914 = vmatprep.subr.mxu0 0.0
  %1915 = vmatpush1.msra.mxu0 0.0
  %1916 = vmatprep.subr.mxu0 0.0
  %1917 = vmatpush1.msra.mxu0 0.0
  %1918 = vmatprep.subr.mxu0 0.0
  %1919 = vmatpush1.msra.mxu0 0.0
  %1920 = vmatprep.subr.mxu0 0.0
  %1921 = vmatpush1.msra.mxu0 0.0
  %1922 = vmatprep.subr.mxu0 0.0
  %1923 = vmatpush1.msra.mxu0 0.0
  %1924 = vmatprep.subr.mxu0 0.0
  %1925 = vmatpush1.msra.mxu0 0.0
  %1926 = vmatprep.subr.mxu0 0.0
  %1927 = vmatpush1.msra.mxu0 0.0
  %1928 = vmatprep.subr.mxu0 0.0
  %1929 = vmatpush1.msra.mxu0 0.0
  %1930 = vmatprep.subr.mxu0 0.0
  %1931 = vmatpush1.msra.mxu0 0.0
  %1932 = vmatprep.subr.mxu0 0.0
  %1933 = vmatpush1.msra.mxu0 0.0
  %1934 = vmatprep.subr.mxu0 0.0
  %1935 = vmatpush1.msra.mxu0 0.0
  %1936 = vmatprep.mubr.f32.mxu0 0.0
  %1937 = vmatmul.mubr.f32.gmra.mrb[0].mxu0 %v1858
  %v1938 = vpop.f32.mrb[0].mxu0
  %v1939 = vadd.f32 %v1854, %v1938
  %v1940 = vpop.f32.mrb[0].mxu0
  %1941 = vmatprep.mubr.f32.mxu0 0.0
  %1942 = vmatmul.mubr.f32.gmra.mrb[0].mxu0 %v1861
  %v1943 = vpop.f32.mrb[0].mxu0
  %v1944 = vadd.f32 %v1854, %v1943
  %v1945 = vpop.f32.mrb[0].mxu0
  %1946 = vmatprep.mubr.f32.mxu0 0.0
  %1947 = vmatmul.mubr.f32.gmra.mrb[0].mxu0 %v1864
  %v1948 = vpop.f32.mrb[0].mxu0
  %v1949 = vadd.f32 %v1854, %v1948
  %v1950 = vpop.f32.mrb[0].mxu0
  %1951 = vmatprep.mubr.f32.mxu0 0.0
  %1952 = vmatmul.mubr.f32.gmra.mrb[0].mxu0 %v1867
  %v1953 = vpop.f32.mrb[0].mxu0
  %v1954 = vadd.f32 %v1854, %v1953
  %v1955 = vpop.f32.mrb[0].mxu0
  %1956 = vmatprep.mubr.f32.mxu0 0.0
  %1957 = vmatmul.mubr.f32.gmra.mrb[0].mxu0 %v1870
  %v1958 = vpop.f32.mrb[0].mxu0
  %v1959 = vadd.f32 %v1854, %v1958
  %v1960 = vpop.f32.mrb[0].mxu0
  %1961 = vdwg.mxu0
  %v1962 = vadd.f32 %v1599, %v1939
  %v1963 = vadd.f32 %v1600, %v1944
  %v1964 = vadd.f32 %v1601, %v1949
  %v1965 = vadd.f32 %v1602, %v1954
  %v1966 = vadd.f32 %v1603, %v1959
  %v1967 = vld [vmem:[%s10] sm:$0x1]
  %v1968 = vld [vmem:[%s11] sm:$0x1]
  %v1970 = vlaneseq
  %v1971 = vshrl.u32 %v1970, 7
  %v1972 = vsub.s32 0, %v1971
  %v1973 = vrot.slane %v1967, %v1972
  %v1975 = vmul.f32 %v458, %v1973
  %v1976 = vmul.f32 %v459, %v1973
  %v1977 = vmul.f32 %v460, %v1973
  %v1978 = vmul.f32 %v461, %v1973
  %v1979 = vmul.f32 %v462, %v1973
  %v1981 = vlaneseq
  %v1982 = vshrl.u32 %v1981, 7
  %v1983 = vsub.s32 0, %v1982
  %v1984 = vrot.slane %v1968, %v1983
  %v1986 = vadd.f32 %v1975, %v1984
  %v1987 = vadd.f32 %v1976, %v1984
  %v1988 = vadd.f32 %v1977, %v1984
  %v1989 = vadd.f32 %v1978, %v1984
  %v1990 = vadd.f32 %v1979, %v1984
  %v1991 = vld [vmem:[%s12] sm:$0xff]
  %v1992 = vld [vmem:[%s12 + $0x8] sm:$0xff]
  %v1993 = vld [vmem:[%s12 + $0x10] sm:$0xff]
  %v1994 = vld [vmem:[%s12 + $0x18] sm:$0xff]
  %v1995 = vld [vmem:[%s13] sm:$0x1]
  %v1997 = vlaneseq
  %v1998 = vshrl.u32 %v1997, 7
  %v1999 = vsub.s32 0, %v1998
  %v2000 = vrot.slane %v1995, %v1999
  %v2003 = vsel %vm198, %v1986, 0
  %v2006 = vsel %vm198, %v1987, 0
  %v2009 = vsel %vm198, %v1988, 0
  %v2012 = vsel %vm198, %v1989, 0
  %v2015 = vsel %vm198, %v1990, 0
  %2017 = vmatprep.subr.mxu0 0.0
  %2018 = vmatpush1.msra.mxu0 %v1991
  %2019 = vmatprep.subr.mxu0 0.0
  %2020 = vmatpush1.msra.mxu0 %v1992
  %2021 = vmatprep.subr.mxu0 0.0
  %2022 = vmatpush1.msra.mxu0 %v1993
  %2023 = vmatprep.subr.mxu0 0.0
  %2024 = vmatpush1.msra.mxu0 %v1994
  %2025 = vmatprep.subr.mxu0 0.0
  %2026 = vmatpush1.msra.mxu0 0.0
  %2027 = vmatprep.subr.mxu0 0.0
  %2028 = vmatpush1.msra.mxu0 0.0
  %2029 = vmatprep.subr.mxu0 0.0
  %2030 = vmatpush1.msra.mxu0 0.0
  %2031 = vmatprep.subr.mxu0 0.0
  %2032 = vmatpush1.msra.mxu0 0.0
  %2033 = vmatprep.subr.mxu0 0.0
  %2034 = vmatpush1.msra.mxu0 0.0
  %2035 = vmatprep.subr.mxu0 0.0
  %2036 = vmatpush1.msra.mxu0 0.0
  %2037 = vmatprep.subr.mxu0 0.0
  %2038 = vmatpush1.msra.mxu0 0.0
  %2039 = vmatprep.subr.mxu0 0.0
  %2040 = vmatpush1.msra.mxu0 0.0
  %2041 = vmatprep.subr.mxu0 0.0
  %2042 = vmatpush1.msra.mxu0 0.0
  %2043 = vmatprep.subr.mxu0 0.0
  %2044 = vmatpush1.msra.mxu0 0.0
  %2045 = vmatprep.subr.mxu0 0.0
  %2046 = vmatpush1.msra.mxu0 0.0
  %2047 = vmatprep.subr.mxu0 0.0
  %2048 = vmatpush1.msra.mxu0 0.0
  %2049 = vmatprep.subr.mxu0 0.0
  %2050 = vmatpush1.msra.mxu0 0.0
  %2051 = vmatprep.subr.mxu0 0.0
  %2052 = vmatpush1.msra.mxu0 0.0
  %2053 = vmatprep.subr.mxu0 0.0
  %2054 = vmatpush1.msra.mxu0 0.0
  %2055 = vmatprep.subr.mxu0 0.0
  %2056 = vmatpush1.msra.mxu0 0.0
  %2057 = vmatprep.subr.mxu0 0.0
  %2058 = vmatpush1.msra.mxu0 0.0
  %2059 = vmatprep.subr.mxu0 0.0
  %2060 = vmatpush1.msra.mxu0 0.0
  %2061 = vmatprep.subr.mxu0 0.0
  %2062 = vmatpush1.msra.mxu0 0.0
  %2063 = vmatprep.subr.mxu0 0.0
  %2064 = vmatpush1.msra.mxu0 0.0
  %2065 = vmatprep.subr.mxu0 0.0
  %2066 = vmatpush1.msra.mxu0 0.0
  %2067 = vmatprep.subr.mxu0 0.0
  %2068 = vmatpush1.msra.mxu0 0.0
  %2069 = vmatprep.subr.mxu0 0.0
  %2070 = vmatpush1.msra.mxu0 0.0
  %2071 = vmatprep.subr.mxu0 0.0
  %2072 = vmatpush1.msra.mxu0 0.0
  %2073 = vmatprep.subr.mxu0 0.0
  %2074 = vmatpush1.msra.mxu0 0.0
  %2075 = vmatprep.subr.mxu0 0.0
  %2076 = vmatpush1.msra.mxu0 0.0
  %2077 = vmatprep.subr.mxu0 0.0
  %2078 = vmatpush1.msra.mxu0 0.0
  %2079 = vmatprep.subr.mxu0 0.0
  %2080 = vmatpush1.msra.mxu0 0.0
  %2081 = vmatprep.mubr.f32.mxu0 0.0
  %2082 = vmatmul.mubr.f32.gmra.mrb[0].mxu0 %v2003
  %v2083 = vpop.f32.mrb[0].mxu0
  %v2084 = vadd.f32 %v2000, %v2083
  %v2085 = vpop.f32.mrb[0].mxu0
  %2086 = vmatprep.mubr.f32.mxu0 0.0
  %2087 = vmatmul.mubr.f32.gmra.mrb[0].mxu0 %v2006
  %v2088 = vpop.f32.mrb[0].mxu0
  %v2089 = vadd.f32 %v2000, %v2088
  %v2090 = vpop.f32.mrb[0].mxu0
  %2091 = vmatprep.mubr.f32.mxu0 0.0
  %2092 = vmatmul.mubr.f32.gmra.mrb[0].mxu0 %v2009
  %v2093 = vpop.f32.mrb[0].mxu0
  %v2094 = vadd.f32 %v2000, %v2093
  %v2095 = vpop.f32.mrb[0].mxu0
  %2096 = vmatprep.mubr.f32.mxu0 0.0
  %2097 = vmatmul.mubr.f32.gmra.mrb[0].mxu0 %v2012
  %v2098 = vpop.f32.mrb[0].mxu0
  %v2099 = vadd.f32 %v2000, %v2098
  %v2100 = vpop.f32.mrb[0].mxu0
  %2101 = vmatprep.mubr.f32.mxu0 0.0
  %2102 = vmatmul.mubr.f32.gmra.mrb[0].mxu0 %v2015
  %v2103 = vpop.f32.mrb[0].mxu0
  %v2104 = vadd.f32 %v2000, %v2103
  %v2105 = vpop.f32.mrb[0].mxu0
  %2106 = vdwg.mxu0
  %v2107 = vmul.f32 %v2084, 0.35355338
  %v2108 = vmul.f32 %v2089, 0.35355338
  %v2109 = vmul.f32 %v2094, 0.35355338
  %v2110 = vmul.f32 %v2099, 0.35355338
  %v2111 = vmul.f32 %v2104, 0.35355338
  %2117 = vrot.lane.b32.xlu0 %v2084, 96
  %v2118 = vpop.permute.xlu0 %2117
  %2119 = vrot.lane.b32.xlu0 %v2089, 96
  %v2120 = vpop.permute.xlu0 %2119
  %2121 = vrot.lane.b32.xlu0 %v2094, 96
  %v2122 = vpop.permute.xlu0 %2121
  %2123 = vrot.lane.b32.xlu0 %v2099, 96
  %v2124 = vpop.permute.xlu0 %2123
  %2125 = vrot.lane.b32.xlu0 %v2104, 96
  %v2126 = vpop.permute.xlu0 %2125
  %v2131 = vsel %vm679, %v2126, 0
  %2133 = vmatprep.subr.mxu0 0.0
  %2134 = vmatpush1.msra.mxu0 %v2118
  %2135 = vmatprep.subr.mxu0 0.0
  %2136 = vmatpush1.msra.mxu0 %v2120
  %2137 = vmatprep.subr.mxu0 0.0
  %2138 = vmatpush1.msra.mxu0 %v2122
  %2139 = vmatprep.subr.mxu0 0.0
  %2140 = vmatpush1.msra.mxu0 %v2124
  %2141 = vmatprep.subr.mxu0 0.0
  %2142 = vmatpush1.msra.mxu0 %v2131
  %2143 = vmatprep.subr.mxu0 0.0
  %2144 = vmatpush1.msra.mxu0 0.0
  %2145 = vmatprep.subr.mxu0 0.0
  %2146 = vmatpush1.msra.mxu0 0.0
  %2147 = vmatprep.subr.mxu0 0.0
  %2148 = vmatpush1.msra.mxu0 0.0
  %2149 = vmatprep.subr.mxu0 0.0
  %2150 = vmatpush1.msra.mxu0 0.0
  %2151 = vmatprep.subr.mxu0 0.0
  %2152 = vmatpush1.msra.mxu0 0.0
  %2153 = vmatprep.subr.mxu0 0.0
  %2154 = vmatpush1.msra.mxu0 0.0
  %2155 = vmatprep.subr.mxu0 0.0
  %2156 = vmatpush1.msra.mxu0 0.0
  %2157 = vmatprep.subr.mxu0 0.0
  %2158 = vmatpush1.msra.mxu0 0.0
  %2159 = vmatprep.subr.mxu0 0.0
  %2160 = vmatpush1.msra.mxu0 0.0
  %2161 = vmatprep.subr.mxu0 0.0
  %2162 = vmatpush1.msra.mxu0 0.0
  %2163 = vmatprep.subr.mxu0 0.0
  %2164 = vmatpush1.msra.mxu0 0.0
  %2165 = vmatprep.subr.mxu0 0.0
  %2166 = vmatpush1.msra.mxu0 0.0
  %2167 = vmatprep.subr.mxu0 0.0
  %2168 = vmatpush1.msra.mxu0 0.0
  %2169 = vmatprep.subr.mxu0 0.0
  %2170 = vmatpush1.msra.mxu0 0.0
  %2171 = vmatprep.subr.mxu0 0.0
  %2172 = vmatpush1.msra.mxu0 0.0
  %2173 = vmatprep.subr.mxu0 0.0
  %2174 = vmatpush1.msra.mxu0 0.0
  %2175 = vmatprep.subr.mxu0 0.0
  %2176 = vmatpush1.msra.mxu0 0.0
  %2177 = vmatprep.subr.mxu0 0.0
  %2178 = vmatpush1.msra.mxu0 0.0
  %2179 = vmatprep.subr.mxu0 0.0
  %2180 = vmatpush1.msra.mxu0 0.0
  %2181 = vmatprep.subr.mxu0 0.0
  %2182 = vmatpush1.msra.mxu0 0.0
  %2183 = vmatprep.subr.mxu0 0.0
  %2184 = vmatpush1.msra.mxu0 0.0
  %2185 = vmatprep.subr.mxu0 0.0
  %2186 = vmatpush1.msra.mxu0 0.0
  %2187 = vmatprep.subr.mxu0 0.0
  %2188 = vmatpush1.msra.mxu0 0.0
  %2189 = vmatprep.subr.mxu0 0.0
  %2190 = vmatpush1.msra.mxu0 0.0
  %2191 = vmatprep.subr.mxu0 0.0
  %2192 = vmatpush1.msra.mxu0 0.0
  %2193 = vmatprep.subr.mxu0 0.0
  %2194 = vmatpush1.msra.mxu0 0.0
  %2195 = vmatprep.subr.mxu0 0.0
  %2196 = vmatpush1.msra.mxu0 0.0
  %2197 = vmatprep.mubr.f32.mxu0 0.0
  %2198 = vmatmul.mubr.f32.gmra.mrb[0].mxu0 %v629
  %v2199 = vpop.f32.mrb[0].mxu0
  %v2200 = vadd.f32 0.0, %v2199
  %v2201 = vpop.f32.mrb[0].mxu0
  %2202 = vmatprep.mubr.f32.mxu0 0.0
  %2203 = vmatmul.mubr.f32.gmra.mrb[0].mxu0 %v632
  %v2204 = vpop.f32.mrb[0].mxu0
  %v2205 = vadd.f32 0.0, %v2204
  %v2206 = vpop.f32.mrb[0].mxu0
  %2207 = vmatprep.mubr.f32.mxu0 0.0
  %2208 = vmatmul.mubr.f32.gmra.mrb[0].mxu0 %v635
  %v2209 = vpop.f32.mrb[0].mxu0
  %v2210 = vadd.f32 0.0, %v2209
  %v2211 = vpop.f32.mrb[0].mxu0
  %2212 = vmatprep.mubr.f32.mxu0 0.0
  %2213 = vmatmul.mubr.f32.gmra.mrb[0].mxu0 %v638
  %v2214 = vpop.f32.mrb[0].mxu0
  %v2215 = vadd.f32 0.0, %v2214
  %v2216 = vpop.f32.mrb[0].mxu0
  %2217 = vmatprep.mubr.f32.mxu0 0.0
  %2218 = vmatmul.mubr.f32.gmra.mrb[0].mxu0 %v641
  %v2219 = vpop.f32.mrb[0].mxu0
  %v2220 = vadd.f32 0.0, %v2219
  %v2221 = vpop.f32.mrb[0].mxu0
  %2222 = vmatprep.mubr.f32.mxu0 0.0
  %2223 = vmatmul.mubr.f32.gmra.mrb[0].mxu0 %v644
  %v2224 = vpop.f32.mrb[0].mxu0
  %v2225 = vadd.f32 0.0, %v2224
  %v2226 = vpop.f32.mrb[0].mxu0
  %2227 = vmatprep.mubr.f32.mxu0 0.0
  %2228 = vmatmul.mubr.f32.gmra.mrb[0].mxu0 %v647
  %v2229 = vpop.f32.mrb[0].mxu0
  %v2230 = vadd.f32 0.0, %v2229
  %v2231 = vpop.f32.mrb[0].mxu0
  %2232 = vmatprep.mubr.f32.mxu0 0.0
  %2233 = vmatmul.mubr.f32.gmra.mrb[0].mxu0 %v650
  %v2234 = vpop.f32.mrb[0].mxu0
  %v2235 = vadd.f32 0.0, %v2234
  %v2236 = vpop.f32.mrb[0].mxu0
  %2237 = vmatprep.mubr.f32.mxu0 0.0
  %2238 = vmatmul.mubr.f32.gmra.mrb[0].mxu0 %v653
  %v2239 = vpop.f32.mrb[0].mxu0
  %v2240 = vadd.f32 0.0, %v2239
  %v2241 = vpop.f32.mrb[0].mxu0
  %2242 = vmatprep.mubr.f32.mxu0 0.0
  %2243 = vmatmul.mubr.f32.gmra.mrb[0].mxu0 %v656
  %v2244 = vpop.f32.mrb[0].mxu0
  %v2245 = vadd.f32 0.0, %v2244
  %v2246 = vpop.f32.mrb[0].mxu0
  %2247 = vmatprep.mubr.f32.mxu0 0.0
  %2248 = vmatmul.mubr.f32.gmra.mrb[0].mxu0 %v659
  %v2249 = vpop.f32.mrb[0].mxu0
  %v2250 = vadd.f32 0.0, %v2249
  %v2251 = vpop.f32.mrb[0].mxu0
  %2252 = vmatprep.mubr.f32.mxu0 0.0
  %2253 = vmatmul.mubr.f32.gmra.mrb[0].mxu0 %v662
  %v2254 = vpop.f32.mrb[0].mxu0
  %v2255 = vadd.f32 0.0, %v2254
  %v2256 = vpop.f32.mrb[0].mxu0
  %2257 = vmatprep.mubr.f32.mxu0 0.0
  %2258 = vmatmul.mubr.f32.gmra.mrb[0].mxu0 %v665
  %v2259 = vpop.f32.mrb[0].mxu0
  %v2260 = vadd.f32 0.0, %v2259
  %v2261 = vpop.f32.mrb[0].mxu0
  %2262 = vmatprep.mubr.f32.mxu0 0.0
  %2263 = vmatmul.mubr.f32.gmra.mrb[0].mxu0 %v668
  %v2264 = vpop.f32.mrb[0].mxu0
  %v2265 = vadd.f32 0.0, %v2264
  %v2266 = vpop.f32.mrb[0].mxu0
  %2267 = vmatprep.mubr.f32.mxu0 0.0
  %2268 = vmatmul.mubr.f32.gmra.mrb[0].mxu0 %v671
  %v2269 = vpop.f32.mrb[0].mxu0
  %v2270 = vadd.f32 0.0, %v2269
  %v2271 = vpop.f32.mrb[0].mxu0
  %2272 = vmatprep.mubr.f32.mxu0 0.0
  %2273 = vmatmul.mubr.f32.gmra.mrb[0].mxu0 %v674
  %v2274 = vpop.f32.mrb[0].mxu0
  %v2275 = vadd.f32 0.0, %v2274
  %v2276 = vpop.f32.mrb[0].mxu0
  %2277 = vmatprep.mubr.f32.mxu0 0.0
  %2278 = vmatmul.mubr.f32.gmra.mrb[0].mxu0 %v677
  %v2279 = vpop.f32.mrb[0].mxu0
  %v2280 = vadd.f32 0.0, %v2279
  %v2281 = vpop.f32.mrb[0].mxu0
  %2282 = vdwg.mxu0
  %v2283 = vmul.f32 %v2200, %v321
  %v2284 = vmul.f32 %v2205, %v322
  %v2285 = vmul.f32 %v2210, %v323
  %v2286 = vmul.f32 %v2215, %v324
  %v2287 = vmul.f32 %v2220, %v325
  %v2288 = vmul.f32 %v2225, %v326
  %v2289 = vmul.f32 %v2230, %v327
  %v2290 = vmul.f32 %v2235, %v328
  %v2291 = vmul.f32 %v2240, %v329
  %v2292 = vmul.f32 %v2245, %v330
  %v2293 = vmul.f32 %v2250, %v331
  %v2294 = vmul.f32 %v2255, %v332
  %v2295 = vmul.f32 %v2260, %v333
  %v2296 = vmul.f32 %v2265, %v334
  %v2297 = vmul.f32 %v2270, %v335
  %v2298 = vmul.f32 %v2275, %v336
  %v2299 = vmul.f32 %v2280, %v337
  %2300 = vrot.lane.b32.xlu0 %v2084, 64
  %v2301 = vpop.permute.xlu0 %2300
  %2302 = vrot.lane.b32.xlu0 %v2089, 64
  %v2303 = vpop.permute.xlu0 %2302
  %2304 = vrot.lane.b32.xlu0 %v2094, 64
  %v2305 = vpop.permute.xlu0 %2304
  %2306 = vrot.lane.b32.xlu0 %v2099, 64
  %v2307 = vpop.permute.xlu0 %2306
  %2308 = vrot.lane.b32.xlu0 %v2104, 64
  %v2309 = vpop.permute.xlu0 %2308
  %v2314 = vsel %vm679, %v2309, 0
  %2316 = vmatprep.subr.mxu0 0.0
  %2317 = vmatpush1.msra.mxu0 %v2301
  %2318 = vmatprep.subr.mxu0 0.0
  %2319 = vmatpush1.msra.mxu0 %v2303
  %2320 = vmatprep.subr.mxu0 0.0
  %2321 = vmatpush1.msra.mxu0 %v2305
  %2322 = vmatprep.subr.mxu0 0.0
  %2323 = vmatpush1.msra.mxu0 %v2307
  %2324 = vmatprep.subr.mxu0 0.0
  %2325 = vmatpush1.msra.mxu0 %v2314
  %2326 = vmatprep.subr.mxu0 0.0
  %2327 = vmatpush1.msra.mxu0 0.0
  %2328 = vmatprep.subr.mxu0 0.0
  %2329 = vmatpush1.msra.mxu0 0.0
  %2330 = vmatprep.subr.mxu0 0.0
  %2331 = vmatpush1.msra.mxu0 0.0
  %2332 = vmatprep.subr.mxu0 0.0
  %2333 = vmatpush1.msra.mxu0 0.0
  %2334 = vmatprep.subr.mxu0 0.0
  %2335 = vmatpush1.msra.mxu0 0.0
  %2336 = vmatprep.subr.mxu0 0.0
  %2337 = vmatpush1.msra.mxu0 0.0
  %2338 = vmatprep.subr.mxu0 0.0
  %2339 = vmatpush1.msra.mxu0 0.0
  %2340 = vmatprep.subr.mxu0 0.0
  %2341 = vmatpush1.msra.mxu0 0.0
  %2342 = vmatprep.subr.mxu0 0.0
  %2343 = vmatpush1.msra.mxu0 0.0
  %2344 = vmatprep.subr.mxu0 0.0
  %2345 = vmatpush1.msra.mxu0 0.0
  %2346 = vmatprep.subr.mxu0 0.0
  %2347 = vmatpush1.msra.mxu0 0.0
  %2348 = vmatprep.subr.mxu0 0.0
  %2349 = vmatpush1.msra.mxu0 0.0
  %2350 = vmatprep.subr.mxu0 0.0
  %2351 = vmatpush1.msra.mxu0 0.0
  %2352 = vmatprep.subr.mxu0 0.0
  %2353 = vmatpush1.msra.mxu0 0.0
  %2354 = vmatprep.subr.mxu0 0.0
  %2355 = vmatpush1.msra.mxu0 0.0
  %2356 = vmatprep.subr.mxu0 0.0
  %2357 = vmatpush1.msra.mxu0 0.0
  %2358 = vmatprep.subr.mxu0 0.0
  %2359 = vmatpush1.msra.mxu0 0.0
  %2360 = vmatprep.subr.mxu0 0.0
  %2361 = vmatpush1.msra.mxu0 0.0
  %2362 = vmatprep.subr.mxu0 0.0
  %2363 = vmatpush1.msra.mxu0 0.0
  %2364 = vmatprep.subr.mxu0 0.0
  %2365 = vmatpush1.msra.mxu0 0.0
  %2366 = vmatprep.subr.mxu0 0.0
  %2367 = vmatpush1.msra.mxu0 0.0
  %2368 = vmatprep.subr.mxu0 0.0
  %2369 = vmatpush1.msra.mxu0 0.0
  %2370 = vmatprep.subr.mxu0 0.0
  %2371 = vmatpush1.msra.mxu0 0.0
  %2372 = vmatprep.subr.mxu0 0.0
  %2373 = vmatpush1.msra.mxu0 0.0
  %2374 = vmatprep.subr.mxu0 0.0
  %2375 = vmatpush1.msra.mxu0 0.0
  %2376 = vmatprep.subr.mxu0 0.0
  %2377 = vmatpush1.msra.mxu0 0.0
  %2378 = vmatprep.subr.mxu0 0.0
  %2379 = vmatpush1.msra.mxu0 0.0
  %2380 = vmatprep.mubr.f32.mxu0 0.0
  %2381 = vmatmul.mubr.f32.gmra.mrb[0].mxu0 %v629
  %v2382 = vpop.f32.mrb[0].mxu0
  %v2383 = vadd.f32 0.0, %v2382
  %v2384 = vpop.f32.mrb[0].mxu0
  %2385 = vmatprep.mubr.f32.mxu0 0.0
  %2386 = vmatmul.mubr.f32.gmra.mrb[0].mxu0 %v632
  %v2387 = vpop.f32.mrb[0].mxu0
  %v2388 = vadd.f32 0.0, %v2387
  %v2389 = vpop.f32.mrb[0].mxu0
  %2390 = vmatprep.mubr.f32.mxu0 0.0
  %2391 = vmatmul.mubr.f32.gmra.mrb[0].mxu0 %v635
  %v2392 = vpop.f32.mrb[0].mxu0
  %v2393 = vadd.f32 0.0, %v2392
  %v2394 = vpop.f32.mrb[0].mxu0
  %2395 = vmatprep.mubr.f32.mxu0 0.0
  %2396 = vmatmul.mubr.f32.gmra.mrb[0].mxu0 %v638
  %v2397 = vpop.f32.mrb[0].mxu0
  %v2398 = vadd.f32 0.0, %v2397
  %v2399 = vpop.f32.mrb[0].mxu0
  %2400 = vmatprep.mubr.f32.mxu0 0.0
  %2401 = vmatmul.mubr.f32.gmra.mrb[0].mxu0 %v641
  %v2402 = vpop.f32.mrb[0].mxu0
  %v2403 = vadd.f32 0.0, %v2402
  %v2404 = vpop.f32.mrb[0].mxu0
  %2405 = vmatprep.mubr.f32.mxu0 0.0
  %2406 = vmatmul.mubr.f32.gmra.mrb[0].mxu0 %v644
  %v2407 = vpop.f32.mrb[0].mxu0
  %v2408 = vadd.f32 0.0, %v2407
  %v2409 = vpop.f32.mrb[0].mxu0
  %2410 = vmatprep.mubr.f32.mxu0 0.0
  %2411 = vmatmul.mubr.f32.gmra.mrb[0].mxu0 %v647
  %v2412 = vpop.f32.mrb[0].mxu0
  %v2413 = vadd.f32 0.0, %v2412
  %v2414 = vpop.f32.mrb[0].mxu0
  %2415 = vmatprep.mubr.f32.mxu0 0.0
  %2416 = vmatmul.mubr.f32.gmra.mrb[0].mxu0 %v650
  %v2417 = vpop.f32.mrb[0].mxu0
  %v2418 = vadd.f32 0.0, %v2417
  %v2419 = vpop.f32.mrb[0].mxu0
  %2420 = vmatprep.mubr.f32.mxu0 0.0
  %2421 = vmatmul.mubr.f32.gmra.mrb[0].mxu0 %v653
  %v2422 = vpop.f32.mrb[0].mxu0
  %v2423 = vadd.f32 0.0, %v2422
  %v2424 = vpop.f32.mrb[0].mxu0
  %2425 = vmatprep.mubr.f32.mxu0 0.0
  %2426 = vmatmul.mubr.f32.gmra.mrb[0].mxu0 %v656
  %v2427 = vpop.f32.mrb[0].mxu0
  %v2428 = vadd.f32 0.0, %v2427
  %v2429 = vpop.f32.mrb[0].mxu0
  %2430 = vmatprep.mubr.f32.mxu0 0.0
  %2431 = vmatmul.mubr.f32.gmra.mrb[0].mxu0 %v659
  %v2432 = vpop.f32.mrb[0].mxu0
  %v2433 = vadd.f32 0.0, %v2432
  %v2434 = vpop.f32.mrb[0].mxu0
  %2435 = vmatprep.mubr.f32.mxu0 0.0
  %2436 = vmatmul.mubr.f32.gmra.mrb[0].mxu0 %v662
  %v2437 = vpop.f32.mrb[0].mxu0
  %v2438 = vadd.f32 0.0, %v2437
  %v2439 = vpop.f32.mrb[0].mxu0
  %2440 = vmatprep.mubr.f32.mxu0 0.0
  %2441 = vmatmul.mubr.f32.gmra.mrb[0].mxu0 %v665
  %v2442 = vpop.f32.mrb[0].mxu0
  %v2443 = vadd.f32 0.0, %v2442
  %v2444 = vpop.f32.mrb[0].mxu0
  %2445 = vmatprep.mubr.f32.mxu0 0.0
  %2446 = vmatmul.mubr.f32.gmra.mrb[0].mxu0 %v668
  %v2447 = vpop.f32.mrb[0].mxu0
  %v2448 = vadd.f32 0.0, %v2447
  %v2449 = vpop.f32.mrb[0].mxu0
  %2450 = vmatprep.mubr.f32.mxu0 0.0
  %2451 = vmatmul.mubr.f32.gmra.mrb[0].mxu0 %v671
  %v2452 = vpop.f32.mrb[0].mxu0
  %v2453 = vadd.f32 0.0, %v2452
  %v2454 = vpop.f32.mrb[0].mxu0
  %2455 = vmatprep.mubr.f32.mxu0 0.0
  %2456 = vmatmul.mubr.f32.gmra.mrb[0].mxu0 %v674
  %v2457 = vpop.f32.mrb[0].mxu0
  %v2458 = vadd.f32 0.0, %v2457
  %v2459 = vpop.f32.mrb[0].mxu0
  %2460 = vmatprep.mubr.f32.mxu0 0.0
  %2461 = vmatmul.mubr.f32.gmra.mrb[0].mxu0 %v677
  %v2462 = vpop.f32.mrb[0].mxu0
  %v2463 = vadd.f32 0.0, %v2462
  %v2464 = vpop.f32.mrb[0].mxu0
  %2465 = vdwg.mxu0
  %v2466 = vmul.f32 %v2383, %v321
  %v2467 = vmul.f32 %v2388, %v322
  %v2468 = vmul.f32 %v2393, %v323
  %v2469 = vmul.f32 %v2398, %v324
  %v2470 = vmul.f32 %v2403, %v325
  %v2471 = vmul.f32 %v2408, %v326
  %v2472 = vmul.f32 %v2413, %v327
  %v2473 = vmul.f32 %v2418, %v328
  %v2474 = vmul.f32 %v2423, %v329
  %v2475 = vmul.f32 %v2428, %v330
  %v2476 = vmul.f32 %v2433, %v331
  %v2477 = vmul.f32 %v2438, %v332
  %v2478 = vmul.f32 %v2443, %v333
  %v2479 = vmul.f32 %v2448, %v334
  %v2480 = vmul.f32 %v2453, %v335
  %v2481 = vmul.f32 %v2458, %v336
  %v2482 = vmul.f32 %v2463, %v337
  %v2484 = vsel %vm198, %v2107, 0
  %v2487 = vsel %vm198, %v2108, 0
  %v2490 = vsel %vm198, %v2109, 0
  %v2493 = vsel %vm198, %v2110, 0
  %v2496 = vsel %vm198, %v2111, 0
  %v2499 = vsel %vm198, %v2283, 0
  %v2502 = vsel %vm198, %v2284, 0
  %v2505 = vsel %vm198, %v2285, 0
  %v2508 = vsel %vm198, %v2286, 0
  %v2511 = vsel %vm198, %v2287, 0
  %v2514 = vsel %vm198, %v2288, 0
  %v2517 = vsel %vm198, %v2289, 0
  %v2520 = vsel %vm198, %v2290, 0
  %v2523 = vsel %vm198, %v2291, 0
  %v2526 = vsel %vm198, %v2292, 0
  %v2529 = vsel %vm198, %v2293, 0
  %v2532 = vsel %vm198, %v2294, 0
  %v2535 = vsel %vm198, %v2295, 0
  %v2538 = vsel %vm198, %v2296, 0
  %v2541 = vsel %vm198, %v2297, 0
  %v2544 = vsel %vm198, %v2298, 0
  %v2547 = vsel %vm198, %v2299, 0
  %2549 = vmatprep.subr.mxu0 0.0
  %2550 = vmatpush1.xpose.msra.mxu0 %v2499
  %2551 = vmatprep.subr.mxu0 0.0
  %2552 = vmatpush1.xpose.msra.mxu0 %v2502
  %2553 = vmatprep.subr.mxu0 0.0
  %2554 = vmatpush1.xpose.msra.mxu0 %v2505
  %2555 = vmatprep.subr.mxu0 0.0
  %2556 = vmatpush1.xpose.msra.mxu0 %v2508
  %2557 = vmatprep.subr.mxu0 0.0
  %2558 = vmatpush1.xpose.msra.mxu0 %v2511
  %2559 = vmatprep.subr.mxu0 0.0
  %2560 = vmatpush1.xpose.msra.mxu0 %v2514
  %2561 = vmatprep.subr.mxu0 0.0
  %2562 = vmatpush1.xpose.msra.mxu0 %v2517
  %2563 = vmatprep.subr.mxu0 0.0
  %2564 = vmatpush1.xpose.msra.mxu0 %v2520
  %2565 = vmatprep.subr.mxu0 0.0
  %2566 = vmatpush1.xpose.msra.mxu0 %v2523
  %2567 = vmatprep.subr.mxu0 0.0
  %2568 = vmatpush1.xpose.msra.mxu0 %v2526
  %2569 = vmatprep.subr.mxu0 0.0
  %2570 = vmatpush1.xpose.msra.mxu0 %v2529
  %2571 = vmatprep.subr.mxu0 0.0
  %2572 = vmatpush1.xpose.msra.mxu0 %v2532
  %2573 = vmatprep.subr.mxu0 0.0
  %2574 = vmatpush1.xpose.msra.mxu0 %v2535
  %2575 = vmatprep.subr.mxu0 0.0
  %2576 = vmatpush1.xpose.msra.mxu0 %v2538
  %2577 = vmatprep.subr.mxu0 0.0
  %2578 = vmatpush1.xpose.msra.mxu0 %v2541
  %2579 = vmatprep.subr.mxu0 0.0
  %2580 = vmatpush1.xpose.msra.mxu0 %v2544
  %2581 = vmatprep.subr.mxu0 0.0
  %2582 = vmatpush1.xpose.msra.mxu0 %v2547
  %2583 = vmatprep.subr.mxu0 0.0
  %2584 = vmatpush1.xpose.msra.mxu0 0.0
  %2585 = vmatprep.subr.mxu0 0.0
  %2586 = vmatpush1.xpose.msra.mxu0 0.0
  %2587 = vmatprep.subr.mxu0 0.0
  %2588 = vmatpush1.xpose.msra.mxu0 0.0
  %2589 = vmatprep.subr.mxu0 0.0
  %2590 = vmatpush1.xpose.msra.mxu0 0.0
  %2591 = vmatprep.subr.mxu0 0.0
  %2592 = vmatpush1.xpose.msra.mxu0 0.0
  %2593 = vmatprep.subr.mxu0 0.0
  %2594 = vmatpush1.xpose.msra.mxu0 0.0
  %2595 = vmatprep.subr.mxu0 0.0
  %2596 = vmatpush1.xpose.msra.mxu0 0.0
  %2597 = vmatprep.subr.mxu0 0.0
  %2598 = vmatpush1.xpose.msra.mxu0 0.0
  %2599 = vmatprep.subr.mxu0 0.0
  %2600 = vmatpush1.xpose.msra.mxu0 0.0
  %2601 = vmatprep.subr.mxu0 0.0
  %2602 = vmatpush1.xpose.msra.mxu0 0.0
  %2603 = vmatprep.subr.mxu0 0.0
  %2604 = vmatpush1.xpose.msra.mxu0 0.0
  %2605 = vmatprep.subr.mxu0 0.0
  %2606 = vmatpush1.xpose.msra.mxu0 0.0
  %2607 = vmatprep.subr.mxu0 0.0
  %2608 = vmatpush1.xpose.msra.mxu0 0.0
  %2609 = vmatprep.subr.mxu0 0.0
  %2610 = vmatpush1.xpose.msra.mxu0 0.0
  %2611 = vmatprep.subr.mxu0 0.0
  %2612 = vmatpush1.xpose.msra.mxu0 0.0
  %2613 = vmatprep.mubr.f32.mxu0 0.0
  %2614 = vmatmul.mubr.f32.gmra.mrb[0].mxu0 %v2484
  %v2615 = vpop.f32.mrb[0].mxu0
  %v2616 = vadd.f32 %v338, %v2615
  %v2617 = vpop.f32.mrb[0].mxu0
  %v2618 = vadd.f32 %v339, %v2617
  %2619 = vmatprep.mubr.f32.mxu0 0.0
  %2620 = vmatmul.mubr.f32.gmra.mrb[0].mxu0 %v2487
  %v2621 = vpop.f32.mrb[0].mxu0
  %v2622 = vadd.f32 %v340, %v2621
  %v2623 = vpop.f32.mrb[0].mxu0
  %v2624 = vadd.f32 %v341, %v2623
  %2625 = vmatprep.mubr.f32.mxu0 0.0
  %2626 = vmatmul.mubr.f32.gmra.mrb[0].mxu0 %v2490
  %v2627 = vpop.f32.mrb[0].mxu0
  %v2628 = vadd.f32 %v342, %v2627
  %v2629 = vpop.f32.mrb[0].mxu0
  %v2630 = vadd.f32 %v343, %v2629
  %2631 = vmatprep.mubr.f32.mxu0 0.0
  %2632 = vmatmul.mubr.f32.gmra.mrb[0].mxu0 %v2493
  %v2633 = vpop.f32.mrb[0].mxu0
  %v2634 = vadd.f32 %v344, %v2633
  %v2635 = vpop.f32.mrb[0].mxu0
  %v2636 = vadd.f32 %v345, %v2635
  %2637 = vmatprep.mubr.f32.mxu0 0.0
  %2638 = vmatmul.mubr.f32.gmra.mrb[0].mxu0 %v2496
  %v2639 = vpop.f32.mrb[0].mxu0
  %v2640 = vadd.f32 %v346, %v2639
  %v2641 = vpop.f32.mrb[0].mxu0
  %v2642 = vadd.f32 %v347, %v2641
  %2643 = vdwg.mxu0
  %v2644 = vsel %vm1193, %v2618, -inf
  %v2645 = vmax.f32 %v2616, %v2644
  %2646 = vmax.xlane.f32.xlu0 %v2645
  %v2647 = vpop.xlane.xlu0 %2646
  %v2648 = vsel %vm1193, %v2624, -inf
  %v2649 = vmax.f32 %v2622, %v2648
  %2650 = vmax.xlane.f32.xlu0 %v2649
  %v2651 = vpop.xlane.xlu0 %2650
  %v2652 = vsel %vm1193, %v2630, -inf
  %v2653 = vmax.f32 %v2628, %v2652
  %2654 = vmax.xlane.f32.xlu0 %v2653
  %v2655 = vpop.xlane.xlu0 %2654
  %v2656 = vsel %vm1193, %v2636, -inf
  %v2657 = vmax.f32 %v2634, %v2656
  %2658 = vmax.xlane.f32.xlu0 %v2657
  %v2659 = vpop.xlane.xlu0 %2658
  %v2660 = vsel %vm679, %v2640, -inf
  %v2661 = vsel %vm1211, %v2642, -inf
  %v2662 = vmax.f32 %v2660, %v2661
  %2663 = vmax.xlane.f32.xlu0 %v2662
  %v2664 = vpop.xlane.xlu0 %2663
  %v2665 = vsub.f32 %v2616, %v2647
  %v2666 = vsub.f32 %v2618, %v2647
  %v2667 = vsub.f32 %v2622, %v2651
  %v2668 = vsub.f32 %v2624, %v2651
  %v2669 = vsub.f32 %v2628, %v2655
  %v2670 = vsub.f32 %v2630, %v2655
  %v2671 = vsub.f32 %v2634, %v2659
  %v2672 = vsub.f32 %v2636, %v2659
  %v2673 = vsub.f32 %v2640, %v2664
  %v2674 = vsub.f32 %v2642, %v2664
  %v2675 = vmul.f32 %v2665, 1.442695
  %v2676 = vpow.pop %v2675
  %v2677 = vmul.f32 %v2666, 1.442695
  %v2678 = vpow.pop %v2677
  %v2679 = vmul.f32 %v2667, 1.442695
  %v2680 = vpow.pop %v2679
  %v2681 = vmul.f32 %v2668, 1.442695
  %v2682 = vpow.pop %v2681
  %v2683 = vmul.f32 %v2669, 1.442695
  %v2684 = vpow.pop %v2683
  %v2685 = vmul.f32 %v2670, 1.442695
  %v2686 = vpow.pop %v2685
  %v2687 = vmul.f32 %v2671, 1.442695
  %v2688 = vpow.pop %v2687
  %v2689 = vmul.f32 %v2672, 1.442695
  %v2690 = vpow.pop %v2689
  %v2691 = vmul.f32 %v2673, 1.442695
  %v2692 = vpow.pop %v2691
  %v2693 = vmul.f32 %v2674, 1.442695
  %v2694 = vpow.pop %v2693
  %v2696 = vsel %vm1193, %v2678, 0
  %v2699 = vsel %vm1193, %v2682, 0
  %v2702 = vsel %vm1193, %v2686, 0
  %v2705 = vsel %vm1193, %v2690, 0
  %v2708 = vsel %vm1193, %v2694, 0
  %2710 = vmatprep.subr.mxu0 %v359
  %2711 = vmatpush1.msra.mxu0 %v358
  %2712 = vmatprep.subr.mxu0 %v361
  %2713 = vmatpush1.msra.mxu0 %v360
  %2714 = vmatprep.subr.mxu0 %v363
  %2715 = vmatpush1.msra.mxu0 %v362
  %2716 = vmatprep.subr.mxu0 %v365
  %2717 = vmatpush1.msra.mxu0 %v364
  %2718 = vmatprep.subr.mxu0 %v367
  %2719 = vmatpush1.msra.mxu0 %v366
  %2720 = vmatprep.subr.mxu0 %v369
  %2721 = vmatpush1.msra.mxu0 %v368
  %2722 = vmatprep.subr.mxu0 %v371
  %2723 = vmatpush1.msra.mxu0 %v370
  %2724 = vmatprep.subr.mxu0 %v373
  %2725 = vmatpush1.msra.mxu0 %v372
  %2726 = vmatprep.subr.mxu0 %v375
  %2727 = vmatpush1.msra.mxu0 %v374
  %2728 = vmatprep.subr.mxu0 %v377
  %2729 = vmatpush1.msra.mxu0 %v376
  %2730 = vmatprep.subr.mxu0 %v379
  %2731 = vmatpush1.msra.mxu0 %v378
  %2732 = vmatprep.subr.mxu0 %v381
  %2733 = vmatpush1.msra.mxu0 %v380
  %2734 = vmatprep.subr.mxu0 %v383
  %2735 = vmatpush1.msra.mxu0 %v382
  %2736 = vmatprep.subr.mxu0 %v385
  %2737 = vmatpush1.msra.mxu0 %v384
  %2738 = vmatprep.subr.mxu0 %v387
  %2739 = vmatpush1.msra.mxu0 %v386
  %2740 = vmatprep.subr.mxu0 %v389
  %2741 = vmatpush1.msra.mxu0 %v388
  %2742 = vmatprep.subr.mxu0 %v391
  %2743 = vmatpush1.msra.mxu0 %v390
  %2744 = vmatprep.subr.mxu0 0.0
  %2745 = vmatpush1.msra.mxu0 0.0
  %2746 = vmatprep.subr.mxu0 0.0
  %2747 = vmatpush1.msra.mxu0 0.0
  %2748 = vmatprep.subr.mxu0 0.0
  %2749 = vmatpush1.msra.mxu0 0.0
  %2750 = vmatprep.subr.mxu0 0.0
  %2751 = vmatpush1.msra.mxu0 0.0
  %2752 = vmatprep.subr.mxu0 0.0
  %2753 = vmatpush1.msra.mxu0 0.0
  %2754 = vmatprep.subr.mxu0 0.0
  %2755 = vmatpush1.msra.mxu0 0.0
  %2756 = vmatprep.subr.mxu0 0.0
  %2757 = vmatpush1.msra.mxu0 0.0
  %2758 = vmatprep.subr.mxu0 0.0
  %2759 = vmatpush1.msra.mxu0 0.0
  %2760 = vmatprep.subr.mxu0 0.0
  %2761 = vmatpush1.msra.mxu0 0.0
  %2762 = vmatprep.subr.mxu0 0.0
  %2763 = vmatpush1.msra.mxu0 0.0
  %2764 = vmatprep.subr.mxu0 0.0
  %2765 = vmatpush1.msra.mxu0 0.0
  %2766 = vmatprep.subr.mxu0 0.0
  %2767 = vmatpush1.msra.mxu0 0.0
  %2768 = vmatprep.subr.mxu0 0.0
  %2769 = vmatpush1.msra.mxu0 0.0
  %2770 = vmatprep.subr.mxu0 0.0
  %2771 = vmatpush1.msra.mxu0 0.0
  %2772 = vmatprep.subr.mxu0 0.0
  %2773 = vmatpush1.msra.mxu0 0.0
  %2774 = vmatprep.mubr.f32.mxu0 %v2696
  %2775 = vmatmul.mubr.f32.gmra.mrb[0].mxu0 %v2676
  %v2776 = vpop.f32.mrb[0].mxu0
  %v2777 = vadd.f32 %v348, %v2776
  %v2778 = vpop.f32.mrb[0].mxu0
  %v2779 = vadd.f32 %v349, %v2778
  %2780 = vmatprep.mubr.f32.mxu0 %v2699
  %2781 = vmatmul.mubr.f32.gmra.mrb[0].mxu0 %v2680
  %v2782 = vpop.f32.mrb[0].mxu0
  %v2783 = vadd.f32 %v350, %v2782
  %v2784 = vpop.f32.mrb[0].mxu0
  %v2785 = vadd.f32 %v351, %v2784
  %2786 = vmatprep.mubr.f32.mxu0 %v2702
  %2787 = vmatmul.mubr.f32.gmra.mrb[0].mxu0 %v2684
  %v2788 = vpop.f32.mrb[0].mxu0
  %v2789 = vadd.f32 %v352, %v2788
  %v2790 = vpop.f32.mrb[0].mxu0
  %v2791 = vadd.f32 %v353, %v2790
  %2792 = vmatprep.mubr.f32.mxu0 %v2705
  %2793 = vmatmul.mubr.f32.gmra.mrb[0].mxu0 %v2688
  %v2794 = vpop.f32.mrb[0].mxu0
  %v2795 = vadd.f32 %v354, %v2794
  %v2796 = vpop.f32.mrb[0].mxu0
  %v2797 = vadd.f32 %v355, %v2796
  %2798 = vmatprep.mubr.f32.mxu0 %v2708
  %2799 = vmatmul.mubr.f32.gmra.mrb[0].mxu0 %v2692
  %v2800 = vpop.f32.mrb[0].mxu0
  %v2801 = vadd.f32 %v356, %v2800
  %v2802 = vpop.f32.mrb[0].mxu0
  %v2803 = vadd.f32 %v357, %v2802
  %2804 = vdwg.mxu0
  %v2805 = vrcp.pop %v2777
  %v2806 = vrcp.pop %v2779
  %v2807 = vrcp.pop %v2783
  %v2808 = vrcp.pop %v2785
  %v2809 = vrcp.pop %v2789
  %v2810 = vrcp.pop %v2791
  %v2811 = vrcp.pop %v2795
  %v2812 = vrcp.pop %v2797
  %v2813 = vrcp.pop %v2801
  %v2814 = vrcp.pop %v2803
  %v2815 = vmul.f32 %v2676, %v2805
  %v2816 = vmul.f32 %v2678, %v2806
  %v2817 = vmul.f32 %v2680, %v2807
  %v2818 = vmul.f32 %v2682, %v2808
  %v2819 = vmul.f32 %v2684, %v2809
  %v2820 = vmul.f32 %v2686, %v2810
  %v2821 = vmul.f32 %v2688, %v2811
  %v2822 = vmul.f32 %v2690, %v2812
  %v2823 = vmul.f32 %v2692, %v2813
  %v2824 = vmul.f32 %v2694, %v2814
  %v2826 = vsel %vm1193, %v2816, 0
  %v2829 = vsel %vm1193, %v2818, 0
  %v2832 = vsel %vm1193, %v2820, 0
  %v2835 = vsel %vm1193, %v2822, 0
  %v2838 = vsel %vm1193, %v2824, 0
  %2840 = vmatprep.subr.mxu0 0.0
  %2841 = vmatpush1.msra.mxu0 %v2466
  %2842 = vmatprep.subr.mxu0 0.0
  %2843 = vmatpush1.msra.mxu0 %v2467
  %2844 = vmatprep.subr.mxu0 0.0
  %2845 = vmatpush1.msra.mxu0 %v2468
  %2846 = vmatprep.subr.mxu0 0.0
  %2847 = vmatpush1.msra.mxu0 %v2469
  %2848 = vmatprep.subr.mxu0 0.0
  %2849 = vmatpush1.msra.mxu0 %v2470
  %2850 = vmatprep.subr.mxu0 0.0
  %2851 = vmatpush1.msra.mxu0 %v2471
  %2852 = vmatprep.subr.mxu0 0.0
  %2853 = vmatpush1.msra.mxu0 %v2472
  %2854 = vmatprep.subr.mxu0 0.0
  %2855 = vmatpush1.msra.mxu0 %v2473
  %2856 = vmatprep.subr.mxu0 0.0
  %2857 = vmatpush1.msra.mxu0 %v2474
  %2858 = vmatprep.subr.mxu0 0.0
  %2859 = vmatpush1.msra.mxu0 %v2475
  %2860 = vmatprep.subr.mxu0 0.0
  %2861 = vmatpush1.msra.mxu0 %v2476
  %2862 = vmatprep.subr.mxu0 0.0
  %2863 = vmatpush1.msra.mxu0 %v2477
  %2864 = vmatprep.subr.mxu0 0.0
  %2865 = vmatpush1.msra.mxu0 %v2478
  %2866 = vmatprep.subr.mxu0 0.0
  %2867 = vmatpush1.msra.mxu0 %v2479
  %2868 = vmatprep.subr.mxu0 0.0
  %2869 = vmatpush1.msra.mxu0 %v2480
  %2870 = vmatprep.subr.mxu0 0.0
  %2871 = vmatpush1.msra.mxu0 %v2481
  %2872 = vmatprep.subr.mxu0 0.0
  %2873 = vmatpush1.msra.mxu0 %v2482
  %2874 = vmatprep.subr.mxu0 0.0
  %2875 = vmatpush1.msra.mxu0 0.0
  %2876 = vmatprep.subr.mxu0 0.0
  %2877 = vmatpush1.msra.mxu0 0.0
  %2878 = vmatprep.subr.mxu0 0.0
  %2879 = vmatpush1.msra.mxu0 0.0
  %2880 = vmatprep.subr.mxu0 0.0
  %2881 = vmatpush1.msra.mxu0 0.0
  %2882 = vmatprep.subr.mxu0 0.0
  %2883 = vmatpush1.msra.mxu0 0.0
  %2884 = vmatprep.subr.mxu0 0.0
  %2885 = vmatpush1.msra.mxu0 0.0
  %2886 = vmatprep.subr.mxu0 0.0
  %2887 = vmatpush1.msra.mxu0 0.0
  %2888 = vmatprep.subr.mxu0 0.0
  %2889 = vmatpush1.msra.mxu0 0.0
  %2890 = vmatprep.subr.mxu0 0.0
  %2891 = vmatpush1.msra.mxu0 0.0
  %2892 = vmatprep.subr.mxu0 0.0
  %2893 = vmatpush1.msra.mxu0 0.0
  %2894 = vmatprep.subr.mxu0 0.0
  %2895 = vmatpush1.msra.mxu0 0.0
  %2896 = vmatprep.subr.mxu0 0.0
  %2897 = vmatpush1.msra.mxu0 0.0
  %2898 = vmatprep.subr.mxu0 0.0
  %2899 = vmatpush1.msra.mxu0 0.0
  %2900 = vmatprep.subr.mxu0 0.0
  %2901 = vmatpush1.msra.mxu0 0.0
  %2902 = vmatprep.subr.mxu0 0.0
  %2903 = vmatpush1.msra.mxu0 0.0
  %2904 = vmatprep.mubr.f32.mxu0 %v2826
  %2905 = vmatmul.mubr.f32.gmra.mrb[0].mxu0 %v2815
  %v2906 = vpop.f32.mrb[0].mxu0
  %v2907 = vadd.f32 0.0, %v2906
  %v2908 = vpop.f32.mrb[0].mxu0
  %2909 = vmatprep.mubr.f32.mxu0 %v2829
  %2910 = vmatmul.mubr.f32.gmra.mrb[0].mxu0 %v2817
  %v2911 = vpop.f32.mrb[0].mxu0
  %v2912 = vadd.f32 0.0, %v2911
  %v2913 = vpop.f32.mrb[0].mxu0
  %2914 = vmatprep.mubr.f32.mxu0 %v2832
  %2915 = vmatmul.mubr.f32.gmra.mrb[0].mxu0 %v2819
  %v2916 = vpop.f32.mrb[0].mxu0
  %v2917 = vadd.f32 0.0, %v2916
  %v2918 = vpop.f32.mrb[0].mxu0
  %2919 = vmatprep.mubr.f32.mxu0 %v2835
  %2920 = vmatmul.mubr.f32.gmra.mrb[0].mxu0 %v2821
  %v2921 = vpop.f32.mrb[0].mxu0
  %v2922 = vadd.f32 0.0, %v2921
  %v2923 = vpop.f32.mrb[0].mxu0
  %2924 = vmatprep.mubr.f32.mxu0 %v2838
  %2925 = vmatmul.mubr.f32.gmra.mrb[0].mxu0 %v2823
  %v2926 = vpop.f32.mrb[0].mxu0
  %v2927 = vadd.f32 0.0, %v2926
  %v2928 = vpop.f32.mrb[0].mxu0
  %2929 = vdwg.mxu0
  %v2930 = vld [vmem:[%s14] sm:$0xff]
  %v2931 = vld [vmem:[%s14 + $0x8] sm:$0xff]
  %v2932 = vld [vmem:[%s14 + $0x10] sm:$0xff]
  %v2933 = vld [vmem:[%s14 + $0x18] sm:$0xff]
  %v2934 = vld [vmem:[%s15] sm:$0x1]
  %v2936 = vlaneseq
  %v2937 = vshrl.u32 %v2936, 7
  %v2938 = vsub.s32 0, %v2937
  %v2939 = vrot.slane %v2934, %v2938
  %v2942 = vsel %vm198, %v2907, 0
  %v2945 = vsel %vm198, %v2912, 0
  %v2948 = vsel %vm198, %v2917, 0
  %v2951 = vsel %vm198, %v2922, 0
  %v2954 = vsel %vm198, %v2927, 0
  %2956 = vmatprep.subr.mxu0 0.0
  %2957 = vmatpush1.msra.mxu0 %v2930
  %2958 = vmatprep.subr.mxu0 0.0
  %2959 = vmatpush1.msra.mxu0 %v2931
  %2960 = vmatprep.subr.mxu0 0.0
  %2961 = vmatpush1.msra.mxu0 %v2932
  %2962 = vmatprep.subr.mxu0 0.0
  %2963 = vmatpush1.msra.mxu0 %v2933
  %2964 = vmatprep.subr.mxu0 0.0
  %2965 = vmatpush1.msra.mxu0 0.0
  %2966 = vmatprep.subr.mxu0 0.0
  %2967 = vmatpush1.msra.mxu0 0.0
  %2968 = vmatprep.subr.mxu0 0.0
  %2969 = vmatpush1.msra.mxu0 0.0
  %2970 = vmatprep.subr.mxu0 0.0
  %2971 = vmatpush1.msra.mxu0 0.0
  %2972 = vmatprep.subr.mxu0 0.0
  %2973 = vmatpush1.msra.mxu0 0.0
  %2974 = vmatprep.subr.mxu0 0.0
  %2975 = vmatpush1.msra.mxu0 0.0
  %2976 = vmatprep.subr.mxu0 0.0
  %2977 = vmatpush1.msra.mxu0 0.0
  %2978 = vmatprep.subr.mxu0 0.0
  %2979 = vmatpush1.msra.mxu0 0.0
  %2980 = vmatprep.subr.mxu0 0.0
  %2981 = vmatpush1.msra.mxu0 0.0
  %2982 = vmatprep.subr.mxu0 0.0
  %2983 = vmatpush1.msra.mxu0 0.0
  %2984 = vmatprep.subr.mxu0 0.0
  %2985 = vmatpush1.msra.mxu0 0.0
  %2986 = vmatprep.subr.mxu0 0.0
  %2987 = vmatpush1.msra.mxu0 0.0
  %2988 = vmatprep.subr.mxu0 0.0
  %2989 = vmatpush1.msra.mxu0 0.0
  %2990 = vmatprep.subr.mxu0 0.0
  %2991 = vmatpush1.msra.mxu0 0.0
  %2992 = vmatprep.subr.mxu0 0.0
  %2993 = vmatpush1.msra.mxu0 0.0
  %2994 = vmatprep.subr.mxu0 0.0
  %2995 = vmatpush1.msra.mxu0 0.0
  %2996 = vmatprep.subr.mxu0 0.0
  %2997 = vmatpush1.msra.mxu0 0.0
  %2998 = vmatprep.subr.mxu0 0.0
  %2999 = vmatpush1.msra.mxu0 0.0
  %3000 = vmatprep.subr.mxu0 0.0
  %3001 = vmatpush1.msra.mxu0 0.0
  %3002 = vmatprep.subr.mxu0 0.0
  %3003 = vmatpush1.msra.mxu0 0.0
  %3004 = vmatprep.subr.mxu0 0.0
  %3005 = vmatpush1.msra.mxu0 0.0
  %3006 = vmatprep.subr.mxu0 0.0
  %3007 = vmatpush1.msra.mxu0 0.0
  %3008 = vmatprep.subr.mxu0 0.0
  %3009 = vmatpush1.msra.mxu0 0.0
  %3010 = vmatprep.subr.mxu0 0.0
  %3011 = vmatpush1.msra.mxu0 0.0
  %3012 = vmatprep.subr.mxu0 0.0
  %3013 = vmatpush1.msra.mxu0 0.0
  %3014 = vmatprep.subr.mxu0 0.0
  %3015 = vmatpush1.msra.mxu0 0.0
  %3016 = vmatprep.subr.mxu0 0.0
  %3017 = vmatpush1.msra.mxu0 0.0
  %3018 = vmatprep.subr.mxu0 0.0
  %3019 = vmatpush1.msra.mxu0 0.0
  %3020 = vmatprep.mubr.f32.mxu0 0.0
  %3021 = vmatmul.mubr.f32.gmra.mrb[0].mxu0 %v2942
  %v3022 = vpop.f32.mrb[0].mxu0
  %v3023 = vadd.f32 %v2939, %v3022
  %v3024 = vpop.f32.mrb[0].mxu0
  %3025 = vmatprep.mubr.f32.mxu0 0.0
  %3026 = vmatmul.mubr.f32.gmra.mrb[0].mxu0 %v2945
  %v3027 = vpop.f32.mrb[0].mxu0
  %v3028 = vadd.f32 %v2939, %v3027
  %v3029 = vpop.f32.mrb[0].mxu0
  %3030 = vmatprep.mubr.f32.mxu0 0.0
  %3031 = vmatmul.mubr.f32.gmra.mrb[0].mxu0 %v2948
  %v3032 = vpop.f32.mrb[0].mxu0
  %v3033 = vadd.f32 %v2939, %v3032
  %v3034 = vpop.f32.mrb[0].mxu0
  %3035 = vmatprep.mubr.f32.mxu0 0.0
  %3036 = vmatmul.mubr.f32.gmra.mrb[0].mxu0 %v2951
  %v3037 = vpop.f32.mrb[0].mxu0
  %v3038 = vadd.f32 %v2939, %v3037
  %v3039 = vpop.f32.mrb[0].mxu0
  %3040 = vmatprep.mubr.f32.mxu0 0.0
  %3041 = vmatmul.mubr.f32.gmra.mrb[0].mxu0 %v2954
  %v3042 = vpop.f32.mrb[0].mxu0
  %v3043 = vadd.f32 %v2939, %v3042
  %v3044 = vpop.f32.mrb[0].mxu0
  %3045 = vdwg.mxu0
  %v3046 = vadd.f32 %v281, %v3023
  %v3047 = vadd.f32 %v286, %v3028
  %v3048 = vadd.f32 %v291, %v3033
  %v3049 = vadd.f32 %v296, %v3038
  %v3050 = vadd.f32 %v301, %v3043
  %v3051 = vld [vmem:[%s16] sm:$0x1]
  %v3052 = vld [vmem:[%s17] sm:$0x1]
  %v3053 = vsel %vm198, %v3046, 0.0
  %3054 = vadd.xlane.f32.xlu0 %v3053
  %v3055 = vpop.xlane.xlu0 %3054
  %v3056 = vsel %vm198, %v3047, 0.0
  %3057 = vadd.xlane.f32.xlu0 %v3056
  %v3058 = vpop.xlane.xlu0 %3057
  %v3059 = vsel %vm198, %v3048, 0.0
  %3060 = vadd.xlane.f32.xlu0 %v3059
  %v3061 = vpop.xlane.xlu0 %3060
  %v3062 = vsel %vm198, %v3049, 0.0
  %3063 = vadd.xlane.f32.xlu0 %v3062
  %v3064 = vpop.xlane.xlu0 %3063
  %v3065 = vsel %vm408, %v3050, 0.0
  %3066 = vadd.xlane.f32.xlu0 %v3065
  %v3067 = vpop.xlane.xlu0 %3066
  %v3068 = vmul.f32 %v3055, %v412
  %v3069 = vmul.f32 %v3058, %v412
  %v3070 = vmul.f32 %v3061, %v412
  %v3071 = vmul.f32 %v3064, %v412
  %v3072 = vmul.f32 %v3067, %v412
  %v3073 = vsub.f32 %v3046, %v3068
  %v3074 = vsub.f32 %v3047, %v3069
  %v3075 = vsub.f32 %v3048, %v3070
  %v3076 = vsub.f32 %v3049, %v3071
  %v3077 = vsub.f32 %v3050, %v3072
  %v3078 = vmul.f32 %v3073, %v3073
  %v3079 = vmul.f32 %v3074, %v3074
  %v3080 = vmul.f32 %v3075, %v3075
  %v3081 = vmul.f32 %v3076, %v3076
  %v3082 = vmul.f32 %v3077, %v3077
  %v3083 = vsel %vm198, %v3078, 0.0
  %3084 = vadd.xlane.f32.xlu0 %v3083
  %v3085 = vpop.xlane.xlu0 %3084
  %v3086 = vsel %vm198, %v3079, 0.0
  %3087 = vadd.xlane.f32.xlu0 %v3086
  %v3088 = vpop.xlane.xlu0 %3087
  %v3089 = vsel %vm198, %v3080, 0.0
  %3090 = vadd.xlane.f32.xlu0 %v3089
  %v3091 = vpop.xlane.xlu0 %3090
  %v3092 = vsel %vm198, %v3081, 0.0
  %3093 = vadd.xlane.f32.xlu0 %v3092
  %v3094 = vpop.xlane.xlu0 %3093
  %v3095 = vsel %vm408, %v3082, 0.0
  %3096 = vadd.xlane.f32.xlu0 %v3095
  %v3097 = vpop.xlane.xlu0 %3096
  %v3098 = vmul.f32 %v3085, %v412
  %v3099 = vmul.f32 %v3088, %v412
  %v3100 = vmul.f32 %v3091, %v412
  %v3101 = vmul.f32 %v3094, %v412
  %v3102 = vmul.f32 %v3097, %v412
  %v3103 = vadd.f32 %v3098, 1e-06
  %v3104 = vadd.f32 %v3099, 1e-06
  %v3105 = vadd.f32 %v3100, 1e-06
  %v3106 = vadd.f32 %v3101, 1e-06
  %v3107 = vadd.f32 %v3102, 1e-06
  %v3108 = vrsqrt.pop %v3103
  %v3109 = vrsqrt.pop %v3104
  %v3110 = vrsqrt.pop %v3105
  %v3111 = vrsqrt.pop %v3106
  %v3112 = vrsqrt.pop %v3107
  %v3113 = vmul.f32 %v3073, %v3108
  %v3114 = vmul.f32 %v3074, %v3109
  %v3115 = vmul.f32 %v3075, %v3110
  %v3116 = vmul.f32 %v3076, %v3111
  %v3117 = vmul.f32 %v3077, %v3112
  %v3119 = vlaneseq
  %v3120 = vshrl.u32 %v3119, 7
  %v3121 = vsub.s32 0, %v3120
  %v3122 = vrot.slane %v3051, %v3121
  %v3124 = vmul.f32 %v3113, %v3122
  %v3125 = vmul.f32 %v3114, %v3122
  %v3126 = vmul.f32 %v3115, %v3122
  %v3127 = vmul.f32 %v3116, %v3122
  %v3128 = vmul.f32 %v3117, %v3122
  %v3130 = vlaneseq
  %v3131 = vshrl.u32 %v3130, 7
  %v3132 = vsub.s32 0, %v3131
  %v3133 = vrot.slane %v3052, %v3132
  %v3135 = vadd.f32 %v3124, %v3133
  %v3136 = vadd.f32 %v3125, %v3133
  %v3137 = vadd.f32 %v3126, %v3133
  %v3138 = vadd.f32 %v3127, %v3133
  %v3139 = vadd.f32 %v3128, %v3133
  %v3140 = vld [vmem:[%s18] sm:$0xff]
  %v3141 = vld [vmem:[%s18 + $0x8] sm:$0xff]
  %v3142 = vld [vmem:[%s18 + $0x10] sm:$0xff]
  %v3143 = vld [vmem:[%s18 + $0x18] sm:$0xff]
  %v3144 = vld [vmem:[%s19] sm:$0x1]
  %v3146 = vlaneseq
  %v3147 = vshrl.u32 %v3146, 7
  %v3148 = vsub.s32 0, %v3147
  %v3149 = vrot.slane %v3144, %v3148
  %v3152 = vsel %vm198, %v3135, 0
  %v3155 = vsel %vm198, %v3136, 0
  %v3158 = vsel %vm198, %v3137, 0
  %v3161 = vsel %vm198, %v3138, 0
  %v3164 = vsel %vm198, %v3139, 0
  %3166 = vmatprep.subr.mxu0 0.0
  %3167 = vmatpush1.msra.mxu0 %v3140
  %3168 = vmatprep.subr.mxu0 0.0
  %3169 = vmatpush1.msra.mxu0 %v3141
  %3170 = vmatprep.subr.mxu0 0.0
  %3171 = vmatpush1.msra.mxu0 %v3142
  %3172 = vmatprep.subr.mxu0 0.0
  %3173 = vmatpush1.msra.mxu0 %v3143
  %3174 = vmatprep.subr.mxu0 0.0
  %3175 = vmatpush1.msra.mxu0 0.0
  %3176 = vmatprep.subr.mxu0 0.0
  %3177 = vmatpush1.msra.mxu0 0.0
  %3178 = vmatprep.subr.mxu0 0.0
  %3179 = vmatpush1.msra.mxu0 0.0
  %3180 = vmatprep.subr.mxu0 0.0
  %3181 = vmatpush1.msra.mxu0 0.0
  %3182 = vmatprep.subr.mxu0 0.0
  %3183 = vmatpush1.msra.mxu0 0.0
  %3184 = vmatprep.subr.mxu0 0.0
  %3185 = vmatpush1.msra.mxu0 0.0
  %3186 = vmatprep.subr.mxu0 0.0
  %3187 = vmatpush1.msra.mxu0 0.0
  %3188 = vmatprep.subr.mxu0 0.0
  %3189 = vmatpush1.msra.mxu0 0.0
  %3190 = vmatprep.subr.mxu0 0.0
  %3191 = vmatpush1.msra.mxu0 0.0
  %3192 = vmatprep.subr.mxu0 0.0
  %3193 = vmatpush1.msra.mxu0 0.0
  %3194 = vmatprep.subr.mxu0 0.0
  %3195 = vmatpush1.msra.mxu0 0.0
  %3196 = vmatprep.subr.mxu0 0.0
  %3197 = vmatpush1.msra.mxu0 0.0
  %3198 = vmatprep.subr.mxu0 0.0
  %3199 = vmatpush1.msra.mxu0 0.0
  %3200 = vmatprep.subr.mxu0 0.0
  %3201 = vmatpush1.msra.mxu0 0.0
  %3202 = vmatprep.subr.mxu0 0.0
  %3203 = vmatpush1.msra.mxu0 0.0
  %3204 = vmatprep.subr.mxu0 0.0
  %3205 = vmatpush1.msra.mxu0 0.0
  %3206 = vmatprep.subr.mxu0 0.0
  %3207 = vmatpush1.msra.mxu0 0.0
  %3208 = vmatprep.subr.mxu0 0.0
  %3209 = vmatpush1.msra.mxu0 0.0
  %3210 = vmatprep.subr.mxu0 0.0
  %3211 = vmatpush1.msra.mxu0 0.0
  %3212 = vmatprep.subr.mxu0 0.0
  %3213 = vmatpush1.msra.mxu0 0.0
  %3214 = vmatprep.subr.mxu0 0.0
  %3215 = vmatpush1.msra.mxu0 0.0
  %3216 = vmatprep.subr.mxu0 0.0
  %3217 = vmatpush1.msra.mxu0 0.0
  %3218 = vmatprep.subr.mxu0 0.0
  %3219 = vmatpush1.msra.mxu0 0.0
  %3220 = vmatprep.subr.mxu0 0.0
  %3221 = vmatpush1.msra.mxu0 0.0
  %3222 = vmatprep.subr.mxu0 0.0
  %3223 = vmatpush1.msra.mxu0 0.0
  %3224 = vmatprep.subr.mxu0 0.0
  %3225 = vmatpush1.msra.mxu0 0.0
  %3226 = vmatprep.subr.mxu0 0.0
  %3227 = vmatpush1.msra.mxu0 0.0
  %3228 = vmatprep.subr.mxu0 0.0
  %3229 = vmatpush1.msra.mxu0 0.0
  %3230 = vmatprep.mubr.f32.mxu0 0.0
  %3231 = vmatmul.mubr.f32.gmra.mrb[0].mxu0 %v3152
  %v3232 = vpop.f32.mrb[0].mxu0
  %v3233 = vadd.f32 %v3149, %v3232
  %v3234 = vpop.f32.mrb[0].mxu0
  %3235 = vmatprep.mubr.f32.mxu0 0.0
  %3236 = vmatmul.mubr.f32.gmra.mrb[0].mxu0 %v3155
  %v3237 = vpop.f32.mrb[0].mxu0
  %v3238 = vadd.f32 %v3149, %v3237
  %v3239 = vpop.f32.mrb[0].mxu0
  %3240 = vmatprep.mubr.f32.mxu0 0.0
  %3241 = vmatmul.mubr.f32.gmra.mrb[0].mxu0 %v3158
  %v3242 = vpop.f32.mrb[0].mxu0
  %v3243 = vadd.f32 %v3149, %v3242
  %v3244 = vpop.f32.mrb[0].mxu0
  %3245 = vmatprep.mubr.f32.mxu0 0.0
  %3246 = vmatmul.mubr.f32.gmra.mrb[0].mxu0 %v3161
  %v3247 = vpop.f32.mrb[0].mxu0
  %v3248 = vadd.f32 %v3149, %v3247
  %v3249 = vpop.f32.mrb[0].mxu0
  %3250 = vmatprep.mubr.f32.mxu0 0.0
  %3251 = vmatmul.mubr.f32.gmra.mrb[0].mxu0 %v3164
  %v3252 = vpop.f32.mrb[0].mxu0
  %v3253 = vadd.f32 %v3149, %v3252
  %v3254 = vpop.f32.mrb[0].mxu0
  %3255 = vdwg.mxu0
  %v3256 = vmul.f32 %v3233, 0.5
  %v3257 = vmul.f32 %v3238, 0.5
  %v3258 = vmul.f32 %v3243, 0.5
  %v3259 = vmul.f32 %v3248, 0.5
  %v3260 = vmul.f32 %v3253, 0.5
  %v3261 = vmul.f32 %v3233, %v1818
  %v3262 = vmul.f32 %v3238, %v1818
  %v3263 = vmul.f32 %v3243, %v1818
  %v3264 = vmul.f32 %v3248, %v1818
  %v3265 = vmul.f32 %v3253, %v1818
  %v3266 = verf.f32.pop %v3261
  %v3267 = verf.f32.pop %v3262
  %v3268 = verf.f32.pop %v3263
  %v3269 = verf.f32.pop %v3264
  %v3270 = verf.f32.pop %v3265
  %v3271 = vadd.f32 %v3266, 1.0
  %v3272 = vadd.f32 %v3267, 1.0
  %v3273 = vadd.f32 %v3268, 1.0
  %v3274 = vadd.f32 %v3269, 1.0
  %v3275 = vadd.f32 %v3270, 1.0
  %v3276 = vmul.f32 %v3256, %v3271
  %v3277 = vmul.f32 %v3257, %v3272
  %v3278 = vmul.f32 %v3258, %v3273
  %v3279 = vmul.f32 %v3259, %v3274
  %v3280 = vmul.f32 %v3260, %v3275
  %v3281 = vld [vmem:[%s20] sm:$0xff]
  %v3282 = vld [vmem:[%s20 + $0x8] sm:$0xff]
  %v3283 = vld [vmem:[%s20 + $0x10] sm:$0xff]
  %v3284 = vld [vmem:[%s20 + $0x18] sm:$0xff]
  %v3285 = vld [vmem:[%s20 + $0x20] sm:$0xff]
  %v3286 = vld [vmem:[%s20 + $0x28] sm:$0xff]
  %v3287 = vld [vmem:[%s20 + $0x30] sm:$0xff]
  %v3288 = vld [vmem:[%s20 + $0x38] sm:$0xff]
  %v3289 = vld [vmem:[%s21] sm:$0x1]
  %v3291 = vlaneseq
  %v3292 = vshrl.u32 %v3291, 7
  %v3293 = vsub.s32 0, %v3292
  %v3294 = vrot.slane %v3289, %v3293
  %v3297 = vsel %vm1856, %v3276, 0
  %v3300 = vsel %vm1856, %v3277, 0
  %v3303 = vsel %vm1856, %v3278, 0
  %v3306 = vsel %vm1856, %v3279, 0
  %v3309 = vsel %vm1856, %v3280, 0
  %3311 = vmatprep.subr.mxu0 0.0
  %3312 = vmatpush1.msra.mxu0 %v3281
  %3313 = vmatprep.subr.mxu0 0.0
  %3314 = vmatpush1.msra.mxu0 %v3282
  %3315 = vmatprep.subr.mxu0 0.0
  %3316 = vmatpush1.msra.mxu0 %v3283
  %3317 = vmatprep.subr.mxu0 0.0
  %3318 = vmatpush1.msra.mxu0 %v3284
  %3319 = vmatprep.subr.mxu0 0.0
  %3320 = vmatpush1.msra.mxu0 %v3285
  %3321 = vmatprep.subr.mxu0 0.0
  %3322 = vmatpush1.msra.mxu0 %v3286
  %3323 = vmatprep.subr.mxu0 0.0
  %3324 = vmatpush1.msra.mxu0 %v3287
  %3325 = vmatprep.subr.mxu0 0.0
  %3326 = vmatpush1.msra.mxu0 %v3288
  %3327 = vmatprep.subr.mxu0 0.0
  %3328 = vmatpush1.msra.mxu0 0.0
  %3329 = vmatprep.subr.mxu0 0.0
  %3330 = vmatpush1.msra.mxu0 0.0
  %3331 = vmatprep.subr.mxu0 0.0
  %3332 = vmatpush1.msra.mxu0 0.0
  %3333 = vmatprep.subr.mxu0 0.0
  %3334 = vmatpush1.msra.mxu0 0.0
  %3335 = vmatprep.subr.mxu0 0.0
  %3336 = vmatpush1.msra.mxu0 0.0
  %3337 = vmatprep.subr.mxu0 0.0
  %3338 = vmatpush1.msra.mxu0 0.0
  %3339 = vmatprep.subr.mxu0 0.0
  %3340 = vmatpush1.msra.mxu0 0.0
  %3341 = vmatprep.subr.mxu0 0.0
  %3342 = vmatpush1.msra.mxu0 0.0
  %3343 = vmatprep.subr.mxu0 0.0
  %3344 = vmatpush1.msra.mxu0 0.0
  %3345 = vmatprep.subr.mxu0 0.0
  %3346 = vmatpush1.msra.mxu0 0.0
  %3347 = vmatprep.subr.mxu0 0.0
  %3348 = vmatpush1.msra.mxu0 0.0
  %3349 = vmatprep.subr.mxu0 0.0
  %3350 = vmatpush1.msra.mxu0 0.0
  %3351 = vmatprep.subr.mxu0 0.0
  %3352 = vmatpush1.msra.mxu0 0.0
  %3353 = vmatprep.subr.mxu0 0.0
  %3354 = vmatpush1.msra.mxu0 0.0
  %3355 = vmatprep.subr.mxu0 0.0
  %3356 = vmatpush1.msra.mxu0 0.0
  %3357 = vmatprep.subr.mxu0 0.0
  %3358 = vmatpush1.msra.mxu0 0.0
  %3359 = vmatprep.subr.mxu0 0.0
  %3360 = vmatpush1.msra.mxu0 0.0
  %3361 = vmatprep.subr.mxu0 0.0
  %3362 = vmatpush1.msra.mxu0 0.0
  %3363 = vmatprep.subr.mxu0 0.0
  %3364 = vmatpush1.msra.mxu0 0.0
  %3365 = vmatprep.subr.mxu0 0.0
  %3366 = vmatpush1.msra.mxu0 0.0
  %3367 = vmatprep.subr.mxu0 0.0
  %3368 = vmatpush1.msra.mxu0 0.0
  %3369 = vmatprep.subr.mxu0 0.0
  %3370 = vmatpush1.msra.mxu0 0.0
  %3371 = vmatprep.subr.mxu0 0.0
  %3372 = vmatpush1.msra.mxu0 0.0
  %3373 = vmatprep.subr.mxu0 0.0
  %3374 = vmatpush1.msra.mxu0 0.0
  %3375 = vmatprep.mubr.f32.mxu0 0.0
  %3376 = vmatmul.mubr.f32.gmra.mrb[0].mxu0 %v3297
  %v3377 = vpop.f32.mrb[0].mxu0
  %v3378 = vadd.f32 %v3294, %v3377
  %v3379 = vpop.f32.mrb[0].mxu0
  %3380 = vmatprep.mubr.f32.mxu0 0.0
  %3381 = vmatmul.mubr.f32.gmra.mrb[0].mxu0 %v3300
  %v3382 = vpop.f32.mrb[0].mxu0
  %v3383 = vadd.f32 %v3294, %v3382
  %v3384 = vpop.f32.mrb[0].mxu0
  %3385 = vmatprep.mubr.f32.mxu0 0.0
  %3386 = vmatmul.mubr.f32.gmra.mrb[0].mxu0 %v3303
  %v3387 = vpop.f32.mrb[0].mxu0
  %v3388 = vadd.f32 %v3294, %v3387
  %v3389 = vpop.f32.mrb[0].mxu0
  %3390 = vmatprep.mubr.f32.mxu0 0.0
  %3391 = vmatmul.mubr.f32.gmra.mrb[0].mxu0 %v3306
  %v3392 = vpop.f32.mrb[0].mxu0
  %v3393 = vadd.f32 %v3294, %v3392
  %v3394 = vpop.f32.mrb[0].mxu0
  %3395 = vmatprep.mubr.f32.mxu0 0.0
  %3396 = vmatmul.mubr.f32.gmra.mrb[0].mxu0 %v3309
  %v3397 = vpop.f32.mrb[0].mxu0
  %v3398 = vadd.f32 %v3294, %v3397
  %v3399 = vpop.f32.mrb[0].mxu0
  %3400 = vdwg.mxu0
  %v3401 = vadd.f32 %v3046, %v3378
  %v3402 = vadd.f32 %v3047, %v3383
  %v3403 = vadd.f32 %v3048, %v3388
  %v3404 = vadd.f32 %v3049, %v3393
  %v3405 = vadd.f32 %v3050, %v3398
  %3406 = vst.msk [vmem:[%s22] sm:$0xff] %vm198, %v3401
  %3407 = vst.msk [vmem:[%s22 + $0x8] sm:$0xff] %vm198, %v3402
  %3408 = vst.msk [vmem:[%s22 + $0x10] sm:$0xff] %vm198, %v3403
  %3409 = vst.msk [vmem:[%s22 + $0x18] sm:$0xff] %vm198, %v3404
  %3410 = vst.msk [vmem:[%s22 + $0x20] sm:$0x3] %vm408, %v3405
  %3411 = vst.msk [vmem:[%s23] sm:$0xff] %vm198, %v1962
  %3412 = vst.msk [vmem:[%s23 + $0x8] sm:$0xff] %vm198, %v1963
  %3413 = vst.msk [vmem:[%s23 + $0x10] sm:$0xff] %vm198, %v1964
  %3414 = vst.msk [vmem:[%s23 + $0x18] sm:$0xff] %vm198, %v1965
  %3415 = vst.msk [vmem:[%s23 + $0x20] sm:$0x3] %vm408, %v1966
  %s3416 = scalar_lea.vmem %s10, 3
  %v3417 = vld [vmem:[%s3416] sm:$0x1]
  %s3418 = scalar_lea.vmem %s11, 3
  %v3419 = vld [vmem:[%s3418] sm:$0x1]
  %v3420 = vsel %vm198, %v3401, 0.0
  %3421 = vadd.xlane.f32.xlu0 %v3420
  %v3422 = vpop.xlane.xlu0 %3421
  %v3423 = vsel %vm198, %v3402, 0.0
  %3424 = vadd.xlane.f32.xlu0 %v3423
  %v3425 = vpop.xlane.xlu0 %3424
  %v3426 = vsel %vm198, %v3403, 0.0
  %3427 = vadd.xlane.f32.xlu0 %v3426
  %v3428 = vpop.xlane.xlu0 %3427
  %v3429 = vsel %vm198, %v3404, 0.0
  %3430 = vadd.xlane.f32.xlu0 %v3429
  %v3431 = vpop.xlane.xlu0 %3430
  %v3432 = vsel %vm408, %v3405, 0.0
  %3433 = vadd.xlane.f32.xlu0 %v3432
  %v3434 = vpop.xlane.xlu0 %3433
  %v3435 = vmul.f32 %v3422, %v412
  %v3436 = vmul.f32 %v3425, %v412
  %v3437 = vmul.f32 %v3428, %v412
  %v3438 = vmul.f32 %v3431, %v412
  %v3439 = vmul.f32 %v3434, %v412
  %v3440 = vsub.f32 %v3401, %v3435
  %v3441 = vsub.f32 %v3402, %v3436
  %v3442 = vsub.f32 %v3403, %v3437
  %v3443 = vsub.f32 %v3404, %v3438
  %v3444 = vsub.f32 %v3405, %v3439
  %v3445 = vmul.f32 %v3440, %v3440
  %v3446 = vmul.f32 %v3441, %v3441
  %v3447 = vmul.f32 %v3442, %v3442
  %v3448 = vmul.f32 %v3443, %v3443
  %v3449 = vmul.f32 %v3444, %v3444
  %v3450 = vsel %vm198, %v3445, 0.0
  %3451 = vadd.xlane.f32.xlu0 %v3450
  %v3452 = vpop.xlane.xlu0 %3451
  %v3453 = vsel %vm198, %v3446, 0.0
  %3454 = vadd.xlane.f32.xlu0 %v3453
  %v3455 = vpop.xlane.xlu0 %3454
  %v3456 = vsel %vm198, %v3447, 0.0
  %3457 = vadd.xlane.f32.xlu0 %v3456
  %v3458 = vpop.xlane.xlu0 %3457
  %v3459 = vsel %vm198, %v3448, 0.0
  %3460 = vadd.xlane.f32.xlu0 %v3459
  %v3461 = vpop.xlane.xlu0 %3460
  %v3462 = vsel %vm408, %v3449, 0.0
  %3463 = vadd.xlane.f32.xlu0 %v3462
  %v3464 = vpop.xlane.xlu0 %3463
  %v3465 = vmul.f32 %v3452, %v412
  %v3466 = vmul.f32 %v3455, %v412
  %v3467 = vmul.f32 %v3458, %v412
  %v3468 = vmul.f32 %v3461, %v412
  %v3469 = vmul.f32 %v3464, %v412
  %v3470 = vadd.f32 %v3465, 1e-06
  %v3471 = vadd.f32 %v3466, 1e-06
  %v3472 = vadd.f32 %v3467, 1e-06
  %v3473 = vadd.f32 %v3468, 1e-06
  %v3474 = vadd.f32 %v3469, 1e-06
  %v3475 = vrsqrt.pop %v3470
  %v3476 = vrsqrt.pop %v3471
  %v3477 = vrsqrt.pop %v3472
  %v3478 = vrsqrt.pop %v3473
  %v3479 = vrsqrt.pop %v3474
  %v3480 = vmul.f32 %v3440, %v3475
  %v3481 = vmul.f32 %v3441, %v3476
  %v3482 = vmul.f32 %v3442, %v3477
  %v3483 = vmul.f32 %v3443, %v3478
  %v3484 = vmul.f32 %v3444, %v3479
  %v3486 = vlaneseq
  %v3487 = vshrl.u32 %v3486, 7
  %v3488 = vsub.s32 0, %v3487
  %v3489 = vrot.slane %v3417, %v3488
  %v3491 = vmul.f32 %v3480, %v3489
  %v3492 = vmul.f32 %v3481, %v3489
  %v3493 = vmul.f32 %v3482, %v3489
  %v3494 = vmul.f32 %v3483, %v3489
  %v3495 = vmul.f32 %v3484, %v3489
  %v3497 = vlaneseq
  %v3498 = vshrl.u32 %v3497, 7
  %v3499 = vsub.s32 0, %v3498
  %v3500 = vrot.slane %v3419, %v3499
  %v3502 = vadd.f32 %v3491, %v3500
  %v3503 = vadd.f32 %v3492, %v3500
  %v3504 = vadd.f32 %v3493, %v3500
  %v3505 = vadd.f32 %v3494, %v3500
  %v3506 = vadd.f32 %v3495, %v3500
  %s3507 = scalar_lea.vmem %s12, 96
  %v3508 = vld [vmem:[%s3507] sm:$0xff]
  %v3509 = vld [vmem:[%s3507 + $0x8] sm:$0xff]
  %v3510 = vld [vmem:[%s3507 + $0x10] sm:$0xff]
  %v3511 = vld [vmem:[%s3507 + $0x18] sm:$0xff]
  %s3512 = scalar_lea.vmem %s13, 3
  %v3513 = vld [vmem:[%s3512] sm:$0x1]
  %v3515 = vlaneseq
  %v3516 = vshrl.u32 %v3515, 7
  %v3517 = vsub.s32 0, %v3516
  %v3518 = vrot.slane %v3513, %v3517
  %v3521 = vsel %vm198, %v3502, 0
  %v3524 = vsel %vm198, %v3503, 0
  %v3527 = vsel %vm198, %v3504, 0
  %v3530 = vsel %vm198, %v3505, 0
  %v3533 = vsel %vm198, %v3506, 0
  %3535 = vmatprep.subr.mxu0 0.0
  %3536 = vmatpush1.msra.mxu0 %v3508
  %3537 = vmatprep.subr.mxu0 0.0
  %3538 = vmatpush1.msra.mxu0 %v3509
  %3539 = vmatprep.subr.mxu0 0.0
  %3540 = vmatpush1.msra.mxu0 %v3510
  %3541 = vmatprep.subr.mxu0 0.0
  %3542 = vmatpush1.msra.mxu0 %v3511
  %3543 = vmatprep.subr.mxu0 0.0
  %3544 = vmatpush1.msra.mxu0 0.0
  %3545 = vmatprep.subr.mxu0 0.0
  %3546 = vmatpush1.msra.mxu0 0.0
  %3547 = vmatprep.subr.mxu0 0.0
  %3548 = vmatpush1.msra.mxu0 0.0
  %3549 = vmatprep.subr.mxu0 0.0
  %3550 = vmatpush1.msra.mxu0 0.0
  %3551 = vmatprep.subr.mxu0 0.0
  %3552 = vmatpush1.msra.mxu0 0.0
  %3553 = vmatprep.subr.mxu0 0.0
  %3554 = vmatpush1.msra.mxu0 0.0
  %3555 = vmatprep.subr.mxu0 0.0
  %3556 = vmatpush1.msra.mxu0 0.0
  %3557 = vmatprep.subr.mxu0 0.0
  %3558 = vmatpush1.msra.mxu0 0.0
  %3559 = vmatprep.subr.mxu0 0.0
  %3560 = vmatpush1.msra.mxu0 0.0
  %3561 = vmatprep.subr.mxu0 0.0
  %3562 = vmatpush1.msra.mxu0 0.0
  %3563 = vmatprep.subr.mxu0 0.0
  %3564 = vmatpush1.msra.mxu0 0.0
  %3565 = vmatprep.subr.mxu0 0.0
  %3566 = vmatpush1.msra.mxu0 0.0
  %3567 = vmatprep.subr.mxu0 0.0
  %3568 = vmatpush1.msra.mxu0 0.0
  %3569 = vmatprep.subr.mxu0 0.0
  %3570 = vmatpush1.msra.mxu0 0.0
  %3571 = vmatprep.subr.mxu0 0.0
  %3572 = vmatpush1.msra.mxu0 0.0
  %3573 = vmatprep.subr.mxu0 0.0
  %3574 = vmatpush1.msra.mxu0 0.0
  %3575 = vmatprep.subr.mxu0 0.0
  %3576 = vmatpush1.msra.mxu0 0.0
  %3577 = vmatprep.subr.mxu0 0.0
  %3578 = vmatpush1.msra.mxu0 0.0
  %3579 = vmatprep.subr.mxu0 0.0
  %3580 = vmatpush1.msra.mxu0 0.0
  %3581 = vmatprep.subr.mxu0 0.0
  %3582 = vmatpush1.msra.mxu0 0.0
  %3583 = vmatprep.subr.mxu0 0.0
  %3584 = vmatpush1.msra.mxu0 0.0
  %3585 = vmatprep.subr.mxu0 0.0
  %3586 = vmatpush1.msra.mxu0 0.0
  %3587 = vmatprep.subr.mxu0 0.0
  %3588 = vmatpush1.msra.mxu0 0.0
  %3589 = vmatprep.subr.mxu0 0.0
  %3590 = vmatpush1.msra.mxu0 0.0
  %3591 = vmatprep.subr.mxu0 0.0
  %3592 = vmatpush1.msra.mxu0 0.0
  %3593 = vmatprep.subr.mxu0 0.0
  %3594 = vmatpush1.msra.mxu0 0.0
  %3595 = vmatprep.subr.mxu0 0.0
  %3596 = vmatpush1.msra.mxu0 0.0
  %3597 = vmatprep.subr.mxu0 0.0
  %3598 = vmatpush1.msra.mxu0 0.0
  %3599 = vmatprep.mubr.f32.mxu0 0.0
  %3600 = vmatmul.mubr.f32.gmra.mrb[0].mxu0 %v3521
  %v3601 = vpop.f32.mrb[0].mxu0
  %v3602 = vadd.f32 %v3518, %v3601
  %v3603 = vpop.f32.mrb[0].mxu0
  %3604 = vmatprep.mubr.f32.mxu0 0.0
  %3605 = vmatmul.mubr.f32.gmra.mrb[0].mxu0 %v3524
  %v3606 = vpop.f32.mrb[0].mxu0
  %v3607 = vadd.f32 %v3518, %v3606
  %v3608 = vpop.f32.mrb[0].mxu0
  %3609 = vmatprep.mubr.f32.mxu0 0.0
  %3610 = vmatmul.mubr.f32.gmra.mrb[0].mxu0 %v3527
  %v3611 = vpop.f32.mrb[0].mxu0
  %v3612 = vadd.f32 %v3518, %v3611
  %v3613 = vpop.f32.mrb[0].mxu0
  %3614 = vmatprep.mubr.f32.mxu0 0.0
  %3615 = vmatmul.mubr.f32.gmra.mrb[0].mxu0 %v3530
  %v3616 = vpop.f32.mrb[0].mxu0
  %v3617 = vadd.f32 %v3518, %v3616
  %v3618 = vpop.f32.mrb[0].mxu0
  %3619 = vmatprep.mubr.f32.mxu0 0.0
  %3620 = vmatmul.mubr.f32.gmra.mrb[0].mxu0 %v3533
  %v3621 = vpop.f32.mrb[0].mxu0
  %v3622 = vadd.f32 %v3518, %v3621
  %v3623 = vpop.f32.mrb[0].mxu0
  %3624 = vdwg.mxu0
  %v3625 = vmul.f32 %v3602, 0.35355338
  %v3626 = vmul.f32 %v3607, 0.35355338
  %v3627 = vmul.f32 %v3612, 0.35355338
  %v3628 = vmul.f32 %v3617, 0.35355338
  %v3629 = vmul.f32 %v3622, 0.35355338
  %3635 = vrot.lane.b32.xlu0 %v3602, 96
  %v3636 = vpop.permute.xlu0 %3635
  %3637 = vrot.lane.b32.xlu0 %v3607, 96
  %v3638 = vpop.permute.xlu0 %3637
  %3639 = vrot.lane.b32.xlu0 %v3612, 96
  %v3640 = vpop.permute.xlu0 %3639
  %3641 = vrot.lane.b32.xlu0 %v3617, 96
  %v3642 = vpop.permute.xlu0 %3641
  %3643 = vrot.lane.b32.xlu0 %v3622, 96
  %v3644 = vpop.permute.xlu0 %3643
  %v3649 = vsel %vm679, %v3644, 0
  %3651 = vmatprep.subr.mxu0 0.0
  %3652 = vmatpush1.msra.mxu0 %v3636
  %3653 = vmatprep.subr.mxu0 0.0
  %3654 = vmatpush1.msra.mxu0 %v3638
  %3655 = vmatprep.subr.mxu0 0.0
  %3656 = vmatpush1.msra.mxu0 %v3640
  %3657 = vmatprep.subr.mxu0 0.0
  %3658 = vmatpush1.msra.mxu0 %v3642
  %3659 = vmatprep.subr.mxu0 0.0
  %3660 = vmatpush1.msra.mxu0 %v3649
  %3661 = vmatprep.subr.mxu0 0.0
  %3662 = vmatpush1.msra.mxu0 0.0
  %3663 = vmatprep.subr.mxu0 0.0
  %3664 = vmatpush1.msra.mxu0 0.0
  %3665 = vmatprep.subr.mxu0 0.0
  %3666 = vmatpush1.msra.mxu0 0.0
  %3667 = vmatprep.subr.mxu0 0.0
  %3668 = vmatpush1.msra.mxu0 0.0
  %3669 = vmatprep.subr.mxu0 0.0
  %3670 = vmatpush1.msra.mxu0 0.0
  %3671 = vmatprep.subr.mxu0 0.0
  %3672 = vmatpush1.msra.mxu0 0.0
  %3673 = vmatprep.subr.mxu0 0.0
  %3674 = vmatpush1.msra.mxu0 0.0
  %3675 = vmatprep.subr.mxu0 0.0
  %3676 = vmatpush1.msra.mxu0 0.0
  %3677 = vmatprep.subr.mxu0 0.0
  %3678 = vmatpush1.msra.mxu0 0.0
  %3679 = vmatprep.subr.mxu0 0.0
  %3680 = vmatpush1.msra.mxu0 0.0
  %3681 = vmatprep.subr.mxu0 0.0
  %3682 = vmatpush1.msra.mxu0 0.0
  %3683 = vmatprep.subr.mxu0 0.0
  %3684 = vmatpush1.msra.mxu0 0.0
  %3685 = vmatprep.subr.mxu0 0.0
  %3686 = vmatpush1.msra.mxu0 0.0
  %3687 = vmatprep.subr.mxu0 0.0
  %3688 = vmatpush1.msra.mxu0 0.0
  %3689 = vmatprep.subr.mxu0 0.0
  %3690 = vmatpush1.msra.mxu0 0.0
  %3691 = vmatprep.subr.mxu0 0.0
  %3692 = vmatpush1.msra.mxu0 0.0
  %3693 = vmatprep.subr.mxu0 0.0
  %3694 = vmatpush1.msra.mxu0 0.0
  %3695 = vmatprep.subr.mxu0 0.0
  %3696 = vmatpush1.msra.mxu0 0.0
  %3697 = vmatprep.subr.mxu0 0.0
  %3698 = vmatpush1.msra.mxu0 0.0
  %3699 = vmatprep.subr.mxu0 0.0
  %3700 = vmatpush1.msra.mxu0 0.0
  %3701 = vmatprep.subr.mxu0 0.0
  %3702 = vmatpush1.msra.mxu0 0.0
  %3703 = vmatprep.subr.mxu0 0.0
  %3704 = vmatpush1.msra.mxu0 0.0
  %3705 = vmatprep.subr.mxu0 0.0
  %3706 = vmatpush1.msra.mxu0 0.0
  %3707 = vmatprep.subr.mxu0 0.0
  %3708 = vmatpush1.msra.mxu0 0.0
  %3709 = vmatprep.subr.mxu0 0.0
  %3710 = vmatpush1.msra.mxu0 0.0
  %3711 = vmatprep.subr.mxu0 0.0
  %3712 = vmatpush1.msra.mxu0 0.0
  %3713 = vmatprep.subr.mxu0 0.0
  %3714 = vmatpush1.msra.mxu0 0.0
  %3715 = vmatprep.mubr.f32.mxu0 0.0
  %3716 = vmatmul.mubr.f32.gmra.mrb[0].mxu0 %v629
  %v3717 = vpop.f32.mrb[0].mxu0
  %v3718 = vadd.f32 0.0, %v3717
  %v3719 = vpop.f32.mrb[0].mxu0
  %3720 = vmatprep.mubr.f32.mxu0 0.0
  %3721 = vmatmul.mubr.f32.gmra.mrb[0].mxu0 %v632
  %v3722 = vpop.f32.mrb[0].mxu0
  %v3723 = vadd.f32 0.0, %v3722
  %v3724 = vpop.f32.mrb[0].mxu0
  %3725 = vmatprep.mubr.f32.mxu0 0.0
  %3726 = vmatmul.mubr.f32.gmra.mrb[0].mxu0 %v635
  %v3727 = vpop.f32.mrb[0].mxu0
  %v3728 = vadd.f32 0.0, %v3727
  %v3729 = vpop.f32.mrb[0].mxu0
  %3730 = vmatprep.mubr.f32.mxu0 0.0
  %3731 = vmatmul.mubr.f32.gmra.mrb[0].mxu0 %v638
  %v3732 = vpop.f32.mrb[0].mxu0
  %v3733 = vadd.f32 0.0, %v3732
  %v3734 = vpop.f32.mrb[0].mxu0
  %3735 = vmatprep.mubr.f32.mxu0 0.0
  %3736 = vmatmul.mubr.f32.gmra.mrb[0].mxu0 %v641
  %v3737 = vpop.f32.mrb[0].mxu0
  %v3738 = vadd.f32 0.0, %v3737
  %v3739 = vpop.f32.mrb[0].mxu0
  %3740 = vmatprep.mubr.f32.mxu0 0.0
  %3741 = vmatmul.mubr.f32.gmra.mrb[0].mxu0 %v644
  %v3742 = vpop.f32.mrb[0].mxu0
  %v3743 = vadd.f32 0.0, %v3742
  %v3744 = vpop.f32.mrb[0].mxu0
  %3745 = vmatprep.mubr.f32.mxu0 0.0
  %3746 = vmatmul.mubr.f32.gmra.mrb[0].mxu0 %v647
  %v3747 = vpop.f32.mrb[0].mxu0
  %v3748 = vadd.f32 0.0, %v3747
  %v3749 = vpop.f32.mrb[0].mxu0
  %3750 = vmatprep.mubr.f32.mxu0 0.0
  %3751 = vmatmul.mubr.f32.gmra.mrb[0].mxu0 %v650
  %v3752 = vpop.f32.mrb[0].mxu0
  %v3753 = vadd.f32 0.0, %v3752
  %v3754 = vpop.f32.mrb[0].mxu0
  %3755 = vmatprep.mubr.f32.mxu0 0.0
  %3756 = vmatmul.mubr.f32.gmra.mrb[0].mxu0 %v653
  %v3757 = vpop.f32.mrb[0].mxu0
  %v3758 = vadd.f32 0.0, %v3757
  %v3759 = vpop.f32.mrb[0].mxu0
  %3760 = vmatprep.mubr.f32.mxu0 0.0
  %3761 = vmatmul.mubr.f32.gmra.mrb[0].mxu0 %v656
  %v3762 = vpop.f32.mrb[0].mxu0
  %v3763 = vadd.f32 0.0, %v3762
  %v3764 = vpop.f32.mrb[0].mxu0
  %3765 = vmatprep.mubr.f32.mxu0 0.0
  %3766 = vmatmul.mubr.f32.gmra.mrb[0].mxu0 %v659
  %v3767 = vpop.f32.mrb[0].mxu0
  %v3768 = vadd.f32 0.0, %v3767
  %v3769 = vpop.f32.mrb[0].mxu0
  %3770 = vmatprep.mubr.f32.mxu0 0.0
  %3771 = vmatmul.mubr.f32.gmra.mrb[0].mxu0 %v662
  %v3772 = vpop.f32.mrb[0].mxu0
  %v3773 = vadd.f32 0.0, %v3772
  %v3774 = vpop.f32.mrb[0].mxu0
  %3775 = vmatprep.mubr.f32.mxu0 0.0
  %3776 = vmatmul.mubr.f32.gmra.mrb[0].mxu0 %v665
  %v3777 = vpop.f32.mrb[0].mxu0
  %v3778 = vadd.f32 0.0, %v3777
  %v3779 = vpop.f32.mrb[0].mxu0
  %3780 = vmatprep.mubr.f32.mxu0 0.0
  %3781 = vmatmul.mubr.f32.gmra.mrb[0].mxu0 %v668
  %v3782 = vpop.f32.mrb[0].mxu0
  %v3783 = vadd.f32 0.0, %v3782
  %v3784 = vpop.f32.mrb[0].mxu0
  %3785 = vmatprep.mubr.f32.mxu0 0.0
  %3786 = vmatmul.mubr.f32.gmra.mrb[0].mxu0 %v671
  %v3787 = vpop.f32.mrb[0].mxu0
  %v3788 = vadd.f32 0.0, %v3787
  %v3789 = vpop.f32.mrb[0].mxu0
  %3790 = vmatprep.mubr.f32.mxu0 0.0
  %3791 = vmatmul.mubr.f32.gmra.mrb[0].mxu0 %v674
  %v3792 = vpop.f32.mrb[0].mxu0
  %v3793 = vadd.f32 0.0, %v3792
  %v3794 = vpop.f32.mrb[0].mxu0
  %3795 = vmatprep.mubr.f32.mxu0 0.0
  %3796 = vmatmul.mubr.f32.gmra.mrb[0].mxu0 %v677
  %v3797 = vpop.f32.mrb[0].mxu0
  %v3798 = vadd.f32 0.0, %v3797
  %v3799 = vpop.f32.mrb[0].mxu0
  %3800 = vdwg.mxu0
  %v3801 = vmul.f32 %v3718, %v321
  %v3802 = vmul.f32 %v3723, %v322
  %v3803 = vmul.f32 %v3728, %v323
  %v3804 = vmul.f32 %v3733, %v324
  %v3805 = vmul.f32 %v3738, %v325
  %v3806 = vmul.f32 %v3743, %v326
  %v3807 = vmul.f32 %v3748, %v327
  %v3808 = vmul.f32 %v3753, %v328
  %v3809 = vmul.f32 %v3758, %v329
  %v3810 = vmul.f32 %v3763, %v330
  %v3811 = vmul.f32 %v3768, %v331
  %v3812 = vmul.f32 %v3773, %v332
  %v3813 = vmul.f32 %v3778, %v333
  %v3814 = vmul.f32 %v3783, %v334
  %v3815 = vmul.f32 %v3788, %v335
  %v3816 = vmul.f32 %v3793, %v336
  %v3817 = vmul.f32 %v3798, %v337
  %3818 = vrot.lane.b32.xlu0 %v3602, 64
  %v3819 = vpop.permute.xlu0 %3818
  %3820 = vrot.lane.b32.xlu0 %v3607, 64
  %v3821 = vpop.permute.xlu0 %3820
  %3822 = vrot.lane.b32.xlu0 %v3612, 64
  %v3823 = vpop.permute.xlu0 %3822
  %3824 = vrot.lane.b32.xlu0 %v3617, 64
  %v3825 = vpop.permute.xlu0 %3824
  %3826 = vrot.lane.b32.xlu0 %v3622, 64
  %v3827 = vpop.permute.xlu0 %3826
  %v3832 = vsel %vm679, %v3827, 0
  %3834 = vmatprep.subr.mxu0 0.0
  %3835 = vmatpush1.msra.mxu0 %v3819
  %3836 = vmatprep.subr.mxu0 0.0
  %3837 = vmatpush1.msra.mxu0 %v3821
  %3838 = vmatprep.subr.mxu0 0.0
  %3839 = vmatpush1.msra.mxu0 %v3823
  %3840 = vmatprep.subr.mxu0 0.0
  %3841 = vmatpush1.msra.mxu0 %v3825
  %3842 = vmatprep.subr.mxu0 0.0
  %3843 = vmatpush1.msra.mxu0 %v3832
  %3844 = vmatprep.subr.mxu0 0.0
  %3845 = vmatpush1.msra.mxu0 0.0
  %3846 = vmatprep.subr.mxu0 0.0
  %3847 = vmatpush1.msra.mxu0 0.0
  %3848 = vmatprep.subr.mxu0 0.0
  %3849 = vmatpush1.msra.mxu0 0.0
  %3850 = vmatprep.subr.mxu0 0.0
  %3851 = vmatpush1.msra.mxu0 0.0
  %3852 = vmatprep.subr.mxu0 0.0
  %3853 = vmatpush1.msra.mxu0 0.0
  %3854 = vmatprep.subr.mxu0 0.0
  %3855 = vmatpush1.msra.mxu0 0.0
  %3856 = vmatprep.subr.mxu0 0.0
  %3857 = vmatpush1.msra.mxu0 0.0
  %3858 = vmatprep.subr.mxu0 0.0
  %3859 = vmatpush1.msra.mxu0 0.0
  %3860 = vmatprep.subr.mxu0 0.0
  %3861 = vmatpush1.msra.mxu0 0.0
  %3862 = vmatprep.subr.mxu0 0.0
  %3863 = vmatpush1.msra.mxu0 0.0
  %3864 = vmatprep.subr.mxu0 0.0
  %3865 = vmatpush1.msra.mxu0 0.0
  %3866 = vmatprep.subr.mxu0 0.0
  %3867 = vmatpush1.msra.mxu0 0.0
  %3868 = vmatprep.subr.mxu0 0.0
  %3869 = vmatpush1.msra.mxu0 0.0
  %3870 = vmatprep.subr.mxu0 0.0
  %3871 = vmatpush1.msra.mxu0 0.0
  %3872 = vmatprep.subr.mxu0 0.0
  %3873 = vmatpush1.msra.mxu0 0.0
  %3874 = vmatprep.subr.mxu0 0.0
  %3875 = vmatpush1.msra.mxu0 0.0
  %3876 = vmatprep.subr.mxu0 0.0
  %3877 = vmatpush1.msra.mxu0 0.0
  %3878 = vmatprep.subr.mxu0 0.0
  %3879 = vmatpush1.msra.mxu0 0.0
  %3880 = vmatprep.subr.mxu0 0.0
  %3881 = vmatpush1.msra.mxu0 0.0
  %3882 = vmatprep.subr.mxu0 0.0
  %3883 = vmatpush1.msra.mxu0 0.0
  %3884 = vmatprep.subr.mxu0 0.0
  %3885 = vmatpush1.msra.mxu0 0.0
  %3886 = vmatprep.subr.mxu0 0.0
  %3887 = vmatpush1.msra.mxu0 0.0
  %3888 = vmatprep.subr.mxu0 0.0
  %3889 = vmatpush1.msra.mxu0 0.0
  %3890 = vmatprep.subr.mxu0 0.0
  %3891 = vmatpush1.msra.mxu0 0.0
  %3892 = vmatprep.subr.mxu0 0.0
  %3893 = vmatpush1.msra.mxu0 0.0
  %3894 = vmatprep.subr.mxu0 0.0
  %3895 = vmatpush1.msra.mxu0 0.0
  %3896 = vmatprep.subr.mxu0 0.0
  %3897 = vmatpush1.msra.mxu0 0.0
  %3898 = vmatprep.mubr.f32.mxu0 0.0
  %3899 = vmatmul.mubr.f32.gmra.mrb[0].mxu0 %v629
  %v3900 = vpop.f32.mrb[0].mxu0
  %v3901 = vadd.f32 0.0, %v3900
  %v3902 = vpop.f32.mrb[0].mxu0
  %3903 = vmatprep.mubr.f32.mxu0 0.0
  %3904 = vmatmul.mubr.f32.gmra.mrb[0].mxu0 %v632
  %v3905 = vpop.f32.mrb[0].mxu0
  %v3906 = vadd.f32 0.0, %v3905
  %v3907 = vpop.f32.mrb[0].mxu0
  %3908 = vmatprep.mubr.f32.mxu0 0.0
  %3909 = vmatmul.mubr.f32.gmra.mrb[0].mxu0 %v635
  %v3910 = vpop.f32.mrb[0].mxu0
  %v3911 = vadd.f32 0.0, %v3910
  %v3912 = vpop.f32.mrb[0].mxu0
  %3913 = vmatprep.mubr.f32.mxu0 0.0
  %3914 = vmatmul.mubr.f32.gmra.mrb[0].mxu0 %v638
  %v3915 = vpop.f32.mrb[0].mxu0
  %v3916 = vadd.f32 0.0, %v3915
  %v3917 = vpop.f32.mrb[0].mxu0
  %3918 = vmatprep.mubr.f32.mxu0 0.0
  %3919 = vmatmul.mubr.f32.gmra.mrb[0].mxu0 %v641
  %v3920 = vpop.f32.mrb[0].mxu0
  %v3921 = vadd.f32 0.0, %v3920
  %v3922 = vpop.f32.mrb[0].mxu0
  %3923 = vmatprep.mubr.f32.mxu0 0.0
  %3924 = vmatmul.mubr.f32.gmra.mrb[0].mxu0 %v644
  %v3925 = vpop.f32.mrb[0].mxu0
  %v3926 = vadd.f32 0.0, %v3925
  %v3927 = vpop.f32.mrb[0].mxu0
  %3928 = vmatprep.mubr.f32.mxu0 0.0
  %3929 = vmatmul.mubr.f32.gmra.mrb[0].mxu0 %v647
  %v3930 = vpop.f32.mrb[0].mxu0
  %v3931 = vadd.f32 0.0, %v3930
  %v3932 = vpop.f32.mrb[0].mxu0
  %3933 = vmatprep.mubr.f32.mxu0 0.0
  %3934 = vmatmul.mubr.f32.gmra.mrb[0].mxu0 %v650
  %v3935 = vpop.f32.mrb[0].mxu0
  %v3936 = vadd.f32 0.0, %v3935
  %v3937 = vpop.f32.mrb[0].mxu0
  %3938 = vmatprep.mubr.f32.mxu0 0.0
  %3939 = vmatmul.mubr.f32.gmra.mrb[0].mxu0 %v653
  %v3940 = vpop.f32.mrb[0].mxu0
  %v3941 = vadd.f32 0.0, %v3940
  %v3942 = vpop.f32.mrb[0].mxu0
  %3943 = vmatprep.mubr.f32.mxu0 0.0
  %3944 = vmatmul.mubr.f32.gmra.mrb[0].mxu0 %v656
  %v3945 = vpop.f32.mrb[0].mxu0
  %v3946 = vadd.f32 0.0, %v3945
  %v3947 = vpop.f32.mrb[0].mxu0
  %3948 = vmatprep.mubr.f32.mxu0 0.0
  %3949 = vmatmul.mubr.f32.gmra.mrb[0].mxu0 %v659
  %v3950 = vpop.f32.mrb[0].mxu0
  %v3951 = vadd.f32 0.0, %v3950
  %v3952 = vpop.f32.mrb[0].mxu0
  %3953 = vmatprep.mubr.f32.mxu0 0.0
  %3954 = vmatmul.mubr.f32.gmra.mrb[0].mxu0 %v662
  %v3955 = vpop.f32.mrb[0].mxu0
  %v3956 = vadd.f32 0.0, %v3955
  %v3957 = vpop.f32.mrb[0].mxu0
  %3958 = vmatprep.mubr.f32.mxu0 0.0
  %3959 = vmatmul.mubr.f32.gmra.mrb[0].mxu0 %v665
  %v3960 = vpop.f32.mrb[0].mxu0
  %v3961 = vadd.f32 0.0, %v3960
  %v3962 = vpop.f32.mrb[0].mxu0
  %3963 = vmatprep.mubr.f32.mxu0 0.0
  %3964 = vmatmul.mubr.f32.gmra.mrb[0].mxu0 %v668
  %v3965 = vpop.f32.mrb[0].mxu0
  %v3966 = vadd.f32 0.0, %v3965
  %v3967 = vpop.f32.mrb[0].mxu0
  %3968 = vmatprep.mubr.f32.mxu0 0.0
  %3969 = vmatmul.mubr.f32.gmra.mrb[0].mxu0 %v671
  %v3970 = vpop.f32.mrb[0].mxu0
  %v3971 = vadd.f32 0.0, %v3970
  %v3972 = vpop.f32.mrb[0].mxu0
  %3973 = vmatprep.mubr.f32.mxu0 0.0
  %3974 = vmatmul.mubr.f32.gmra.mrb[0].mxu0 %v674
  %v3975 = vpop.f32.mrb[0].mxu0
  %v3976 = vadd.f32 0.0, %v3975
  %v3977 = vpop.f32.mrb[0].mxu0
  %3978 = vmatprep.mubr.f32.mxu0 0.0
  %3979 = vmatmul.mubr.f32.gmra.mrb[0].mxu0 %v677
  %v3980 = vpop.f32.mrb[0].mxu0
  %v3981 = vadd.f32 0.0, %v3980
  %v3982 = vpop.f32.mrb[0].mxu0
  %3983 = vdwg.mxu0
  %v3984 = vmul.f32 %v3901, %v321
  %v3985 = vmul.f32 %v3906, %v322
  %v3986 = vmul.f32 %v3911, %v323
  %v3987 = vmul.f32 %v3916, %v324
  %v3988 = vmul.f32 %v3921, %v325
  %v3989 = vmul.f32 %v3926, %v326
  %v3990 = vmul.f32 %v3931, %v327
  %v3991 = vmul.f32 %v3936, %v328
  %v3992 = vmul.f32 %v3941, %v329
  %v3993 = vmul.f32 %v3946, %v330
  %v3994 = vmul.f32 %v3951, %v331
  %v3995 = vmul.f32 %v3956, %v332
  %v3996 = vmul.f32 %v3961, %v333
  %v3997 = vmul.f32 %v3966, %v334
  %v3998 = vmul.f32 %v3971, %v335
  %v3999 = vmul.f32 %v3976, %v336
  %v4000 = vmul.f32 %v3981, %v337
  %v4002 = vsel %vm198, %v3625, 0
  %v4005 = vsel %vm198, %v3626, 0
  %v4008 = vsel %vm198, %v3627, 0
  %v4011 = vsel %vm198, %v3628, 0
  %v4014 = vsel %vm198, %v3629, 0
  %v4017 = vsel %vm198, %v3801, 0
  %v4020 = vsel %vm198, %v3802, 0
  %v4023 = vsel %vm198, %v3803, 0
  %v4026 = vsel %vm198, %v3804, 0
  %v4029 = vsel %vm198, %v3805, 0
  %v4032 = vsel %vm198, %v3806, 0
  %v4035 = vsel %vm198, %v3807, 0
  %v4038 = vsel %vm198, %v3808, 0
  %v4041 = vsel %vm198, %v3809, 0
  %v4044 = vsel %vm198, %v3810, 0
  %v4047 = vsel %vm198, %v3811, 0
  %v4050 = vsel %vm198, %v3812, 0
  %v4053 = vsel %vm198, %v3813, 0
  %v4056 = vsel %vm198, %v3814, 0
  %v4059 = vsel %vm198, %v3815, 0
  %v4062 = vsel %vm198, %v3816, 0
  %v4065 = vsel %vm198, %v3817, 0
  %4067 = vmatprep.subr.mxu0 0.0
  %4068 = vmatpush1.xpose.msra.mxu0 %v4017
  %4069 = vmatprep.subr.mxu0 0.0
  %4070 = vmatpush1.xpose.msra.mxu0 %v4020
  %4071 = vmatprep.subr.mxu0 0.0
  %4072 = vmatpush1.xpose.msra.mxu0 %v4023
  %4073 = vmatprep.subr.mxu0 0.0
  %4074 = vmatpush1.xpose.msra.mxu0 %v4026
  %4075 = vmatprep.subr.mxu0 0.0
  %4076 = vmatpush1.xpose.msra.mxu0 %v4029
  %4077 = vmatprep.subr.mxu0 0.0
  %4078 = vmatpush1.xpose.msra.mxu0 %v4032
  %4079 = vmatprep.subr.mxu0 0.0
  %4080 = vmatpush1.xpose.msra.mxu0 %v4035
  %4081 = vmatprep.subr.mxu0 0.0
  %4082 = vmatpush1.xpose.msra.mxu0 %v4038
  %4083 = vmatprep.subr.mxu0 0.0
  %4084 = vmatpush1.xpose.msra.mxu0 %v4041
  %4085 = vmatprep.subr.mxu0 0.0
  %4086 = vmatpush1.xpose.msra.mxu0 %v4044
  %4087 = vmatprep.subr.mxu0 0.0
  %4088 = vmatpush1.xpose.msra.mxu0 %v4047
  %4089 = vmatprep.subr.mxu0 0.0
  %4090 = vmatpush1.xpose.msra.mxu0 %v4050
  %4091 = vmatprep.subr.mxu0 0.0
  %4092 = vmatpush1.xpose.msra.mxu0 %v4053
  %4093 = vmatprep.subr.mxu0 0.0
  %4094 = vmatpush1.xpose.msra.mxu0 %v4056
  %4095 = vmatprep.subr.mxu0 0.0
  %4096 = vmatpush1.xpose.msra.mxu0 %v4059
  %4097 = vmatprep.subr.mxu0 0.0
  %4098 = vmatpush1.xpose.msra.mxu0 %v4062
  %4099 = vmatprep.subr.mxu0 0.0
  %4100 = vmatpush1.xpose.msra.mxu0 %v4065
  %4101 = vmatprep.subr.mxu0 0.0
  %4102 = vmatpush1.xpose.msra.mxu0 0.0
  %4103 = vmatprep.subr.mxu0 0.0
  %4104 = vmatpush1.xpose.msra.mxu0 0.0
  %4105 = vmatprep.subr.mxu0 0.0
  %4106 = vmatpush1.xpose.msra.mxu0 0.0
  %4107 = vmatprep.subr.mxu0 0.0
  %4108 = vmatpush1.xpose.msra.mxu0 0.0
  %4109 = vmatprep.subr.mxu0 0.0
  %4110 = vmatpush1.xpose.msra.mxu0 0.0
  %4111 = vmatprep.subr.mxu0 0.0
  %4112 = vmatpush1.xpose.msra.mxu0 0.0
  %4113 = vmatprep.subr.mxu0 0.0
  %4114 = vmatpush1.xpose.msra.mxu0 0.0
  %4115 = vmatprep.subr.mxu0 0.0
  %4116 = vmatpush1.xpose.msra.mxu0 0.0
  %4117 = vmatprep.subr.mxu0 0.0
  %4118 = vmatpush1.xpose.msra.mxu0 0.0
  %4119 = vmatprep.subr.mxu0 0.0
  %4120 = vmatpush1.xpose.msra.mxu0 0.0
  %4121 = vmatprep.subr.mxu0 0.0
  %4122 = vmatpush1.xpose.msra.mxu0 0.0
  %4123 = vmatprep.subr.mxu0 0.0
  %4124 = vmatpush1.xpose.msra.mxu0 0.0
  %4125 = vmatprep.subr.mxu0 0.0
  %4126 = vmatpush1.xpose.msra.mxu0 0.0
  %4127 = vmatprep.subr.mxu0 0.0
  %4128 = vmatpush1.xpose.msra.mxu0 0.0
  %4129 = vmatprep.subr.mxu0 0.0
  %4130 = vmatpush1.xpose.msra.mxu0 0.0
  %4131 = vmatprep.mubr.f32.mxu0 0.0
  %4132 = vmatmul.mubr.f32.gmra.mrb[0].mxu0 %v4002
  %v4133 = vpop.f32.mrb[0].mxu0
  %v4134 = vadd.f32 %v338, %v4133
  %v4135 = vpop.f32.mrb[0].mxu0
  %v4136 = vadd.f32 %v339, %v4135
  %4137 = vmatprep.mubr.f32.mxu0 0.0
  %4138 = vmatmul.mubr.f32.gmra.mrb[0].mxu0 %v4005
  %v4139 = vpop.f32.mrb[0].mxu0
  %v4140 = vadd.f32 %v340, %v4139
  %v4141 = vpop.f32.mrb[0].mxu0
  %v4142 = vadd.f32 %v341, %v4141
  %4143 = vmatprep.mubr.f32.mxu0 0.0
  %4144 = vmatmul.mubr.f32.gmra.mrb[0].mxu0 %v4008
  %v4145 = vpop.f32.mrb[0].mxu0
  %v4146 = vadd.f32 %v342, %v4145
  %v4147 = vpop.f32.mrb[0].mxu0
  %v4148 = vadd.f32 %v343, %v4147
  %4149 = vmatprep.mubr.f32.mxu0 0.0
  %4150 = vmatmul.mubr.f32.gmra.mrb[0].mxu0 %v4011
  %v4151 = vpop.f32.mrb[0].mxu0
  %v4152 = vadd.f32 %v344, %v4151
  %v4153 = vpop.f32.mrb[0].mxu0
  %v4154 = vadd.f32 %v345, %v4153
  %4155 = vmatprep.mubr.f32.mxu0 0.0
  %4156 = vmatmul.mubr.f32.gmra.mrb[0].mxu0 %v4014
  %v4157 = vpop.f32.mrb[0].mxu0
  %v4158 = vadd.f32 %v346, %v4157
  %v4159 = vpop.f32.mrb[0].mxu0
  %v4160 = vadd.f32 %v347, %v4159
  %4161 = vdwg.mxu0
  %v4162 = vsel %vm1193, %v4136, -inf
  %v4163 = vmax.f32 %v4134, %v4162
  %4164 = vmax.xlane.f32.xlu0 %v4163
  %v4165 = vpop.xlane.xlu0 %4164
  %v4166 = vsel %vm1193, %v4142, -inf
  %v4167 = vmax.f32 %v4140, %v4166
  %4168 = vmax.xlane.f32.xlu0 %v4167
  %v4169 = vpop.xlane.xlu0 %4168
  %v4170 = vsel %vm1193, %v4148, -inf
  %v4171 = vmax.f32 %v4146, %v4170
  %4172 = vmax.xlane.f32.xlu0 %v4171
  %v4173 = vpop.xlane.xlu0 %4172
  %v4174 = vsel %vm1193, %v4154, -inf
  %v4175 = vmax.f32 %v4152, %v4174
  %4176 = vmax.xlane.f32.xlu0 %v4175
  %v4177 = vpop.xlane.xlu0 %4176
  %v4178 = vsel %vm679, %v4158, -inf
  %v4179 = vsel %vm1211, %v4160, -inf
  %v4180 = vmax.f32 %v4178, %v4179
  %4181 = vmax.xlane.f32.xlu0 %v4180
  %v4182 = vpop.xlane.xlu0 %4181
  %v4183 = vsub.f32 %v4134, %v4165
  %v4184 = vsub.f32 %v4136, %v4165
  %v4185 = vsub.f32 %v4140, %v4169
  %v4186 = vsub.f32 %v4142, %v4169
  %v4187 = vsub.f32 %v4146, %v4173
  %v4188 = vsub.f32 %v4148, %v4173
  %v4189 = vsub.f32 %v4152, %v4177
  %v4190 = vsub.f32 %v4154, %v4177
  %v4191 = vsub.f32 %v4158, %v4182
  %v4192 = vsub.f32 %v4160, %v4182
  %v4193 = vmul.f32 %v4183, 1.442695
  %v4194 = vpow.pop %v4193
  %v4195 = vmul.f32 %v4184, 1.442695
  %v4196 = vpow.pop %v4195
  %v4197 = vmul.f32 %v4185, 1.442695
  %v4198 = vpow.pop %v4197
  %v4199 = vmul.f32 %v4186, 1.442695
  %v4200 = vpow.pop %v4199
  %v4201 = vmul.f32 %v4187, 1.442695
  %v4202 = vpow.pop %v4201
  %v4203 = vmul.f32 %v4188, 1.442695
  %v4204 = vpow.pop %v4203
  %v4205 = vmul.f32 %v4189, 1.442695
  %v4206 = vpow.pop %v4205
  %v4207 = vmul.f32 %v4190, 1.442695
  %v4208 = vpow.pop %v4207
  %v4209 = vmul.f32 %v4191, 1.442695
  %v4210 = vpow.pop %v4209
  %v4211 = vmul.f32 %v4192, 1.442695
  %v4212 = vpow.pop %v4211
  %v4214 = vsel %vm1193, %v4196, 0
  %v4217 = vsel %vm1193, %v4200, 0
  %v4220 = vsel %vm1193, %v4204, 0
  %v4223 = vsel %vm1193, %v4208, 0
  %v4226 = vsel %vm1193, %v4212, 0
  %4228 = vmatprep.subr.mxu0 %v359
  %4229 = vmatpush1.msra.mxu0 %v358
  %4230 = vmatprep.subr.mxu0 %v361
  %4231 = vmatpush1.msra.mxu0 %v360
  %4232 = vmatprep.subr.mxu0 %v363
  %4233 = vmatpush1.msra.mxu0 %v362
  %4234 = vmatprep.subr.mxu0 %v365
  %4235 = vmatpush1.msra.mxu0 %v364
  %4236 = vmatprep.subr.mxu0 %v367
  %4237 = vmatpush1.msra.mxu0 %v366
  %4238 = vmatprep.subr.mxu0 %v369
  %4239 = vmatpush1.msra.mxu0 %v368
  %4240 = vmatprep.subr.mxu0 %v371
  %4241 = vmatpush1.msra.mxu0 %v370
  %4242 = vmatprep.subr.mxu0 %v373
  %4243 = vmatpush1.msra.mxu0 %v372
  %4244 = vmatprep.subr.mxu0 %v375
  %4245 = vmatpush1.msra.mxu0 %v374
  %4246 = vmatprep.subr.mxu0 %v377
  %4247 = vmatpush1.msra.mxu0 %v376
  %4248 = vmatprep.subr.mxu0 %v379
  %4249 = vmatpush1.msra.mxu0 %v378
  %4250 = vmatprep.subr.mxu0 %v381
  %4251 = vmatpush1.msra.mxu0 %v380
  %4252 = vmatprep.subr.mxu0 %v383
  %4253 = vmatpush1.msra.mxu0 %v382
  %4254 = vmatprep.subr.mxu0 %v385
  %4255 = vmatpush1.msra.mxu0 %v384
  %4256 = vmatprep.subr.mxu0 %v387
  %4257 = vmatpush1.msra.mxu0 %v386
  %4258 = vmatprep.subr.mxu0 %v389
  %4259 = vmatpush1.msra.mxu0 %v388
  %4260 = vmatprep.subr.mxu0 %v391
  %4261 = vmatpush1.msra.mxu0 %v390
  %4262 = vmatprep.subr.mxu0 0.0
  %4263 = vmatpush1.msra.mxu0 0.0
  %4264 = vmatprep.subr.mxu0 0.0
  %4265 = vmatpush1.msra.mxu0 0.0
  %4266 = vmatprep.subr.mxu0 0.0
  %4267 = vmatpush1.msra.mxu0 0.0
  %4268 = vmatprep.subr.mxu0 0.0
  %4269 = vmatpush1.msra.mxu0 0.0
  %4270 = vmatprep.subr.mxu0 0.0
  %4271 = vmatpush1.msra.mxu0 0.0
  %4272 = vmatprep.subr.mxu0 0.0
  %4273 = vmatpush1.msra.mxu0 0.0
  %4274 = vmatprep.subr.mxu0 0.0
  %4275 = vmatpush1.msra.mxu0 0.0
  %4276 = vmatprep.subr.mxu0 0.0
  %4277 = vmatpush1.msra.mxu0 0.0
  %4278 = vmatprep.subr.mxu0 0.0
  %4279 = vmatpush1.msra.mxu0 0.0
  %4280 = vmatprep.subr.mxu0 0.0
  %4281 = vmatpush1.msra.mxu0 0.0
  %4282 = vmatprep.subr.mxu0 0.0
  %4283 = vmatpush1.msra.mxu0 0.0
  %4284 = vmatprep.subr.mxu0 0.0
  %4285 = vmatpush1.msra.mxu0 0.0
  %4286 = vmatprep.subr.mxu0 0.0
  %4287 = vmatpush1.msra.mxu0 0.0
  %4288 = vmatprep.subr.mxu0 0.0
  %4289 = vmatpush1.msra.mxu0 0.0
  %4290 = vmatprep.subr.mxu0 0.0
  %4291 = vmatpush1.msra.mxu0 0.0
  %4292 = vmatprep.mubr.f32.mxu0 %v4214
  %4293 = vmatmul.mubr.f32.gmra.mrb[0].mxu0 %v4194
  %v4294 = vpop.f32.mrb[0].mxu0
  %v4295 = vadd.f32 %v348, %v4294
  %v4296 = vpop.f32.mrb[0].mxu0
  %v4297 = vadd.f32 %v349, %v4296
  %4298 = vmatprep.mubr.f32.mxu0 %v4217
  %4299 = vmatmul.mubr.f32.gmra.mrb[0].mxu0 %v4198
  %v4300 = vpop.f32.mrb[0].mxu0
  %v4301 = vadd.f32 %v350, %v4300
  %v4302 = vpop.f32.mrb[0].mxu0
  %v4303 = vadd.f32 %v351, %v4302
  %4304 = vmatprep.mubr.f32.mxu0 %v4220
  %4305 = vmatmul.mubr.f32.gmra.mrb[0].mxu0 %v4202
  %v4306 = vpop.f32.mrb[0].mxu0
  %v4307 = vadd.f32 %v352, %v4306
  %v4308 = vpop.f32.mrb[0].mxu0
  %v4309 = vadd.f32 %v353, %v4308
  %4310 = vmatprep.mubr.f32.mxu0 %v4223
  %4311 = vmatmul.mubr.f32.gmra.mrb[0].mxu0 %v4206
  %v4312 = vpop.f32.mrb[0].mxu0
  %v4313 = vadd.f32 %v354, %v4312
  %v4314 = vpop.f32.mrb[0].mxu0
  %v4315 = vadd.f32 %v355, %v4314
  %4316 = vmatprep.mubr.f32.mxu0 %v4226
  %4317 = vmatmul.mubr.f32.gmra.mrb[0].mxu0 %v4210
  %v4318 = vpop.f32.mrb[0].mxu0
  %v4319 = vadd.f32 %v356, %v4318
  %v4320 = vpop.f32.mrb[0].mxu0
  %v4321 = vadd.f32 %v357, %v4320
  %4322 = vdwg.mxu0
  %v4323 = vrcp.pop %v4295
  %v4324 = vrcp.pop %v4297
  %v4325 = vrcp.pop %v4301
  %v4326 = vrcp.pop %v4303
  %v4327 = vrcp.pop %v4307
  %v4328 = vrcp.pop %v4309
  %v4329 = vrcp.pop %v4313
  %v4330 = vrcp.pop %v4315
  %v4331 = vrcp.pop %v4319
  %v4332 = vrcp.pop %v4321
  %v4333 = vmul.f32 %v4194, %v4323
  %v4334 = vmul.f32 %v4196, %v4324
  %v4335 = vmul.f32 %v4198, %v4325
  %v4336 = vmul.f32 %v4200, %v4326
  %v4337 = vmul.f32 %v4202, %v4327
  %v4338 = vmul.f32 %v4204, %v4328
  %v4339 = vmul.f32 %v4206, %v4329
  %v4340 = vmul.f32 %v4208, %v4330
  %v4341 = vmul.f32 %v4210, %v4331
  %v4342 = vmul.f32 %v4212, %v4332
  %v4344 = vsel %vm1193, %v4334, 0
  %v4347 = vsel %vm1193, %v4336, 0
  %v4350 = vsel %vm1193, %v4338, 0
  %v4353 = vsel %vm1193, %v4340, 0
  %v4356 = vsel %vm1193, %v4342, 0
  %4358 = vmatprep.subr.mxu0 0.0
  %4359 = vmatpush1.msra.mxu0 %v3984
  %4360 = vmatprep.subr.mxu0 0.0
  %4361 = vmatpush1.msra.mxu0 %v3985
  %4362 = vmatprep.subr.mxu0 0.0
  %4363 = vmatpush1.msra.mxu0 %v3986
  %4364 = vmatprep.subr.mxu0 0.0
  %4365 = vmatpush1.msra.mxu0 %v3987
  %4366 = vmatprep.subr.mxu0 0.0
  %4367 = vmatpush1.msra.mxu0 %v3988
  %4368 = vmatprep.subr.mxu0 0.0
  %4369 = vmatpush1.msra.mxu0 %v3989
  %4370 = vmatprep.subr.mxu0 0.0
  %4371 = vmatpush1.msra.mxu0 %v3990
  %4372 = vmatprep.subr.mxu0 0.0
  %4373 = vmatpush1.msra.mxu0 %v3991
  %4374 = vmatprep.subr.mxu0 0.0
  %4375 = vmatpush1.msra.mxu0 %v3992
  %4376 = vmatprep.subr.mxu0 0.0
  %4377 = vmatpush1.msra.mxu0 %v3993
  %4378 = vmatprep.subr.mxu0 0.0
  %4379 = vmatpush1.msra.mxu0 %v3994
  %4380 = vmatprep.subr.mxu0 0.0
  %4381 = vmatpush1.msra.mxu0 %v3995
  %4382 = vmatprep.subr.mxu0 0.0
  %4383 = vmatpush1.msra.mxu0 %v3996
  %4384 = vmatprep.subr.mxu0 0.0
  %4385 = vmatpush1.msra.mxu0 %v3997
  %4386 = vmatprep.subr.mxu0 0.0
  %4387 = vmatpush1.msra.mxu0 %v3998
  %4388 = vmatprep.subr.mxu0 0.0
  %4389 = vmatpush1.msra.mxu0 %v3999
  %4390 = vmatprep.subr.mxu0 0.0
  %4391 = vmatpush1.msra.mxu0 %v4000
  %4392 = vmatprep.subr.mxu0 0.0
  %4393 = vmatpush1.msra.mxu0 0.0
  %4394 = vmatprep.subr.mxu0 0.0
  %4395 = vmatpush1.msra.mxu0 0.0
  %4396 = vmatprep.subr.mxu0 0.0
  %4397 = vmatpush1.msra.mxu0 0.0
  %4398 = vmatprep.subr.mxu0 0.0
  %4399 = vmatpush1.msra.mxu0 0.0
  %4400 = vmatprep.subr.mxu0 0.0
  %4401 = vmatpush1.msra.mxu0 0.0
  %4402 = vmatprep.subr.mxu0 0.0
  %4403 = vmatpush1.msra.mxu0 0.0
  %4404 = vmatprep.subr.mxu0 0.0
  %4405 = vmatpush1.msra.mxu0 0.0
  %4406 = vmatprep.subr.mxu0 0.0
  %4407 = vmatpush1.msra.mxu0 0.0
  %4408 = vmatprep.subr.mxu0 0.0
  %4409 = vmatpush1.msra.mxu0 0.0
  %4410 = vmatprep.subr.mxu0 0.0
  %4411 = vmatpush1.msra.mxu0 0.0
  %4412 = vmatprep.subr.mxu0 0.0
  %4413 = vmatpush1.msra.mxu0 0.0
  %4414 = vmatprep.subr.mxu0 0.0
  %4415 = vmatpush1.msra.mxu0 0.0
  %4416 = vmatprep.subr.mxu0 0.0
  %4417 = vmatpush1.msra.mxu0 0.0
  %4418 = vmatprep.subr.mxu0 0.0
  %4419 = vmatpush1.msra.mxu0 0.0
  %4420 = vmatprep.subr.mxu0 0.0
  %4421 = vmatpush1.msra.mxu0 0.0
  %4422 = vmatprep.mubr.f32.mxu0 %v4344
  %4423 = vmatmul.mubr.f32.gmra.mrb[0].mxu0 %v4333
  %v4424 = vpop.f32.mrb[0].mxu0
  %v4425 = vadd.f32 0.0, %v4424
  %v4426 = vpop.f32.mrb[0].mxu0
  %4427 = vmatprep.mubr.f32.mxu0 %v4347
  %4428 = vmatmul.mubr.f32.gmra.mrb[0].mxu0 %v4335
  %v4429 = vpop.f32.mrb[0].mxu0
  %v4430 = vadd.f32 0.0, %v4429
  %v4431 = vpop.f32.mrb[0].mxu0
  %4432 = vmatprep.mubr.f32.mxu0 %v4350
  %4433 = vmatmul.mubr.f32.gmra.mrb[0].mxu0 %v4337
  %v4434 = vpop.f32.mrb[0].mxu0
  %v4435 = vadd.f32 0.0, %v4434
  %v4436 = vpop.f32.mrb[0].mxu0
  %4437 = vmatprep.mubr.f32.mxu0 %v4353
  %4438 = vmatmul.mubr.f32.gmra.mrb[0].mxu0 %v4339
  %v4439 = vpop.f32.mrb[0].mxu0
  %v4440 = vadd.f32 0.0, %v4439
  %v4441 = vpop.f32.mrb[0].mxu0
  %4442 = vmatprep.mubr.f32.mxu0 %v4356
  %4443 = vmatmul.mubr.f32.gmra.mrb[0].mxu0 %v4341
  %v4444 = vpop.f32.mrb[0].mxu0
  %v4445 = vadd.f32 0.0, %v4444
  %v4446 = vpop.f32.mrb[0].mxu0
  %4447 = vdwg.mxu0
  %s4448 = scalar_lea.vmem %s14, 96
  %v4449 = vld [vmem:[%s4448] sm:$0xff]
  %v4450 = vld [vmem:[%s4448 + $0x8] sm:$0xff]
  %v4451 = vld [vmem:[%s4448 + $0x10] sm:$0xff]
  %v4452 = vld [vmem:[%s4448 + $0x18] sm:$0xff]
  %s4453 = scalar_lea.vmem %s15, 3
  %v4454 = vld [vmem:[%s4453] sm:$0x1]
  %v4456 = vlaneseq
  %v4457 = vshrl.u32 %v4456, 7
  %v4458 = vsub.s32 0, %v4457
  %v4459 = vrot.slane %v4454, %v4458
  %v4462 = vsel %vm198, %v4425, 0
  %v4465 = vsel %vm198, %v4430, 0
  %v4468 = vsel %vm198, %v4435, 0
  %v4471 = vsel %vm198, %v4440, 0
  %v4474 = vsel %vm198, %v4445, 0
  %4476 = vmatprep.subr.mxu0 0.0
  %4477 = vmatpush1.msra.mxu0 %v4449
  %4478 = vmatprep.subr.mxu0 0.0
  %4479 = vmatpush1.msra.mxu0 %v4450
  %4480 = vmatprep.subr.mxu0 0.0
  %4481 = vmatpush1.msra.mxu0 %v4451
  %4482 = vmatprep.subr.mxu0 0.0
  %4483 = vmatpush1.msra.mxu0 %v4452
  %4484 = vmatprep.subr.mxu0 0.0
  %4485 = vmatpush1.msra.mxu0 0.0
  %4486 = vmatprep.subr.mxu0 0.0
  %4487 = vmatpush1.msra.mxu0 0.0
  %4488 = vmatprep.subr.mxu0 0.0
  %4489 = vmatpush1.msra.mxu0 0.0
  %4490 = vmatprep.subr.mxu0 0.0
  %4491 = vmatpush1.msra.mxu0 0.0
  %4492 = vmatprep.subr.mxu0 0.0
  %4493 = vmatpush1.msra.mxu0 0.0
  %4494 = vmatprep.subr.mxu0 0.0
  %4495 = vmatpush1.msra.mxu0 0.0
  %4496 = vmatprep.subr.mxu0 0.0
  %4497 = vmatpush1.msra.mxu0 0.0
  %4498 = vmatprep.subr.mxu0 0.0
  %4499 = vmatpush1.msra.mxu0 0.0
  %4500 = vmatprep.subr.mxu0 0.0
  %4501 = vmatpush1.msra.mxu0 0.0
  %4502 = vmatprep.subr.mxu0 0.0
  %4503 = vmatpush1.msra.mxu0 0.0
  %4504 = vmatprep.subr.mxu0 0.0
  %4505 = vmatpush1.msra.mxu0 0.0
  %4506 = vmatprep.subr.mxu0 0.0
  %4507 = vmatpush1.msra.mxu0 0.0
  %4508 = vmatprep.subr.mxu0 0.0
  %4509 = vmatpush1.msra.mxu0 0.0
  %4510 = vmatprep.subr.mxu0 0.0
  %4511 = vmatpush1.msra.mxu0 0.0
  %4512 = vmatprep.subr.mxu0 0.0
  %4513 = vmatpush1.msra.mxu0 0.0
  %4514 = vmatprep.subr.mxu0 0.0
  %4515 = vmatpush1.msra.mxu0 0.0
  %4516 = vmatprep.subr.mxu0 0.0
  %4517 = vmatpush1.msra.mxu0 0.0
  %4518 = vmatprep.subr.mxu0 0.0
  %4519 = vmatpush1.msra.mxu0 0.0
  %4520 = vmatprep.subr.mxu0 0.0
  %4521 = vmatpush1.msra.mxu0 0.0
  %4522 = vmatprep.subr.mxu0 0.0
  %4523 = vmatpush1.msra.mxu0 0.0
  %4524 = vmatprep.subr.mxu0 0.0
  %4525 = vmatpush1.msra.mxu0 0.0
  %4526 = vmatprep.subr.mxu0 0.0
  %4527 = vmatpush1.msra.mxu0 0.0
  %4528 = vmatprep.subr.mxu0 0.0
  %4529 = vmatpush1.msra.mxu0 0.0
  %4530 = vmatprep.subr.mxu0 0.0
  %4531 = vmatpush1.msra.mxu0 0.0
  %4532 = vmatprep.subr.mxu0 0.0
  %4533 = vmatpush1.msra.mxu0 0.0
  %4534 = vmatprep.subr.mxu0 0.0
  %4535 = vmatpush1.msra.mxu0 0.0
  %4536 = vmatprep.subr.mxu0 0.0
  %4537 = vmatpush1.msra.mxu0 0.0
  %4538 = vmatprep.subr.mxu0 0.0
  %4539 = vmatpush1.msra.mxu0 0.0
  %4540 = vmatprep.mubr.f32.mxu0 0.0
  %4541 = vmatmul.mubr.f32.gmra.mrb[0].mxu0 %v4462
  %v4542 = vpop.f32.mrb[0].mxu0
  %v4543 = vadd.f32 %v4459, %v4542
  %v4544 = vpop.f32.mrb[0].mxu0
  %4545 = vmatprep.mubr.f32.mxu0 0.0
  %4546 = vmatmul.mubr.f32.gmra.mrb[0].mxu0 %v4465
  %v4547 = vpop.f32.mrb[0].mxu0
  %v4548 = vadd.f32 %v4459, %v4547
  %v4549 = vpop.f32.mrb[0].mxu0
  %4550 = vmatprep.mubr.f32.mxu0 0.0
  %4551 = vmatmul.mubr.f32.gmra.mrb[0].mxu0 %v4468
  %v4552 = vpop.f32.mrb[0].mxu0
  %v4553 = vadd.f32 %v4459, %v4552
  %v4554 = vpop.f32.mrb[0].mxu0
  %4555 = vmatprep.mubr.f32.mxu0 0.0
  %4556 = vmatmul.mubr.f32.gmra.mrb[0].mxu0 %v4471
  %v4557 = vpop.f32.mrb[0].mxu0
  %v4558 = vadd.f32 %v4459, %v4557
  %v4559 = vpop.f32.mrb[0].mxu0
  %4560 = vmatprep.mubr.f32.mxu0 0.0
  %4561 = vmatmul.mubr.f32.gmra.mrb[0].mxu0 %v4474
  %v4562 = vpop.f32.mrb[0].mxu0
  %v4563 = vadd.f32 %v4459, %v4562
  %v4564 = vpop.f32.mrb[0].mxu0
  %4565 = vdwg.mxu0
  %v4566 = vadd.f32 %v3401, %v4543
  %v4567 = vadd.f32 %v3402, %v4548
  %v4568 = vadd.f32 %v3403, %v4553
  %v4569 = vadd.f32 %v3404, %v4558
  %v4570 = vadd.f32 %v3405, %v4563
  %s4571 = scalar_lea.vmem %s16, 3
  %v4572 = vld [vmem:[%s4571] sm:$0x1]
  %s4573 = scalar_lea.vmem %s17, 3
  %v4574 = vld [vmem:[%s4573] sm:$0x1]
  %v4575 = vsel %vm198, %v4566, 0.0
  %4576 = vadd.xlane.f32.xlu0 %v4575
  %v4577 = vpop.xlane.xlu0 %4576
  %v4578 = vsel %vm198, %v4567, 0.0
  %4579 = vadd.xlane.f32.xlu0 %v4578
  %v4580 = vpop.xlane.xlu0 %4579
  %v4581 = vsel %vm198, %v4568, 0.0
  %4582 = vadd.xlane.f32.xlu0 %v4581
  %v4583 = vpop.xlane.xlu0 %4582
  %v4584 = vsel %vm198, %v4569, 0.0
  %4585 = vadd.xlane.f32.xlu0 %v4584
  %v4586 = vpop.xlane.xlu0 %4585
  %v4587 = vsel %vm408, %v4570, 0.0
  %4588 = vadd.xlane.f32.xlu0 %v4587
  %v4589 = vpop.xlane.xlu0 %4588
  %v4590 = vmul.f32 %v4577, %v412
  %v4591 = vmul.f32 %v4580, %v412
  %v4592 = vmul.f32 %v4583, %v412
  %v4593 = vmul.f32 %v4586, %v412
  %v4594 = vmul.f32 %v4589, %v412
  %v4595 = vsub.f32 %v4566, %v4590
  %v4596 = vsub.f32 %v4567, %v4591
  %v4597 = vsub.f32 %v4568, %v4592
  %v4598 = vsub.f32 %v4569, %v4593
  %v4599 = vsub.f32 %v4570, %v4594
  %v4600 = vmul.f32 %v4595, %v4595
  %v4601 = vmul.f32 %v4596, %v4596
  %v4602 = vmul.f32 %v4597, %v4597
  %v4603 = vmul.f32 %v4598, %v4598
  %v4604 = vmul.f32 %v4599, %v4599
  %v4605 = vsel %vm198, %v4600, 0.0
  %4606 = vadd.xlane.f32.xlu0 %v4605
  %v4607 = vpop.xlane.xlu0 %4606
  %v4608 = vsel %vm198, %v4601, 0.0
  %4609 = vadd.xlane.f32.xlu0 %v4608
  %v4610 = vpop.xlane.xlu0 %4609
  %v4611 = vsel %vm198, %v4602, 0.0
  %4612 = vadd.xlane.f32.xlu0 %v4611
  %v4613 = vpop.xlane.xlu0 %4612
  %v4614 = vsel %vm198, %v4603, 0.0
  %4615 = vadd.xlane.f32.xlu0 %v4614
  %v4616 = vpop.xlane.xlu0 %4615
  %v4617 = vsel %vm408, %v4604, 0.0
  %4618 = vadd.xlane.f32.xlu0 %v4617
  %v4619 = vpop.xlane.xlu0 %4618
  %v4620 = vmul.f32 %v4607, %v412
  %v4621 = vmul.f32 %v4610, %v412
  %v4622 = vmul.f32 %v4613, %v412
  %v4623 = vmul.f32 %v4616, %v412
  %v4624 = vmul.f32 %v4619, %v412
  %v4625 = vadd.f32 %v4620, 1e-06
  %v4626 = vadd.f32 %v4621, 1e-06
  %v4627 = vadd.f32 %v4622, 1e-06
  %v4628 = vadd.f32 %v4623, 1e-06
  %v4629 = vadd.f32 %v4624, 1e-06
  %v4630 = vrsqrt.pop %v4625
  %v4631 = vrsqrt.pop %v4626
  %v4632 = vrsqrt.pop %v4627
  %v4633 = vrsqrt.pop %v4628
  %v4634 = vrsqrt.pop %v4629
  %v4635 = vmul.f32 %v4595, %v4630
  %v4636 = vmul.f32 %v4596, %v4631
  %v4637 = vmul.f32 %v4597, %v4632
  %v4638 = vmul.f32 %v4598, %v4633
  %v4639 = vmul.f32 %v4599, %v4634
  %v4641 = vlaneseq
  %v4642 = vshrl.u32 %v4641, 7
  %v4643 = vsub.s32 0, %v4642
  %v4644 = vrot.slane %v4572, %v4643
  %v4646 = vmul.f32 %v4635, %v4644
  %v4647 = vmul.f32 %v4636, %v4644
  %v4648 = vmul.f32 %v4637, %v4644
  %v4649 = vmul.f32 %v4638, %v4644
  %v4650 = vmul.f32 %v4639, %v4644
  %v4652 = vlaneseq
  %v4653 = vshrl.u32 %v4652, 7
  %v4654 = vsub.s32 0, %v4653
  %v4655 = vrot.slane %v4574, %v4654
  %v4657 = vadd.f32 %v4646, %v4655
  %v4658 = vadd.f32 %v4647, %v4655
  %v4659 = vadd.f32 %v4648, %v4655
  %v4660 = vadd.f32 %v4649, %v4655
  %v4661 = vadd.f32 %v4650, %v4655
  %s4662 = scalar_lea.vmem %s18, 96
  %v4663 = vld [vmem:[%s4662] sm:$0xff]
  %v4664 = vld [vmem:[%s4662 + $0x8] sm:$0xff]
  %v4665 = vld [vmem:[%s4662 + $0x10] sm:$0xff]
  %v4666 = vld [vmem:[%s4662 + $0x18] sm:$0xff]
  %s4667 = scalar_lea.vmem %s19, 3
  %v4668 = vld [vmem:[%s4667] sm:$0x1]
  %v4670 = vlaneseq
  %v4671 = vshrl.u32 %v4670, 7
  %v4672 = vsub.s32 0, %v4671
  %v4673 = vrot.slane %v4668, %v4672
  %v4676 = vsel %vm198, %v4657, 0
  %v4679 = vsel %vm198, %v4658, 0
  %v4682 = vsel %vm198, %v4659, 0
  %v4685 = vsel %vm198, %v4660, 0
  %v4688 = vsel %vm198, %v4661, 0
  %4690 = vmatprep.subr.mxu0 0.0
  %4691 = vmatpush1.msra.mxu0 %v4663
  %4692 = vmatprep.subr.mxu0 0.0
  %4693 = vmatpush1.msra.mxu0 %v4664
  %4694 = vmatprep.subr.mxu0 0.0
  %4695 = vmatpush1.msra.mxu0 %v4665
  %4696 = vmatprep.subr.mxu0 0.0
  %4697 = vmatpush1.msra.mxu0 %v4666
  %4698 = vmatprep.subr.mxu0 0.0
  %4699 = vmatpush1.msra.mxu0 0.0
  %4700 = vmatprep.subr.mxu0 0.0
  %4701 = vmatpush1.msra.mxu0 0.0
  %4702 = vmatprep.subr.mxu0 0.0
  %4703 = vmatpush1.msra.mxu0 0.0
  %4704 = vmatprep.subr.mxu0 0.0
  %4705 = vmatpush1.msra.mxu0 0.0
  %4706 = vmatprep.subr.mxu0 0.0
  %4707 = vmatpush1.msra.mxu0 0.0
  %4708 = vmatprep.subr.mxu0 0.0
  %4709 = vmatpush1.msra.mxu0 0.0
  %4710 = vmatprep.subr.mxu0 0.0
  %4711 = vmatpush1.msra.mxu0 0.0
  %4712 = vmatprep.subr.mxu0 0.0
  %4713 = vmatpush1.msra.mxu0 0.0
  %4714 = vmatprep.subr.mxu0 0.0
  %4715 = vmatpush1.msra.mxu0 0.0
  %4716 = vmatprep.subr.mxu0 0.0
  %4717 = vmatpush1.msra.mxu0 0.0
  %4718 = vmatprep.subr.mxu0 0.0
  %4719 = vmatpush1.msra.mxu0 0.0
  %4720 = vmatprep.subr.mxu0 0.0
  %4721 = vmatpush1.msra.mxu0 0.0
  %4722 = vmatprep.subr.mxu0 0.0
  %4723 = vmatpush1.msra.mxu0 0.0
  %4724 = vmatprep.subr.mxu0 0.0
  %4725 = vmatpush1.msra.mxu0 0.0
  %4726 = vmatprep.subr.mxu0 0.0
  %4727 = vmatpush1.msra.mxu0 0.0
  %4728 = vmatprep.subr.mxu0 0.0
  %4729 = vmatpush1.msra.mxu0 0.0
  %4730 = vmatprep.subr.mxu0 0.0
  %4731 = vmatpush1.msra.mxu0 0.0
  %4732 = vmatprep.subr.mxu0 0.0
  %4733 = vmatpush1.msra.mxu0 0.0
  %4734 = vmatprep.subr.mxu0 0.0
  %4735 = vmatpush1.msra.mxu0 0.0
  %4736 = vmatprep.subr.mxu0 0.0
  %4737 = vmatpush1.msra.mxu0 0.0
  %4738 = vmatprep.subr.mxu0 0.0
  %4739 = vmatpush1.msra.mxu0 0.0
  %4740 = vmatprep.subr.mxu0 0.0
  %4741 = vmatpush1.msra.mxu0 0.0
  %4742 = vmatprep.subr.mxu0 0.0
  %4743 = vmatpush1.msra.mxu0 0.0
  %4744 = vmatprep.subr.mxu0 0.0
  %4745 = vmatpush1.msra.mxu0 0.0
  %4746 = vmatprep.subr.mxu0 0.0
  %4747 = vmatpush1.msra.mxu0 0.0
  %4748 = vmatprep.subr.mxu0 0.0
  %4749 = vmatpush1.msra.mxu0 0.0
  %4750 = vmatprep.subr.mxu0 0.0
  %4751 = vmatpush1.msra.mxu0 0.0
  %4752 = vmatprep.subr.mxu0 0.0
  %4753 = vmatpush1.msra.mxu0 0.0
  %4754 = vmatprep.mubr.f32.mxu0 0.0
  %4755 = vmatmul.mubr.f32.gmra.mrb[0].mxu0 %v4676
  %v4756 = vpop.f32.mrb[0].mxu0
  %v4757 = vadd.f32 %v4673, %v4756
  %v4758 = vpop.f32.mrb[0].mxu0
  %4759 = vmatprep.mubr.f32.mxu0 0.0
  %4760 = vmatmul.mubr.f32.gmra.mrb[0].mxu0 %v4679
  %v4761 = vpop.f32.mrb[0].mxu0
  %v4762 = vadd.f32 %v4673, %v4761
  %v4763 = vpop.f32.mrb[0].mxu0
  %4764 = vmatprep.mubr.f32.mxu0 0.0
  %4765 = vmatmul.mubr.f32.gmra.mrb[0].mxu0 %v4682
  %v4766 = vpop.f32.mrb[0].mxu0
  %v4767 = vadd.f32 %v4673, %v4766
  %v4768 = vpop.f32.mrb[0].mxu0
  %4769 = vmatprep.mubr.f32.mxu0 0.0
  %4770 = vmatmul.mubr.f32.gmra.mrb[0].mxu0 %v4685
  %v4771 = vpop.f32.mrb[0].mxu0
  %v4772 = vadd.f32 %v4673, %v4771
  %v4773 = vpop.f32.mrb[0].mxu0
  %4774 = vmatprep.mubr.f32.mxu0 0.0
  %4775 = vmatmul.mubr.f32.gmra.mrb[0].mxu0 %v4688
  %v4776 = vpop.f32.mrb[0].mxu0
  %v4777 = vadd.f32 %v4673, %v4776
  %v4778 = vpop.f32.mrb[0].mxu0
  %4779 = vdwg.mxu0
  %v4780 = vmul.f32 %v4757, 0.5
  %v4781 = vmul.f32 %v4762, 0.5
  %v4782 = vmul.f32 %v4767, 0.5
  %v4783 = vmul.f32 %v4772, 0.5
  %v4784 = vmul.f32 %v4777, 0.5
  %v4785 = vmul.f32 %v4757, %v1818
  %v4786 = vmul.f32 %v4762, %v1818
  %v4787 = vmul.f32 %v4767, %v1818
  %v4788 = vmul.f32 %v4772, %v1818
  %v4789 = vmul.f32 %v4777, %v1818
  %v4790 = verf.f32.pop %v4785
  %v4791 = verf.f32.pop %v4786
  %v4792 = verf.f32.pop %v4787
  %v4793 = verf.f32.pop %v4788
  %v4794 = verf.f32.pop %v4789
  %v4795 = vadd.f32 %v4790, 1.0
  %v4796 = vadd.f32 %v4791, 1.0
  %v4797 = vadd.f32 %v4792, 1.0
  %v4798 = vadd.f32 %v4793, 1.0
  %v4799 = vadd.f32 %v4794, 1.0
  %v4800 = vmul.f32 %v4780, %v4795
  %v4801 = vmul.f32 %v4781, %v4796
  %v4802 = vmul.f32 %v4782, %v4797
  %v4803 = vmul.f32 %v4783, %v4798
  %v4804 = vmul.f32 %v4784, %v4799
  %s4805 = scalar_lea.vmem %s20, 192
  %v4806 = vld [vmem:[%s4805] sm:$0xff]
  %v4807 = vld [vmem:[%s4805 + $0x8] sm:$0xff]
  %v4808 = vld [vmem:[%s4805 + $0x10] sm:$0xff]
  %v4809 = vld [vmem:[%s4805 + $0x18] sm:$0xff]
  %v4810 = vld [vmem:[%s4805 + $0x20] sm:$0xff]
  %v4811 = vld [vmem:[%s4805 + $0x28] sm:$0xff]
  %v4812 = vld [vmem:[%s4805 + $0x30] sm:$0xff]
  %v4813 = vld [vmem:[%s4805 + $0x38] sm:$0xff]
  %s4814 = scalar_lea.vmem %s21, 3
  %v4815 = vld [vmem:[%s4814] sm:$0x1]
  %v4817 = vlaneseq
  %v4818 = vshrl.u32 %v4817, 7
  %v4819 = vsub.s32 0, %v4818
  %v4820 = vrot.slane %v4815, %v4819
  %v4823 = vsel %vm1856, %v4800, 0
  %v4826 = vsel %vm1856, %v4801, 0
  %v4829 = vsel %vm1856, %v4802, 0
  %v4832 = vsel %vm1856, %v4803, 0
  %v4835 = vsel %vm1856, %v4804, 0
  %4837 = vmatprep.subr.mxu0 0.0
  %4838 = vmatpush1.msra.mxu0 %v4806
  %4839 = vmatprep.subr.mxu0 0.0
  %4840 = vmatpush1.msra.mxu0 %v4807
  %4841 = vmatprep.subr.mxu0 0.0
  %4842 = vmatpush1.msra.mxu0 %v4808
  %4843 = vmatprep.subr.mxu0 0.0
  %4844 = vmatpush1.msra.mxu0 %v4809
  %4845 = vmatprep.subr.mxu0 0.0
  %4846 = vmatpush1.msra.mxu0 %v4810
  %4847 = vmatprep.subr.mxu0 0.0
  %4848 = vmatpush1.msra.mxu0 %v4811
  %4849 = vmatprep.subr.mxu0 0.0
  %4850 = vmatpush1.msra.mxu0 %v4812
  %4851 = vmatprep.subr.mxu0 0.0
  %4852 = vmatpush1.msra.mxu0 %v4813
  %4853 = vmatprep.subr.mxu0 0.0
  %4854 = vmatpush1.msra.mxu0 0.0
  %4855 = vmatprep.subr.mxu0 0.0
  %4856 = vmatpush1.msra.mxu0 0.0
  %4857 = vmatprep.subr.mxu0 0.0
  %4858 = vmatpush1.msra.mxu0 0.0
  %4859 = vmatprep.subr.mxu0 0.0
  %4860 = vmatpush1.msra.mxu0 0.0
  %4861 = vmatprep.subr.mxu0 0.0
  %4862 = vmatpush1.msra.mxu0 0.0
  %4863 = vmatprep.subr.mxu0 0.0
  %4864 = vmatpush1.msra.mxu0 0.0
  %4865 = vmatprep.subr.mxu0 0.0
  %4866 = vmatpush1.msra.mxu0 0.0
  %4867 = vmatprep.subr.mxu0 0.0
  %4868 = vmatpush1.msra.mxu0 0.0
  %4869 = vmatprep.subr.mxu0 0.0
  %4870 = vmatpush1.msra.mxu0 0.0
  %4871 = vmatprep.subr.mxu0 0.0
  %4872 = vmatpush1.msra.mxu0 0.0
  %4873 = vmatprep.subr.mxu0 0.0
  %4874 = vmatpush1.msra.mxu0 0.0
  %4875 = vmatprep.subr.mxu0 0.0
  %4876 = vmatpush1.msra.mxu0 0.0
  %4877 = vmatprep.subr.mxu0 0.0
  %4878 = vmatpush1.msra.mxu0 0.0
  %4879 = vmatprep.subr.mxu0 0.0
  %4880 = vmatpush1.msra.mxu0 0.0
  %4881 = vmatprep.subr.mxu0 0.0
  %4882 = vmatpush1.msra.mxu0 0.0
  %4883 = vmatprep.subr.mxu0 0.0
  %4884 = vmatpush1.msra.mxu0 0.0
  %4885 = vmatprep.subr.mxu0 0.0
  %4886 = vmatpush1.msra.mxu0 0.0
  %4887 = vmatprep.subr.mxu0 0.0
  %4888 = vmatpush1.msra.mxu0 0.0
  %4889 = vmatprep.subr.mxu0 0.0
  %4890 = vmatpush1.msra.mxu0 0.0
  %4891 = vmatprep.subr.mxu0 0.0
  %4892 = vmatpush1.msra.mxu0 0.0
  %4893 = vmatprep.subr.mxu0 0.0
  %4894 = vmatpush1.msra.mxu0 0.0
  %4895 = vmatprep.subr.mxu0 0.0
  %4896 = vmatpush1.msra.mxu0 0.0
  %4897 = vmatprep.subr.mxu0 0.0
  %4898 = vmatpush1.msra.mxu0 0.0
  %4899 = vmatprep.subr.mxu0 0.0
  %4900 = vmatpush1.msra.mxu0 0.0
  %4901 = vmatprep.mubr.f32.mxu0 0.0
  %4902 = vmatmul.mubr.f32.gmra.mrb[0].mxu0 %v4823
  %v4903 = vpop.f32.mrb[0].mxu0
  %v4904 = vadd.f32 %v4820, %v4903
  %v4905 = vpop.f32.mrb[0].mxu0
  %4906 = vmatprep.mubr.f32.mxu0 0.0
  %4907 = vmatmul.mubr.f32.gmra.mrb[0].mxu0 %v4826
  %v4908 = vpop.f32.mrb[0].mxu0
  %v4909 = vadd.f32 %v4820, %v4908
  %v4910 = vpop.f32.mrb[0].mxu0
  %4911 = vmatprep.mubr.f32.mxu0 0.0
  %4912 = vmatmul.mubr.f32.gmra.mrb[0].mxu0 %v4829
  %v4913 = vpop.f32.mrb[0].mxu0
  %v4914 = vadd.f32 %v4820, %v4913
  %v4915 = vpop.f32.mrb[0].mxu0
  %4916 = vmatprep.mubr.f32.mxu0 0.0
  %4917 = vmatmul.mubr.f32.gmra.mrb[0].mxu0 %v4832
  %v4918 = vpop.f32.mrb[0].mxu0
  %v4919 = vadd.f32 %v4820, %v4918
  %v4920 = vpop.f32.mrb[0].mxu0
  %4921 = vmatprep.mubr.f32.mxu0 0.0
  %4922 = vmatmul.mubr.f32.gmra.mrb[0].mxu0 %v4835
  %v4923 = vpop.f32.mrb[0].mxu0
  %v4924 = vadd.f32 %v4820, %v4923
  %v4925 = vpop.f32.mrb[0].mxu0
  %4926 = vdwg.mxu0
  %v4927 = vadd.f32 %v4566, %v4904
  %v4928 = vadd.f32 %v4567, %v4909
  %v4929 = vadd.f32 %v4568, %v4914
  %v4930 = vadd.f32 %v4569, %v4919
  %v4931 = vadd.f32 %v4570, %v4924
  %s4932 = scalar_lea.vmem %s10, 2
  %v4933 = vld [vmem:[%s4932] sm:$0x1]
  %s4934 = scalar_lea.vmem %s11, 2
  %v4935 = vld [vmem:[%s4934] sm:$0x1]
  %v4937 = vlaneseq
  %v4938 = vshrl.u32 %v4937, 7
  %v4939 = vsub.s32 0, %v4938
  %v4940 = vrot.slane %v4933, %v4939
  %v4942 = vmul.f32 %v3480, %v4940
  %v4943 = vmul.f32 %v3481, %v4940
  %v4944 = vmul.f32 %v3482, %v4940
  %v4945 = vmul.f32 %v3483, %v4940
  %v4946 = vmul.f32 %v3484, %v4940
  %v4948 = vlaneseq
  %v4949 = vshrl.u32 %v4948, 7
  %v4950 = vsub.s32 0, %v4949
  %v4951 = vrot.slane %v4935, %v4950
  %v4953 = vadd.f32 %v4942, %v4951
  %v4954 = vadd.f32 %v4943, %v4951
  %v4955 = vadd.f32 %v4944, %v4951
  %v4956 = vadd.f32 %v4945, %v4951
  %v4957 = vadd.f32 %v4946, %v4951
  %s4958 = scalar_lea.vmem %s12, 64
  %v4959 = vld [vmem:[%s4958] sm:$0xff]
  %v4960 = vld [vmem:[%s4958 + $0x8] sm:$0xff]
  %v4961 = vld [vmem:[%s4958 + $0x10] sm:$0xff]
  %v4962 = vld [vmem:[%s4958 + $0x18] sm:$0xff]
  %s4963 = scalar_lea.vmem %s13, 2
  %v4964 = vld [vmem:[%s4963] sm:$0x1]
  %v4966 = vlaneseq
  %v4967 = vshrl.u32 %v4966, 7
  %v4968 = vsub.s32 0, %v4967
  %v4969 = vrot.slane %v4964, %v4968
  %v4972 = vsel %vm198, %v4953, 0
  %v4975 = vsel %vm198, %v4954, 0
  %v4978 = vsel %vm198, %v4955, 0
  %v4981 = vsel %vm198, %v4956, 0
  %v4984 = vsel %vm198, %v4957, 0
  %4986 = vmatprep.subr.mxu0 0.0
  %4987 = vmatpush1.msra.mxu0 %v4959
  %4988 = vmatprep.subr.mxu0 0.0
  %4989 = vmatpush1.msra.mxu0 %v4960
  %4990 = vmatprep.subr.mxu0 0.0
  %4991 = vmatpush1.msra.mxu0 %v4961
  %4992 = vmatprep.subr.mxu0 0.0
  %4993 = vmatpush1.msra.mxu0 %v4962
  %4994 = vmatprep.subr.mxu0 0.0
  %4995 = vmatpush1.msra.mxu0 0.0
  %4996 = vmatprep.subr.mxu0 0.0
  %4997 = vmatpush1.msra.mxu0 0.0
  %4998 = vmatprep.subr.mxu0 0.0
  %4999 = vmatpush1.msra.mxu0 0.0
  %5000 = vmatprep.subr.mxu0 0.0
  %5001 = vmatpush1.msra.mxu0 0.0
  %5002 = vmatprep.subr.mxu0 0.0
  %5003 = vmatpush1.msra.mxu0 0.0
  %5004 = vmatprep.subr.mxu0 0.0
  %5005 = vmatpush1.msra.mxu0 0.0
  %5006 = vmatprep.subr.mxu0 0.0
  %5007 = vmatpush1.msra.mxu0 0.0
  %5008 = vmatprep.subr.mxu0 0.0
  %5009 = vmatpush1.msra.mxu0 0.0
  %5010 = vmatprep.subr.mxu0 0.0
  %5011 = vmatpush1.msra.mxu0 0.0
  %5012 = vmatprep.subr.mxu0 0.0
  %5013 = vmatpush1.msra.mxu0 0.0
  %5014 = vmatprep.subr.mxu0 0.0
  %5015 = vmatpush1.msra.mxu0 0.0
  %5016 = vmatprep.subr.mxu0 0.0
  %5017 = vmatpush1.msra.mxu0 0.0
  %5018 = vmatprep.subr.mxu0 0.0
  %5019 = vmatpush1.msra.mxu0 0.0
  %5020 = vmatprep.subr.mxu0 0.0
  %5021 = vmatpush1.msra.mxu0 0.0
  %5022 = vmatprep.subr.mxu0 0.0
  %5023 = vmatpush1.msra.mxu0 0.0
  %5024 = vmatprep.subr.mxu0 0.0
  %5025 = vmatpush1.msra.mxu0 0.0
  %5026 = vmatprep.subr.mxu0 0.0
  %5027 = vmatpush1.msra.mxu0 0.0
  %5028 = vmatprep.subr.mxu0 0.0
  %5029 = vmatpush1.msra.mxu0 0.0
  %5030 = vmatprep.subr.mxu0 0.0
  %5031 = vmatpush1.msra.mxu0 0.0
  %5032 = vmatprep.subr.mxu0 0.0
  %5033 = vmatpush1.msra.mxu0 0.0
  %5034 = vmatprep.subr.mxu0 0.0
  %5035 = vmatpush1.msra.mxu0 0.0
  %5036 = vmatprep.subr.mxu0 0.0
  %5037 = vmatpush1.msra.mxu0 0.0
  %5038 = vmatprep.subr.mxu0 0.0
  %5039 = vmatpush1.msra.mxu0 0.0
  %5040 = vmatprep.subr.mxu0 0.0
  %5041 = vmatpush1.msra.mxu0 0.0
  %5042 = vmatprep.subr.mxu0 0.0
  %5043 = vmatpush1.msra.mxu0 0.0
  %5044 = vmatprep.subr.mxu0 0.0
  %5045 = vmatpush1.msra.mxu0 0.0
  %5046 = vmatprep.subr.mxu0 0.0
  %5047 = vmatpush1.msra.mxu0 0.0
  %5048 = vmatprep.subr.mxu0 0.0
  %5049 = vmatpush1.msra.mxu0 0.0
  %5050 = vmatprep.mubr.f32.mxu0 0.0
  %5051 = vmatmul.mubr.f32.gmra.mrb[0].mxu0 %v4972
  %v5052 = vpop.f32.mrb[0].mxu0
  %v5053 = vadd.f32 %v4969, %v5052
  %v5054 = vpop.f32.mrb[0].mxu0
  %5055 = vmatprep.mubr.f32.mxu0 0.0
  %5056 = vmatmul.mubr.f32.gmra.mrb[0].mxu0 %v4975
  %v5057 = vpop.f32.mrb[0].mxu0
  %v5058 = vadd.f32 %v4969, %v5057
  %v5059 = vpop.f32.mrb[0].mxu0
  %5060 = vmatprep.mubr.f32.mxu0 0.0
  %5061 = vmatmul.mubr.f32.gmra.mrb[0].mxu0 %v4978
  %v5062 = vpop.f32.mrb[0].mxu0
  %v5063 = vadd.f32 %v4969, %v5062
  %v5064 = vpop.f32.mrb[0].mxu0
  %5065 = vmatprep.mubr.f32.mxu0 0.0
  %5066 = vmatmul.mubr.f32.gmra.mrb[0].mxu0 %v4981
  %v5067 = vpop.f32.mrb[0].mxu0
  %v5068 = vadd.f32 %v4969, %v5067
  %v5069 = vpop.f32.mrb[0].mxu0
  %5070 = vmatprep.mubr.f32.mxu0 0.0
  %5071 = vmatmul.mubr.f32.gmra.mrb[0].mxu0 %v4984
  %v5072 = vpop.f32.mrb[0].mxu0
  %v5073 = vadd.f32 %v4969, %v5072
  %v5074 = vpop.f32.mrb[0].mxu0
  %5075 = vdwg.mxu0
  %v5076 = vmul.f32 %v5053, 0.35355338
  %v5077 = vmul.f32 %v5058, 0.35355338
  %v5078 = vmul.f32 %v5063, 0.35355338
  %v5079 = vmul.f32 %v5068, 0.35355338
  %v5080 = vmul.f32 %v5073, 0.35355338
  %5086 = vrot.lane.b32.xlu0 %v5053, 96
  %v5087 = vpop.permute.xlu0 %5086
  %5088 = vrot.lane.b32.xlu0 %v5058, 96
  %v5089 = vpop.permute.xlu0 %5088
  %5090 = vrot.lane.b32.xlu0 %v5063, 96
  %v5091 = vpop.permute.xlu0 %5090
  %5092 = vrot.lane.b32.xlu0 %v5068, 96
  %v5093 = vpop.permute.xlu0 %5092
  %5094 = vrot.lane.b32.xlu0 %v5073, 96
  %v5095 = vpop.permute.xlu0 %5094
  %v5100 = vsel %vm679, %v5095, 0
  %5102 = vmatprep.subr.mxu0 0.0
  %5103 = vmatpush1.msra.mxu0 %v5087
  %5104 = vmatprep.subr.mxu0 0.0
  %5105 = vmatpush1.msra.mxu0 %v5089
  %5106 = vmatprep.subr.mxu0 0.0
  %5107 = vmatpush1.msra.mxu0 %v5091
  %5108 = vmatprep.subr.mxu0 0.0
  %5109 = vmatpush1.msra.mxu0 %v5093
  %5110 = vmatprep.subr.mxu0 0.0
  %5111 = vmatpush1.msra.mxu0 %v5100
  %5112 = vmatprep.subr.mxu0 0.0
  %5113 = vmatpush1.msra.mxu0 0.0
  %5114 = vmatprep.subr.mxu0 0.0
  %5115 = vmatpush1.msra.mxu0 0.0
  %5116 = vmatprep.subr.mxu0 0.0
  %5117 = vmatpush1.msra.mxu0 0.0
  %5118 = vmatprep.subr.mxu0 0.0
  %5119 = vmatpush1.msra.mxu0 0.0
  %5120 = vmatprep.subr.mxu0 0.0
  %5121 = vmatpush1.msra.mxu0 0.0
  %5122 = vmatprep.subr.mxu0 0.0
  %5123 = vmatpush1.msra.mxu0 0.0
  %5124 = vmatprep.subr.mxu0 0.0
  %5125 = vmatpush1.msra.mxu0 0.0
  %5126 = vmatprep.subr.mxu0 0.0
  %5127 = vmatpush1.msra.mxu0 0.0
  %5128 = vmatprep.subr.mxu0 0.0
  %5129 = vmatpush1.msra.mxu0 0.0
  %5130 = vmatprep.subr.mxu0 0.0
  %5131 = vmatpush1.msra.mxu0 0.0
  %5132 = vmatprep.subr.mxu0 0.0
  %5133 = vmatpush1.msra.mxu0 0.0
  %5134 = vmatprep.subr.mxu0 0.0
  %5135 = vmatpush1.msra.mxu0 0.0
  %5136 = vmatprep.subr.mxu0 0.0
  %5137 = vmatpush1.msra.mxu0 0.0
  %5138 = vmatprep.subr.mxu0 0.0
  %5139 = vmatpush1.msra.mxu0 0.0
  %5140 = vmatprep.subr.mxu0 0.0
  %5141 = vmatpush1.msra.mxu0 0.0
  %5142 = vmatprep.subr.mxu0 0.0
  %5143 = vmatpush1.msra.mxu0 0.0
  %5144 = vmatprep.subr.mxu0 0.0
  %5145 = vmatpush1.msra.mxu0 0.0
  %5146 = vmatprep.subr.mxu0 0.0
  %5147 = vmatpush1.msra.mxu0 0.0
  %5148 = vmatprep.subr.mxu0 0.0
  %5149 = vmatpush1.msra.mxu0 0.0
  %5150 = vmatprep.subr.mxu0 0.0
  %5151 = vmatpush1.msra.mxu0 0.0
  %5152 = vmatprep.subr.mxu0 0.0
  %5153 = vmatpush1.msra.mxu0 0.0
  %5154 = vmatprep.subr.mxu0 0.0
  %5155 = vmatpush1.msra.mxu0 0.0
  %5156 = vmatprep.subr.mxu0 0.0
  %5157 = vmatpush1.msra.mxu0 0.0
  %5158 = vmatprep.subr.mxu0 0.0
  %5159 = vmatpush1.msra.mxu0 0.0
  %5160 = vmatprep.subr.mxu0 0.0
  %5161 = vmatpush1.msra.mxu0 0.0
  %5162 = vmatprep.subr.mxu0 0.0
  %5163 = vmatpush1.msra.mxu0 0.0
  %5164 = vmatprep.subr.mxu0 0.0
  %5165 = vmatpush1.msra.mxu0 0.0
  %5166 = vmatprep.mubr.f32.mxu0 0.0
  %5167 = vmatmul.mubr.f32.gmra.mrb[0].mxu0 %v629
  %v5168 = vpop.f32.mrb[0].mxu0
  %v5169 = vadd.f32 0.0, %v5168
  %v5170 = vpop.f32.mrb[0].mxu0
  %5171 = vmatprep.mubr.f32.mxu0 0.0
  %5172 = vmatmul.mubr.f32.gmra.mrb[0].mxu0 %v632
  %v5173 = vpop.f32.mrb[0].mxu0
  %v5174 = vadd.f32 0.0, %v5173
  %v5175 = vpop.f32.mrb[0].mxu0
  %5176 = vmatprep.mubr.f32.mxu0 0.0
  %5177 = vmatmul.mubr.f32.gmra.mrb[0].mxu0 %v635
  %v5178 = vpop.f32.mrb[0].mxu0
  %v5179 = vadd.f32 0.0, %v5178
  %v5180 = vpop.f32.mrb[0].mxu0
  %5181 = vmatprep.mubr.f32.mxu0 0.0
  %5182 = vmatmul.mubr.f32.gmra.mrb[0].mxu0 %v638
  %v5183 = vpop.f32.mrb[0].mxu0
  %v5184 = vadd.f32 0.0, %v5183
  %v5185 = vpop.f32.mrb[0].mxu0
  %5186 = vmatprep.mubr.f32.mxu0 0.0
  %5187 = vmatmul.mubr.f32.gmra.mrb[0].mxu0 %v641
  %v5188 = vpop.f32.mrb[0].mxu0
  %v5189 = vadd.f32 0.0, %v5188
  %v5190 = vpop.f32.mrb[0].mxu0
  %5191 = vmatprep.mubr.f32.mxu0 0.0
  %5192 = vmatmul.mubr.f32.gmra.mrb[0].mxu0 %v644
  %v5193 = vpop.f32.mrb[0].mxu0
  %v5194 = vadd.f32 0.0, %v5193
  %v5195 = vpop.f32.mrb[0].mxu0
  %5196 = vmatprep.mubr.f32.mxu0 0.0
  %5197 = vmatmul.mubr.f32.gmra.mrb[0].mxu0 %v647
  %v5198 = vpop.f32.mrb[0].mxu0
  %v5199 = vadd.f32 0.0, %v5198
  %v5200 = vpop.f32.mrb[0].mxu0
  %5201 = vmatprep.mubr.f32.mxu0 0.0
  %5202 = vmatmul.mubr.f32.gmra.mrb[0].mxu0 %v650
  %v5203 = vpop.f32.mrb[0].mxu0
  %v5204 = vadd.f32 0.0, %v5203
  %v5205 = vpop.f32.mrb[0].mxu0
  %5206 = vmatprep.mubr.f32.mxu0 0.0
  %5207 = vmatmul.mubr.f32.gmra.mrb[0].mxu0 %v653
  %v5208 = vpop.f32.mrb[0].mxu0
  %v5209 = vadd.f32 0.0, %v5208
  %v5210 = vpop.f32.mrb[0].mxu0
  %5211 = vmatprep.mubr.f32.mxu0 0.0
  %5212 = vmatmul.mubr.f32.gmra.mrb[0].mxu0 %v656
  %v5213 = vpop.f32.mrb[0].mxu0
  %v5214 = vadd.f32 0.0, %v5213
  %v5215 = vpop.f32.mrb[0].mxu0
  %5216 = vmatprep.mubr.f32.mxu0 0.0
  %5217 = vmatmul.mubr.f32.gmra.mrb[0].mxu0 %v659
  %v5218 = vpop.f32.mrb[0].mxu0
  %v5219 = vadd.f32 0.0, %v5218
  %v5220 = vpop.f32.mrb[0].mxu0
  %5221 = vmatprep.mubr.f32.mxu0 0.0
  %5222 = vmatmul.mubr.f32.gmra.mrb[0].mxu0 %v662
  %v5223 = vpop.f32.mrb[0].mxu0
  %v5224 = vadd.f32 0.0, %v5223
  %v5225 = vpop.f32.mrb[0].mxu0
  %5226 = vmatprep.mubr.f32.mxu0 0.0
  %5227 = vmatmul.mubr.f32.gmra.mrb[0].mxu0 %v665
  %v5228 = vpop.f32.mrb[0].mxu0
  %v5229 = vadd.f32 0.0, %v5228
  %v5230 = vpop.f32.mrb[0].mxu0
  %5231 = vmatprep.mubr.f32.mxu0 0.0
  %5232 = vmatmul.mubr.f32.gmra.mrb[0].mxu0 %v668
  %v5233 = vpop.f32.mrb[0].mxu0
  %v5234 = vadd.f32 0.0, %v5233
  %v5235 = vpop.f32.mrb[0].mxu0
  %5236 = vmatprep.mubr.f32.mxu0 0.0
  %5237 = vmatmul.mubr.f32.gmra.mrb[0].mxu0 %v671
  %v5238 = vpop.f32.mrb[0].mxu0
  %v5239 = vadd.f32 0.0, %v5238
  %v5240 = vpop.f32.mrb[0].mxu0
  %5241 = vmatprep.mubr.f32.mxu0 0.0
  %5242 = vmatmul.mubr.f32.gmra.mrb[0].mxu0 %v674
  %v5243 = vpop.f32.mrb[0].mxu0
  %v5244 = vadd.f32 0.0, %v5243
  %v5245 = vpop.f32.mrb[0].mxu0
  %5246 = vmatprep.mubr.f32.mxu0 0.0
  %5247 = vmatmul.mubr.f32.gmra.mrb[0].mxu0 %v677
  %v5248 = vpop.f32.mrb[0].mxu0
  %v5249 = vadd.f32 0.0, %v5248
  %v5250 = vpop.f32.mrb[0].mxu0
  %5251 = vdwg.mxu0
  %v5252 = vmul.f32 %v5169, %v321
  %v5253 = vmul.f32 %v5174, %v322
  %v5254 = vmul.f32 %v5179, %v323
  %v5255 = vmul.f32 %v5184, %v324
  %v5256 = vmul.f32 %v5189, %v325
  %v5257 = vmul.f32 %v5194, %v326
  %v5258 = vmul.f32 %v5199, %v327
  %v5259 = vmul.f32 %v5204, %v328
  %v5260 = vmul.f32 %v5209, %v329
  %v5261 = vmul.f32 %v5214, %v330
  %v5262 = vmul.f32 %v5219, %v331
  %v5263 = vmul.f32 %v5224, %v332
  %v5264 = vmul.f32 %v5229, %v333
  %v5265 = vmul.f32 %v5234, %v334
  %v5266 = vmul.f32 %v5239, %v335
  %v5267 = vmul.f32 %v5244, %v336
  %v5268 = vmul.f32 %v5249, %v337
  %5269 = vrot.lane.b32.xlu0 %v5053, 64
  %v5270 = vpop.permute.xlu0 %5269
  %5271 = vrot.lane.b32.xlu0 %v5058, 64
  %v5272 = vpop.permute.xlu0 %5271
  %5273 = vrot.lane.b32.xlu0 %v5063, 64
  %v5274 = vpop.permute.xlu0 %5273
  %5275 = vrot.lane.b32.xlu0 %v5068, 64
  %v5276 = vpop.permute.xlu0 %5275
  %5277 = vrot.lane.b32.xlu0 %v5073, 64
  %v5278 = vpop.permute.xlu0 %5277
  %v5283 = vsel %vm679, %v5278, 0
  %5285 = vmatprep.subr.mxu0 0.0
  %5286 = vmatpush1.msra.mxu0 %v5270
  %5287 = vmatprep.subr.mxu0 0.0
  %5288 = vmatpush1.msra.mxu0 %v5272
  %5289 = vmatprep.subr.mxu0 0.0
  %5290 = vmatpush1.msra.mxu0 %v5274
  %5291 = vmatprep.subr.mxu0 0.0
  %5292 = vmatpush1.msra.mxu0 %v5276
  %5293 = vmatprep.subr.mxu0 0.0
  %5294 = vmatpush1.msra.mxu0 %v5283
  %5295 = vmatprep.subr.mxu0 0.0
  %5296 = vmatpush1.msra.mxu0 0.0
  %5297 = vmatprep.subr.mxu0 0.0
  %5298 = vmatpush1.msra.mxu0 0.0
  %5299 = vmatprep.subr.mxu0 0.0
  %5300 = vmatpush1.msra.mxu0 0.0
  %5301 = vmatprep.subr.mxu0 0.0
  %5302 = vmatpush1.msra.mxu0 0.0
  %5303 = vmatprep.subr.mxu0 0.0
  %5304 = vmatpush1.msra.mxu0 0.0
  %5305 = vmatprep.subr.mxu0 0.0
  %5306 = vmatpush1.msra.mxu0 0.0
  %5307 = vmatprep.subr.mxu0 0.0
  %5308 = vmatpush1.msra.mxu0 0.0
  %5309 = vmatprep.subr.mxu0 0.0
  %5310 = vmatpush1.msra.mxu0 0.0
  %5311 = vmatprep.subr.mxu0 0.0
  %5312 = vmatpush1.msra.mxu0 0.0
  %5313 = vmatprep.subr.mxu0 0.0
  %5314 = vmatpush1.msra.mxu0 0.0
  %5315 = vmatprep.subr.mxu0 0.0
  %5316 = vmatpush1.msra.mxu0 0.0
  %5317 = vmatprep.subr.mxu0 0.0
  %5318 = vmatpush1.msra.mxu0 0.0
  %5319 = vmatprep.subr.mxu0 0.0
  %5320 = vmatpush1.msra.mxu0 0.0
  %5321 = vmatprep.subr.mxu0 0.0
  %5322 = vmatpush1.msra.mxu0 0.0
  %5323 = vmatprep.subr.mxu0 0.0
  %5324 = vmatpush1.msra.mxu0 0.0
  %5325 = vmatprep.subr.mxu0 0.0
  %5326 = vmatpush1.msra.mxu0 0.0
  %5327 = vmatprep.subr.mxu0 0.0
  %5328 = vmatpush1.msra.mxu0 0.0
  %5329 = vmatprep.subr.mxu0 0.0
  %5330 = vmatpush1.msra.mxu0 0.0
  %5331 = vmatprep.subr.mxu0 0.0
  %5332 = vmatpush1.msra.mxu0 0.0
  %5333 = vmatprep.subr.mxu0 0.0
  %5334 = vmatpush1.msra.mxu0 0.0
  %5335 = vmatprep.subr.mxu0 0.0
  %5336 = vmatpush1.msra.mxu0 0.0
  %5337 = vmatprep.subr.mxu0 0.0
  %5338 = vmatpush1.msra.mxu0 0.0
  %5339 = vmatprep.subr.mxu0 0.0
  %5340 = vmatpush1.msra.mxu0 0.0
  %5341 = vmatprep.subr.mxu0 0.0
  %5342 = vmatpush1.msra.mxu0 0.0
  %5343 = vmatprep.subr.mxu0 0.0
  %5344 = vmatpush1.msra.mxu0 0.0
  %5345 = vmatprep.subr.mxu0 0.0
  %5346 = vmatpush1.msra.mxu0 0.0
  %5347 = vmatprep.subr.mxu0 0.0
  %5348 = vmatpush1.msra.mxu0 0.0
  %5349 = vmatprep.mubr.f32.mxu0 0.0
  %5350 = vmatmul.mubr.f32.gmra.mrb[0].mxu0 %v629
  %v5351 = vpop.f32.mrb[0].mxu0
  %v5352 = vadd.f32 0.0, %v5351
  %v5353 = vpop.f32.mrb[0].mxu0
  %5354 = vmatprep.mubr.f32.mxu0 0.0
  %5355 = vmatmul.mubr.f32.gmra.mrb[0].mxu0 %v632
  %v5356 = vpop.f32.mrb[0].mxu0
  %v5357 = vadd.f32 0.0, %v5356
  %v5358 = vpop.f32.mrb[0].mxu0
  %5359 = vmatprep.mubr.f32.mxu0 0.0
  %5360 = vmatmul.mubr.f32.gmra.mrb[0].mxu0 %v635
  %v5361 = vpop.f32.mrb[0].mxu0
  %v5362 = vadd.f32 0.0, %v5361
  %v5363 = vpop.f32.mrb[0].mxu0
  %5364 = vmatprep.mubr.f32.mxu0 0.0
  %5365 = vmatmul.mubr.f32.gmra.mrb[0].mxu0 %v638
  %v5366 = vpop.f32.mrb[0].mxu0
  %v5367 = vadd.f32 0.0, %v5366
  %v5368 = vpop.f32.mrb[0].mxu0
  %5369 = vmatprep.mubr.f32.mxu0 0.0
  %5370 = vmatmul.mubr.f32.gmra.mrb[0].mxu0 %v641
  %v5371 = vpop.f32.mrb[0].mxu0
  %v5372 = vadd.f32 0.0, %v5371
  %v5373 = vpop.f32.mrb[0].mxu0
  %5374 = vmatprep.mubr.f32.mxu0 0.0
  %5375 = vmatmul.mubr.f32.gmra.mrb[0].mxu0 %v644
  %v5376 = vpop.f32.mrb[0].mxu0
  %v5377 = vadd.f32 0.0, %v5376
  %v5378 = vpop.f32.mrb[0].mxu0
  %5379 = vmatprep.mubr.f32.mxu0 0.0
  %5380 = vmatmul.mubr.f32.gmra.mrb[0].mxu0 %v647
  %v5381 = vpop.f32.mrb[0].mxu0
  %v5382 = vadd.f32 0.0, %v5381
  %v5383 = vpop.f32.mrb[0].mxu0
  %5384 = vmatprep.mubr.f32.mxu0 0.0
  %5385 = vmatmul.mubr.f32.gmra.mrb[0].mxu0 %v650
  %v5386 = vpop.f32.mrb[0].mxu0
  %v5387 = vadd.f32 0.0, %v5386
  %v5388 = vpop.f32.mrb[0].mxu0
  %5389 = vmatprep.mubr.f32.mxu0 0.0
  %5390 = vmatmul.mubr.f32.gmra.mrb[0].mxu0 %v653
  %v5391 = vpop.f32.mrb[0].mxu0
  %v5392 = vadd.f32 0.0, %v5391
  %v5393 = vpop.f32.mrb[0].mxu0
  %5394 = vmatprep.mubr.f32.mxu0 0.0
  %5395 = vmatmul.mubr.f32.gmra.mrb[0].mxu0 %v656
  %v5396 = vpop.f32.mrb[0].mxu0
  %v5397 = vadd.f32 0.0, %v5396
  %v5398 = vpop.f32.mrb[0].mxu0
  %5399 = vmatprep.mubr.f32.mxu0 0.0
  %5400 = vmatmul.mubr.f32.gmra.mrb[0].mxu0 %v659
  %v5401 = vpop.f32.mrb[0].mxu0
  %v5402 = vadd.f32 0.0, %v5401
  %v5403 = vpop.f32.mrb[0].mxu0
  %5404 = vmatprep.mubr.f32.mxu0 0.0
  %5405 = vmatmul.mubr.f32.gmra.mrb[0].mxu0 %v662
  %v5406 = vpop.f32.mrb[0].mxu0
  %v5407 = vadd.f32 0.0, %v5406
  %v5408 = vpop.f32.mrb[0].mxu0
  %5409 = vmatprep.mubr.f32.mxu0 0.0
  %5410 = vmatmul.mubr.f32.gmra.mrb[0].mxu0 %v665
  %v5411 = vpop.f32.mrb[0].mxu0
  %v5412 = vadd.f32 0.0, %v5411
  %v5413 = vpop.f32.mrb[0].mxu0
  %5414 = vmatprep.mubr.f32.mxu0 0.0
  %5415 = vmatmul.mubr.f32.gmra.mrb[0].mxu0 %v668
  %v5416 = vpop.f32.mrb[0].mxu0
  %v5417 = vadd.f32 0.0, %v5416
  %v5418 = vpop.f32.mrb[0].mxu0
  %5419 = vmatprep.mubr.f32.mxu0 0.0
  %5420 = vmatmul.mubr.f32.gmra.mrb[0].mxu0 %v671
  %v5421 = vpop.f32.mrb[0].mxu0
  %v5422 = vadd.f32 0.0, %v5421
  %v5423 = vpop.f32.mrb[0].mxu0
  %5424 = vmatprep.mubr.f32.mxu0 0.0
  %5425 = vmatmul.mubr.f32.gmra.mrb[0].mxu0 %v674
  %v5426 = vpop.f32.mrb[0].mxu0
  %v5427 = vadd.f32 0.0, %v5426
  %v5428 = vpop.f32.mrb[0].mxu0
  %5429 = vmatprep.mubr.f32.mxu0 0.0
  %5430 = vmatmul.mubr.f32.gmra.mrb[0].mxu0 %v677
  %v5431 = vpop.f32.mrb[0].mxu0
  %v5432 = vadd.f32 0.0, %v5431
  %v5433 = vpop.f32.mrb[0].mxu0
  %5434 = vdwg.mxu0
  %v5435 = vmul.f32 %v5352, %v321
  %v5436 = vmul.f32 %v5357, %v322
  %v5437 = vmul.f32 %v5362, %v323
  %v5438 = vmul.f32 %v5367, %v324
  %v5439 = vmul.f32 %v5372, %v325
  %v5440 = vmul.f32 %v5377, %v326
  %v5441 = vmul.f32 %v5382, %v327
  %v5442 = vmul.f32 %v5387, %v328
  %v5443 = vmul.f32 %v5392, %v329
  %v5444 = vmul.f32 %v5397, %v330
  %v5445 = vmul.f32 %v5402, %v331
  %v5446 = vmul.f32 %v5407, %v332
  %v5447 = vmul.f32 %v5412, %v333
  %v5448 = vmul.f32 %v5417, %v334
  %v5449 = vmul.f32 %v5422, %v335
  %v5450 = vmul.f32 %v5427, %v336
  %v5451 = vmul.f32 %v5432, %v337
  %v5453 = vsel %vm198, %v5076, 0
  %v5456 = vsel %vm198, %v5077, 0
  %v5459 = vsel %vm198, %v5078, 0
  %v5462 = vsel %vm198, %v5079, 0
  %v5465 = vsel %vm198, %v5080, 0
  %v5468 = vsel %vm198, %v5252, 0
  %v5471 = vsel %vm198, %v5253, 0
  %v5474 = vsel %vm198, %v5254, 0
  %v5477 = vsel %vm198, %v5255, 0
  %v5480 = vsel %vm198, %v5256, 0
  %v5483 = vsel %vm198, %v5257, 0
  %v5486 = vsel %vm198, %v5258, 0
  %v5489 = vsel %vm198, %v5259, 0
  %v5492 = vsel %vm198, %v5260, 0
  %v5495 = vsel %vm198, %v5261, 0
  %v5498 = vsel %vm198, %v5262, 0
  %v5501 = vsel %vm198, %v5263, 0
  %v5504 = vsel %vm198, %v5264, 0
  %v5507 = vsel %vm198, %v5265, 0
  %v5510 = vsel %vm198, %v5266, 0
  %v5513 = vsel %vm198, %v5267, 0
  %v5516 = vsel %vm198, %v5268, 0
  %5518 = vmatprep.subr.mxu0 0.0
  %5519 = vmatpush1.xpose.msra.mxu0 %v5468
  %5520 = vmatprep.subr.mxu0 0.0
  %5521 = vmatpush1.xpose.msra.mxu0 %v5471
  %5522 = vmatprep.subr.mxu0 0.0
  %5523 = vmatpush1.xpose.msra.mxu0 %v5474
  %5524 = vmatprep.subr.mxu0 0.0
  %5525 = vmatpush1.xpose.msra.mxu0 %v5477
  %5526 = vmatprep.subr.mxu0 0.0
  %5527 = vmatpush1.xpose.msra.mxu0 %v5480
  %5528 = vmatprep.subr.mxu0 0.0
  %5529 = vmatpush1.xpose.msra.mxu0 %v5483
  %5530 = vmatprep.subr.mxu0 0.0
  %5531 = vmatpush1.xpose.msra.mxu0 %v5486
  %5532 = vmatprep.subr.mxu0 0.0
  %5533 = vmatpush1.xpose.msra.mxu0 %v5489
  %5534 = vmatprep.subr.mxu0 0.0
  %5535 = vmatpush1.xpose.msra.mxu0 %v5492
  %5536 = vmatprep.subr.mxu0 0.0
  %5537 = vmatpush1.xpose.msra.mxu0 %v5495
  %5538 = vmatprep.subr.mxu0 0.0
  %5539 = vmatpush1.xpose.msra.mxu0 %v5498
  %5540 = vmatprep.subr.mxu0 0.0
  %5541 = vmatpush1.xpose.msra.mxu0 %v5501
  %5542 = vmatprep.subr.mxu0 0.0
  %5543 = vmatpush1.xpose.msra.mxu0 %v5504
  %5544 = vmatprep.subr.mxu0 0.0
  %5545 = vmatpush1.xpose.msra.mxu0 %v5507
  %5546 = vmatprep.subr.mxu0 0.0
  %5547 = vmatpush1.xpose.msra.mxu0 %v5510
  %5548 = vmatprep.subr.mxu0 0.0
  %5549 = vmatpush1.xpose.msra.mxu0 %v5513
  %5550 = vmatprep.subr.mxu0 0.0
  %5551 = vmatpush1.xpose.msra.mxu0 %v5516
  %5552 = vmatprep.subr.mxu0 0.0
  %5553 = vmatpush1.xpose.msra.mxu0 0.0
  %5554 = vmatprep.subr.mxu0 0.0
  %5555 = vmatpush1.xpose.msra.mxu0 0.0
  %5556 = vmatprep.subr.mxu0 0.0
  %5557 = vmatpush1.xpose.msra.mxu0 0.0
  %5558 = vmatprep.subr.mxu0 0.0
  %5559 = vmatpush1.xpose.msra.mxu0 0.0
  %5560 = vmatprep.subr.mxu0 0.0
  %5561 = vmatpush1.xpose.msra.mxu0 0.0
  %5562 = vmatprep.subr.mxu0 0.0
  %5563 = vmatpush1.xpose.msra.mxu0 0.0
  %5564 = vmatprep.subr.mxu0 0.0
  %5565 = vmatpush1.xpose.msra.mxu0 0.0
  %5566 = vmatprep.subr.mxu0 0.0
  %5567 = vmatpush1.xpose.msra.mxu0 0.0
  %5568 = vmatprep.subr.mxu0 0.0
  %5569 = vmatpush1.xpose.msra.mxu0 0.0
  %5570 = vmatprep.subr.mxu0 0.0
  %5571 = vmatpush1.xpose.msra.mxu0 0.0
  %5572 = vmatprep.subr.mxu0 0.0
  %5573 = vmatpush1.xpose.msra.mxu0 0.0
  %5574 = vmatprep.subr.mxu0 0.0
  %5575 = vmatpush1.xpose.msra.mxu0 0.0
  %5576 = vmatprep.subr.mxu0 0.0
  %5577 = vmatpush1.xpose.msra.mxu0 0.0
  %5578 = vmatprep.subr.mxu0 0.0
  %5579 = vmatpush1.xpose.msra.mxu0 0.0
  %5580 = vmatprep.subr.mxu0 0.0
  %5581 = vmatpush1.xpose.msra.mxu0 0.0
  %5582 = vmatprep.mubr.f32.mxu0 0.0
  %5583 = vmatmul.mubr.f32.gmra.mrb[0].mxu0 %v5453
  %v5584 = vpop.f32.mrb[0].mxu0
  %v5585 = vadd.f32 %v338, %v5584
  %v5586 = vpop.f32.mrb[0].mxu0
  %v5587 = vadd.f32 %v339, %v5586
  %5588 = vmatprep.mubr.f32.mxu0 0.0
  %5589 = vmatmul.mubr.f32.gmra.mrb[0].mxu0 %v5456
  %v5590 = vpop.f32.mrb[0].mxu0
  %v5591 = vadd.f32 %v340, %v5590
  %v5592 = vpop.f32.mrb[0].mxu0
  %v5593 = vadd.f32 %v341, %v5592
  %5594 = vmatprep.mubr.f32.mxu0 0.0
  %5595 = vmatmul.mubr.f32.gmra.mrb[0].mxu0 %v5459
  %v5596 = vpop.f32.mrb[0].mxu0
  %v5597 = vadd.f32 %v342, %v5596
  %v5598 = vpop.f32.mrb[0].mxu0
  %v5599 = vadd.f32 %v343, %v5598
  %5600 = vmatprep.mubr.f32.mxu0 0.0
  %5601 = vmatmul.mubr.f32.gmra.mrb[0].mxu0 %v5462
  %v5602 = vpop.f32.mrb[0].mxu0
  %v5603 = vadd.f32 %v344, %v5602
  %v5604 = vpop.f32.mrb[0].mxu0
  %v5605 = vadd.f32 %v345, %v5604
  %5606 = vmatprep.mubr.f32.mxu0 0.0
  %5607 = vmatmul.mubr.f32.gmra.mrb[0].mxu0 %v5465
  %v5608 = vpop.f32.mrb[0].mxu0
  %v5609 = vadd.f32 %v346, %v5608
  %v5610 = vpop.f32.mrb[0].mxu0
  %v5611 = vadd.f32 %v347, %v5610
  %5612 = vdwg.mxu0
  %v5613 = vsel %vm1193, %v5587, -inf
  %v5614 = vmax.f32 %v5585, %v5613
  %5615 = vmax.xlane.f32.xlu0 %v5614
  %v5616 = vpop.xlane.xlu0 %5615
  %v5617 = vsel %vm1193, %v5593, -inf
  %v5618 = vmax.f32 %v5591, %v5617
  %5619 = vmax.xlane.f32.xlu0 %v5618
  %v5620 = vpop.xlane.xlu0 %5619
  %v5621 = vsel %vm1193, %v5599, -inf
  %v5622 = vmax.f32 %v5597, %v5621
  %5623 = vmax.xlane.f32.xlu0 %v5622
  %v5624 = vpop.xlane.xlu0 %5623
  %v5625 = vsel %vm1193, %v5605, -inf
  %v5626 = vmax.f32 %v5603, %v5625
  %5627 = vmax.xlane.f32.xlu0 %v5626
  %v5628 = vpop.xlane.xlu0 %5627
  %v5629 = vsel %vm679, %v5609, -inf
  %v5630 = vsel %vm1211, %v5611, -inf
  %v5631 = vmax.f32 %v5629, %v5630
  %5632 = vmax.xlane.f32.xlu0 %v5631
  %v5633 = vpop.xlane.xlu0 %5632
  %v5634 = vsub.f32 %v5585, %v5616
  %v5635 = vsub.f32 %v5587, %v5616
  %v5636 = vsub.f32 %v5591, %v5620
  %v5637 = vsub.f32 %v5593, %v5620
  %v5638 = vsub.f32 %v5597, %v5624
  %v5639 = vsub.f32 %v5599, %v5624
  %v5640 = vsub.f32 %v5603, %v5628
  %v5641 = vsub.f32 %v5605, %v5628
  %v5642 = vsub.f32 %v5609, %v5633
  %v5643 = vsub.f32 %v5611, %v5633
  %v5644 = vmul.f32 %v5634, 1.442695
  %v5645 = vpow.pop %v5644
  %v5646 = vmul.f32 %v5635, 1.442695
  %v5647 = vpow.pop %v5646
  %v5648 = vmul.f32 %v5636, 1.442695
  %v5649 = vpow.pop %v5648
  %v5650 = vmul.f32 %v5637, 1.442695
  %v5651 = vpow.pop %v5650
  %v5652 = vmul.f32 %v5638, 1.442695
  %v5653 = vpow.pop %v5652
  %v5654 = vmul.f32 %v5639, 1.442695
  %v5655 = vpow.pop %v5654
  %v5656 = vmul.f32 %v5640, 1.442695
  %v5657 = vpow.pop %v5656
  %v5658 = vmul.f32 %v5641, 1.442695
  %v5659 = vpow.pop %v5658
  %v5660 = vmul.f32 %v5642, 1.442695
  %v5661 = vpow.pop %v5660
  %v5662 = vmul.f32 %v5643, 1.442695
  %v5663 = vpow.pop %v5662
  %v5665 = vsel %vm1193, %v5647, 0
  %v5668 = vsel %vm1193, %v5651, 0
  %v5671 = vsel %vm1193, %v5655, 0
  %v5674 = vsel %vm1193, %v5659, 0
  %v5677 = vsel %vm1193, %v5663, 0
  %5679 = vmatprep.subr.mxu0 %v359
  %5680 = vmatpush1.msra.mxu0 %v358
  %5681 = vmatprep.subr.mxu0 %v361
  %5682 = vmatpush1.msra.mxu0 %v360
  %5683 = vmatprep.subr.mxu0 %v363
  %5684 = vmatpush1.msra.mxu0 %v362
  %5685 = vmatprep.subr.mxu0 %v365
  %5686 = vmatpush1.msra.mxu0 %v364
  %5687 = vmatprep.subr.mxu0 %v367
  %5688 = vmatpush1.msra.mxu0 %v366
  %5689 = vmatprep.subr.mxu0 %v369
  %5690 = vmatpush1.msra.mxu0 %v368
  %5691 = vmatprep.subr.mxu0 %v371
  %5692 = vmatpush1.msra.mxu0 %v370
  %5693 = vmatprep.subr.mxu0 %v373
  %5694 = vmatpush1.msra.mxu0 %v372
  %5695 = vmatprep.subr.mxu0 %v375
  %5696 = vmatpush1.msra.mxu0 %v374
  %5697 = vmatprep.subr.mxu0 %v377
  %5698 = vmatpush1.msra.mxu0 %v376
  %5699 = vmatprep.subr.mxu0 %v379
  %5700 = vmatpush1.msra.mxu0 %v378
  %5701 = vmatprep.subr.mxu0 %v381
  %5702 = vmatpush1.msra.mxu0 %v380
  %5703 = vmatprep.subr.mxu0 %v383
  %5704 = vmatpush1.msra.mxu0 %v382
  %5705 = vmatprep.subr.mxu0 %v385
  %5706 = vmatpush1.msra.mxu0 %v384
  %5707 = vmatprep.subr.mxu0 %v387
  %5708 = vmatpush1.msra.mxu0 %v386
  %5709 = vmatprep.subr.mxu0 %v389
  %5710 = vmatpush1.msra.mxu0 %v388
  %5711 = vmatprep.subr.mxu0 %v391
  %5712 = vmatpush1.msra.mxu0 %v390
  %5713 = vmatprep.subr.mxu0 0.0
  %5714 = vmatpush1.msra.mxu0 0.0
  %5715 = vmatprep.subr.mxu0 0.0
  %5716 = vmatpush1.msra.mxu0 0.0
  %5717 = vmatprep.subr.mxu0 0.0
  %5718 = vmatpush1.msra.mxu0 0.0
  %5719 = vmatprep.subr.mxu0 0.0
  %5720 = vmatpush1.msra.mxu0 0.0
  %5721 = vmatprep.subr.mxu0 0.0
  %5722 = vmatpush1.msra.mxu0 0.0
  %5723 = vmatprep.subr.mxu0 0.0
  %5724 = vmatpush1.msra.mxu0 0.0
  %5725 = vmatprep.subr.mxu0 0.0
  %5726 = vmatpush1.msra.mxu0 0.0
  %5727 = vmatprep.subr.mxu0 0.0
  %5728 = vmatpush1.msra.mxu0 0.0
  %5729 = vmatprep.subr.mxu0 0.0
  %5730 = vmatpush1.msra.mxu0 0.0
  %5731 = vmatprep.subr.mxu0 0.0
  %5732 = vmatpush1.msra.mxu0 0.0
  %5733 = vmatprep.subr.mxu0 0.0
  %5734 = vmatpush1.msra.mxu0 0.0
  %5735 = vmatprep.subr.mxu0 0.0
  %5736 = vmatpush1.msra.mxu0 0.0
  %5737 = vmatprep.subr.mxu0 0.0
  %5738 = vmatpush1.msra.mxu0 0.0
  %5739 = vmatprep.subr.mxu0 0.0
  %5740 = vmatpush1.msra.mxu0 0.0
  %5741 = vmatprep.subr.mxu0 0.0
  %5742 = vmatpush1.msra.mxu0 0.0
  %5743 = vmatprep.mubr.f32.mxu0 %v5665
  %5744 = vmatmul.mubr.f32.gmra.mrb[0].mxu0 %v5645
  %v5745 = vpop.f32.mrb[0].mxu0
  %v5746 = vadd.f32 %v348, %v5745
  %v5747 = vpop.f32.mrb[0].mxu0
  %v5748 = vadd.f32 %v349, %v5747
  %5749 = vmatprep.mubr.f32.mxu0 %v5668
  %5750 = vmatmul.mubr.f32.gmra.mrb[0].mxu0 %v5649
  %v5751 = vpop.f32.mrb[0].mxu0
  %v5752 = vadd.f32 %v350, %v5751
  %v5753 = vpop.f32.mrb[0].mxu0
  %v5754 = vadd.f32 %v351, %v5753
  %5755 = vmatprep.mubr.f32.mxu0 %v5671
  %5756 = vmatmul.mubr.f32.gmra.mrb[0].mxu0 %v5653
  %v5757 = vpop.f32.mrb[0].mxu0
  %v5758 = vadd.f32 %v352, %v5757
  %v5759 = vpop.f32.mrb[0].mxu0
  %v5760 = vadd.f32 %v353, %v5759
  %5761 = vmatprep.mubr.f32.mxu0 %v5674
  %5762 = vmatmul.mubr.f32.gmra.mrb[0].mxu0 %v5657
  %v5763 = vpop.f32.mrb[0].mxu0
  %v5764 = vadd.f32 %v354, %v5763
  %v5765 = vpop.f32.mrb[0].mxu0
  %v5766 = vadd.f32 %v355, %v5765
  %5767 = vmatprep.mubr.f32.mxu0 %v5677
  %5768 = vmatmul.mubr.f32.gmra.mrb[0].mxu0 %v5661
  %v5769 = vpop.f32.mrb[0].mxu0
  %v5770 = vadd.f32 %v356, %v5769
  %v5771 = vpop.f32.mrb[0].mxu0
  %v5772 = vadd.f32 %v357, %v5771
  %5773 = vdwg.mxu0
  %v5774 = vrcp.pop %v5746
  %v5775 = vrcp.pop %v5748
  %v5776 = vrcp.pop %v5752
  %v5777 = vrcp.pop %v5754
  %v5778 = vrcp.pop %v5758
  %v5779 = vrcp.pop %v5760
  %v5780 = vrcp.pop %v5764
  %v5781 = vrcp.pop %v5766
  %v5782 = vrcp.pop %v5770
  %v5783 = vrcp.pop %v5772
  %v5784 = vmul.f32 %v5645, %v5774
  %v5785 = vmul.f32 %v5647, %v5775
  %v5786 = vmul.f32 %v5649, %v5776
  %v5787 = vmul.f32 %v5651, %v5777
  %v5788 = vmul.f32 %v5653, %v5778
  %v5789 = vmul.f32 %v5655, %v5779
  %v5790 = vmul.f32 %v5657, %v5780
  %v5791 = vmul.f32 %v5659, %v5781
  %v5792 = vmul.f32 %v5661, %v5782
  %v5793 = vmul.f32 %v5663, %v5783
  %v5795 = vsel %vm1193, %v5785, 0
  %v5798 = vsel %vm1193, %v5787, 0
  %v5801 = vsel %vm1193, %v5789, 0
  %v5804 = vsel %vm1193, %v5791, 0
  %v5807 = vsel %vm1193, %v5793, 0
  %5809 = vmatprep.subr.mxu0 0.0
  %5810 = vmatpush1.msra.mxu0 %v5435
  %5811 = vmatprep.subr.mxu0 0.0
  %5812 = vmatpush1.msra.mxu0 %v5436
  %5813 = vmatprep.subr.mxu0 0.0
  %5814 = vmatpush1.msra.mxu0 %v5437
  %5815 = vmatprep.subr.mxu0 0.0
  %5816 = vmatpush1.msra.mxu0 %v5438
  %5817 = vmatprep.subr.mxu0 0.0
  %5818 = vmatpush1.msra.mxu0 %v5439
  %5819 = vmatprep.subr.mxu0 0.0
  %5820 = vmatpush1.msra.mxu0 %v5440
  %5821 = vmatprep.subr.mxu0 0.0
  %5822 = vmatpush1.msra.mxu0 %v5441
  %5823 = vmatprep.subr.mxu0 0.0
  %5824 = vmatpush1.msra.mxu0 %v5442
  %5825 = vmatprep.subr.mxu0 0.0
  %5826 = vmatpush1.msra.mxu0 %v5443
  %5827 = vmatprep.subr.mxu0 0.0
  %5828 = vmatpush1.msra.mxu0 %v5444
  %5829 = vmatprep.subr.mxu0 0.0
  %5830 = vmatpush1.msra.mxu0 %v5445
  %5831 = vmatprep.subr.mxu0 0.0
  %5832 = vmatpush1.msra.mxu0 %v5446
  %5833 = vmatprep.subr.mxu0 0.0
  %5834 = vmatpush1.msra.mxu0 %v5447
  %5835 = vmatprep.subr.mxu0 0.0
  %5836 = vmatpush1.msra.mxu0 %v5448
  %5837 = vmatprep.subr.mxu0 0.0
  %5838 = vmatpush1.msra.mxu0 %v5449
  %5839 = vmatprep.subr.mxu0 0.0
  %5840 = vmatpush1.msra.mxu0 %v5450
  %5841 = vmatprep.subr.mxu0 0.0
  %5842 = vmatpush1.msra.mxu0 %v5451
  %5843 = vmatprep.subr.mxu0 0.0
  %5844 = vmatpush1.msra.mxu0 0.0
  %5845 = vmatprep.subr.mxu0 0.0
  %5846 = vmatpush1.msra.mxu0 0.0
  %5847 = vmatprep.subr.mxu0 0.0
  %5848 = vmatpush1.msra.mxu0 0.0
  %5849 = vmatprep.subr.mxu0 0.0
  %5850 = vmatpush1.msra.mxu0 0.0
  %5851 = vmatprep.subr.mxu0 0.0
  %5852 = vmatpush1.msra.mxu0 0.0
  %5853 = vmatprep.subr.mxu0 0.0
  %5854 = vmatpush1.msra.mxu0 0.0
  %5855 = vmatprep.subr.mxu0 0.0
  %5856 = vmatpush1.msra.mxu0 0.0
  %5857 = vmatprep.subr.mxu0 0.0
  %5858 = vmatpush1.msra.mxu0 0.0
  %5859 = vmatprep.subr.mxu0 0.0
  %5860 = vmatpush1.msra.mxu0 0.0
  %5861 = vmatprep.subr.mxu0 0.0
  %5862 = vmatpush1.msra.mxu0 0.0
  %5863 = vmatprep.subr.mxu0 0.0
  %5864 = vmatpush1.msra.mxu0 0.0
  %5865 = vmatprep.subr.mxu0 0.0
  %5866 = vmatpush1.msra.mxu0 0.0
  %5867 = vmatprep.subr.mxu0 0.0
  %5868 = vmatpush1.msra.mxu0 0.0
  %5869 = vmatprep.subr.mxu0 0.0
  %5870 = vmatpush1.msra.mxu0 0.0
  %5871 = vmatprep.subr.mxu0 0.0
  %5872 = vmatpush1.msra.mxu0 0.0
  %5873 = vmatprep.mubr.f32.mxu0 %v5795
  %5874 = vmatmul.mubr.f32.gmra.mrb[0].mxu0 %v5784
  %v5875 = vpop.f32.mrb[0].mxu0
  %v5876 = vadd.f32 0.0, %v5875
  %v5877 = vpop.f32.mrb[0].mxu0
  %5878 = vmatprep.mubr.f32.mxu0 %v5798
  %5879 = vmatmul.mubr.f32.gmra.mrb[0].mxu0 %v5786
  %v5880 = vpop.f32.mrb[0].mxu0
  %v5881 = vadd.f32 0.0, %v5880
  %v5882 = vpop.f32.mrb[0].mxu0
  %5883 = vmatprep.mubr.f32.mxu0 %v5801
  %5884 = vmatmul.mubr.f32.gmra.mrb[0].mxu0 %v5788
  %v5885 = vpop.f32.mrb[0].mxu0
  %v5886 = vadd.f32 0.0, %v5885
  %v5887 = vpop.f32.mrb[0].mxu0
  %5888 = vmatprep.mubr.f32.mxu0 %v5804
  %5889 = vmatmul.mubr.f32.gmra.mrb[0].mxu0 %v5790
  %v5890 = vpop.f32.mrb[0].mxu0
  %v5891 = vadd.f32 0.0, %v5890
  %v5892 = vpop.f32.mrb[0].mxu0
  %5893 = vmatprep.mubr.f32.mxu0 %v5807
  %5894 = vmatmul.mubr.f32.gmra.mrb[0].mxu0 %v5792
  %v5895 = vpop.f32.mrb[0].mxu0
  %v5896 = vadd.f32 0.0, %v5895
  %v5897 = vpop.f32.mrb[0].mxu0
  %5898 = vdwg.mxu0
  %s5899 = scalar_lea.vmem %s14, 64
  %v5900 = vld [vmem:[%s5899] sm:$0xff]
  %v5901 = vld [vmem:[%s5899 + $0x8] sm:$0xff]
  %v5902 = vld [vmem:[%s5899 + $0x10] sm:$0xff]
  %v5903 = vld [vmem:[%s5899 + $0x18] sm:$0xff]
  %s5904 = scalar_lea.vmem %s15, 2
  %v5905 = vld [vmem:[%s5904] sm:$0x1]
  %v5907 = vlaneseq
  %v5908 = vshrl.u32 %v5907, 7
  %v5909 = vsub.s32 0, %v5908
  %v5910 = vrot.slane %v5905, %v5909
  %v5913 = vsel %vm198, %v5876, 0
  %v5916 = vsel %vm198, %v5881, 0
  %v5919 = vsel %vm198, %v5886, 0
  %v5922 = vsel %vm198, %v5891, 0
  %v5925 = vsel %vm198, %v5896, 0
  %5927 = vmatprep.subr.mxu0 0.0
  %5928 = vmatpush1.msra.mxu0 %v5900
  %5929 = vmatprep.subr.mxu0 0.0
  %5930 = vmatpush1.msra.mxu0 %v5901
  %5931 = vmatprep.subr.mxu0 0.0
  %5932 = vmatpush1.msra.mxu0 %v5902
  %5933 = vmatprep.subr.mxu0 0.0
  %5934 = vmatpush1.msra.mxu0 %v5903
  %5935 = vmatprep.subr.mxu0 0.0
  %5936 = vmatpush1.msra.mxu0 0.0
  %5937 = vmatprep.subr.mxu0 0.0
  %5938 = vmatpush1.msra.mxu0 0.0
  %5939 = vmatprep.subr.mxu0 0.0
  %5940 = vmatpush1.msra.mxu0 0.0
  %5941 = vmatprep.subr.mxu0 0.0
  %5942 = vmatpush1.msra.mxu0 0.0
  %5943 = vmatprep.subr.mxu0 0.0
  %5944 = vmatpush1.msra.mxu0 0.0
  %5945 = vmatprep.subr.mxu0 0.0
  %5946 = vmatpush1.msra.mxu0 0.0
  %5947 = vmatprep.subr.mxu0 0.0
  %5948 = vmatpush1.msra.mxu0 0.0
  %5949 = vmatprep.subr.mxu0 0.0
  %5950 = vmatpush1.msra.mxu0 0.0
  %5951 = vmatprep.subr.mxu0 0.0
  %5952 = vmatpush1.msra.mxu0 0.0
  %5953 = vmatprep.subr.mxu0 0.0
  %5954 = vmatpush1.msra.mxu0 0.0
  %5955 = vmatprep.subr.mxu0 0.0
  %5956 = vmatpush1.msra.mxu0 0.0
  %5957 = vmatprep.subr.mxu0 0.0
  %5958 = vmatpush1.msra.mxu0 0.0
  %5959 = vmatprep.subr.mxu0 0.0
  %5960 = vmatpush1.msra.mxu0 0.0
  %5961 = vmatprep.subr.mxu0 0.0
  %5962 = vmatpush1.msra.mxu0 0.0
  %5963 = vmatprep.subr.mxu0 0.0
  %5964 = vmatpush1.msra.mxu0 0.0
  %5965 = vmatprep.subr.mxu0 0.0
  %5966 = vmatpush1.msra.mxu0 0.0
  %5967 = vmatprep.subr.mxu0 0.0
  %5968 = vmatpush1.msra.mxu0 0.0
  %5969 = vmatprep.subr.mxu0 0.0
  %5970 = vmatpush1.msra.mxu0 0.0
  %5971 = vmatprep.subr.mxu0 0.0
  %5972 = vmatpush1.msra.mxu0 0.0
  %5973 = vmatprep.subr.mxu0 0.0
  %5974 = vmatpush1.msra.mxu0 0.0
  %5975 = vmatprep.subr.mxu0 0.0
  %5976 = vmatpush1.msra.mxu0 0.0
  %5977 = vmatprep.subr.mxu0 0.0
  %5978 = vmatpush1.msra.mxu0 0.0
  %5979 = vmatprep.subr.mxu0 0.0
  %5980 = vmatpush1.msra.mxu0 0.0
  %5981 = vmatprep.subr.mxu0 0.0
  %5982 = vmatpush1.msra.mxu0 0.0
  %5983 = vmatprep.subr.mxu0 0.0
  %5984 = vmatpush1.msra.mxu0 0.0
  %5985 = vmatprep.subr.mxu0 0.0
  %5986 = vmatpush1.msra.mxu0 0.0
  %5987 = vmatprep.subr.mxu0 0.0
  %5988 = vmatpush1.msra.mxu0 0.0
  %5989 = vmatprep.subr.mxu0 0.0
  %5990 = vmatpush1.msra.mxu0 0.0
  %5991 = vmatprep.mubr.f32.mxu0 0.0
  %5992 = vmatmul.mubr.f32.gmra.mrb[0].mxu0 %v5913
  %v5993 = vpop.f32.mrb[0].mxu0
  %v5994 = vadd.f32 %v5910, %v5993
  %v5995 = vpop.f32.mrb[0].mxu0
  %5996 = vmatprep.mubr.f32.mxu0 0.0
  %5997 = vmatmul.mubr.f32.gmra.mrb[0].mxu0 %v5916
  %v5998 = vpop.f32.mrb[0].mxu0
  %v5999 = vadd.f32 %v5910, %v5998
  %v6000 = vpop.f32.mrb[0].mxu0
  %6001 = vmatprep.mubr.f32.mxu0 0.0
  %6002 = vmatmul.mubr.f32.gmra.mrb[0].mxu0 %v5919
  %v6003 = vpop.f32.mrb[0].mxu0
  %v6004 = vadd.f32 %v5910, %v6003
  %v6005 = vpop.f32.mrb[0].mxu0
  %6006 = vmatprep.mubr.f32.mxu0 0.0
  %6007 = vmatmul.mubr.f32.gmra.mrb[0].mxu0 %v5922
  %v6008 = vpop.f32.mrb[0].mxu0
  %v6009 = vadd.f32 %v5910, %v6008
  %v6010 = vpop.f32.mrb[0].mxu0
  %6011 = vmatprep.mubr.f32.mxu0 0.0
  %6012 = vmatmul.mubr.f32.gmra.mrb[0].mxu0 %v5925
  %v6013 = vpop.f32.mrb[0].mxu0
  %v6014 = vadd.f32 %v5910, %v6013
  %v6015 = vpop.f32.mrb[0].mxu0
  %6016 = vdwg.mxu0
  %v6017 = vadd.f32 %v3401, %v5994
  %v6018 = vadd.f32 %v3402, %v5999
  %v6019 = vadd.f32 %v3403, %v6004
  %v6020 = vadd.f32 %v3404, %v6009
  %v6021 = vadd.f32 %v3405, %v6014
  %s6022 = scalar_lea.vmem %s16, 2
  %v6023 = vld [vmem:[%s6022] sm:$0x1]
  %s6024 = scalar_lea.vmem %s17, 2
  %v6025 = vld [vmem:[%s6024] sm:$0x1]
  %v6026 = vsel %vm198, %v6017, 0.0
  %6027 = vadd.xlane.f32.xlu0 %v6026
  %v6028 = vpop.xlane.xlu0 %6027
  %v6029 = vsel %vm198, %v6018, 0.0
  %6030 = vadd.xlane.f32.xlu0 %v6029
  %v6031 = vpop.xlane.xlu0 %6030
  %v6032 = vsel %vm198, %v6019, 0.0
  %6033 = vadd.xlane.f32.xlu0 %v6032
  %v6034 = vpop.xlane.xlu0 %6033
  %v6035 = vsel %vm198, %v6020, 0.0
  %6036 = vadd.xlane.f32.xlu0 %v6035
  %v6037 = vpop.xlane.xlu0 %6036
  %v6038 = vsel %vm408, %v6021, 0.0
  %6039 = vadd.xlane.f32.xlu0 %v6038
  %v6040 = vpop.xlane.xlu0 %6039
  %v6041 = vmul.f32 %v6028, %v412
  %v6042 = vmul.f32 %v6031, %v412
  %v6043 = vmul.f32 %v6034, %v412
  %v6044 = vmul.f32 %v6037, %v412
  %v6045 = vmul.f32 %v6040, %v412
  %v6046 = vsub.f32 %v6017, %v6041
  %v6047 = vsub.f32 %v6018, %v6042
  %v6048 = vsub.f32 %v6019, %v6043
  %v6049 = vsub.f32 %v6020, %v6044
  %v6050 = vsub.f32 %v6021, %v6045
  %v6051 = vmul.f32 %v6046, %v6046
  %v6052 = vmul.f32 %v6047, %v6047
  %v6053 = vmul.f32 %v6048, %v6048
  %v6054 = vmul.f32 %v6049, %v6049
  %v6055 = vmul.f32 %v6050, %v6050
  %v6056 = vsel %vm198, %v6051, 0.0
  %6057 = vadd.xlane.f32.xlu0 %v6056
  %v6058 = vpop.xlane.xlu0 %6057
  %v6059 = vsel %vm198, %v6052, 0.0
  %6060 = vadd.xlane.f32.xlu0 %v6059
  %v6061 = vpop.xlane.xlu0 %6060
  %v6062 = vsel %vm198, %v6053, 0.0
  %6063 = vadd.xlane.f32.xlu0 %v6062
  %v6064 = vpop.xlane.xlu0 %6063
  %v6065 = vsel %vm198, %v6054, 0.0
  %6066 = vadd.xlane.f32.xlu0 %v6065
  %v6067 = vpop.xlane.xlu0 %6066
  %v6068 = vsel %vm408, %v6055, 0.0
  %6069 = vadd.xlane.f32.xlu0 %v6068
  %v6070 = vpop.xlane.xlu0 %6069
  %v6071 = vmul.f32 %v6058, %v412
  %v6072 = vmul.f32 %v6061, %v412
  %v6073 = vmul.f32 %v6064, %v412
  %v6074 = vmul.f32 %v6067, %v412
  %v6075 = vmul.f32 %v6070, %v412
  %v6076 = vadd.f32 %v6071, 1e-06
  %v6077 = vadd.f32 %v6072, 1e-06
  %v6078 = vadd.f32 %v6073, 1e-06
  %v6079 = vadd.f32 %v6074, 1e-06
  %v6080 = vadd.f32 %v6075, 1e-06
  %v6081 = vrsqrt.pop %v6076
  %v6082 = vrsqrt.pop %v6077
  %v6083 = vrsqrt.pop %v6078
  %v6084 = vrsqrt.pop %v6079
  %v6085 = vrsqrt.pop %v6080
  %v6086 = vmul.f32 %v6046, %v6081
  %v6087 = vmul.f32 %v6047, %v6082
  %v6088 = vmul.f32 %v6048, %v6083
  %v6089 = vmul.f32 %v6049, %v6084
  %v6090 = vmul.f32 %v6050, %v6085
  %v6092 = vlaneseq
  %v6093 = vshrl.u32 %v6092, 7
  %v6094 = vsub.s32 0, %v6093
  %v6095 = vrot.slane %v6023, %v6094
  %v6097 = vmul.f32 %v6086, %v6095
  %v6098 = vmul.f32 %v6087, %v6095
  %v6099 = vmul.f32 %v6088, %v6095
  %v6100 = vmul.f32 %v6089, %v6095
  %v6101 = vmul.f32 %v6090, %v6095
  %v6103 = vlaneseq
  %v6104 = vshrl.u32 %v6103, 7
  %v6105 = vsub.s32 0, %v6104
  %v6106 = vrot.slane %v6025, %v6105
  %v6108 = vadd.f32 %v6097, %v6106
  %v6109 = vadd.f32 %v6098, %v6106
  %v6110 = vadd.f32 %v6099, %v6106
  %v6111 = vadd.f32 %v6100, %v6106
  %v6112 = vadd.f32 %v6101, %v6106
  %s6113 = scalar_lea.vmem %s18, 64
  %v6114 = vld [vmem:[%s6113] sm:$0xff]
  %v6115 = vld [vmem:[%s6113 + $0x8] sm:$0xff]
  %v6116 = vld [vmem:[%s6113 + $0x10] sm:$0xff]
  %v6117 = vld [vmem:[%s6113 + $0x18] sm:$0xff]
  %s6118 = scalar_lea.vmem %s19, 2
  %v6119 = vld [vmem:[%s6118] sm:$0x1]
  %v6121 = vlaneseq
  %v6122 = vshrl.u32 %v6121, 7
  %v6123 = vsub.s32 0, %v6122
  %v6124 = vrot.slane %v6119, %v6123
  %v6127 = vsel %vm198, %v6108, 0
  %v6130 = vsel %vm198, %v6109, 0
  %v6133 = vsel %vm198, %v6110, 0
  %v6136 = vsel %vm198, %v6111, 0
  %v6139 = vsel %vm198, %v6112, 0
  %6141 = vmatprep.subr.mxu0 0.0
  %6142 = vmatpush1.msra.mxu0 %v6114
  %6143 = vmatprep.subr.mxu0 0.0
  %6144 = vmatpush1.msra.mxu0 %v6115
  %6145 = vmatprep.subr.mxu0 0.0
  %6146 = vmatpush1.msra.mxu0 %v6116
  %6147 = vmatprep.subr.mxu0 0.0
  %6148 = vmatpush1.msra.mxu0 %v6117
  %6149 = vmatprep.subr.mxu0 0.0
  %6150 = vmatpush1.msra.mxu0 0.0
  %6151 = vmatprep.subr.mxu0 0.0
  %6152 = vmatpush1.msra.mxu0 0.0
  %6153 = vmatprep.subr.mxu0 0.0
  %6154 = vmatpush1.msra.mxu0 0.0
  %6155 = vmatprep.subr.mxu0 0.0
  %6156 = vmatpush1.msra.mxu0 0.0
  %6157 = vmatprep.subr.mxu0 0.0
  %6158 = vmatpush1.msra.mxu0 0.0
  %6159 = vmatprep.subr.mxu0 0.0
  %6160 = vmatpush1.msra.mxu0 0.0
  %6161 = vmatprep.subr.mxu0 0.0
  %6162 = vmatpush1.msra.mxu0 0.0
  %6163 = vmatprep.subr.mxu0 0.0
  %6164 = vmatpush1.msra.mxu0 0.0
  %6165 = vmatprep.subr.mxu0 0.0
  %6166 = vmatpush1.msra.mxu0 0.0
  %6167 = vmatprep.subr.mxu0 0.0
  %6168 = vmatpush1.msra.mxu0 0.0
  %6169 = vmatprep.subr.mxu0 0.0
  %6170 = vmatpush1.msra.mxu0 0.0
  %6171 = vmatprep.subr.mxu0 0.0
  %6172 = vmatpush1.msra.mxu0 0.0
  %6173 = vmatprep.subr.mxu0 0.0
  %6174 = vmatpush1.msra.mxu0 0.0
  %6175 = vmatprep.subr.mxu0 0.0
  %6176 = vmatpush1.msra.mxu0 0.0
  %6177 = vmatprep.subr.mxu0 0.0
  %6178 = vmatpush1.msra.mxu0 0.0
  %6179 = vmatprep.subr.mxu0 0.0
  %6180 = vmatpush1.msra.mxu0 0.0
  %6181 = vmatprep.subr.mxu0 0.0
  %6182 = vmatpush1.msra.mxu0 0.0
  %6183 = vmatprep.subr.mxu0 0.0
  %6184 = vmatpush1.msra.mxu0 0.0
  %6185 = vmatprep.subr.mxu0 0.0
  %6186 = vmatpush1.msra.mxu0 0.0
  %6187 = vmatprep.subr.mxu0 0.0
  %6188 = vmatpush1.msra.mxu0 0.0
  %6189 = vmatprep.subr.mxu0 0.0
  %6190 = vmatpush1.msra.mxu0 0.0
  %6191 = vmatprep.subr.mxu0 0.0
  %6192 = vmatpush1.msra.mxu0 0.0
  %6193 = vmatprep.subr.mxu0 0.0
  %6194 = vmatpush1.msra.mxu0 0.0
  %6195 = vmatprep.subr.mxu0 0.0
  %6196 = vmatpush1.msra.mxu0 0.0
  %6197 = vmatprep.subr.mxu0 0.0
  %6198 = vmatpush1.msra.mxu0 0.0
  %6199 = vmatprep.subr.mxu0 0.0
  %6200 = vmatpush1.msra.mxu0 0.0
  %6201 = vmatprep.subr.mxu0 0.0
  %6202 = vmatpush1.msra.mxu0 0.0
  %6203 = vmatprep.subr.mxu0 0.0
  %6204 = vmatpush1.msra.mxu0 0.0
  %6205 = vmatprep.mubr.f32.mxu0 0.0
  %6206 = vmatmul.mubr.f32.gmra.mrb[0].mxu0 %v6127
  %v6207 = vpop.f32.mrb[0].mxu0
  %v6208 = vadd.f32 %v6124, %v6207
  %v6209 = vpop.f32.mrb[0].mxu0
  %6210 = vmatprep.mubr.f32.mxu0 0.0
  %6211 = vmatmul.mubr.f32.gmra.mrb[0].mxu0 %v6130
  %v6212 = vpop.f32.mrb[0].mxu0
  %v6213 = vadd.f32 %v6124, %v6212
  %v6214 = vpop.f32.mrb[0].mxu0
  %6215 = vmatprep.mubr.f32.mxu0 0.0
  %6216 = vmatmul.mubr.f32.gmra.mrb[0].mxu0 %v6133
  %v6217 = vpop.f32.mrb[0].mxu0
  %v6218 = vadd.f32 %v6124, %v6217
  %v6219 = vpop.f32.mrb[0].mxu0
  %6220 = vmatprep.mubr.f32.mxu0 0.0
  %6221 = vmatmul.mubr.f32.gmra.mrb[0].mxu0 %v6136
  %v6222 = vpop.f32.mrb[0].mxu0
  %v6223 = vadd.f32 %v6124, %v6222
  %v6224 = vpop.f32.mrb[0].mxu0
  %6225 = vmatprep.mubr.f32.mxu0 0.0
  %6226 = vmatmul.mubr.f32.gmra.mrb[0].mxu0 %v6139
  %v6227 = vpop.f32.mrb[0].mxu0
  %v6228 = vadd.f32 %v6124, %v6227
  %v6229 = vpop.f32.mrb[0].mxu0
  %6230 = vdwg.mxu0
  %v6231 = vmul.f32 %v6208, 0.5
  %v6232 = vmul.f32 %v6213, 0.5
  %v6233 = vmul.f32 %v6218, 0.5
  %v6234 = vmul.f32 %v6223, 0.5
  %v6235 = vmul.f32 %v6228, 0.5
  %v6236 = vmul.f32 %v6208, %v1818
  %v6237 = vmul.f32 %v6213, %v1818
  %v6238 = vmul.f32 %v6218, %v1818
  %v6239 = vmul.f32 %v6223, %v1818
  %v6240 = vmul.f32 %v6228, %v1818
  %v6241 = verf.f32.pop %v6236
  %v6242 = verf.f32.pop %v6237
  %v6243 = verf.f32.pop %v6238
  %v6244 = verf.f32.pop %v6239
  %v6245 = verf.f32.pop %v6240
  %v6246 = vadd.f32 %v6241, 1.0
  %v6247 = vadd.f32 %v6242, 1.0
  %v6248 = vadd.f32 %v6243, 1.0
  %v6249 = vadd.f32 %v6244, 1.0
  %v6250 = vadd.f32 %v6245, 1.0
  %v6251 = vmul.f32 %v6231, %v6246
  %v6252 = vmul.f32 %v6232, %v6247
  %v6253 = vmul.f32 %v6233, %v6248
  %v6254 = vmul.f32 %v6234, %v6249
  %v6255 = vmul.f32 %v6235, %v6250
  %s6256 = scalar_lea.vmem %s20, 128
  %v6257 = vld [vmem:[%s6256] sm:$0xff]
  %v6258 = vld [vmem:[%s6256 + $0x8] sm:$0xff]
  %v6259 = vld [vmem:[%s6256 + $0x10] sm:$0xff]
  %v6260 = vld [vmem:[%s6256 + $0x18] sm:$0xff]
  %v6261 = vld [vmem:[%s6256 + $0x20] sm:$0xff]
  %v6262 = vld [vmem:[%s6256 + $0x28] sm:$0xff]
  %v6263 = vld [vmem:[%s6256 + $0x30] sm:$0xff]
  %v6264 = vld [vmem:[%s6256 + $0x38] sm:$0xff]
  %s6265 = scalar_lea.vmem %s21, 2
  %v6266 = vld [vmem:[%s6265] sm:$0x1]
  %v6268 = vlaneseq
  %v6269 = vshrl.u32 %v6268, 7
  %v6270 = vsub.s32 0, %v6269
  %v6271 = vrot.slane %v6266, %v6270
  %v6274 = vsel %vm1856, %v6251, 0
  %v6277 = vsel %vm1856, %v6252, 0
  %v6280 = vsel %vm1856, %v6253, 0
  %v6283 = vsel %vm1856, %v6254, 0
  %v6286 = vsel %vm1856, %v6255, 0
  %6288 = vmatprep.subr.mxu0 0.0
  %6289 = vmatpush1.msra.mxu0 %v6257
  %6290 = vmatprep.subr.mxu0 0.0
  %6291 = vmatpush1.msra.mxu0 %v6258
  %6292 = vmatprep.subr.mxu0 0.0
  %6293 = vmatpush1.msra.mxu0 %v6259
  %6294 = vmatprep.subr.mxu0 0.0
  %6295 = vmatpush1.msra.mxu0 %v6260
  %6296 = vmatprep.subr.mxu0 0.0
  %6297 = vmatpush1.msra.mxu0 %v6261
  %6298 = vmatprep.subr.mxu0 0.0
  %6299 = vmatpush1.msra.mxu0 %v6262
  %6300 = vmatprep.subr.mxu0 0.0
  %6301 = vmatpush1.msra.mxu0 %v6263
  %6302 = vmatprep.subr.mxu0 0.0
  %6303 = vmatpush1.msra.mxu0 %v6264
  %6304 = vmatprep.subr.mxu0 0.0
  %6305 = vmatpush1.msra.mxu0 0.0
  %6306 = vmatprep.subr.mxu0 0.0
  %6307 = vmatpush1.msra.mxu0 0.0
  %6308 = vmatprep.subr.mxu0 0.0
  %6309 = vmatpush1.msra.mxu0 0.0
  %6310 = vmatprep.subr.mxu0 0.0
  %6311 = vmatpush1.msra.mxu0 0.0
  %6312 = vmatprep.subr.mxu0 0.0
  %6313 = vmatpush1.msra.mxu0 0.0
  %6314 = vmatprep.subr.mxu0 0.0
  %6315 = vmatpush1.msra.mxu0 0.0
  %6316 = vmatprep.subr.mxu0 0.0
  %6317 = vmatpush1.msra.mxu0 0.0
  %6318 = vmatprep.subr.mxu0 0.0
  %6319 = vmatpush1.msra.mxu0 0.0
  %6320 = vmatprep.subr.mxu0 0.0
  %6321 = vmatpush1.msra.mxu0 0.0
  %6322 = vmatprep.subr.mxu0 0.0
  %6323 = vmatpush1.msra.mxu0 0.0
  %6324 = vmatprep.subr.mxu0 0.0
  %6325 = vmatpush1.msra.mxu0 0.0
  %6326 = vmatprep.subr.mxu0 0.0
  %6327 = vmatpush1.msra.mxu0 0.0
  %6328 = vmatprep.subr.mxu0 0.0
  %6329 = vmatpush1.msra.mxu0 0.0
  %6330 = vmatprep.subr.mxu0 0.0
  %6331 = vmatpush1.msra.mxu0 0.0
  %6332 = vmatprep.subr.mxu0 0.0
  %6333 = vmatpush1.msra.mxu0 0.0
  %6334 = vmatprep.subr.mxu0 0.0
  %6335 = vmatpush1.msra.mxu0 0.0
  %6336 = vmatprep.subr.mxu0 0.0
  %6337 = vmatpush1.msra.mxu0 0.0
  %6338 = vmatprep.subr.mxu0 0.0
  %6339 = vmatpush1.msra.mxu0 0.0
  %6340 = vmatprep.subr.mxu0 0.0
  %6341 = vmatpush1.msra.mxu0 0.0
  %6342 = vmatprep.subr.mxu0 0.0
  %6343 = vmatpush1.msra.mxu0 0.0
  %6344 = vmatprep.subr.mxu0 0.0
  %6345 = vmatpush1.msra.mxu0 0.0
  %6346 = vmatprep.subr.mxu0 0.0
  %6347 = vmatpush1.msra.mxu0 0.0
  %6348 = vmatprep.subr.mxu0 0.0
  %6349 = vmatpush1.msra.mxu0 0.0
  %6350 = vmatprep.subr.mxu0 0.0
  %6351 = vmatpush1.msra.mxu0 0.0
  %6352 = vmatprep.mubr.f32.mxu0 0.0
  %6353 = vmatmul.mubr.f32.gmra.mrb[0].mxu0 %v6274
  %v6354 = vpop.f32.mrb[0].mxu0
  %v6355 = vadd.f32 %v6271, %v6354
  %v6356 = vpop.f32.mrb[0].mxu0
  %6357 = vmatprep.mubr.f32.mxu0 0.0
  %6358 = vmatmul.mubr.f32.gmra.mrb[0].mxu0 %v6277
  %v6359 = vpop.f32.mrb[0].mxu0
  %v6360 = vadd.f32 %v6271, %v6359
  %v6361 = vpop.f32.mrb[0].mxu0
  %6362 = vmatprep.mubr.f32.mxu0 0.0
  %6363 = vmatmul.mubr.f32.gmra.mrb[0].mxu0 %v6280
  %v6364 = vpop.f32.mrb[0].mxu0
  %v6365 = vadd.f32 %v6271, %v6364
  %v6366 = vpop.f32.mrb[0].mxu0
  %6367 = vmatprep.mubr.f32.mxu0 0.0
  %6368 = vmatmul.mubr.f32.gmra.mrb[0].mxu0 %v6283
  %v6369 = vpop.f32.mrb[0].mxu0
  %v6370 = vadd.f32 %v6271, %v6369
  %v6371 = vpop.f32.mrb[0].mxu0
  %6372 = vmatprep.mubr.f32.mxu0 0.0
  %6373 = vmatmul.mubr.f32.gmra.mrb[0].mxu0 %v6286
  %v6374 = vpop.f32.mrb[0].mxu0
  %v6375 = vadd.f32 %v6271, %v6374
  %v6376 = vpop.f32.mrb[0].mxu0
  %6377 = vdwg.mxu0
  %v6378 = vadd.f32 %v6017, %v6355
  %v6379 = vadd.f32 %v6018, %v6360
  %v6380 = vadd.f32 %v6019, %v6365
  %v6381 = vadd.f32 %v6020, %v6370
  %v6382 = vadd.f32 %v6021, %v6375
  %s6383 = scalar_lea.vmem %s22, 40
  %6384 = vst.msk [vmem:[%s6383] sm:$0xff] %vm198, %v6378
  %6385 = vst.msk [vmem:[%s6383 + $0x8] sm:$0xff] %vm198, %v6379
  %6386 = vst.msk [vmem:[%s6383 + $0x10] sm:$0xff] %vm198, %v6380
  %6387 = vst.msk [vmem:[%s6383 + $0x18] sm:$0xff] %vm198, %v6381
  %6388 = vst.msk [vmem:[%s6383 + $0x20] sm:$0x3] %vm408, %v6382
  %s6389 = scalar_lea.vmem %s23, 40
  %6390 = vst.msk [vmem:[%s6389] sm:$0xff] %vm198, %v4927
  %6391 = vst.msk [vmem:[%s6389 + $0x8] sm:$0xff] %vm198, %v4928
  %6392 = vst.msk [vmem:[%s6389 + $0x10] sm:$0xff] %vm198, %v4929
  %6393 = vst.msk [vmem:[%s6389 + $0x18] sm:$0xff] %vm198, %v4930
  %6394 = vst.msk [vmem:[%s6389 + $0x20] sm:$0x3] %vm408, %v4931
  // Predicated region
  $region90: #{anomaly_vit_forward.1} parent=0 // pred_check
    _
  $region91: #{anomaly_vit_forward.1} parent=0 // pred_check_branch
    %6396 = sbr.rel (0) target = $region93
  $region92: #{anomaly_vit_forward.1} parent=0 // pred_region
    _
  $region93: #{anomaly_vit_forward.1} parent=0 // pred_fallthru
    _
  // Predicated region
  $region94: #{anomaly_vit_forward.1} parent=0 // pred_check
    _
  $region95: #{anomaly_vit_forward.1} parent=0 // pred_check_branch
    %6398 = sbr.rel (0) target = $region97
  $region96: #{anomaly_vit_forward.1} parent=0 // pred_region
    _
  $region97: #{anomaly_vit_forward.1} parent=0 // pred_fallthru
    _
  // Predicated region
  $region98: #{anomaly_vit_forward.1} parent=0 // pred_check
    _
  $region99: #{anomaly_vit_forward.1} parent=0 // pred_check_branch
    %6400 = sbr.rel (0) target = $region101
  $region100: #{anomaly_vit_forward.1} parent=0 // pred_region
    _
  $region101: #{anomaly_vit_forward.1} parent=0 // pred_fallthru
    _
  // Predicated region
  $region102: #{anomaly_vit_forward.1} parent=0 // pred_check
    _
  $region103: #{anomaly_vit_forward.1} parent=0 // pred_check_branch
    %6402 = sbr.rel (0) target = $region105
  $region104: #{anomaly_vit_forward.1} parent=0 // pred_region
    _
  $region105: #{anomaly_vit_forward.1} parent=0 // pred_fallthru
    _

</llo_original>
